<compile_context>
chip_gen: v5e
topology: v5e:2x2
jax: 0.10.0
libtpu: 0.0.40
codegen_flags: <defaults>
</compile_context>

<pallas_src>
import jax
import jax.numpy as jnp
from jax.experimental import pallas as pl
from jax.experimental.pallas import tpu as pltpu

EPS = 1e-5
BF16 = jnp.bfloat16

# FFCBlock(16, 16, 16, ratio_in=(0.5, 0.5), ratio_out=(0.5, 0.5), stride=1, lfu=True)
N, H, W = 2, 16, 16
CL = CG = 8                       # local / global channels (0.5 * 16)
CH = CG // 2                      # SpectralTransform hidden channels (out_cg // 2)
M = N * H * W                     # 512 flattened (n, h, w) positions (lane axis)
WF = W // 2 + 1                   # rfft2 width
S = N * H * WF                    # 288 spectral positions (full FourierUnit)
SP = ((S + 127) // 128) * 128     # 384: lane-padded so real/imag halves stay aligned
H2, W2 = H // 2, W // 2
WF2 = W2 // 2 + 1
S2 = N * H2 * WF2                 # 80 spectral positions (local FourierUnit)
S2P = ((S2 + 127) // 128) * 128   # 128

_VMEM = pl.BlockSpec(memory_space=pltpu.MemorySpace.VMEM)


def _bn_relu(y, count):
    """BatchNorm2d (training batch stats, identity affine) + ReLU, channel rows.

    Stats are one f32 lane reduction over the sublane-stacked [y ; y*y] tensor;
    `count` = number of *valid* lanes (padded spectral lanes are exactly zero,
    so the sums are unaffected and only the divisor matters)."""
    c = y.shape[0]
    stacked = jnp.concatenate([y, y * y], axis=0)
    s = jnp.sum(stacked, axis=1, keepdims=True) * (1.0 / count)
    mu, ms = s[:c], s[c:]
    var = ms - mu * mu
    return jnp.maximum((y - mu) * jax.lax.rsqrt(var + EPS), 0.0)


# ----------------------------------------------------------------------------
# The fused FFCBlock kernel
# ----------------------------------------------------------------------------
def ffc_block_kernel(xl_ref, xg_ref, m3_ref, qmask_ref,
                     kfwd_ref, kinv_ref, lfwd_ref, linv_ref,
                     w1l_ref, w1g_ref, w3_ref,
                     stw1_ref, stw2_ref, wfu_ref, wlfu_ref,
                     ol_ref, og_ref):
    kfwd = kfwd_ref[...]      # (M, 2*SP)   bf16  [Kr | Ki]
    kinv = kinv_ref[...]      # (2*SP, M)   bf16  [IKr ; IKi]
    lfwd = lfwd_ref[...]      # (M, 2*S2P)  bf16  folded LFU forward DFT
    linv = linv_ref[...]      # (2*S2P, M)  bf16  LFU inverse DFT (2x2 tile baked in)
    qmask = qmask_ref[...]    # (4, M)  quadrant 0/1 mask
    m3 = m3_ref[...]          # (9, M)  3x3 border masks

    def fourier_unit(lhs, kf, ki, w_conv, sp, count):
        # forward DFT: ONE bf16 matmul against the lane-concatenated [Kr | Ki]
        z = jnp.dot(lhs.astype(BF16), kf, preferred_element_type=jnp.float32)
        # restack [real ; imag] channels (== torch.cat([x.real, x.imag], dim=1))
        x_conv = jnp.concatenate([z[:, :sp], z[:, sp:]], axis=0)           # (2CH, sp)
        pre = jnp.dot(w_conv, x_conv, preferred_element_type=jnp.float32)  # 1x1 conv
        u = _bn_relu(pre, count)                                           # (2CH, sp)
        # inverse DFT: ONE bf16 matmul of [Ur | Ui] against [IKr ; IKi]
        u_lane = jnp.concatenate([u[:CH], u[CH:]], axis=1)                 # (CH, 2*sp)
        return jnp.dot(u_lane.astype(BF16), ki, preferred_element_type=jnp.float32)

    def spectral_transform(xg_in, k):
        # conv1 (1x1 cg->ch) + BN + ReLU
        y = _bn_relu(jnp.dot(stw1_ref[k], xg_in,
                             preferred_element_type=jnp.float32), M)       # (CH, M)
        # full-resolution FourierUnit
        fu = fourier_unit(y, kfwd, kinv, wfu_ref[k], SP, S)                # (CH, M)
        # local FourierUnit: 2x2 quadrant fold = masked broadcast of channel 0
        # on the LHS, so the forward DFT is a single matmul for all quadrants.
        lf = fourier_unit(qmask * y[0:1, :], lfwd, linv, wlfu_ref[k], S2P, S2)
        # conv2 (1x1 ch->cg) on (y + fu + lf)
        return jnp.dot(stw2_ref[k], y + fu + lf,
                       preferred_element_type=jnp.float32)                 # (CG, M)

    def finish(pre, st):
        # add the SpectralTransform output to the global rows, then one merged
        # BN+ReLU pass over local+global (stats are per-row, so equivalent).
        full = jnp.concatenate([pre[0:CL], pre[CL:CL + CG] + st], axis=0)  # (16, M)
        act = _bn_relu(full, M)
        return act[0:CL], act[CL:CL + CG]

    def convset_1x1(xl_in, xg_in, idx, k):
        # merged [convl2l; convl2g] / [convg2l; 0] weights -> one pre-activation
        pre = (jnp.dot(w1l_ref[idx], xl_in, preferred_element_type=jnp.float32) +
               jnp.dot(w1g_ref[idx], xg_in, preferred_element_type=jnp.float32))
        return finish(pre, spectral_transform(xg_in, k))

    def convset_3x3(xl_in, xg_in, k):
        # 3x3/pad=1 conv as ONE (16,144)x(144,M) matmul: the 9 shifted taps are
        # built with pltpu.roll (XLU) + constant border masks and stacked along
        # the sublane axis (no padded scratch / unaligned lane slices).
        x_cat = jnp.concatenate([xl_in, xg_in], axis=0)                    # (16, M)
        cols = []
        for t in range(9):
            kh, kw = t // 3, t % 3
            off = (kh - 1) * W + (kw - 1)
            if off == 0:
                cols.append(x_cat)
            else:
                cols.append(pltpu.roll(x_cat, shift=(-off) % M, axis=1)
                            * m3[t:t + 1, :])
        col_stack = jnp.concatenate(cols, axis=0)                          # (144, M)
        pre = jnp.dot(w3_ref[...], col_stack, preferred_element_type=jnp.float32)
        return finish(pre, spectral_transform(xg_in, k))

    id_l = xl_ref[...]
    id_g = xg_ref[...]
    a_l, a_g = convset_1x1(id_l, id_g, 0, 0)     # conv1 (1x1)
    b_l, b_g = convset_3x3(a_l, a_g, 1)          # conv2 (3x3, pad 1)
    c_l, c_g = convset_1x1(b_l, b_g, 1, 2)       # conv3 (1x1)
    # identity shortcut + ReLU; lane-dense (8, 512) stores
    ol_ref[...] = jnp.maximum(c_l + id_l, 0.0)
    og_ref[...] = jnp.maximum(c_g + id_g, 0.0)


# ----------------------------------------------------------------------------
# Wrapper: layout plumbing (NCHW <-> channel-major) + single pallas_call
# ----------------------------------------------------------------------------
@jax.jit
def ffc_block(x_l, x_g, params):
    xl_cm = x_l.transpose(1, 0, 2, 3).reshape(CL, M)
    xg_cm = x_g.transpose(1, 0, 2, 3).reshape(CG, M)
    out_l_cm, out_g_cm = pl.pallas_call(
        ffc_block_kernel,
        out_shape=(jax.ShapeDtypeStruct((CL, M), jnp.float32),
                   jax.ShapeDtypeStruct((CG, M), jnp.float32)),
        in_specs=[_VMEM] * 15,
        out_specs=(_VMEM, _VMEM),
        compiler_params=pltpu.CompilerParams(vmem_limit_bytes=8 * 1024 * 1024),
        cost_estimate=pl.CostEstimate(flops=28_000_000, transcendentals=0,
                                      bytes_accessed=2_400_000),
    )(xl_cm, xg_cm,
      params["m3"], params["qmask"],
      params["kfwd"], params["kinv"], params["lfwd"], params["linv"],
      params["w1l"], params["w1g"], params["w3"],
      params["stw1"], params["stw2"], params["wfu"], params["wlfu"])
    out_l = out_l_cm.reshape(CL, N, H, W).transpose(1, 0, 2, 3)
    out_g = out_g_cm.reshape(CG, N, H, W).transpose(1, 0, 2, 3)
    return out_l, out_g


# ----------------------------------------------------------------------------
# Constant (DFT / mask) and parameter construction - runs once, outside the
# forward pass.
# ----------------------------------------------------------------------------
def _blockdiag(a, n):
    r, c = a.shape
    out = jnp.zeros((n * r, n * c), a.dtype)
    for i in range(n):
        out = out.at[i * r:(i + 1) * r, i * c:(i + 1) * c].set(a)
    return out


def _dft_mats(h, w, n):
    """rfft2 / irfft2 (norm='ortho') as real matrices on flattened (n,h,w) lanes."""
    wf = w // 2 + 1
    eye_sp = jnp.eye(h * w, dtype=jnp.float32).reshape(h * w, h, w)
    kf = jnp.fft.rfft2(eye_sp, axes=(1, 2), norm="ortho").reshape(h * w, h * wf)
    eye_fr = jnp.eye(h * wf, dtype=jnp.complex64).reshape(h * wf, h, wf)
    ikr = jnp.fft.irfft2(eye_fr, s=(h, w), axes=(1, 2), norm="ortho").reshape(h * wf, h * w)
    iki = jnp.fft.irfft2(1j * eye_fr, s=(h, w), axes=(1, 2), norm="ortho").reshape(h * wf, h * w)
    return (_blockdiag(jnp.real(kf).astype(jnp.float32), n),
            _blockdiag(jnp.imag(kf).astype(jnp.float32), n),
            _blockdiag(ikr.astype(jnp.float32), n),
            _blockdiag(iki.astype(jnp.float32), n))


def _lane_coords():
    m = jnp.arange(M)
    n_of = m // (H * W)
    h_of = (m // W) % H
    w_of = m % W
    return n_of, h_of, w_of


def _full_fu_mats():
    """Full-resolution FourierUnit DFTs, real/imag fused and lane-padded, bf16."""
    kr, ki, ikr, iki = _dft_mats(H, W, N)          # (512,288) x2, (288,512) x2
    kfwd = jnp.zeros((M, 2 * SP), jnp.float32)
    kfwd = kfwd.at[:, :S].set(kr).at[:, SP:SP + S].set(ki)
    kinv = jnp.zeros((2 * SP, M), jnp.float32)
    kinv = kinv.at[:S, :].set(ikr).at[SP:SP + S, :].set(iki)
    return kfwd.astype(BF16), kinv.astype(BF16)


def _lfu_mats():
    """LFU constants: quadrant fold handled by an LHS mask, folded 8x8 DFT on
    the RHS, 2x2 output tiling folded into the inverse DFT. bf16 matrices."""
    k8r, k8i, ik8r, ik8i = _dft_mats(H2, W2, N)    # (128,80) x2, (80,128) x2
    n_of, h_of, w_of = _lane_coords()
    q_of = (h_of >= H2).astype(jnp.int32) + 2 * (w_of >= W2).astype(jnp.int32)
    f_of = n_of * (H2 * W2) + (h_of % H2) * W2 + (w_of % W2)
    lfwd = jnp.zeros((M, 2 * S2P), jnp.float32)
    lfwd = lfwd.at[:, :S2].set(k8r[f_of, :]).at[:, S2P:S2P + S2].set(k8i[f_of, :])
    # 2x2 spatial tiling of the LFU output folded into the inverse DFT
    r = jnp.arange(N * H2 * W2)
    n1, hp, wp = r // (H2 * W2), (r // W2) % H2, r % W2
    tile = ((n1[:, None] == n_of[None, :]) &
            (hp[:, None] == (h_of % H2)[None, :]) &
            (wp[:, None] == (w_of % W2)[None, :])).astype(jnp.float32)     # (N*64, M)
    linv = jnp.zeros((2 * S2P, M), jnp.float32)
    linv = linv.at[:S2, :].set(ik8r @ tile).at[S2P:S2P + S2, :].set(ik8i @ tile)
    qmask = jnp.stack([(q_of == q).astype(jnp.float32) for q in range(4)])  # (4, M)
    return lfwd.astype(BF16), linv.astype(BF16), qmask


def _conv3_masks():
    _, h_of, w_of = _lane_coords()
    rows = []
    for kh in range(3):
        for kw in range(3):
            hh = h_of + kh - 1
            ww = w_of + kw - 1
            rows.append(((hh >= 0) & (hh < H) & (ww >= 0) & (ww < W)).astype(jnp.float32))
    return jnp.stack(rows)                                                  # (9, M)


def _conv_uniform(key, shape, fan_in):
    bound = 1.0 / jnp.sqrt(jnp.float32(fan_in))
    return jax.random.uniform(key, shape, jnp.float32, -bound, bound)


def make_params(key):
    keys = jax.random.split(key, 8)
    kit = iter(keys)

    def merged_1x1(k):
        k1, k2, k3 = jax.random.split(k, 3)
        wl2l = _conv_uniform(k1, (CL, CL), CL)
        wg2l = _conv_uniform(k2, (CL, CG), CG)
        wl2g = _conv_uniform(k3, (CG, CL), CL)
        from_l = jnp.concatenate([wl2l, wl2g], axis=0)                          # (16, 8)
        from_g = jnp.concatenate([wg2l, jnp.zeros((CG, CG), jnp.float32)], 0)   # (16, 8)
        return from_l, from_g

    def merged_3x3(k):
        k1, k2, k3 = jax.random.split(k, 3)
        wl2l = _conv_uniform(k1, (CL, CL, 3, 3), CL * 9)
        wg2l = _conv_uniform(k2, (CL, CG, 3, 3), CG * 9)
        wl2g = _conv_uniform(k3, (CG, CL, 3, 3), CL * 9)
        taps = []
        for kh in range(3):
            for kw in range(3):
                top = jnp.concatenate([wl2l[:, :, kh, kw], wg2l[:, :, kh, kw]], axis=1)
                bot = jnp.concatenate([wl2g[:, :, kh, kw],
                                       jnp.zeros((CG, CG), jnp.float32)], axis=1)
                taps.append(jnp.concatenate([top, bot], axis=0))                # (16, 16)
        return jnp.concatenate(taps, axis=1)                                    # (16, 144)

    def spectral(k):
        k1, k2, k3, k4 = jax.random.split(k, 4)
        w1 = _conv_uniform(k1, (CH, CG), CG)                 # conv1: cg -> ch
        fu = _conv_uniform(k2, (2 * CH, 2 * CH), 2 * CH)     # FourierUnit conv ([re;im] order)
        lfu = _conv_uniform(k3, (2 * CH, 2 * CH), 2 * CH)    # local FourierUnit conv
        w2 = _conv_uniform(k4, (CG, CH), CH)                 # conv2: ch -> cg
        return w1, fu, lfu, w2

    w1l_list, w1g_list, stw1, stw2, wfu, wlfu = [], [], [], [], [], []
    w3 = None
    for cs in range(3):
        if cs == 1:
            w3 = merged_3x3(next(kit))
        else:
            fl, fg = merged_1x1(next(kit))
            w1l_list.append(fl)
            w1g_list.append(fg)
        s1, f, lf, s2 = spectral(next(kit))
        stw1.append(s1)
        stw2.append(s2)
        wfu.append(f)
        wlfu.append(lf)

    kfwd, kinv = _full_fu_mats()
    lfwd, linv, qmask = _lfu_mats()

    return dict(
        m3=_conv3_masks(), qmask=qmask,
        kfwd=kfwd, kinv=kinv, lfwd=lfwd, linv=linv,
        w1l=jnp.stack(w1l_list), w1g=jnp.stack(w1g_list), w3=w3,
        stw1=jnp.stack(stw1), stw2=jnp.stack(stw2),
        wfu=jnp.stack(wfu), wlfu=jnp.stack(wlfu),
    )


if __name__ == "__main__":
    key = jax.random.PRNGKey(0)
    kx, kp = jax.random.split(key)
    kxl, kxg = jax.random.split(kx)

    # NCHW like the PyTorch reference: x = (x_local, x_global)
    x_l = jax.random.normal(kxl, (N, CL, H, W), jnp.float32)
    x_g = jax.random.normal(kxg, (N, CG, H, W), jnp.float32)

    params = make_params(kp)

    out_l, out_g = ffc_block(x_l, x_g, params)
    jax.block_until_ready((out_l, out_g))

    assert out_l.shape == (N, CL, H, W) and out_g.shape == (N, CG, H, W)
    assert bool(jnp.all(jnp.isfinite(out_l))) and bool(jnp.all(jnp.isfinite(out_g)))
    print("KERNEL_OK")
</pallas_src>

<mosaic_0001>
module attributes {stable_mosaic.version = 11 : i64} {
  func.func @ffc_block_kernel(%arg0: memref<8x512xf32, #tpu.memory_space<vmem>>, %arg1: memref<8x512xf32, #tpu.memory_space<vmem>>, %arg2: memref<9x512xf32, #tpu.memory_space<vmem>>, %arg3: memref<4x512xf32, #tpu.memory_space<vmem>>, %arg4: memref<512x768xbf16, #tpu.memory_space<vmem>>, %arg5: memref<768x512xbf16, #tpu.memory_space<vmem>>, %arg6: memref<512x256xbf16, #tpu.memory_space<vmem>>, %arg7: memref<256x512xbf16, #tpu.memory_space<vmem>>, %arg8: memref<2x16x8xf32, #tpu.memory_space<vmem>>, %arg9: memref<2x16x8xf32, #tpu.memory_space<vmem>>, %arg10: memref<16x144xf32, #tpu.memory_space<vmem>>, %arg11: memref<3x4x8xf32, #tpu.memory_space<vmem>>, %arg12: memref<3x8x4xf32, #tpu.memory_space<vmem>>, %arg13: memref<3x8x8xf32, #tpu.memory_space<vmem>>, %arg14: memref<3x8x8xf32, #tpu.memory_space<vmem>>, %arg15: memref<8x512xf32, #tpu.memory_space<vmem>>, %arg16: memref<8x512xf32, #tpu.memory_space<vmem>>) attributes {dimension_semantics = [], scalar_prefetch = 0 : i64, scratch_operands = 0 : i64, tpu.core_type = #tpu.core_type<tc>} {
    %c0 = arith.constant 0 : index
    %c0_0 = arith.constant 0 : index
    %0 = vector.load %arg4[%c0, %c0_0] : memref<512x768xbf16, #tpu.memory_space<vmem>>, vector<512x768xbf16>
    %c0_1 = arith.constant 0 : index
    %c0_2 = arith.constant 0 : index
    %1 = vector.load %arg5[%c0_1, %c0_2] : memref<768x512xbf16, #tpu.memory_space<vmem>>, vector<768x512xbf16>
    %c0_3 = arith.constant 0 : index
    %c0_4 = arith.constant 0 : index
    %2 = vector.load %arg6[%c0_3, %c0_4] : memref<512x256xbf16, #tpu.memory_space<vmem>>, vector<512x256xbf16>
    %c0_5 = arith.constant 0 : index
    %c0_6 = arith.constant 0 : index
    %3 = vector.load %arg7[%c0_5, %c0_6] : memref<256x512xbf16, #tpu.memory_space<vmem>>, vector<256x512xbf16>
    %c0_7 = arith.constant 0 : index
    %c0_8 = arith.constant 0 : index
    %4 = vector.load %arg3[%c0_7, %c0_8] : memref<4x512xf32, #tpu.memory_space<vmem>>, vector<4x512xf32>
    %c0_9 = arith.constant 0 : index
    %c0_10 = arith.constant 0 : index
    %5 = vector.load %arg2[%c0_9, %c0_10] : memref<9x512xf32, #tpu.memory_space<vmem>>, vector<9x512xf32>
    %c0_11 = arith.constant 0 : index
    %c0_12 = arith.constant 0 : index
    %6 = vector.load %arg0[%c0_11, %c0_12] : memref<8x512xf32, #tpu.memory_space<vmem>>, vector<8x512xf32>
    %c0_13 = arith.constant 0 : index
    %c0_14 = arith.constant 0 : index
    %7 = vector.load %arg1[%c0_13, %c0_14] : memref<8x512xf32, #tpu.memory_space<vmem>>, vector<8x512xf32>
    %c0_15 = arith.constant 0 : index
    %c0_16 = arith.constant 0 : index
    %c0_17 = arith.constant 0 : index
    %8 = vector.load %arg8[%c0_15, %c0_16, %c0_17] : memref<2x16x8xf32, #tpu.memory_space<vmem>>, vector<1x16x8xf32>
    %9 = vector.shape_cast %8 : vector<1x16x8xf32> to vector<16x8xf32>
    %cst = arith.constant dense<0.000000e+00> : vector<16x512xf32>
    %10 = tpu.matmul %9, %6, %cst {dimension_numbers = #tpu.dot_dimension_numbers<[1], [0], [0], [1], [0, 0, 1, 1], [], []>} : vector<16x8xf32>, vector<8x512xf32>, vector<16x512xf32> -> vector<16x512xf32>
    %c0_18 = arith.constant 0 : index
    %c0_19 = arith.constant 0 : index
    %c0_20 = arith.constant 0 : index
    %11 = vector.load %arg9[%c0_18, %c0_19, %c0_20] : memref<2x16x8xf32, #tpu.memory_space<vmem>>, vector<1x16x8xf32>
    %12 = vector.shape_cast %11 : vector<1x16x8xf32> to vector<16x8xf32>
    %cst_21 = arith.constant dense<0.000000e+00> : vector<16x512xf32>
    %13 = tpu.matmul %12, %7, %cst_21 {dimension_numbers = #tpu.dot_dimension_numbers<[1], [0], [0], [1], [0, 0, 1, 1], [], []>} : vector<16x8xf32>, vector<8x512xf32>, vector<16x512xf32> -> vector<16x512xf32>
    %14 = arith.addf %10, %13 : vector<16x512xf32>
    %c0_22 = arith.constant 0 : index
    %c0_23 = arith.constant 0 : index
    %c0_24 = arith.constant 0 : index
    %15 = vector.load %arg11[%c0_22, %c0_23, %c0_24] : memref<3x4x8xf32, #tpu.memory_space<vmem>>, vector<1x4x8xf32>
    %16 = vector.shape_cast %15 : vector<1x4x8xf32> to vector<4x8xf32>
    %cst_25 = arith.constant dense<0.000000e+00> : vector<4x512xf32>
    %17 = tpu.matmul %16, %7, %cst_25 {dimension_numbers = #tpu.dot_dimension_numbers<[1], [0], [0], [1], [0, 0, 1, 1], [], []>} : vector<4x8xf32>, vector<8x512xf32>, vector<4x512xf32> -> vector<4x512xf32>
    %18 = arith.mulf %17, %17 : vector<4x512xf32>
    %19 = tpu.concatenate %17, %18 in 0 : vector<4x512xf32>, vector<4x512xf32> -> vector<8x512xf32>
    %cst_26 = arith.constant dense<0.000000e+00> : vector<8xf32>
    %20 = vector.multi_reduction <add>, %19, %cst_26 [1] : vector<8x512xf32> to vector<8xf32>
    %21 = vector.shape_cast %20 : vector<8xf32> to vector<8x1xf32>
    %cst_27 = arith.constant 0.001953125 : f32
    %22 = vector.broadcast %cst_27 : f32 to vector<8x1xf32>
    %23 = arith.mulf %21, %22 : vector<8x1xf32>
    %24 = vector.extract_strided_slice %23 {offsets = [0, 0], sizes = [4, 1], strides = [1, 1]} : vector<8x1xf32> to vector<4x1xf32>
    %25 = vector.extract_strided_slice %23 {offsets = [4, 0], sizes = [4, 1], strides = [1, 1]} : vector<8x1xf32> to vector<4x1xf32>
    %26 = arith.mulf %24, %24 : vector<4x1xf32>
    %27 = arith.subf %25, %26 : vector<4x1xf32>
    %28 = vector.broadcast %24 : vector<4x1xf32> to vector<4x512xf32>
    %29 = arith.subf %17, %28 : vector<4x512xf32>
    %cst_28 = arith.constant 9.99999974E-6 : f32
    %30 = vector.broadcast %cst_28 : f32 to vector<4x1xf32>
    %31 = arith.addf %27, %30 : vector<4x1xf32>
    %32 = math.rsqrt %31 : vector<4x1xf32>
    %33 = vector.broadcast %32 : vector<4x1xf32> to vector<4x512xf32>
    %34 = arith.mulf %29, %33 : vector<4x512xf32>
    %cst_29 = arith.constant 0.000000e+00 : f32
    %35 = vector.broadcast %cst_29 : f32 to vector<4x512xf32>
    %36 = arith.maximumf %34, %35 : vector<4x512xf32>
    %c0_30 = arith.constant 0 : index
    %c0_31 = arith.constant 0 : index
    %c0_32 = arith.constant 0 : index
    %37 = vector.load %arg13[%c0_30, %c0_31, %c0_32] : memref<3x8x8xf32, #tpu.memory_space<vmem>>, vector<1x8x8xf32>
    %38 = vector.shape_cast %37 : vector<1x8x8xf32> to vector<8x8xf32>
    %39 = arith.truncf %36 : vector<4x512xf32> to vector<4x512xbf16>
    %cst_33 = arith.constant dense<0.000000e+00> : vector<4x768xf32>
    %40 = tpu.matmul %39, %0, %cst_33 {dimension_numbers = #tpu.dot_dimension_numbers<[1], [0], [0], [1], [0, 0, 1, 1], [], []>} : vector<4x512xbf16>, vector<512x768xbf16>, vector<4x768xf32> -> vector<4x768xf32>
    %41 = vector.extract_strided_slice %40 {offsets = [0, 0], sizes = [4, 384], strides = [1, 1]} : vector<4x768xf32> to vector<4x384xf32>
    %42 = vector.extract_strided_slice %40 {offsets = [0, 384], sizes = [4, 384], strides = [1, 1]} : vector<4x768xf32> to vector<4x384xf32>
    %43 = tpu.concatenate %41, %42 in 0 : vector<4x384xf32>, vector<4x384xf32> -> vector<8x384xf32>
    %cst_34 = arith.constant dense<0.000000e+00> : vector<8x384xf32>
    %44 = tpu.matmul %38, %43, %cst_34 {dimension_numbers = #tpu.dot_dimension_numbers<[1], [0], [0], [1], [0, 0, 1, 1], [], []>} : vector<8x8xf32>, vector<8x384xf32>, vector<8x384xf32> -> vector<8x384xf32>
    %45 = arith.mulf %44, %44 : vector<8x384xf32>
    %46 = tpu.concatenate %44, %45 in 0 : vector<8x384xf32>, vector<8x384xf32> -> vector<16x384xf32>
    %cst_35 = arith.constant dense<0.000000e+00> : vector<16xf32>
    %47 = vector.multi_reduction <add>, %46, %cst_35 [1] : vector<16x384xf32> to vector<16xf32>
    %48 = vector.shape_cast %47 : vector<16xf32> to vector<16x1xf32>
    %cst_36 = arith.constant 0.00347222225 : f32
    %49 = vector.broadcast %cst_36 : f32 to vector<16x1xf32>
    %50 = arith.mulf %48, %49 : vector<16x1xf32>
    %51 = vector.extract_strided_slice %50 {offsets = [0, 0], sizes = [8, 1], strides = [1, 1]} : vector<16x1xf32> to vector<8x1xf32>
    %52 = vector.extract_strided_slice %50 {offsets = [8, 0], sizes = [8, 1], strides = [1, 1]} : vector<16x1xf32> to vector<8x1xf32>
    %53 = arith.mulf %51, %51 : vector<8x1xf32>
    %54 = arith.subf %52, %53 : vector<8x1xf32>
    %55 = vector.broadcast %51 : vector<8x1xf32> to vector<8x384xf32>
    %56 = arith.subf %44, %55 : vector<8x384xf32>
    %cst_37 = arith.constant 9.99999974E-6 : f32
    %57 = vector.broadcast %cst_37 : f32 to vector<8x1xf32>
    %58 = arith.addf %54, %57 : vector<8x1xf32>
    %59 = math.rsqrt %58 : vector<8x1xf32>
    %60 = vector.broadcast %59 : vector<8x1xf32> to vector<8x384xf32>
    %61 = arith.mulf %56, %60 : vector<8x384xf32>
    %cst_38 = arith.constant 0.000000e+00 : f32
    %62 = vector.broadcast %cst_38 : f32 to vector<8x384xf32>
    %63 = arith.maximumf %61, %62 : vector<8x384xf32>
    %64 = vector.extract_strided_slice %63 {offsets = [0, 0], sizes = [4, 384], strides = [1, 1]} : vector<8x384xf32> to vector<4x384xf32>
    %65 = vector.extract_strided_slice %63 {offsets = [4, 0], sizes = [4, 384], strides = [1, 1]} : vector<8x384xf32> to vector<4x384xf32>
    %66 = tpu.concatenate %64, %65 in 1 : vector<4x384xf32>, vector<4x384xf32> -> vector<4x768xf32>
    %67 = arith.truncf %66 : vector<4x768xf32> to vector<4x768xbf16>
    %cst_39 = arith.constant dense<0.000000e+00> : vector<4x512xf32>
    %68 = tpu.matmul %67, %1, %cst_39 {dimension_numbers = #tpu.dot_dimension_numbers<[1], [0], [0], [1], [0, 0, 1, 1], [], []>} : vector<4x768xbf16>, vector<768x512xbf16>, vector<4x512xf32> -> vector<4x512xf32>
    %69 = vector.extract_strided_slice %36 {offsets = [0, 0], sizes = [1, 512], strides = [1, 1]} : vector<4x512xf32> to vector<1x512xf32>
    %70 = vector.broadcast %69 : vector<1x512xf32> to vector<4x512xf32>
    %71 = arith.mulf %4, %70 : vector<4x512xf32>
    %c0_40 = arith.constant 0 : index
    %c0_41 = arith.constant 0 : index
    %c0_42 = arith.constant 0 : index
    %72 = vector.load %arg14[%c0_40, %c0_41, %c0_42] : memref<3x8x8xf32, #tpu.memory_space<vmem>>, vector<1x8x8xf32>
    %73 = vector.shape_cast %72 : vector<1x8x8xf32> to vector<8x8xf32>
    %74 = arith.truncf %71 : vector<4x512xf32> to vector<4x512xbf16>
    %cst_43 = arith.constant dense<0.000000e+00> : vector<4x256xf32>
    %75 = tpu.matmul %74, %2, %cst_43 {dimension_numbers = #tpu.dot_dimension_numbers<[1], [0], [0], [1], [0, 0, 1, 1], [], []>} : vector<4x512xbf16>, vector<512x256xbf16>, vector<4x256xf32> -> vector<4x256xf32>
    %76 = vector.extract_strided_slice %75 {offsets = [0, 0], sizes = [4, 128], strides = [1, 1]} : vector<4x256xf32> to vector<4x128xf32>
    %77 = vector.extract_strided_slice %75 {offsets = [0, 128], sizes = [4, 128], strides = [1, 1]} : vector<4x256xf32> to vector<4x128xf32>
    %78 = tpu.concatenate %76, %77 in 0 : vector<4x128xf32>, vector<4x128xf32> -> vector<8x128xf32>
    %cst_44 = arith.constant dense<0.000000e+00> : vector<8x128xf32>
    %79 = tpu.matmul %73, %78, %cst_44 {dimension_numbers = #tpu.dot_dimension_numbers<[1], [0], [0], [1], [0, 0, 1, 1], [], []>} : vector<8x8xf32>, vector<8x128xf32>, vector<8x128xf32> -> vector<8x128xf32>
    %80 = arith.mulf %79, %79 : vector<8x128xf32>
    %81 = tpu.concatenate %79, %80 in 0 : vector<8x128xf32>, vector<8x128xf32> -> vector<16x128xf32>
    %cst_45 = arith.constant dense<0.000000e+00> : vector<16xf32>
    %82 = vector.multi_reduction <add>, %81, %cst_45 [1] : vector<16x128xf32> to vector<16xf32>
    %83 = vector.shape_cast %82 : vector<16xf32> to vector<16x1xf32>
    %cst_46 = arith.constant 1.250000e-02 : f32
    %84 = vector.broadcast %cst_46 : f32 to vector<16x1xf32>
    %85 = arith.mulf %83, %84 : vector<16x1xf32>
    %86 = vector.extract_strided_slice %85 {offsets = [0, 0], sizes = [8, 1], strides = [1, 1]} : vector<16x1xf32> to vector<8x1xf32>
    %87 = vector.extract_strided_slice %85 {offsets = [8, 0], sizes = [8, 1], strides = [1, 1]} : vector<16x1xf32> to vector<8x1xf32>
    %88 = arith.mulf %86, %86 : vector<8x1xf32>
    %89 = arith.subf %87, %88 : vector<8x1xf32>
    %90 = vector.broadcast %86 : vector<8x1xf32> to vector<8x128xf32>
    %91 = arith.subf %79, %90 : vector<8x128xf32>
    %cst_47 = arith.constant 9.99999974E-6 : f32
    %92 = vector.broadcast %cst_47 : f32 to vector<8x1xf32>
    %93 = arith.addf %89, %92 : vector<8x1xf32>
    %94 = math.rsqrt %93 : vector<8x1xf32>
    %95 = vector.broadcast %94 : vector<8x1xf32> to vector<8x128xf32>
    %96 = arith.mulf %91, %95 : vector<8x128xf32>
    %cst_48 = arith.constant 0.000000e+00 : f32
    %97 = vector.broadcast %cst_48 : f32 to vector<8x128xf32>
    %98 = arith.maximumf %96, %97 : vector<8x128xf32>
    %99 = vector.extract_strided_slice %98 {offsets = [0, 0], sizes = [4, 128], strides = [1, 1]} : vector<8x128xf32> to vector<4x128xf32>
    %100 = vector.extract_strided_slice %98 {offsets = [4, 0], sizes = [4, 128], strides = [1, 1]} : vector<8x128xf32> to vector<4x128xf32>
    %101 = tpu.concatenate %99, %100 in 1 : vector<4x128xf32>, vector<4x128xf32> -> vector<4x256xf32>
    %102 = arith.truncf %101 : vector<4x256xf32> to vector<4x256xbf16>
    %cst_49 = arith.constant dense<0.000000e+00> : vector<4x512xf32>
    %103 = tpu.matmul %102, %3, %cst_49 {dimension_numbers = #tpu.dot_dimension_numbers<[1], [0], [0], [1], [0, 0, 1, 1], [], []>} : vector<4x256xbf16>, vector<256x512xbf16>, vector<4x512xf32> -> vector<4x512xf32>
    %c0_50 = arith.constant 0 : index
    %c0_51 = arith.constant 0 : index
    %c0_52 = arith.constant 0 : index
    %104 = vector.load %arg12[%c0_50, %c0_51, %c0_52] : memref<3x8x4xf32, #tpu.memory_space<vmem>>, vector<1x8x4xf32>
    %105 = vector.shape_cast %104 : vector<1x8x4xf32> to vector<8x4xf32>
    %106 = arith.addf %36, %68 : vector<4x512xf32>
    %107 = arith.addf %106, %103 : vector<4x512xf32>
    %cst_53 = arith.constant dense<0.000000e+00> : vector<8x512xf32>
    %108 = tpu.matmul %105, %107, %cst_53 {dimension_numbers = #tpu.dot_dimension_numbers<[1], [0], [0], [1], [0, 0, 1, 1], [], []>} : vector<8x4xf32>, vector<4x512xf32>, vector<8x512xf32> -> vector<8x512xf32>
    %109 = vector.extract_strided_slice %14 {offsets = [0, 0], sizes = [8, 512], strides = [1, 1]} : vector<16x512xf32> to vector<8x512xf32>
    %110 = vector.extract_strided_slice %14 {offsets = [8, 0], sizes = [8, 512], strides = [1, 1]} : vector<16x512xf32> to vector<8x512xf32>
    %111 = arith.addf %110, %108 : vector<8x512xf32>
    %112 = tpu.concatenate %109, %111 in 0 : vector<8x512xf32>, vector<8x512xf32> -> vector<16x512xf32>
    %113 = arith.mulf %112, %112 : vector<16x512xf32>
    %114 = tpu.concatenate %112, %113 in 0 : vector<16x512xf32>, vector<16x512xf32> -> vector<32x512xf32>
    %cst_54 = arith.constant dense<0.000000e+00> : vector<32xf32>
    %115 = vector.multi_reduction <add>, %114, %cst_54 [1] : vector<32x512xf32> to vector<32xf32>
    %116 = vector.shape_cast %115 : vector<32xf32> to vector<32x1xf32>
    %cst_55 = arith.constant 0.001953125 : f32
    %117 = vector.broadcast %cst_55 : f32 to vector<32x1xf32>
    %118 = arith.mulf %116, %117 : vector<32x1xf32>
    %119 = vector.extract_strided_slice %118 {offsets = [0, 0], sizes = [16, 1], strides = [1, 1]} : vector<32x1xf32> to vector<16x1xf32>
    %120 = vector.extract_strided_slice %118 {offsets = [16, 0], sizes = [16, 1], strides = [1, 1]} : vector<32x1xf32> to vector<16x1xf32>
    %121 = arith.mulf %119, %119 : vector<16x1xf32>
    %122 = arith.subf %120, %121 : vector<16x1xf32>
    %123 = vector.broadcast %119 : vector<16x1xf32> to vector<16x512xf32>
    %124 = arith.subf %112, %123 : vector<16x512xf32>
    %cst_56 = arith.constant 9.99999974E-6 : f32
    %125 = vector.broadcast %cst_56 : f32 to vector<16x1xf32>
    %126 = arith.addf %122, %125 : vector<16x1xf32>
    %127 = math.rsqrt %126 : vector<16x1xf32>
    %128 = vector.broadcast %127 : vector<16x1xf32> to vector<16x512xf32>
    %129 = arith.mulf %124, %128 : vector<16x512xf32>
    %cst_57 = arith.constant 0.000000e+00 : f32
    %130 = vector.broadcast %cst_57 : f32 to vector<16x512xf32>
    %131 = arith.maximumf %129, %130 : vector<16x512xf32>
    %132 = vector.extract_strided_slice %131 {offsets = [0, 0], sizes = [8, 512], strides = [1, 1]} : vector<16x512xf32> to vector<8x512xf32>
    %133 = vector.extract_strided_slice %131 {offsets = [8, 0], sizes = [8, 512], strides = [1, 1]} : vector<16x512xf32> to vector<8x512xf32>
    %134 = tpu.concatenate %132, %133 in 0 : vector<8x512xf32>, vector<8x512xf32> -> vector<16x512xf32>
    %c17_i32 = arith.constant 17 : i32
    %135 = tpu.dynamic_rotate %134 by %c17_i32 dim 1 : vector<16x512xf32>, i32 -> vector<16x512xf32>
    %136 = vector.extract_strided_slice %5 {offsets = [0, 0], sizes = [1, 512], strides = [1, 1]} : vector<9x512xf32> to vector<1x512xf32>
    %137 = vector.broadcast %136 : vector<1x512xf32> to vector<16x512xf32>
    %138 = arith.mulf %135, %137 : vector<16x512xf32>
    %c16_i32 = arith.constant 16 : i32
    %139 = tpu.dynamic_rotate %134 by %c16_i32 dim 1 : vector<16x512xf32>, i32 -> vector<16x512xf32>
    %140 = vector.extract_strided_slice %5 {offsets = [1, 0], sizes = [1, 512], strides = [1, 1]} : vector<9x512xf32> to vector<1x512xf32>
    %141 = vector.broadcast %140 : vector<1x512xf32> to vector<16x512xf32>
    %142 = arith.mulf %139, %141 : vector<16x512xf32>
    %c15_i32 = arith.constant 15 : i32
    %143 = tpu.dynamic_rotate %134 by %c15_i32 dim 1 : vector<16x512xf32>, i32 -> vector<16x512xf32>
    %144 = vector.extract_strided_slice %5 {offsets = [2, 0], sizes = [1, 512], strides = [1, 1]} : vector<9x512xf32> to vector<1x512xf32>
    %145 = vector.broadcast %144 : vector<1x512xf32> to vector<16x512xf32>
    %146 = arith.mulf %143, %145 : vector<16x512xf32>
    %c1_i32 = arith.constant 1 : i32
    %147 = tpu.dynamic_rotate %134 by %c1_i32 dim 1 : vector<16x512xf32>, i32 -> vector<16x512xf32>
    %148 = vector.extract_strided_slice %5 {offsets = [3, 0], sizes = [1, 512], strides = [1, 1]} : vector<9x512xf32> to vector<1x512xf32>
    %149 = vector.broadcast %148 : vector<1x512xf32> to vector<16x512xf32>
    %150 = arith.mulf %147, %149 : vector<16x512xf32>
    %c511_i32 = arith.constant 511 : i32
    %151 = tpu.dynamic_rotate %134 by %c511_i32 dim 1 : vector<16x512xf32>, i32 -> vector<16x512xf32>
    %152 = vector.extract_strided_slice %5 {offsets = [5, 0], sizes = [1, 512], strides = [1, 1]} : vector<9x512xf32> to vector<1x512xf32>
    %153 = vector.broadcast %152 : vector<1x512xf32> to vector<16x512xf32>
    %154 = arith.mulf %151, %153 : vector<16x512xf32>
    %c497_i32 = arith.constant 497 : i32
    %155 = tpu.dynamic_rotate %134 by %c497_i32 dim 1 : vector<16x512xf32>, i32 -> vector<16x512xf32>
    %156 = vector.extract_strided_slice %5 {offsets = [6, 0], sizes = [1, 512], strides = [1, 1]} : vector<9x512xf32> to vector<1x512xf32>
    %157 = vector.broadcast %156 : vector<1x512xf32> to vector<16x512xf32>
    %158 = arith.mulf %155, %157 : vector<16x512xf32>
    %c496_i32 = arith.constant 496 : i32
    %159 = tpu.dynamic_rotate %134 by %c496_i32 dim 1 : vector<16x512xf32>, i32 -> vector<16x512xf32>
    %160 = vector.extract_strided_slice %5 {offsets = [7, 0], sizes = [1, 512], strides = [1, 1]} : vector<9x512xf32> to vector<1x512xf32>
    %161 = vector.broadcast %160 : vector<1x512xf32> to vector<16x512xf32>
    %162 = arith.mulf %159, %161 : vector<16x512xf32>
    %c495_i32 = arith.constant 495 : i32
    %163 = tpu.dynamic_rotate %134 by %c495_i32 dim 1 : vector<16x512xf32>, i32 -> vector<16x512xf32>
    %164 = vector.extract_strided_slice %5 {offsets = [8, 0], sizes = [1, 512], strides = [1, 1]} : vector<9x512xf32> to vector<1x512xf32>
    %165 = vector.broadcast %164 : vector<1x512xf32> to vector<16x512xf32>
    %166 = arith.mulf %163, %165 : vector<16x512xf32>
    %167 = tpu.concatenate %138, %142, %146, %150, %134, %154, %158, %162, %166 in 0 : vector<16x512xf32>, vector<16x512xf32>, vector<16x512xf32>, vector<16x512xf32>, vector<16x512xf32>, vector<16x512xf32>, vector<16x512xf32>, vector<16x512xf32>, vector<16x512xf32> -> vector<144x512xf32>
    %c0_58 = arith.constant 0 : index
    %c0_59 = arith.constant 0 : index
    %168 = vector.load %arg10[%c0_58, %c0_59] : memref<16x144xf32, #tpu.memory_space<vmem>>, vector<16x144xf32>
    %cst_60 = arith.constant dense<0.000000e+00> : vector<16x512xf32>
    %169 = tpu.matmul %168, %167, %cst_60 {dimension_numbers = #tpu.dot_dimension_numbers<[1], [0], [0], [1], [0, 0, 1, 1], [], []>} : vector<16x144xf32>, vector<144x512xf32>, vector<16x512xf32> -> vector<16x512xf32>
    %c1 = arith.constant 1 : index
    %c0_61 = arith.constant 0 : index
    %c0_62 = arith.constant 0 : index
    %170 = vector.load %arg11[%c1, %c0_61, %c0_62] : memref<3x4x8xf32, #tpu.memory_space<vmem>>, vector<1x4x8xf32>
    %171 = vector.shape_cast %170 : vector<1x4x8xf32> to vector<4x8xf32>
    %cst_63 = arith.constant dense<0.000000e+00> : vector<4x512xf32>
    %172 = tpu.matmul %171, %133, %cst_63 {dimension_numbers = #tpu.dot_dimension_numbers<[1], [0], [0], [1], [0, 0, 1, 1], [], []>} : vector<4x8xf32>, vector<8x512xf32>, vector<4x512xf32> -> vector<4x512xf32>
    %173 = arith.mulf %172, %172 : vector<4x512xf32>
    %174 = tpu.concatenate %172, %173 in 0 : vector<4x512xf32>, vector<4x512xf32> -> vector<8x512xf32>
    %cst_64 = arith.constant dense<0.000000e+00> : vector<8xf32>
    %175 = vector.multi_reduction <add>, %174, %cst_64 [1] : vector<8x512xf32> to vector<8xf32>
    %176 = vector.shape_cast %175 : vector<8xf32> to vector<8x1xf32>
    %cst_65 = arith.constant 0.001953125 : f32
    %177 = vector.broadcast %cst_65 : f32 to vector<8x1xf32>
    %178 = arith.mulf %176, %177 : vector<8x1xf32>
    %179 = vector.extract_strided_slice %178 {offsets = [0, 0], sizes = [4, 1], strides = [1, 1]} : vector<8x1xf32> to vector<4x1xf32>
    %180 = vector.extract_strided_slice %178 {offsets = [4, 0], sizes = [4, 1], strides = [1, 1]} : vector<8x1xf32> to vector<4x1xf32>
    %181 = arith.mulf %179, %179 : vector<4x1xf32>
    %182 = arith.subf %180, %181 : vector<4x1xf32>
    %183 = vector.broadcast %179 : vector<4x1xf32> to vector<4x512xf32>
    %184 = arith.subf %172, %183 : vector<4x512xf32>
    %cst_66 = arith.constant 9.99999974E-6 : f32
    %185 = vector.broadcast %cst_66 : f32 to vector<4x1xf32>
    %186 = arith.addf %182, %185 : vector<4x1xf32>
    %187 = math.rsqrt %186 : vector<4x1xf32>
    %188 = vector.broadcast %187 : vector<4x1xf32> to vector<4x512xf32>
    %189 = arith.mulf %184, %188 : vector<4x512xf32>
    %cst_67 = arith.constant 0.000000e+00 : f32
    %190 = vector.broadcast %cst_67 : f32 to vector<4x512xf32>
    %191 = arith.maximumf %189, %190 : vector<4x512xf32>
    %c1_68 = arith.constant 1 : index
    %c0_69 = arith.constant 0 : index
    %c0_70 = arith.constant 0 : index
    %192 = vector.load %arg13[%c1_68, %c0_69, %c0_70] : memref<3x8x8xf32, #tpu.memory_space<vmem>>, vector<1x8x8xf32>
    %193 = vector.shape_cast %192 : vector<1x8x8xf32> to vector<8x8xf32>
    %194 = arith.truncf %191 : vector<4x512xf32> to vector<4x512xbf16>
    %cst_71 = arith.constant dense<0.000000e+00> : vector<4x768xf32>
    %195 = tpu.matmul %194, %0, %cst_71 {dimension_numbers = #tpu.dot_dimension_numbers<[1], [0], [0], [1], [0, 0, 1, 1], [], []>} : vector<4x512xbf16>, vector<512x768xbf16>, vector<4x768xf32> -> vector<4x768xf32>
    %196 = vector.extract_strided_slice %195 {offsets = [0, 0], sizes = [4, 384], strides = [1, 1]} : vector<4x768xf32> to vector<4x384xf32>
    %197 = vector.extract_strided_slice %195 {offsets = [0, 384], sizes = [4, 384], strides = [1, 1]} : vector<4x768xf32> to vector<4x384xf32>
    %198 = tpu.concatenate %196, %197 in 0 : vector<4x384xf32>, vector<4x384xf32> -> vector<8x384xf32>
    %cst_72 = arith.constant dense<0.000000e+00> : vector<8x384xf32>
    %199 = tpu.matmul %193, %198, %cst_72 {dimension_numbers = #tpu.dot_dimension_numbers<[1], [0], [0], [1], [0, 0, 1, 1], [], []>} : vector<8x8xf32>, vector<8x384xf32>, vector<8x384xf32> -> vector<8x384xf32>
    %200 = arith.mulf %199, %199 : vector<8x384xf32>
    %201 = tpu.concatenate %199, %200 in 0 : vector<8x384xf32>, vector<8x384xf32> -> vector<16x384xf32>
    %cst_73 = arith.constant dense<0.000000e+00> : vector<16xf32>
    %202 = vector.multi_reduction <add>, %201, %cst_73 [1] : vector<16x384xf32> to vector<16xf32>
    %203 = vector.shape_cast %202 : vector<16xf32> to vector<16x1xf32>
    %cst_74 = arith.constant 0.00347222225 : f32
    %204 = vector.broadcast %cst_74 : f32 to vector<16x1xf32>
    %205 = arith.mulf %203, %204 : vector<16x1xf32>
    %206 = vector.extract_strided_slice %205 {offsets = [0, 0], sizes = [8, 1], strides = [1, 1]} : vector<16x1xf32> to vector<8x1xf32>
    %207 = vector.extract_strided_slice %205 {offsets = [8, 0], sizes = [8, 1], strides = [1, 1]} : vector<16x1xf32> to vector<8x1xf32>
    %208 = arith.mulf %206, %206 : vector<8x1xf32>
    %209 = arith.subf %207, %208 : vector<8x1xf32>
    %210 = vector.broadcast %206 : vector<8x1xf32> to vector<8x384xf32>
    %211 = arith.subf %199, %210 : vector<8x384xf32>
    %cst_75 = arith.constant 9.99999974E-6 : f32
    %212 = vector.broadcast %cst_75 : f32 to vector<8x1xf32>
    %213 = arith.addf %209, %212 : vector<8x1xf32>
    %214 = math.rsqrt %213 : vector<8x1xf32>
    %215 = vector.broadcast %214 : vector<8x1xf32> to vector<8x384xf32>
    %216 = arith.mulf %211, %215 : vector<8x384xf32>
    %cst_76 = arith.constant 0.000000e+00 : f32
    %217 = vector.broadcast %cst_76 : f32 to vector<8x384xf32>
    %218 = arith.maximumf %216, %217 : vector<8x384xf32>
    %219 = vector.extract_strided_slice %218 {offsets = [0, 0], sizes = [4, 384], strides = [1, 1]} : vector<8x384xf32> to vector<4x384xf32>
    %220 = vector.extract_strided_slice %218 {offsets = [4, 0], sizes = [4, 384], strides = [1, 1]} : vector<8x384xf32> to vector<4x384xf32>
    %221 = tpu.concatenate %219, %220 in 1 : vector<4x384xf32>, vector<4x384xf32> -> vector<4x768xf32>
    %222 = arith.truncf %221 : vector<4x768xf32> to vector<4x768xbf16>
    %cst_77 = arith.constant dense<0.000000e+00> : vector<4x512xf32>
    %223 = tpu.matmul %222, %1, %cst_77 {dimension_numbers = #tpu.dot_dimension_numbers<[1], [0], [0], [1], [0, 0, 1, 1], [], []>} : vector<4x768xbf16>, vector<768x512xbf16>, vector<4x512xf32> -> vector<4x512xf32>
    %224 = vector.extract_strided_slice %191 {offsets = [0, 0], sizes = [1, 512], strides = [1, 1]} : vector<4x512xf32> to vector<1x512xf32>
    %225 = vector.broadcast %224 : vector<1x512xf32> to vector<4x512xf32>
    %226 = arith.mulf %4, %225 : vector<4x512xf32>
    %c1_78 = arith.constant 1 : index
    %c0_79 = arith.constant 0 : index
    %c0_80 = arith.constant 0 : index
    %227 = vector.load %arg14[%c1_78, %c0_79, %c0_80] : memref<3x8x8xf32, #tpu.memory_space<vmem>>, vector<1x8x8xf32>
    %228 = vector.shape_cast %227 : vector<1x8x8xf32> to vector<8x8xf32>
    %229 = arith.truncf %226 : vector<4x512xf32> to vector<4x512xbf16>
    %cst_81 = arith.constant dense<0.000000e+00> : vector<4x256xf32>
    %230 = tpu.matmul %229, %2, %cst_81 {dimension_numbers = #tpu.dot_dimension_numbers<[1], [0], [0], [1], [0, 0, 1, 1], [], []>} : vector<4x512xbf16>, vector<512x256xbf16>, vector<4x256xf32> -> vector<4x256xf32>
    %231 = vector.extract_strided_slice %230 {offsets = [0, 0], sizes = [4, 128], strides = [1, 1]} : vector<4x256xf32> to vector<4x128xf32>
    %232 = vector.extract_strided_slice %230 {offsets = [0, 128], sizes = [4, 128], strides = [1, 1]} : vector<4x256xf32> to vector<4x128xf32>
    %233 = tpu.concatenate %231, %232 in 0 : vector<4x128xf32>, vector<4x128xf32> -> vector<8x128xf32>
    %cst_82 = arith.constant dense<0.000000e+00> : vector<8x128xf32>
    %234 = tpu.matmul %228, %233, %cst_82 {dimension_numbers = #tpu.dot_dimension_numbers<[1], [0], [0], [1], [0, 0, 1, 1], [], []>} : vector<8x8xf32>, vector<8x128xf32>, vector<8x128xf32> -> vector<8x128xf32>
    %235 = arith.mulf %234, %234 : vector<8x128xf32>
    %236 = tpu.concatenate %234, %235 in 0 : vector<8x128xf32>, vector<8x128xf32> -> vector<16x128xf32>
    %cst_83 = arith.constant dense<0.000000e+00> : vector<16xf32>
    %237 = vector.multi_reduction <add>, %236, %cst_83 [1] : vector<16x128xf32> to vector<16xf32>
    %238 = vector.shape_cast %237 : vector<16xf32> to vector<16x1xf32>
    %cst_84 = arith.constant 1.250000e-02 : f32
    %239 = vector.broadcast %cst_84 : f32 to vector<16x1xf32>
    %240 = arith.mulf %238, %239 : vector<16x1xf32>
    %241 = vector.extract_strided_slice %240 {offsets = [0, 0], sizes = [8, 1], strides = [1, 1]} : vector<16x1xf32> to vector<8x1xf32>
    %242 = vector.extract_strided_slice %240 {offsets = [8, 0], sizes = [8, 1], strides = [1, 1]} : vector<16x1xf32> to vector<8x1xf32>
    %243 = arith.mulf %241, %241 : vector<8x1xf32>
    %244 = arith.subf %242, %243 : vector<8x1xf32>
    %245 = vector.broadcast %241 : vector<8x1xf32> to vector<8x128xf32>
    %246 = arith.subf %234, %245 : vector<8x128xf32>
    %cst_85 = arith.constant 9.99999974E-6 : f32
    %247 = vector.broadcast %cst_85 : f32 to vector<8x1xf32>
    %248 = arith.addf %244, %247 : vector<8x1xf32>
    %249 = math.rsqrt %248 : vector<8x1xf32>
    %250 = vector.broadcast %249 : vector<8x1xf32> to vector<8x128xf32>
    %251 = arith.mulf %246, %250 : vector<8x128xf32>
    %cst_86 = arith.constant 0.000000e+00 : f32
    %252 = vector.broadcast %cst_86 : f32 to vector<8x128xf32>
    %253 = arith.maximumf %251, %252 : vector<8x128xf32>
    %254 = vector.extract_strided_slice %253 {offsets = [0, 0], sizes = [4, 128], strides = [1, 1]} : vector<8x128xf32> to vector<4x128xf32>
    %255 = vector.extract_strided_slice %253 {offsets = [4, 0], sizes = [4, 128], strides = [1, 1]} : vector<8x128xf32> to vector<4x128xf32>
    %256 = tpu.concatenate %254, %255 in 1 : vector<4x128xf32>, vector<4x128xf32> -> vector<4x256xf32>
    %257 = arith.truncf %256 : vector<4x256xf32> to vector<4x256xbf16>
    %cst_87 = arith.constant dense<0.000000e+00> : vector<4x512xf32>
    %258 = tpu.matmul %257, %3, %cst_87 {dimension_numbers = #tpu.dot_dimension_numbers<[1], [0], [0], [1], [0, 0, 1, 1], [], []>} : vector<4x256xbf16>, vector<256x512xbf16>, vector<4x512xf32> -> vector<4x512xf32>
    %c1_88 = arith.constant 1 : index
    %c0_89 = arith.constant 0 : index
    %c0_90 = arith.constant 0 : index
    %259 = vector.load %arg12[%c1_88, %c0_89, %c0_90] : memref<3x8x4xf32, #tpu.memory_space<vmem>>, vector<1x8x4xf32>
    %260 = vector.shape_cast %259 : vector<1x8x4xf32> to vector<8x4xf32>
    %261 = arith.addf %191, %223 : vector<4x512xf32>
    %262 = arith.addf %261, %258 : vector<4x512xf32>
    %cst_91 = arith.constant dense<0.000000e+00> : vector<8x512xf32>
    %263 = tpu.matmul %260, %262, %cst_91 {dimension_numbers = #tpu.dot_dimension_numbers<[1], [0], [0], [1], [0, 0, 1, 1], [], []>} : vector<8x4xf32>, vector<4x512xf32>, vector<8x512xf32> -> vector<8x512xf32>
    %264 = vector.extract_strided_slice %169 {offsets = [0, 0], sizes = [8, 512], strides = [1, 1]} : vector<16x512xf32> to vector<8x512xf32>
    %265 = vector.extract_strided_slice %169 {offsets = [8, 0], sizes = [8, 512], strides = [1, 1]} : vector<16x512xf32> to vector<8x512xf32>
    %266 = arith.addf %265, %263 : vector<8x512xf32>
    %267 = tpu.concatenate %264, %266 in 0 : vector<8x512xf32>, vector<8x512xf32> -> vector<16x512xf32>
    %268 = arith.mulf %267, %267 : vector<16x512xf32>
    %269 = tpu.concatenate %267, %268 in 0 : vector<16x512xf32>, vector<16x512xf32> -> vector<32x512xf32>
    %cst_92 = arith.constant dense<0.000000e+00> : vector<32xf32>
    %270 = vector.multi_reduction <add>, %269, %cst_92 [1] : vector<32x512xf32> to vector<32xf32>
    %271 = vector.shape_cast %270 : vector<32xf32> to vector<32x1xf32>
    %cst_93 = arith.constant 0.001953125 : f32
    %272 = vector.broadcast %cst_93 : f32 to vector<32x1xf32>
    %273 = arith.mulf %271, %272 : vector<32x1xf32>
    %274 = vector.extract_strided_slice %273 {offsets = [0, 0], sizes = [16, 1], strides = [1, 1]} : vector<32x1xf32> to vector<16x1xf32>
    %275 = vector.extract_strided_slice %273 {offsets = [16, 0], sizes = [16, 1], strides = [1, 1]} : vector<32x1xf32> to vector<16x1xf32>
    %276 = arith.mulf %274, %274 : vector<16x1xf32>
    %277 = arith.subf %275, %276 : vector<16x1xf32>
    %278 = vector.broadcast %274 : vector<16x1xf32> to vector<16x512xf32>
    %279 = arith.subf %267, %278 : vector<16x512xf32>
    %cst_94 = arith.constant 9.99999974E-6 : f32
    %280 = vector.broadcast %cst_94 : f32 to vector<16x1xf32>
    %281 = arith.addf %277, %280 : vector<16x1xf32>
    %282 = math.rsqrt %281 : vector<16x1xf32>
    %283 = vector.broadcast %282 : vector<16x1xf32> to vector<16x512xf32>
    %284 = arith.mulf %279, %283 : vector<16x512xf32>
    %cst_95 = arith.constant 0.000000e+00 : f32
    %285 = vector.broadcast %cst_95 : f32 to vector<16x512xf32>
    %286 = arith.maximumf %284, %285 : vector<16x512xf32>
    %287 = vector.extract_strided_slice %286 {offsets = [0, 0], sizes = [8, 512], strides = [1, 1]} : vector<16x512xf32> to vector<8x512xf32>
    %288 = vector.extract_strided_slice %286 {offsets = [8, 0], sizes = [8, 512], strides = [1, 1]} : vector<16x512xf32> to vector<8x512xf32>
    %c1_96 = arith.constant 1 : index
    %c0_97 = arith.constant 0 : index
    %c0_98 = arith.constant 0 : index
    %289 = vector.load %arg8[%c1_96, %c0_97, %c0_98] : memref<2x16x8xf32, #tpu.memory_space<vmem>>, vector<1x16x8xf32>
    %290 = vector.shape_cast %289 : vector<1x16x8xf32> to vector<16x8xf32>
    %cst_99 = arith.constant dense<0.000000e+00> : vector<16x512xf32>
    %291 = tpu.matmul %290, %287, %cst_99 {dimension_numbers = #tpu.dot_dimension_numbers<[1], [0], [0], [1], [0, 0, 1, 1], [], []>} : vector<16x8xf32>, vector<8x512xf32>, vector<16x512xf32> -> vector<16x512xf32>
    %c1_100 = arith.constant 1 : index
    %c0_101 = arith.constant 0 : index
    %c0_102 = arith.constant 0 : index
    %292 = vector.load %arg9[%c1_100, %c0_101, %c0_102] : memref<2x16x8xf32, #tpu.memory_space<vmem>>, vector<1x16x8xf32>
    %293 = vector.shape_cast %292 : vector<1x16x8xf32> to vector<16x8xf32>
    %cst_103 = arith.constant dense<0.000000e+00> : vector<16x512xf32>
    %294 = tpu.matmul %293, %288, %cst_103 {dimension_numbers = #tpu.dot_dimension_numbers<[1], [0], [0], [1], [0, 0, 1, 1], [], []>} : vector<16x8xf32>, vector<8x512xf32>, vector<16x512xf32> -> vector<16x512xf32>
    %295 = arith.addf %291, %294 : vector<16x512xf32>
    %c2 = arith.constant 2 : index
    %c0_104 = arith.constant 0 : index
    %c0_105 = arith.constant 0 : index
    %296 = vector.load %arg11[%c2, %c0_104, %c0_105] : memref<3x4x8xf32, #tpu.memory_space<vmem>>, vector<1x4x8xf32>
    %297 = vector.shape_cast %296 : vector<1x4x8xf32> to vector<4x8xf32>
    %cst_106 = arith.constant dense<0.000000e+00> : vector<4x512xf32>
    %298 = tpu.matmul %297, %288, %cst_106 {dimension_numbers = #tpu.dot_dimension_numbers<[1], [0], [0], [1], [0, 0, 1, 1], [], []>} : vector<4x8xf32>, vector<8x512xf32>, vector<4x512xf32> -> vector<4x512xf32>
    %299 = arith.mulf %298, %298 : vector<4x512xf32>
    %300 = tpu.concatenate %298, %299 in 0 : vector<4x512xf32>, vector<4x512xf32> -> vector<8x512xf32>
    %cst_107 = arith.constant dense<0.000000e+00> : vector<8xf32>
    %301 = vector.multi_reduction <add>, %300, %cst_107 [1] : vector<8x512xf32> to vector<8xf32>
    %302 = vector.shape_cast %301 : vector<8xf32> to vector<8x1xf32>
    %cst_108 = arith.constant 0.001953125 : f32
    %303 = vector.broadcast %cst_108 : f32 to vector<8x1xf32>
    %304 = arith.mulf %302, %303 : vector<8x1xf32>
    %305 = vector.extract_strided_slice %304 {offsets = [0, 0], sizes = [4, 1], strides = [1, 1]} : vector<8x1xf32> to vector<4x1xf32>
    %306 = vector.extract_strided_slice %304 {offsets = [4, 0], sizes = [4, 1], strides = [1, 1]} : vector<8x1xf32> to vector<4x1xf32>
    %307 = arith.mulf %305, %305 : vector<4x1xf32>
    %308 = arith.subf %306, %307 : vector<4x1xf32>
    %309 = vector.broadcast %305 : vector<4x1xf32> to vector<4x512xf32>
    %310 = arith.subf %298, %309 : vector<4x512xf32>
    %cst_109 = arith.constant 9.99999974E-6 : f32
    %311 = vector.broadcast %cst_109 : f32 to vector<4x1xf32>
    %312 = arith.addf %308, %311 : vector<4x1xf32>
    %313 = math.rsqrt %312 : vector<4x1xf32>
    %314 = vector.broadcast %313 : vector<4x1xf32> to vector<4x512xf32>
    %315 = arith.mulf %310, %314 : vector<4x512xf32>
    %cst_110 = arith.constant 0.000000e+00 : f32
    %316 = vector.broadcast %cst_110 : f32 to vector<4x512xf32>
    %317 = arith.maximumf %315, %316 : vector<4x512xf32>
    %c2_111 = arith.constant 2 : index
    %c0_112 = arith.constant 0 : index
    %c0_113 = arith.constant 0 : index
    %318 = vector.load %arg13[%c2_111, %c0_112, %c0_113] : memref<3x8x8xf32, #tpu.memory_space<vmem>>, vector<1x8x8xf32>
    %319 = vector.shape_cast %318 : vector<1x8x8xf32> to vector<8x8xf32>
    %320 = arith.truncf %317 : vector<4x512xf32> to vector<4x512xbf16>
    %cst_114 = arith.constant dense<0.000000e+00> : vector<4x768xf32>
    %321 = tpu.matmul %320, %0, %cst_114 {dimension_numbers = #tpu.dot_dimension_numbers<[1], [0], [0], [1], [0, 0, 1, 1], [], []>} : vector<4x512xbf16>, vector<512x768xbf16>, vector<4x768xf32> -> vector<4x768xf32>
    %322 = vector.extract_strided_slice %321 {offsets = [0, 0], sizes = [4, 384], strides = [1, 1]} : vector<4x768xf32> to vector<4x384xf32>
    %323 = vector.extract_strided_slice %321 {offsets = [0, 384], sizes = [4, 384], strides = [1, 1]} : vector<4x768xf32> to vector<4x384xf32>
    %324 = tpu.concatenate %322, %323 in 0 : vector<4x384xf32>, vector<4x384xf32> -> vector<8x384xf32>
    %cst_115 = arith.constant dense<0.000000e+00> : vector<8x384xf32>
    %325 = tpu.matmul %319, %324, %cst_115 {dimension_numbers = #tpu.dot_dimension_numbers<[1], [0], [0], [1], [0, 0, 1, 1], [], []>} : vector<8x8xf32>, vector<8x384xf32>, vector<8x384xf32> -> vector<8x384xf32>
    %326 = arith.mulf %325, %325 : vector<8x384xf32>
    %327 = tpu.concatenate %325, %326 in 0 : vector<8x384xf32>, vector<8x384xf32> -> vector<16x384xf32>
    %cst_116 = arith.constant dense<0.000000e+00> : vector<16xf32>
    %328 = vector.multi_reduction <add>, %327, %cst_116 [1] : vector<16x384xf32> to vector<16xf32>
    %329 = vector.shape_cast %328 : vector<16xf32> to vector<16x1xf32>
    %cst_117 = arith.constant 0.00347222225 : f32
    %330 = vector.broadcast %cst_117 : f32 to vector<16x1xf32>
    %331 = arith.mulf %329, %330 : vector<16x1xf32>
    %332 = vector.extract_strided_slice %331 {offsets = [0, 0], sizes = [8, 1], strides = [1, 1]} : vector<16x1xf32> to vector<8x1xf32>
    %333 = vector.extract_strided_slice %331 {offsets = [8, 0], sizes = [8, 1], strides = [1, 1]} : vector<16x1xf32> to vector<8x1xf32>
    %334 = arith.mulf %332, %332 : vector<8x1xf32>
    %335 = arith.subf %333, %334 : vector<8x1xf32>
    %336 = vector.broadcast %332 : vector<8x1xf32> to vector<8x384xf32>
    %337 = arith.subf %325, %336 : vector<8x384xf32>
    %cst_118 = arith.constant 9.99999974E-6 : f32
    %338 = vector.broadcast %cst_118 : f32 to vector<8x1xf32>
    %339 = arith.addf %335, %338 : vector<8x1xf32>
    %340 = math.rsqrt %339 : vector<8x1xf32>
    %341 = vector.broadcast %340 : vector<8x1xf32> to vector<8x384xf32>
    %342 = arith.mulf %337, %341 : vector<8x384xf32>
    %cst_119 = arith.constant 0.000000e+00 : f32
    %343 = vector.broadcast %cst_119 : f32 to vector<8x384xf32>
    %344 = arith.maximumf %342, %343 : vector<8x384xf32>
    %345 = vector.extract_strided_slice %344 {offsets = [0, 0], sizes = [4, 384], strides = [1, 1]} : vector<8x384xf32> to vector<4x384xf32>
    %346 = vector.extract_strided_slice %344 {offsets = [4, 0], sizes = [4, 384], strides = [1, 1]} : vector<8x384xf32> to vector<4x384xf32>
    %347 = tpu.concatenate %345, %346 in 1 : vector<4x384xf32>, vector<4x384xf32> -> vector<4x768xf32>
    %348 = arith.truncf %347 : vector<4x768xf32> to vector<4x768xbf16>
    %cst_120 = arith.constant dense<0.000000e+00> : vector<4x512xf32>
    %349 = tpu.matmul %348, %1, %cst_120 {dimension_numbers = #tpu.dot_dimension_numbers<[1], [0], [0], [1], [0, 0, 1, 1], [], []>} : vector<4x768xbf16>, vector<768x512xbf16>, vector<4x512xf32> -> vector<4x512xf32>
    %350 = vector.extract_strided_slice %317 {offsets = [0, 0], sizes = [1, 512], strides = [1, 1]} : vector<4x512xf32> to vector<1x512xf32>
    %351 = vector.broadcast %350 : vector<1x512xf32> to vector<4x512xf32>
    %352 = arith.mulf %4, %351 : vector<4x512xf32>
    %c2_121 = arith.constant 2 : index
    %c0_122 = arith.constant 0 : index
    %c0_123 = arith.constant 0 : index
    %353 = vector.load %arg14[%c2_121, %c0_122, %c0_123] : memref<3x8x8xf32, #tpu.memory_space<vmem>>, vector<1x8x8xf32>
    %354 = vector.shape_cast %353 : vector<1x8x8xf32> to vector<8x8xf32>
    %355 = arith.truncf %352 : vector<4x512xf32> to vector<4x512xbf16>
    %cst_124 = arith.constant dense<0.000000e+00> : vector<4x256xf32>
    %356 = tpu.matmul %355, %2, %cst_124 {dimension_numbers = #tpu.dot_dimension_numbers<[1], [0], [0], [1], [0, 0, 1, 1], [], []>} : vector<4x512xbf16>, vector<512x256xbf16>, vector<4x256xf32> -> vector<4x256xf32>
    %357 = vector.extract_strided_slice %356 {offsets = [0, 0], sizes = [4, 128], strides = [1, 1]} : vector<4x256xf32> to vector<4x128xf32>
    %358 = vector.extract_strided_slice %356 {offsets = [0, 128], sizes = [4, 128], strides = [1, 1]} : vector<4x256xf32> to vector<4x128xf32>
    %359 = tpu.concatenate %357, %358 in 0 : vector<4x128xf32>, vector<4x128xf32> -> vector<8x128xf32>
    %cst_125 = arith.constant dense<0.000000e+00> : vector<8x128xf32>
    %360 = tpu.matmul %354, %359, %cst_125 {dimension_numbers = #tpu.dot_dimension_numbers<[1], [0], [0], [1], [0, 0, 1, 1], [], []>} : vector<8x8xf32>, vector<8x128xf32>, vector<8x128xf32> -> vector<8x128xf32>
    %361 = arith.mulf %360, %360 : vector<8x128xf32>
    %362 = tpu.concatenate %360, %361 in 0 : vector<8x128xf32>, vector<8x128xf32> -> vector<16x128xf32>
    %cst_126 = arith.constant dense<0.000000e+00> : vector<16xf32>
    %363 = vector.multi_reduction <add>, %362, %cst_126 [1] : vector<16x128xf32> to vector<16xf32>
    %364 = vector.shape_cast %363 : vector<16xf32> to vector<16x1xf32>
    %cst_127 = arith.constant 1.250000e-02 : f32
    %365 = vector.broadcast %cst_127 : f32 to vector<16x1xf32>
    %366 = arith.mulf %364, %365 : vector<16x1xf32>
    %367 = vector.extract_strided_slice %366 {offsets = [0, 0], sizes = [8, 1], strides = [1, 1]} : vector<16x1xf32> to vector<8x1xf32>
    %368 = vector.extract_strided_slice %366 {offsets = [8, 0], sizes = [8, 1], strides = [1, 1]} : vector<16x1xf32> to vector<8x1xf32>
    %369 = arith.mulf %367, %367 : vector<8x1xf32>
    %370 = arith.subf %368, %369 : vector<8x1xf32>
    %371 = vector.broadcast %367 : vector<8x1xf32> to vector<8x128xf32>
    %372 = arith.subf %360, %371 : vector<8x128xf32>
    %cst_128 = arith.constant 9.99999974E-6 : f32
    %373 = vector.broadcast %cst_128 : f32 to vector<8x1xf32>
    %374 = arith.addf %370, %373 : vector<8x1xf32>
    %375 = math.rsqrt %374 : vector<8x1xf32>
    %376 = vector.broadcast %375 : vector<8x1xf32> to vector<8x128xf32>
    %377 = arith.mulf %372, %376 : vector<8x128xf32>
    %cst_129 = arith.constant 0.000000e+00 : f32
    %378 = vector.broadcast %cst_129 : f32 to vector<8x128xf32>
    %379 = arith.maximumf %377, %378 : vector<8x128xf32>
    %380 = vector.extract_strided_slice %379 {offsets = [0, 0], sizes = [4, 128], strides = [1, 1]} : vector<8x128xf32> to vector<4x128xf32>
    %381 = vector.extract_strided_slice %379 {offsets = [4, 0], sizes = [4, 128], strides = [1, 1]} : vector<8x128xf32> to vector<4x128xf32>
    %382 = tpu.concatenate %380, %381 in 1 : vector<4x128xf32>, vector<4x128xf32> -> vector<4x256xf32>
    %383 = arith.truncf %382 : vector<4x256xf32> to vector<4x256xbf16>
    %cst_130 = arith.constant dense<0.000000e+00> : vector<4x512xf32>
    %384 = tpu.matmul %383, %3, %cst_130 {dimension_numbers = #tpu.dot_dimension_numbers<[1], [0], [0], [1], [0, 0, 1, 1], [], []>} : vector<4x256xbf16>, vector<256x512xbf16>, vector<4x512xf32> -> vector<4x512xf32>
    %c2_131 = arith.constant 2 : index
    %c0_132 = arith.constant 0 : index
    %c0_133 = arith.constant 0 : index
    %385 = vector.load %arg12[%c2_131, %c0_132, %c0_133] : memref<3x8x4xf32, #tpu.memory_space<vmem>>, vector<1x8x4xf32>
    %386 = vector.shape_cast %385 : vector<1x8x4xf32> to vector<8x4xf32>
    %387 = arith.addf %317, %349 : vector<4x512xf32>
    %388 = arith.addf %387, %384 : vector<4x512xf32>
    %cst_134 = arith.constant dense<0.000000e+00> : vector<8x512xf32>
    %389 = tpu.matmul %386, %388, %cst_134 {dimension_numbers = #tpu.dot_dimension_numbers<[1], [0], [0], [1], [0, 0, 1, 1], [], []>} : vector<8x4xf32>, vector<4x512xf32>, vector<8x512xf32> -> vector<8x512xf32>
    %390 = vector.extract_strided_slice %295 {offsets = [0, 0], sizes = [8, 512], strides = [1, 1]} : vector<16x512xf32> to vector<8x512xf32>
    %391 = vector.extract_strided_slice %295 {offsets = [8, 0], sizes = [8, 512], strides = [1, 1]} : vector<16x512xf32> to vector<8x512xf32>
    %392 = arith.addf %391, %389 : vector<8x512xf32>
    %393 = tpu.concatenate %390, %392 in 0 : vector<8x512xf32>, vector<8x512xf32> -> vector<16x512xf32>
    %394 = arith.mulf %393, %393 : vector<16x512xf32>
    %395 = tpu.concatenate %393, %394 in 0 : vector<16x512xf32>, vector<16x512xf32> -> vector<32x512xf32>
    %cst_135 = arith.constant dense<0.000000e+00> : vector<32xf32>
    %396 = vector.multi_reduction <add>, %395, %cst_135 [1] : vector<32x512xf32> to vector<32xf32>
    %397 = vector.shape_cast %396 : vector<32xf32> to vector<32x1xf32>
    %cst_136 = arith.constant 0.001953125 : f32
    %398 = vector.broadcast %cst_136 : f32 to vector<32x1xf32>
    %399 = arith.mulf %397, %398 : vector<32x1xf32>
    %400 = vector.extract_strided_slice %399 {offsets = [0, 0], sizes = [16, 1], strides = [1, 1]} : vector<32x1xf32> to vector<16x1xf32>
    %401 = vector.extract_strided_slice %399 {offsets = [16, 0], sizes = [16, 1], strides = [1, 1]} : vector<32x1xf32> to vector<16x1xf32>
    %402 = arith.mulf %400, %400 : vector<16x1xf32>
    %403 = arith.subf %401, %402 : vector<16x1xf32>
    %404 = vector.broadcast %400 : vector<16x1xf32> to vector<16x512xf32>
    %405 = arith.subf %393, %404 : vector<16x512xf32>
    %cst_137 = arith.constant 9.99999974E-6 : f32
    %406 = vector.broadcast %cst_137 : f32 to vector<16x1xf32>
    %407 = arith.addf %403, %406 : vector<16x1xf32>
    %408 = math.rsqrt %407 : vector<16x1xf32>
    %409 = vector.broadcast %408 : vector<16x1xf32> to vector<16x512xf32>
    %410 = arith.mulf %405, %409 : vector<16x512xf32>
    %cst_138 = arith.constant 0.000000e+00 : f32
    %411 = vector.broadcast %cst_138 : f32 to vector<16x512xf32>
    %412 = arith.maximumf %410, %411 : vector<16x512xf32>
    %413 = vector.extract_strided_slice %412 {offsets = [0, 0], sizes = [8, 512], strides = [1, 1]} : vector<16x512xf32> to vector<8x512xf32>
    %414 = vector.extract_strided_slice %412 {offsets = [8, 0], sizes = [8, 512], strides = [1, 1]} : vector<16x512xf32> to vector<8x512xf32>
    %415 = arith.addf %413, %6 : vector<8x512xf32>
    %cst_139 = arith.constant 0.000000e+00 : f32
    %416 = vector.broadcast %cst_139 : f32 to vector<8x512xf32>
    %417 = arith.maximumf %415, %416 : vector<8x512xf32>
    %c0_140 = arith.constant 0 : index
    %c0_141 = arith.constant 0 : index
    %418 = vector.load %arg15[%c0_140, %c0_141] : memref<8x512xf32, #tpu.memory_space<vmem>>, vector<8x512xf32>
    tpu.vector_store %arg15[%c0_140, %c0_141], %417 {strides = array<i32>} : memref<8x512xf32, #tpu.memory_space<vmem>>, vector<8x512xf32>,
    %419 = arith.addf %414, %7 : vector<8x512xf32>
    %cst_142 = arith.constant 0.000000e+00 : f32
    %420 = vector.broadcast %cst_142 : f32 to vector<8x512xf32>
    %421 = arith.maximumf %419, %420 : vector<8x512xf32>
    %c0_143 = arith.constant 0 : index
    %c0_144 = arith.constant 0 : index
    %422 = vector.load %arg16[%c0_143, %c0_144] : memref<8x512xf32, #tpu.memory_space<vmem>>, vector<8x512xf32>
    tpu.vector_store %arg16[%c0_143, %c0_144], %421 {strides = array<i32>} : memref<8x512xf32, #tpu.memory_space<vmem>>, vector<8x512xf32>,
    return
  }
}

</mosaic_0001>

<llo_original>
// kernel: ffc_block.1
$region0: #{ffc_block.1}
  #allocation0 [shape = 'u32[]', space=smem, size = 0x4, offset = 0x4, fixed_abs, tag = 'smem constant byte address 0x4 - core index']
  #allocation1 [shape = 'u32[72,128]{1,0:T(1,128)}', space=vmem, size = 0x9000, scoped, tag = 'internal scratch']
  %s0 = inlined_call_operand.vmem [shape: f32[8,512], index: 0, kind: input, shape index: {}]
  %s1 = inlined_call_operand.vmem [shape: f32[8,512], index: 1, kind: input, shape index: {}]
  %s2 = inlined_call_operand.vmem [shape: f32[9,512], index: 2, kind: input, shape index: {}]
  %s3 = inlined_call_operand.vmem [shape: f32[4,512], index: 3, kind: input, shape index: {}]
  %s4 = inlined_call_operand.vmem [shape: bf16[512,768], index: 4, kind: input, shape index: {}]
  %s5 = inlined_call_operand.hbm [shape: bf16[768,512], index: 5, kind: input, shape index: {}]
  %s6 = inlined_call_operand.hbm [shape: bf16[512,256], index: 6, kind: input, shape index: {}]
  %s7 = inlined_call_operand.hbm [shape: bf16[256,512], index: 7, kind: input, shape index: {}]
  %s8 = inlined_call_operand.vmem [shape: f32[2,16,8], index: 8, kind: input, shape index: {}]
  %s9 = inlined_call_operand.vmem [shape: f32[2,16,8], index: 9, kind: input, shape index: {}]
  %s10 = inlined_call_operand.vmem [shape: f32[16,144], index: 10, kind: input, shape index: {}]
  %s11 = inlined_call_operand.hbm [shape: f32[3,4,8], index: 11, kind: input, shape index: {}]
  %s12 = inlined_call_operand.vmem [shape: f32[3,8,4], index: 12, kind: input, shape index: {}]
  %s13 = inlined_call_operand.vmem [shape: f32[3,8,8], index: 13, kind: input, shape index: {}]
  %s14 = inlined_call_operand.vmem [shape: f32[3,8,8], index: 14, kind: input, shape index: {}]
  %s15 = inlined_call_operand.vmem [shape: f32[8,512], index: 15, kind: output, shape index: {0}]
  %s16 = inlined_call_operand.vmem [shape: f32[8,512], index: 16, kind: output, shape index: {1}]
  %17 = xla_tuple %s15, %s16
  %s18 = sld [smem:[#allocation0]]
  $region94: #{ffc_block.1} parent=0
    _
  %s20 = ssub.s32 1, %s18
  %s21 = scalar_select 0, %s20, %s18
  $region1: #{ffc_block.1} parent=0
    #allocation2 [shape = 'u8[786432]{0}', space=vmem, size = 0xc0000, scoped, tag = 'input window, operand 5, single buffered']
    #allocation3 [shape = 's32[1]{0}', space=sflag, size = 0x4, scoped, tag = 'scoped memory for ffc_block.1']
    #allocation4 [shape = 'u8[262144]{0}', space=vmem, size = 0x40000, scoped, tag = 'input window, operand 6, single buffered']
    #allocation5 [shape = 's32[1]{0}', space=sflag, size = 0x4, scoped, tag = 'scoped memory for ffc_block.1']
    #allocation6 [shape = 'u8[262144]{0}', space=vmem, size = 0x40000, scoped, tag = 'input window, operand 7, single buffered']
    #allocation7 [shape = 'u8[6144]{0}', space=vmem, size = 0x1800, scoped, tag = 'input window, operand 11, single buffered']
    #allocation8 [shape = 's32[1]{0}', space=sflag, size = 0x4, scoped, tag = 'scoped memory for ffc_block.1']
    %22 = vsyncpa [#allocation3], 0
    %23 = vsyncpa [#allocation5], 0
    %24 = vsyncpa [#allocation8], 0
    // Predicated region
    $region2: #{ffc_block.1} parent=1 // pred_check
      _
    $region3: #{ffc_block.1} parent=1 // pred_check_branch
      %26 = sbr.rel (0) target = $region5
    $region4: #{ffc_block.1} parent=1 // pred_region
      _
    $region5: #{ffc_block.1} parent=1 // pred_fallthru
      _
    // Predicated region
    $region6: #{ffc_block.1} parent=1 // pred_check
      _
    $region7: #{ffc_block.1} parent=1 // pred_check_branch
      %28 = sbr.rel (0) target = $region9
    $region8: #{ffc_block.1} parent=1 // pred_region
      _
    $region9: #{ffc_block.1} parent=1 // pred_fallthru
      _
    // Predicated region
    $region10: #{ffc_block.1} parent=1 // pred_check
      _
    $region11: #{ffc_block.1} parent=1 // pred_check_branch
      %30 = sbr.rel (0) target = $region13
    $region12: #{ffc_block.1} parent=1 // pred_region
      _
    $region13: #{ffc_block.1} parent=1 // pred_fallthru
      _
    // Predicated region
    $region14: #{ffc_block.1} parent=1 // pred_check
      _
    $region15: #{ffc_block.1} parent=1 // pred_check_branch
      %32 = sbr.rel (0) target = $region17
    $region16: #{ffc_block.1} parent=1 // pred_region
      _
    $region17: #{ffc_block.1} parent=1 // pred_fallthru
      _
    // Predicated region
    $region18: #{ffc_block.1} parent=1 // pred_check
      _
    $region19: #{ffc_block.1} parent=1 // pred_check_branch
      %34 = sbr.rel (0) target = $region21
    $region20: #{ffc_block.1} parent=1 // pred_region
      _
    $region21: #{ffc_block.1} parent=1 // pred_fallthru
      _
    // Predicated region
    $region22: #{ffc_block.1} parent=1 // pred_check
      _
    $region23: #{ffc_block.1} parent=1 // pred_check_branch
      %36 = sbr.rel (0) target = $region25
    $region24: #{ffc_block.1} parent=1 // pred_region
      %38 = vsyncadd [#allocation3], 0
      %s39 = sshll.u32 %s5, 4
      %s40 = int_to_ptr.hbm [resolvable:$true] %s39
      %s41 = sshll.u32 [#allocation2], 4
      %s42 = int_to_ptr.vmem [resolvable:$true] %s41
      %47 = dma.hbm_to_vmem [thread:$0]  %s40, 24576, %s42, [#allocation3], 256, 256, 16
    $region25: #{ffc_block.1} parent=1 // pred_fallthru
      _
    // Predicated region
    $region26: #{ffc_block.1} parent=1 // pred_check
      _
    $region27: #{ffc_block.1} parent=1 // pred_check_branch
      %49 = sbr.rel (0) target = $region29
    $region28: #{ffc_block.1} parent=1 // pred_region
      %51 = vsyncadd [#allocation5], 0
      %s52 = sshll.u32 %s6, 4
      %s53 = int_to_ptr.hbm [resolvable:$true] %s52
      %s54 = sshll.u32 [#allocation4], 4
      %s55 = int_to_ptr.vmem [resolvable:$true] %s54
      %60 = dma.hbm_to_vmem [thread:$0]  %s53, 8192, %s55, [#allocation5], 128, 128, 8
    $region29: #{ffc_block.1} parent=1 // pred_fallthru
      _
    // Predicated region
    $region30: #{ffc_block.1} parent=1 // pred_check
      _
    $region31: #{ffc_block.1} parent=1 // pred_check_branch
      %62 = sbr.rel (0) target = $region33
    $region32: #{ffc_block.1} parent=1 // pred_region
      %64 = vsyncadd [#allocation5], 0
      %s65 = sshll.u32 %s7, 4
      %s66 = int_to_ptr.hbm [resolvable:$true] %s65
      %s67 = sshll.u32 [#allocation6], 4
      %s68 = int_to_ptr.vmem [resolvable:$true] %s67
      %73 = dma.hbm_to_vmem [thread:$0]  %s66, 8192, %s68, [#allocation5], 256, 256, 16
    $region33: #{ffc_block.1} parent=1 // pred_fallthru
      _
    // Predicated region
    $region34: #{ffc_block.1} parent=1 // pred_check
      _
    $region35: #{ffc_block.1} parent=1 // pred_check_branch
      %75 = sbr.rel (0) target = $region37
    $region36: #{ffc_block.1} parent=1 // pred_region
      _
    $region37: #{ffc_block.1} parent=1 // pred_fallthru
      _
    // Predicated region
    $region38: #{ffc_block.1} parent=1 // pred_check
      _
    $region39: #{ffc_block.1} parent=1 // pred_check_branch
      %77 = sbr.rel (0) target = $region41
    $region40: #{ffc_block.1} parent=1 // pred_region
      _
    $region41: #{ffc_block.1} parent=1 // pred_fallthru
      _
    // Predicated region
    $region42: #{ffc_block.1} parent=1 // pred_check
      _
    $region43: #{ffc_block.1} parent=1 // pred_check_branch
      %79 = sbr.rel (0) target = $region45
    $region44: #{ffc_block.1} parent=1 // pred_region
      _
    $region45: #{ffc_block.1} parent=1 // pred_fallthru
      _
    // Predicated region
    $region46: #{ffc_block.1} parent=1 // pred_check
      _
    $region47: #{ffc_block.1} parent=1 // pred_check_branch
      %81 = sbr.rel (0) target = $region49
    $region48: #{ffc_block.1} parent=1 // pred_region
      %83 = vsyncadd [#allocation8], 0
      %s84 = sshll.u32 %s11, 4
      %s85 = int_to_ptr.hbm [resolvable:$true] %s84
      %s86 = sshll.u32 [#allocation7], 4
      %s87 = int_to_ptr.vmem [resolvable:$true] %s86
      %92 = dma.hbm_to_vmem [thread:$0]  %s85, 192, %s87, [#allocation8], 64, 64, 4
    $region49: #{ffc_block.1} parent=1 // pred_fallthru
      _
    // Predicated region
    $region50: #{ffc_block.1} parent=1 // pred_check
      _
    $region51: #{ffc_block.1} parent=1 // pred_check_branch
      %94 = sbr.rel (0) target = $region53
    $region52: #{ffc_block.1} parent=1 // pred_region
      _
    $region53: #{ffc_block.1} parent=1 // pred_fallthru
      _
    // Predicated region
    $region54: #{ffc_block.1} parent=1 // pred_check
      _
    $region55: #{ffc_block.1} parent=1 // pred_check_branch
      %96 = sbr.rel (0) target = $region57
    $region56: #{ffc_block.1} parent=1 // pred_region
      _
    $region57: #{ffc_block.1} parent=1 // pred_fallthru
      _
    // Predicated region
    $region58: #{ffc_block.1} parent=1 // pred_check
      _
    $region59: #{ffc_block.1} parent=1 // pred_check_branch
      %98 = sbr.rel (0) target = $region61
    $region60: #{ffc_block.1} parent=1 // pred_region
      _
    $region61: #{ffc_block.1} parent=1 // pred_fallthru
      _
    // Predicated region
    $region62: #{ffc_block.1} parent=1 // pred_check
      _
    $region63: #{ffc_block.1} parent=1 // pred_check_branch
      %100 = sbr.rel (0) target = $region65
    $region64: #{ffc_block.1} parent=1 // pred_region
      %102 = dma.done [#allocation3], 24576
    $region65: #{ffc_block.1} parent=1 // pred_fallthru
      _
    // Predicated region
    $region66: #{ffc_block.1} parent=1 // pred_check
      _
    $region67: #{ffc_block.1} parent=1 // pred_check_branch
      %104 = sbr.rel (0) target = $region69
    $region68: #{ffc_block.1} parent=1 // pred_region
      %106 = dma.done [#allocation5], 8192
    $region69: #{ffc_block.1} parent=1 // pred_fallthru
      _
    // Predicated region
    $region70: #{ffc_block.1} parent=1 // pred_check
      _
    $region71: #{ffc_block.1} parent=1 // pred_check_branch
      %108 = sbr.rel (0) target = $region73
    $region72: #{ffc_block.1} parent=1 // pred_region
      %110 = dma.done [#allocation5], 8192
    $region73: #{ffc_block.1} parent=1 // pred_fallthru
      _
    // Predicated region
    $region74: #{ffc_block.1} parent=1 // pred_check
      _
    $region75: #{ffc_block.1} parent=1 // pred_check_branch
      %112 = sbr.rel (0) target = $region77
    $region76: #{ffc_block.1} parent=1 // pred_region
      %114 = dma.done [#allocation8], 192
    $region77: #{ffc_block.1} parent=1 // pred_fallthru
      _
    %v115 = vld [vmem:[%s4] sm:$0xff]
    %v116 = vld [vmem:[%s4 + $0x8] sm:$0xff]
    %v117 = vld [vmem:[%s4 + $0x10] sm:$0xff]
    %v118 = vld [vmem:[%s4 + $0x18] sm:$0xff]
    %v119 = vld [vmem:[%s4 + $0x20] sm:$0xff]
    %v120 = vld [vmem:[%s4 + $0x28] sm:$0xff]
    %v121 = vld [vmem:[%s4 + $0x30] sm:$0xff]
    %v122 = vld [vmem:[%s4 + $0x38] sm:$0xff]
    %v123 = vld [vmem:[%s4 + $0x40] sm:$0xff]
    %v124 = vld [vmem:[%s4 + $0x48] sm:$0xff]
    %v125 = vld [vmem:[%s4 + $0x50] sm:$0xff]
    %v126 = vld [vmem:[%s4 + $0x58] sm:$0xff]
    %v127 = vld [vmem:[%s4 + $0x60] sm:$0xff]
    %v128 = vld [vmem:[%s4 + $0x68] sm:$0xff]
    %v129 = vld [vmem:[%s4 + $0x70] sm:$0xff]
    %v130 = vld [vmem:[%s4 + $0x78] sm:$0xff]
    %v131 = vld [vmem:[%s4 + $0x80] sm:$0xff]
    %v132 = vld [vmem:[%s4 + $0x88] sm:$0xff]
    %v133 = vld [vmem:[%s4 + $0x90] sm:$0xff]
    %v134 = vld [vmem:[%s4 + $0x98] sm:$0xff]
    %v135 = vld [vmem:[%s4 + $0xa0] sm:$0xff]
    %v136 = vld [vmem:[%s4 + $0xa8] sm:$0xff]
    %v137 = vld [vmem:[%s4 + $0xb0] sm:$0xff]
    %v138 = vld [vmem:[%s4 + $0xb8] sm:$0xff]
    %v139 = vld [vmem:[%s4 + $0xc0] sm:$0xff]
    %v140 = vld [vmem:[%s4 + $0xc8] sm:$0xff]
    %v141 = vld [vmem:[%s4 + $0xd0] sm:$0xff]
    %v142 = vld [vmem:[%s4 + $0xd8] sm:$0xff]
    %v143 = vld [vmem:[%s4 + $0xe0] sm:$0xff]
    %v144 = vld [vmem:[%s4 + $0xe8] sm:$0xff]
    %v145 = vld [vmem:[%s4 + $0xf0] sm:$0xff]
    %v146 = vld [vmem:[%s4 + $0xf8] sm:$0xff]
    %v147 = vld [vmem:[%s4 + $0x100] sm:$0xff]
    %v148 = vld [vmem:[%s4 + $0x108] sm:$0xff]
    %v149 = vld [vmem:[%s4 + $0x110] sm:$0xff]
    %v150 = vld [vmem:[%s4 + $0x118] sm:$0xff]
    %v151 = vld [vmem:[%s4 + $0x120] sm:$0xff]
    %v152 = vld [vmem:[%s4 + $0x128] sm:$0xff]
    %v153 = vld [vmem:[%s4 + $0x130] sm:$0xff]
    %v154 = vld [vmem:[%s4 + $0x138] sm:$0xff]
    %v155 = vld [vmem:[%s4 + $0x140] sm:$0xff]
    %v156 = vld [vmem:[%s4 + $0x148] sm:$0xff]
    %v157 = vld [vmem:[%s4 + $0x150] sm:$0xff]
    %v158 = vld [vmem:[%s4 + $0x158] sm:$0xff]
    %v159 = vld [vmem:[%s4 + $0x160] sm:$0xff]
    %v160 = vld [vmem:[%s4 + $0x168] sm:$0xff]
    %v161 = vld [vmem:[%s4 + $0x170] sm:$0xff]
    %v162 = vld [vmem:[%s4 + $0x178] sm:$0xff]
    %v163 = vld [vmem:[%s4 + $0x180] sm:$0xff]
    %v164 = vld [vmem:[%s4 + $0x188] sm:$0xff]
    %v165 = vld [vmem:[%s4 + $0x190] sm:$0xff]
    %v166 = vld [vmem:[%s4 + $0x198] sm:$0xff]
    %v167 = vld [vmem:[%s4 + $0x1a0] sm:$0xff]
    %v168 = vld [vmem:[%s4 + $0x1a8] sm:$0xff]
    %v169 = vld [vmem:[%s4 + $0x1b0] sm:$0xff]
    %v170 = vld [vmem:[%s4 + $0x1b8] sm:$0xff]
    %v171 = vld [vmem:[%s4 + $0x1c0] sm:$0xff]
    %v172 = vld [vmem:[%s4 + $0x1c8] sm:$0xff]
    %v173 = vld [vmem:[%s4 + $0x1d0] sm:$0xff]
    %v174 = vld [vmem:[%s4 + $0x1d8] sm:$0xff]
    %v175 = vld [vmem:[%s4 + $0x1e0] sm:$0xff]
    %v176 = vld [vmem:[%s4 + $0x1e8] sm:$0xff]
    %v177 = vld [vmem:[%s4 + $0x1f0] sm:$0xff]
    %v178 = vld [vmem:[%s4 + $0x1f8] sm:$0xff]
    %v179 = vld [vmem:[%s4 + $0x200] sm:$0xff]
    %v180 = vld [vmem:[%s4 + $0x208] sm:$0xff]
    %v181 = vld [vmem:[%s4 + $0x210] sm:$0xff]
    %v182 = vld [vmem:[%s4 + $0x218] sm:$0xff]
    %v183 = vld [vmem:[%s4 + $0x220] sm:$0xff]
    %v184 = vld [vmem:[%s4 + $0x228] sm:$0xff]
    %v185 = vld [vmem:[%s4 + $0x230] sm:$0xff]
    %v186 = vld [vmem:[%s4 + $0x238] sm:$0xff]
    %v187 = vld [vmem:[%s4 + $0x240] sm:$0xff]
    %v188 = vld [vmem:[%s4 + $0x248] sm:$0xff]
    %v189 = vld [vmem:[%s4 + $0x250] sm:$0xff]
    %v190 = vld [vmem:[%s4 + $0x258] sm:$0xff]
    %v191 = vld [vmem:[%s4 + $0x260] sm:$0xff]
    %v192 = vld [vmem:[%s4 + $0x268] sm:$0xff]
    %v193 = vld [vmem:[%s4 + $0x270] sm:$0xff]
    %v194 = vld [vmem:[%s4 + $0x278] sm:$0xff]
    %v195 = vld [vmem:[%s4 + $0x280] sm:$0xff]
    %v196 = vld [vmem:[%s4 + $0x288] sm:$0xff]
    %v197 = vld [vmem:[%s4 + $0x290] sm:$0xff]
    %v198 = vld [vmem:[%s4 + $0x298] sm:$0xff]
    %v199 = vld [vmem:[%s4 + $0x2a0] sm:$0xff]
    %v200 = vld [vmem:[%s4 + $0x2a8] sm:$0xff]
    %v201 = vld [vmem:[%s4 + $0x2b0] sm:$0xff]
    %v202 = vld [vmem:[%s4 + $0x2b8] sm:$0xff]
    %v203 = vld [vmem:[%s4 + $0x2c0] sm:$0xff]
    %v204 = vld [vmem:[%s4 + $0x2c8] sm:$0xff]
    %v205 = vld [vmem:[%s4 + $0x2d0] sm:$0xff]
    %v206 = vld [vmem:[%s4 + $0x2d8] sm:$0xff]
    %v207 = vld [vmem:[%s4 + $0x2e0] sm:$0xff]
    %v208 = vld [vmem:[%s4 + $0x2e8] sm:$0xff]
    %v209 = vld [vmem:[%s4 + $0x2f0] sm:$0xff]
    %v210 = vld [vmem:[%s4 + $0x2f8] sm:$0xff]
    %v211 = vld [vmem:[%s4 + $0x300] sm:$0xff]
    %v212 = vld [vmem:[%s4 + $0x308] sm:$0xff]
    %v213 = vld [vmem:[%s4 + $0x310] sm:$0xff]
    %v214 = vld [vmem:[%s4 + $0x318] sm:$0xff]
    %v215 = vld [vmem:[%s4 + $0x320] sm:$0xff]
    %v216 = vld [vmem:[%s4 + $0x328] sm:$0xff]
    %v217 = vld [vmem:[%s4 + $0x330] sm:$0xff]
    %v218 = vld [vmem:[%s4 + $0x338] sm:$0xff]
    %v219 = vld [vmem:[%s4 + $0x340] sm:$0xff]
    %v220 = vld [vmem:[%s4 + $0x348] sm:$0xff]
    %v221 = vld [vmem:[%s4 + $0x350] sm:$0xff]
    %v222 = vld [vmem:[%s4 + $0x358] sm:$0xff]
    %v223 = vld [vmem:[%s4 + $0x360] sm:$0xff]
    %v224 = vld [vmem:[%s4 + $0x368] sm:$0xff]
    %v225 = vld [vmem:[%s4 + $0x370] sm:$0xff]
    %v226 = vld [vmem:[%s4 + $0x378] sm:$0xff]
    %v227 = vld [vmem:[%s4 + $0x380] sm:$0xff]
    %v228 = vld [vmem:[%s4 + $0x388] sm:$0xff]
    %v229 = vld [vmem:[%s4 + $0x390] sm:$0xff]
    %v230 = vld [vmem:[%s4 + $0x398] sm:$0xff]
    %v231 = vld [vmem:[%s4 + $0x3a0] sm:$0xff]
    %v232 = vld [vmem:[%s4 + $0x3a8] sm:$0xff]
    %v233 = vld [vmem:[%s4 + $0x3b0] sm:$0xff]
    %v234 = vld [vmem:[%s4 + $0x3b8] sm:$0xff]
    %v235 = vld [vmem:[%s4 + $0x3c0] sm:$0xff]
    %v236 = vld [vmem:[%s4 + $0x3c8] sm:$0xff]
    %v237 = vld [vmem:[%s4 + $0x3d0] sm:$0xff]
    %v238 = vld [vmem:[%s4 + $0x3d8] sm:$0xff]
    %v239 = vld [vmem:[%s4 + $0x3e0] sm:$0xff]
    %v240 = vld [vmem:[%s4 + $0x3e8] sm:$0xff]
    %v241 = vld [vmem:[%s4 + $0x3f0] sm:$0xff]
    %v242 = vld [vmem:[%s4 + $0x3f8] sm:$0xff]
    %v243 = vld [vmem:[%s4 + $0x400] sm:$0xff]
    %v244 = vld [vmem:[%s4 + $0x408] sm:$0xff]
    %v245 = vld [vmem:[%s4 + $0x410] sm:$0xff]
    %v246 = vld [vmem:[%s4 + $0x418] sm:$0xff]
    %v247 = vld [vmem:[%s4 + $0x420] sm:$0xff]
    %v248 = vld [vmem:[%s4 + $0x428] sm:$0xff]
    %v249 = vld [vmem:[%s4 + $0x430] sm:$0xff]
    %v250 = vld [vmem:[%s4 + $0x438] sm:$0xff]
    %v251 = vld [vmem:[%s4 + $0x440] sm:$0xff]
    %v252 = vld [vmem:[%s4 + $0x448] sm:$0xff]
    %v253 = vld [vmem:[%s4 + $0x450] sm:$0xff]
    %v254 = vld [vmem:[%s4 + $0x458] sm:$0xff]
    %v255 = vld [vmem:[%s4 + $0x460] sm:$0xff]
    %v256 = vld [vmem:[%s4 + $0x468] sm:$0xff]
    %v257 = vld [vmem:[%s4 + $0x470] sm:$0xff]
    %v258 = vld [vmem:[%s4 + $0x478] sm:$0xff]
    %v259 = vld [vmem:[%s4 + $0x480] sm:$0xff]
    %v260 = vld [vmem:[%s4 + $0x488] sm:$0xff]
    %v261 = vld [vmem:[%s4 + $0x490] sm:$0xff]
    %v262 = vld [vmem:[%s4 + $0x498] sm:$0xff]
    %v263 = vld [vmem:[%s4 + $0x4a0] sm:$0xff]
    %v264 = vld [vmem:[%s4 + $0x4a8] sm:$0xff]
    %v265 = vld [vmem:[%s4 + $0x4b0] sm:$0xff]
    %v266 = vld [vmem:[%s4 + $0x4b8] sm:$0xff]
    %v267 = vld [vmem:[%s4 + $0x4c0] sm:$0xff]
    %v268 = vld [vmem:[%s4 + $0x4c8] sm:$0xff]
    %v269 = vld [vmem:[%s4 + $0x4d0] sm:$0xff]
    %v270 = vld [vmem:[%s4 + $0x4d8] sm:$0xff]
    %v271 = vld [vmem:[%s4 + $0x4e0] sm:$0xff]
    %v272 = vld [vmem:[%s4 + $0x4e8] sm:$0xff]
    %v273 = vld [vmem:[%s4 + $0x4f0] sm:$0xff]
    %v274 = vld [vmem:[%s4 + $0x4f8] sm:$0xff]
    %v275 = vld [vmem:[%s4 + $0x500] sm:$0xff]
    %v276 = vld [vmem:[%s4 + $0x508] sm:$0xff]
    %v277 = vld [vmem:[%s4 + $0x510] sm:$0xff]
    %v278 = vld [vmem:[%s4 + $0x518] sm:$0xff]
    %v279 = vld [vmem:[%s4 + $0x520] sm:$0xff]
    %v280 = vld [vmem:[%s4 + $0x528] sm:$0xff]
    %v281 = vld [vmem:[%s4 + $0x530] sm:$0xff]
    %v282 = vld [vmem:[%s4 + $0x538] sm:$0xff]
    %v283 = vld [vmem:[%s4 + $0x540] sm:$0xff]
    %v284 = vld [vmem:[%s4 + $0x548] sm:$0xff]
    %v285 = vld [vmem:[%s4 + $0x550] sm:$0xff]
    %v286 = vld [vmem:[%s4 + $0x558] sm:$0xff]
    %v287 = vld [vmem:[%s4 + $0x560] sm:$0xff]
    %v288 = vld [vmem:[%s4 + $0x568] sm:$0xff]
    %v289 = vld [vmem:[%s4 + $0x570] sm:$0xff]
    %v290 = vld [vmem:[%s4 + $0x578] sm:$0xff]
    %v291 = vld [vmem:[%s4 + $0x580] sm:$0xff]
    %v292 = vld [vmem:[%s4 + $0x588] sm:$0xff]
    %v293 = vld [vmem:[%s4 + $0x590] sm:$0xff]
    %v294 = vld [vmem:[%s4 + $0x598] sm:$0xff]
    %v295 = vld [vmem:[%s4 + $0x5a0] sm:$0xff]
    %v296 = vld [vmem:[%s4 + $0x5a8] sm:$0xff]
    %v297 = vld [vmem:[%s4 + $0x5b0] sm:$0xff]
    %v298 = vld [vmem:[%s4 + $0x5b8] sm:$0xff]
    %v299 = vld [vmem:[%s4 + $0x5c0] sm:$0xff]
    %v300 = vld [vmem:[%s4 + $0x5c8] sm:$0xff]
    %v301 = vld [vmem:[%s4 + $0x5d0] sm:$0xff]
    %v302 = vld [vmem:[%s4 + $0x5d8] sm:$0xff]
    %v303 = vld [vmem:[%s4 + $0x5e0] sm:$0xff]
    %v304 = vld [vmem:[%s4 + $0x5e8] sm:$0xff]
    %v305 = vld [vmem:[%s4 + $0x5f0] sm:$0xff]
    %v306 = vld [vmem:[%s4 + $0x5f8] sm:$0xff]
    %v307 = vld [vmem:[#allocation2] sm:$0xff]
    %v308 = vld [vmem:[#allocation2 + $0x8] sm:$0xff]
    %v309 = vld [vmem:[#allocation2 + $0x10] sm:$0xff]
    %v310 = vld [vmem:[#allocation2 + $0x18] sm:$0xff]
    %v311 = vld [vmem:[#allocation2 + $0x20] sm:$0xff]
    %v312 = vld [vmem:[#allocation2 + $0x28] sm:$0xff]
    %v313 = vld [vmem:[#allocation2 + $0x30] sm:$0xff]
    %v314 = vld [vmem:[#allocation2 + $0x38] sm:$0xff]
    %v315 = vld [vmem:[#allocation2 + $0x40] sm:$0xff]
    %v316 = vld [vmem:[#allocation2 + $0x48] sm:$0xff]
    %v317 = vld [vmem:[#allocation2 + $0x50] sm:$0xff]
    %v318 = vld [vmem:[#allocation2 + $0x58] sm:$0xff]
    %v319 = vld [vmem:[#allocation2 + $0x60] sm:$0xff]
    %v320 = vld [vmem:[#allocation2 + $0x68] sm:$0xff]
    %v321 = vld [vmem:[#allocation2 + $0x70] sm:$0xff]
    %v322 = vld [vmem:[#allocation2 + $0x78] sm:$0xff]
    %v323 = vld [vmem:[#allocation2 + $0x80] sm:$0xff]
    %v324 = vld [vmem:[#allocation2 + $0x88] sm:$0xff]
    %v325 = vld [vmem:[#allocation2 + $0x90] sm:$0xff]
    %v326 = vld [vmem:[#allocation2 + $0x98] sm:$0xff]
    %v327 = vld [vmem:[#allocation2 + $0xa0] sm:$0xff]
    %v328 = vld [vmem:[#allocation2 + $0xa8] sm:$0xff]
    %v329 = vld [vmem:[#allocation2 + $0xb0] sm:$0xff]
    %v330 = vld [vmem:[#allocation2 + $0xb8] sm:$0xff]
    %v331 = vld [vmem:[#allocation2 + $0xc0] sm:$0xff]
    %v332 = vld [vmem:[#allocation2 + $0xc8] sm:$0xff]
    %v333 = vld [vmem:[#allocation2 + $0xd0] sm:$0xff]
    %v334 = vld [vmem:[#allocation2 + $0xd8] sm:$0xff]
    %v335 = vld [vmem:[#allocation2 + $0xe0] sm:$0xff]
    %v336 = vld [vmem:[#allocation2 + $0xe8] sm:$0xff]
    %v337 = vld [vmem:[#allocation2 + $0xf0] sm:$0xff]
    %v338 = vld [vmem:[#allocation2 + $0xf8] sm:$0xff]
    %v339 = vld [vmem:[#allocation2 + $0x100] sm:$0xff]
    %v340 = vld [vmem:[#allocation2 + $0x108] sm:$0xff]
    %v341 = vld [vmem:[#allocation2 + $0x110] sm:$0xff]
    %v342 = vld [vmem:[#allocation2 + $0x118] sm:$0xff]
    %v343 = vld [vmem:[#allocation2 + $0x120] sm:$0xff]
    %v344 = vld [vmem:[#allocation2 + $0x128] sm:$0xff]
    %v345 = vld [vmem:[#allocation2 + $0x130] sm:$0xff]
    %v346 = vld [vmem:[#allocation2 + $0x138] sm:$0xff]
    %v347 = vld [vmem:[#allocation2 + $0x140] sm:$0xff]
    %v348 = vld [vmem:[#allocation2 + $0x148] sm:$0xff]
    %v349 = vld [vmem:[#allocation2 + $0x150] sm:$0xff]
    %v350 = vld [vmem:[#allocation2 + $0x158] sm:$0xff]
    %v351 = vld [vmem:[#allocation2 + $0x160] sm:$0xff]
    %v352 = vld [vmem:[#allocation2 + $0x168] sm:$0xff]
    %v353 = vld [vmem:[#allocation2 + $0x170] sm:$0xff]
    %v354 = vld [vmem:[#allocation2 + $0x178] sm:$0xff]
    %v355 = vld [vmem:[#allocation2 + $0x180] sm:$0xff]
    %v356 = vld [vmem:[#allocation2 + $0x188] sm:$0xff]
    %v357 = vld [vmem:[#allocation2 + $0x190] sm:$0xff]
    %v358 = vld [vmem:[#allocation2 + $0x198] sm:$0xff]
    %v359 = vld [vmem:[#allocation2 + $0x1a0] sm:$0xff]
    %v360 = vld [vmem:[#allocation2 + $0x1a8] sm:$0xff]
    %v361 = vld [vmem:[#allocation2 + $0x1b0] sm:$0xff]
    %v362 = vld [vmem:[#allocation2 + $0x1b8] sm:$0xff]
    %v363 = vld [vmem:[#allocation2 + $0x1c0] sm:$0xff]
    %v364 = vld [vmem:[#allocation2 + $0x1c8] sm:$0xff]
    %v365 = vld [vmem:[#allocation2 + $0x1d0] sm:$0xff]
    %v366 = vld [vmem:[#allocation2 + $0x1d8] sm:$0xff]
    %v367 = vld [vmem:[#allocation2 + $0x1e0] sm:$0xff]
    %v368 = vld [vmem:[#allocation2 + $0x1e8] sm:$0xff]
    %v369 = vld [vmem:[#allocation2 + $0x1f0] sm:$0xff]
    %v370 = vld [vmem:[#allocation2 + $0x1f8] sm:$0xff]
    %v371 = vld [vmem:[#allocation2 + $0x200] sm:$0xff]
    %v372 = vld [vmem:[#allocation2 + $0x208] sm:$0xff]
    %v373 = vld [vmem:[#allocation2 + $0x210] sm:$0xff]
    %v374 = vld [vmem:[#allocation2 + $0x218] sm:$0xff]
    %v375 = vld [vmem:[#allocation2 + $0x220] sm:$0xff]
    %v376 = vld [vmem:[#allocation2 + $0x228] sm:$0xff]
    %v377 = vld [vmem:[#allocation2 + $0x230] sm:$0xff]
    %v378 = vld [vmem:[#allocation2 + $0x238] sm:$0xff]
    %v379 = vld [vmem:[#allocation2 + $0x240] sm:$0xff]
    %v380 = vld [vmem:[#allocation2 + $0x248] sm:$0xff]
    %v381 = vld [vmem:[#allocation2 + $0x250] sm:$0xff]
    %v382 = vld [vmem:[#allocation2 + $0x258] sm:$0xff]
    %v383 = vld [vmem:[#allocation2 + $0x260] sm:$0xff]
    %v384 = vld [vmem:[#allocation2 + $0x268] sm:$0xff]
    %v385 = vld [vmem:[#allocation2 + $0x270] sm:$0xff]
    %v386 = vld [vmem:[#allocation2 + $0x278] sm:$0xff]
    %v387 = vld [vmem:[#allocation2 + $0x280] sm:$0xff]
    %v388 = vld [vmem:[#allocation2 + $0x288] sm:$0xff]
    %v389 = vld [vmem:[#allocation2 + $0x290] sm:$0xff]
    %v390 = vld [vmem:[#allocation2 + $0x298] sm:$0xff]
    %v391 = vld [vmem:[#allocation2 + $0x2a0] sm:$0xff]
    %v392 = vld [vmem:[#allocation2 + $0x2a8] sm:$0xff]
    %v393 = vld [vmem:[#allocation2 + $0x2b0] sm:$0xff]
    %v394 = vld [vmem:[#allocation2 + $0x2b8] sm:$0xff]
    %v395 = vld [vmem:[#allocation2 + $0x2c0] sm:$0xff]
    %v396 = vld [vmem:[#allocation2 + $0x2c8] sm:$0xff]
    %v397 = vld [vmem:[#allocation2 + $0x2d0] sm:$0xff]
    %v398 = vld [vmem:[#allocation2 + $0x2d8] sm:$0xff]
    %v399 = vld [vmem:[#allocation2 + $0x2e0] sm:$0xff]
    %v400 = vld [vmem:[#allocation2 + $0x2e8] sm:$0xff]
    %v401 = vld [vmem:[#allocation2 + $0x2f0] sm:$0xff]
    %v402 = vld [vmem:[#allocation2 + $0x2f8] sm:$0xff]
    %v403 = vld [vmem:[#allocation2 + $0x300] sm:$0xff]
    %v404 = vld [vmem:[#allocation2 + $0x308] sm:$0xff]
    %v405 = vld [vmem:[#allocation2 + $0x310] sm:$0xff]
    %v406 = vld [vmem:[#allocation2 + $0x318] sm:$0xff]
    %v407 = vld [vmem:[#allocation2 + $0x320] sm:$0xff]
    %v408 = vld [vmem:[#allocation2 + $0x328] sm:$0xff]
    %v409 = vld [vmem:[#allocation2 + $0x330] sm:$0xff]
    %v410 = vld [vmem:[#allocation2 + $0x338] sm:$0xff]
    %v411 = vld [vmem:[#allocation2 + $0x340] sm:$0xff]
    %v412 = vld [vmem:[#allocation2 + $0x348] sm:$0xff]
    %v413 = vld [vmem:[#allocation2 + $0x350] sm:$0xff]
    %v414 = vld [vmem:[#allocation2 + $0x358] sm:$0xff]
    %v415 = vld [vmem:[#allocation2 + $0x360] sm:$0xff]
    %v416 = vld [vmem:[#allocation2 + $0x368] sm:$0xff]
    %v417 = vld [vmem:[#allocation2 + $0x370] sm:$0xff]
    %v418 = vld [vmem:[#allocation2 + $0x378] sm:$0xff]
    %v419 = vld [vmem:[#allocation2 + $0x380] sm:$0xff]
    %v420 = vld [vmem:[#allocation2 + $0x388] sm:$0xff]
    %v421 = vld [vmem:[#allocation2 + $0x390] sm:$0xff]
    %v422 = vld [vmem:[#allocation2 + $0x398] sm:$0xff]
    %v423 = vld [vmem:[#allocation2 + $0x3a0] sm:$0xff]
    %v424 = vld [vmem:[#allocation2 + $0x3a8] sm:$0xff]
    %v425 = vld [vmem:[#allocation2 + $0x3b0] sm:$0xff]
    %v426 = vld [vmem:[#allocation2 + $0x3b8] sm:$0xff]
    %v427 = vld [vmem:[#allocation2 + $0x3c0] sm:$0xff]
    %v428 = vld [vmem:[#allocation2 + $0x3c8] sm:$0xff]
    %v429 = vld [vmem:[#allocation2 + $0x3d0] sm:$0xff]
    %v430 = vld [vmem:[#allocation2 + $0x3d8] sm:$0xff]
    %v431 = vld [vmem:[#allocation2 + $0x3e0] sm:$0xff]
    %v432 = vld [vmem:[#allocation2 + $0x3e8] sm:$0xff]
    %v433 = vld [vmem:[#allocation2 + $0x3f0] sm:$0xff]
    %v434 = vld [vmem:[#allocation2 + $0x3f8] sm:$0xff]
    %v435 = vld [vmem:[#allocation2 + $0x400] sm:$0xff]
    %v436 = vld [vmem:[#allocation2 + $0x408] sm:$0xff]
    %v437 = vld [vmem:[#allocation2 + $0x410] sm:$0xff]
    %v438 = vld [vmem:[#allocation2 + $0x418] sm:$0xff]
    %v439 = vld [vmem:[#allocation2 + $0x420] sm:$0xff]
    %v440 = vld [vmem:[#allocation2 + $0x428] sm:$0xff]
    %v441 = vld [vmem:[#allocation2 + $0x430] sm:$0xff]
    %v442 = vld [vmem:[#allocation2 + $0x438] sm:$0xff]
    %v443 = vld [vmem:[#allocation2 + $0x440] sm:$0xff]
    %v444 = vld [vmem:[#allocation2 + $0x448] sm:$0xff]
    %v445 = vld [vmem:[#allocation2 + $0x450] sm:$0xff]
    %v446 = vld [vmem:[#allocation2 + $0x458] sm:$0xff]
    %v447 = vld [vmem:[#allocation2 + $0x460] sm:$0xff]
    %v448 = vld [vmem:[#allocation2 + $0x468] sm:$0xff]
    %v449 = vld [vmem:[#allocation2 + $0x470] sm:$0xff]
    %v450 = vld [vmem:[#allocation2 + $0x478] sm:$0xff]
    %v451 = vld [vmem:[#allocation2 + $0x480] sm:$0xff]
    %v452 = vld [vmem:[#allocation2 + $0x488] sm:$0xff]
    %v453 = vld [vmem:[#allocation2 + $0x490] sm:$0xff]
    %v454 = vld [vmem:[#allocation2 + $0x498] sm:$0xff]
    %v455 = vld [vmem:[#allocation2 + $0x4a0] sm:$0xff]
    %v456 = vld [vmem:[#allocation2 + $0x4a8] sm:$0xff]
    %v457 = vld [vmem:[#allocation2 + $0x4b0] sm:$0xff]
    %v458 = vld [vmem:[#allocation2 + $0x4b8] sm:$0xff]
    %v459 = vld [vmem:[#allocation2 + $0x4c0] sm:$0xff]
    %v460 = vld [vmem:[#allocation2 + $0x4c8] sm:$0xff]
    %v461 = vld [vmem:[#allocation2 + $0x4d0] sm:$0xff]
    %v462 = vld [vmem:[#allocation2 + $0x4d8] sm:$0xff]
    %v463 = vld [vmem:[#allocation2 + $0x4e0] sm:$0xff]
    %v464 = vld [vmem:[#allocation2 + $0x4e8] sm:$0xff]
    %v465 = vld [vmem:[#allocation2 + $0x4f0] sm:$0xff]
    %v466 = vld [vmem:[#allocation2 + $0x4f8] sm:$0xff]
    %v467 = vld [vmem:[#allocation2 + $0x500] sm:$0xff]
    %v468 = vld [vmem:[#allocation2 + $0x508] sm:$0xff]
    %v469 = vld [vmem:[#allocation2 + $0x510] sm:$0xff]
    %v470 = vld [vmem:[#allocation2 + $0x518] sm:$0xff]
    %v471 = vld [vmem:[#allocation2 + $0x520] sm:$0xff]
    %v472 = vld [vmem:[#allocation2 + $0x528] sm:$0xff]
    %v473 = vld [vmem:[#allocation2 + $0x530] sm:$0xff]
    %v474 = vld [vmem:[#allocation2 + $0x538] sm:$0xff]
    %v475 = vld [vmem:[#allocation2 + $0x540] sm:$0xff]
    %v476 = vld [vmem:[#allocation2 + $0x548] sm:$0xff]
    %v477 = vld [vmem:[#allocation2 + $0x550] sm:$0xff]
    %v478 = vld [vmem:[#allocation2 + $0x558] sm:$0xff]
    %v479 = vld [vmem:[#allocation2 + $0x560] sm:$0xff]
    %v480 = vld [vmem:[#allocation2 + $0x568] sm:$0xff]
    %v481 = vld [vmem:[#allocation2 + $0x570] sm:$0xff]
    %v482 = vld [vmem:[#allocation2 + $0x578] sm:$0xff]
    %v483 = vld [vmem:[#allocation2 + $0x580] sm:$0xff]
    %v484 = vld [vmem:[#allocation2 + $0x588] sm:$0xff]
    %v485 = vld [vmem:[#allocation2 + $0x590] sm:$0xff]
    %v486 = vld [vmem:[#allocation2 + $0x598] sm:$0xff]
    %v487 = vld [vmem:[#allocation2 + $0x5a0] sm:$0xff]
    %v488 = vld [vmem:[#allocation2 + $0x5a8] sm:$0xff]
    %v489 = vld [vmem:[#allocation2 + $0x5b0] sm:$0xff]
    %v490 = vld [vmem:[#allocation2 + $0x5b8] sm:$0xff]
    %v491 = vld [vmem:[#allocation2 + $0x5c0] sm:$0xff]
    %v492 = vld [vmem:[#allocation2 + $0x5c8] sm:$0xff]
    %v493 = vld [vmem:[#allocation2 + $0x5d0] sm:$0xff]
    %v494 = vld [vmem:[#allocation2 + $0x5d8] sm:$0xff]
    %v495 = vld [vmem:[#allocation2 + $0x5e0] sm:$0xff]
    %v496 = vld [vmem:[#allocation2 + $0x5e8] sm:$0xff]
    %v497 = vld [vmem:[#allocation2 + $0x5f0] sm:$0xff]
    %v498 = vld [vmem:[#allocation2 + $0x5f8] sm:$0xff]
    %v499 = vld [vmem:[#allocation4] sm:$0xff]
    %v500 = vld [vmem:[#allocation4 + $0x8] sm:$0xff]
    %v501 = vld [vmem:[#allocation4 + $0x10] sm:$0xff]
    %v502 = vld [vmem:[#allocation4 + $0x18] sm:$0xff]
    %v503 = vld [vmem:[#allocation4 + $0x20] sm:$0xff]
    %v504 = vld [vmem:[#allocation4 + $0x28] sm:$0xff]
    %v505 = vld [vmem:[#allocation4 + $0x30] sm:$0xff]
    %v506 = vld [vmem:[#allocation4 + $0x38] sm:$0xff]
    %v507 = vld [vmem:[#allocation4 + $0x40] sm:$0xff]
    %v508 = vld [vmem:[#allocation4 + $0x48] sm:$0xff]
    %v509 = vld [vmem:[#allocation4 + $0x50] sm:$0xff]
    %v510 = vld [vmem:[#allocation4 + $0x58] sm:$0xff]
    %v511 = vld [vmem:[#allocation4 + $0x60] sm:$0xff]
    %v512 = vld [vmem:[#allocation4 + $0x68] sm:$0xff]
    %v513 = vld [vmem:[#allocation4 + $0x70] sm:$0xff]
    %v514 = vld [vmem:[#allocation4 + $0x78] sm:$0xff]
    %v515 = vld [vmem:[#allocation4 + $0x80] sm:$0xff]
    %v516 = vld [vmem:[#allocation4 + $0x88] sm:$0xff]
    %v517 = vld [vmem:[#allocation4 + $0x90] sm:$0xff]
    %v518 = vld [vmem:[#allocation4 + $0x98] sm:$0xff]
    %v519 = vld [vmem:[#allocation4 + $0xa0] sm:$0xff]
    %v520 = vld [vmem:[#allocation4 + $0xa8] sm:$0xff]
    %v521 = vld [vmem:[#allocation4 + $0xb0] sm:$0xff]
    %v522 = vld [vmem:[#allocation4 + $0xb8] sm:$0xff]
    %v523 = vld [vmem:[#allocation4 + $0xc0] sm:$0xff]
    %v524 = vld [vmem:[#allocation4 + $0xc8] sm:$0xff]
    %v525 = vld [vmem:[#allocation4 + $0xd0] sm:$0xff]
    %v526 = vld [vmem:[#allocation4 + $0xd8] sm:$0xff]
    %v527 = vld [vmem:[#allocation4 + $0xe0] sm:$0xff]
    %v528 = vld [vmem:[#allocation4 + $0xe8] sm:$0xff]
    %v529 = vld [vmem:[#allocation4 + $0xf0] sm:$0xff]
    %v530 = vld [vmem:[#allocation4 + $0xf8] sm:$0xff]
    %v531 = vld [vmem:[#allocation4 + $0x100] sm:$0xff]
    %v532 = vld [vmem:[#allocation4 + $0x108] sm:$0xff]
    %v533 = vld [vmem:[#allocation4 + $0x110] sm:$0xff]
    %v534 = vld [vmem:[#allocation4 + $0x118] sm:$0xff]
    %v535 = vld [vmem:[#allocation4 + $0x120] sm:$0xff]
    %v536 = vld [vmem:[#allocation4 + $0x128] sm:$0xff]
    %v537 = vld [vmem:[#allocation4 + $0x130] sm:$0xff]
    %v538 = vld [vmem:[#allocation4 + $0x138] sm:$0xff]
    %v539 = vld [vmem:[#allocation4 + $0x140] sm:$0xff]
    %v540 = vld [vmem:[#allocation4 + $0x148] sm:$0xff]
    %v541 = vld [vmem:[#allocation4 + $0x150] sm:$0xff]
    %v542 = vld [vmem:[#allocation4 + $0x158] sm:$0xff]
    %v543 = vld [vmem:[#allocation4 + $0x160] sm:$0xff]
    %v544 = vld [vmem:[#allocation4 + $0x168] sm:$0xff]
    %v545 = vld [vmem:[#allocation4 + $0x170] sm:$0xff]
    %v546 = vld [vmem:[#allocation4 + $0x178] sm:$0xff]
    %v547 = vld [vmem:[#allocation4 + $0x180] sm:$0xff]
    %v548 = vld [vmem:[#allocation4 + $0x188] sm:$0xff]
    %v549 = vld [vmem:[#allocation4 + $0x190] sm:$0xff]
    %v550 = vld [vmem:[#allocation4 + $0x198] sm:$0xff]
    %v551 = vld [vmem:[#allocation4 + $0x1a0] sm:$0xff]
    %v552 = vld [vmem:[#allocation4 + $0x1a8] sm:$0xff]
    %v553 = vld [vmem:[#allocation4 + $0x1b0] sm:$0xff]
    %v554 = vld [vmem:[#allocation4 + $0x1b8] sm:$0xff]
    %v555 = vld [vmem:[#allocation4 + $0x1c0] sm:$0xff]
    %v556 = vld [vmem:[#allocation4 + $0x1c8] sm:$0xff]
    %v557 = vld [vmem:[#allocation4 + $0x1d0] sm:$0xff]
    %v558 = vld [vmem:[#allocation4 + $0x1d8] sm:$0xff]
    %v559 = vld [vmem:[#allocation4 + $0x1e0] sm:$0xff]
    %v560 = vld [vmem:[#allocation4 + $0x1e8] sm:$0xff]
    %v561 = vld [vmem:[#allocation4 + $0x1f0] sm:$0xff]
    %v562 = vld [vmem:[#allocation4 + $0x1f8] sm:$0xff]
    %v563 = vld [vmem:[#allocation6] sm:$0xff]
    %v564 = vld [vmem:[#allocation6 + $0x8] sm:$0xff]
    %v565 = vld [vmem:[#allocation6 + $0x10] sm:$0xff]
    %v566 = vld [vmem:[#allocation6 + $0x18] sm:$0xff]
    %v567 = vld [vmem:[#allocation6 + $0x20] sm:$0xff]
    %v568 = vld [vmem:[#allocation6 + $0x28] sm:$0xff]
    %v569 = vld [vmem:[#allocation6 + $0x30] sm:$0xff]
    %v570 = vld [vmem:[#allocation6 + $0x38] sm:$0xff]
    %v571 = vld [vmem:[#allocation6 + $0x40] sm:$0xff]
    %v572 = vld [vmem:[#allocation6 + $0x48] sm:$0xff]
    %v573 = vld [vmem:[#allocation6 + $0x50] sm:$0xff]
    %v574 = vld [vmem:[#allocation6 + $0x58] sm:$0xff]
    %v575 = vld [vmem:[#allocation6 + $0x60] sm:$0xff]
    %v576 = vld [vmem:[#allocation6 + $0x68] sm:$0xff]
    %v577 = vld [vmem:[#allocation6 + $0x70] sm:$0xff]
    %v578 = vld [vmem:[#allocation6 + $0x78] sm:$0xff]
    %v579 = vld [vmem:[#allocation6 + $0x80] sm:$0xff]
    %v580 = vld [vmem:[#allocation6 + $0x88] sm:$0xff]
    %v581 = vld [vmem:[#allocation6 + $0x90] sm:$0xff]
    %v582 = vld [vmem:[#allocation6 + $0x98] sm:$0xff]
    %v583 = vld [vmem:[#allocation6 + $0xa0] sm:$0xff]
    %v584 = vld [vmem:[#allocation6 + $0xa8] sm:$0xff]
    %v585 = vld [vmem:[#allocation6 + $0xb0] sm:$0xff]
    %v586 = vld [vmem:[#allocation6 + $0xb8] sm:$0xff]
    %v587 = vld [vmem:[#allocation6 + $0xc0] sm:$0xff]
    %v588 = vld [vmem:[#allocation6 + $0xc8] sm:$0xff]
    %v589 = vld [vmem:[#allocation6 + $0xd0] sm:$0xff]
    %v590 = vld [vmem:[#allocation6 + $0xd8] sm:$0xff]
    %v591 = vld [vmem:[#allocation6 + $0xe0] sm:$0xff]
    %v592 = vld [vmem:[#allocation6 + $0xe8] sm:$0xff]
    %v593 = vld [vmem:[#allocation6 + $0xf0] sm:$0xff]
    %v594 = vld [vmem:[#allocation6 + $0xf8] sm:$0xff]
    %v595 = vld [vmem:[#allocation6 + $0x100] sm:$0xff]
    %v596 = vld [vmem:[#allocation6 + $0x108] sm:$0xff]
    %v597 = vld [vmem:[#allocation6 + $0x110] sm:$0xff]
    %v598 = vld [vmem:[#allocation6 + $0x118] sm:$0xff]
    %v599 = vld [vmem:[#allocation6 + $0x120] sm:$0xff]
    %v600 = vld [vmem:[#allocation6 + $0x128] sm:$0xff]
    %v601 = vld [vmem:[#allocation6 + $0x130] sm:$0xff]
    %v602 = vld [vmem:[#allocation6 + $0x138] sm:$0xff]
    %v603 = vld [vmem:[#allocation6 + $0x140] sm:$0xff]
    %v604 = vld [vmem:[#allocation6 + $0x148] sm:$0xff]
    %v605 = vld [vmem:[#allocation6 + $0x150] sm:$0xff]
    %v606 = vld [vmem:[#allocation6 + $0x158] sm:$0xff]
    %v607 = vld [vmem:[#allocation6 + $0x160] sm:$0xff]
    %v608 = vld [vmem:[#allocation6 + $0x168] sm:$0xff]
    %v609 = vld [vmem:[#allocation6 + $0x170] sm:$0xff]
    %v610 = vld [vmem:[#allocation6 + $0x178] sm:$0xff]
    %v611 = vld [vmem:[#allocation6 + $0x180] sm:$0xff]
    %v612 = vld [vmem:[#allocation6 + $0x188] sm:$0xff]
    %v613 = vld [vmem:[#allocation6 + $0x190] sm:$0xff]
    %v614 = vld [vmem:[#allocation6 + $0x198] sm:$0xff]
    %v615 = vld [vmem:[#allocation6 + $0x1a0] sm:$0xff]
    %v616 = vld [vmem:[#allocation6 + $0x1a8] sm:$0xff]
    %v617 = vld [vmem:[#allocation6 + $0x1b0] sm:$0xff]
    %v618 = vld [vmem:[#allocation6 + $0x1b8] sm:$0xff]
    %v619 = vld [vmem:[#allocation6 + $0x1c0] sm:$0xff]
    %v620 = vld [vmem:[#allocation6 + $0x1c8] sm:$0xff]
    %v621 = vld [vmem:[#allocation6 + $0x1d0] sm:$0xff]
    %v622 = vld [vmem:[#allocation6 + $0x1d8] sm:$0xff]
    %v623 = vld [vmem:[#allocation6 + $0x1e0] sm:$0xff]
    %v624 = vld [vmem:[#allocation6 + $0x1e8] sm:$0xff]
    %v625 = vld [vmem:[#allocation6 + $0x1f0] sm:$0xff]
    %v626 = vld [vmem:[#allocation6 + $0x1f8] sm:$0xff]
    %v627 = vld [vmem:[%s3] sm:$0xff]
    %v628 = vld [vmem:[%s3 + $0x8] sm:$0xff]
    %v629 = vld [vmem:[%s2] sm:$0xff]
    %v630 = vld [vmem:[%s2 + $0x8] sm:$0xff]
    %v631 = vld [vmem:[%s2 + $0x10] sm:$0xff]
    %v632 = vld [vmem:[%s2 + $0x18] sm:$0xff]
    %v633 = vld [vmem:[%s2 + $0x20] sm:$0x1]
    %v634 = vld [vmem:[%s2 + $0x28] sm:$0x1]
    %v635 = vld [vmem:[%s2 + $0x30] sm:$0x1]
    %v636 = vld [vmem:[%s2 + $0x38] sm:$0x1]
    %v637 = vld [vmem:[%s0] sm:$0xff]
    %v638 = vld [vmem:[%s0 + $0x8] sm:$0xff]
    %v639 = vld [vmem:[%s0 + $0x10] sm:$0xff]
    %v640 = vld [vmem:[%s0 + $0x18] sm:$0xff]
    %v641 = vld [vmem:[%s1] sm:$0xff]
    %v642 = vld [vmem:[%s1 + $0x8] sm:$0xff]
    %v643 = vld [vmem:[%s1 + $0x10] sm:$0xff]
    %v644 = vld [vmem:[%s1 + $0x18] sm:$0xff]
    %v645 = vld [vmem:[%s8] sm:$0xff]
    %v646 = vld [vmem:[%s8 + $0x8] sm:$0xff]
    %v647 = vld [vmem:[%s9] sm:$0xff]
    %v648 = vld [vmem:[%s9 + $0x8] sm:$0xff]
    %vm649 = vcmask 64512
    %v651 = vsel %vm649, %v647, 0
    %v654 = vsel %vm649, %v648, 0
    %656 = vmatpush.msra.mxu0 0.0
    %657 = vmatpush.msra.mxu0 0.0
    %658 = vmatpush.msra.mxu0 0.0
    %659 = vmatpush.msra.mxu0 0.0
    %660 = vmatpush.msra.mxu0 0.0
    %661 = vmatpush.msra.mxu0 0.0
    %662 = vmatpush.msra.mxu0 0.0
    %663 = vmatpush.msra.mxu0 0.0
    %664 = vmatpush.msra.mxu0 0.0
    %665 = vmatpush.msra.mxu0 0.0
    %666 = vmatpush.msra.mxu0 0.0
    %667 = vmatpush.msra.mxu0 0.0
    %668 = vmatpush.msra.mxu0 0.0
    %669 = vmatpush.msra.mxu0 0.0
    %670 = vmatpush.msra.mxu0 0.0
    %671 = vmatpush.msra.mxu0 %v641
    %672 = vmatmul.f32.gmra.mxu0 %v651
    %v673 = vpop.f32.mrf.mxu0
    %v674 = vadd.f32 0.0, %v673
    %675 = vmatmul.f32.gmra.mxu0 %v654
    %v676 = vpop.f32.mrf.mxu0
    %v677 = vadd.f32 0.0, %v676
    %678 = vdwg.mxu0
    %679 = vmatpush.msra.mxu0 0.0
    %680 = vmatpush.msra.mxu0 0.0
    %681 = vmatpush.msra.mxu0 0.0
    %682 = vmatpush.msra.mxu0 0.0
    %683 = vmatpush.msra.mxu0 0.0
    %684 = vmatpush.msra.mxu0 0.0
    %685 = vmatpush.msra.mxu0 0.0
    %686 = vmatpush.msra.mxu0 0.0
    %687 = vmatpush.msra.mxu0 0.0
    %688 = vmatpush.msra.mxu0 0.0
    %689 = vmatpush.msra.mxu0 0.0
    %690 = vmatpush.msra.mxu0 0.0
    %691 = vmatpush.msra.mxu0 0.0
    %692 = vmatpush.msra.mxu0 0.0
    %693 = vmatpush.msra.mxu0 0.0
    %694 = vmatpush.msra.mxu0 %v642
    %695 = vmatmul.f32.gmra.mxu0 %v651
    %v696 = vpop.f32.mrf.mxu0
    %v697 = vadd.f32 0.0, %v696
    %698 = vmatmul.f32.gmra.mxu0 %v654
    %v699 = vpop.f32.mrf.mxu0
    %v700 = vadd.f32 0.0, %v699
    %701 = vdwg.mxu0
    %702 = vmatpush.msra.mxu0 0.0
    %703 = vmatpush.msra.mxu0 0.0
    %704 = vmatpush.msra.mxu0 0.0
    %705 = vmatpush.msra.mxu0 0.0
    %706 = vmatpush.msra.mxu0 0.0
    %707 = vmatpush.msra.mxu0 0.0
    %708 = vmatpush.msra.mxu0 0.0
    %709 = vmatpush.msra.mxu0 0.0
    %710 = vmatpush.msra.mxu0 0.0
    %711 = vmatpush.msra.mxu0 0.0
    %712 = vmatpush.msra.mxu0 0.0
    %713 = vmatpush.msra.mxu0 0.0
    %714 = vmatpush.msra.mxu0 0.0
    %715 = vmatpush.msra.mxu0 0.0
    %716 = vmatpush.msra.mxu0 0.0
    %717 = vmatpush.msra.mxu0 %v643
    %718 = vmatmul.f32.gmra.mxu0 %v651
    %v719 = vpop.f32.mrf.mxu0
    %v720 = vadd.f32 0.0, %v719
    %721 = vmatmul.f32.gmra.mxu0 %v654
    %v722 = vpop.f32.mrf.mxu0
    %v723 = vadd.f32 0.0, %v722
    %724 = vdwg.mxu0
    %725 = vmatpush.msra.mxu0 0.0
    %726 = vmatpush.msra.mxu0 0.0
    %727 = vmatpush.msra.mxu0 0.0
    %728 = vmatpush.msra.mxu0 0.0
    %729 = vmatpush.msra.mxu0 0.0
    %730 = vmatpush.msra.mxu0 0.0
    %731 = vmatpush.msra.mxu0 0.0
    %732 = vmatpush.msra.mxu0 0.0
    %733 = vmatpush.msra.mxu0 0.0
    %734 = vmatpush.msra.mxu0 0.0
    %735 = vmatpush.msra.mxu0 0.0
    %736 = vmatpush.msra.mxu0 0.0
    %737 = vmatpush.msra.mxu0 0.0
    %738 = vmatpush.msra.mxu0 0.0
    %739 = vmatpush.msra.mxu0 0.0
    %740 = vmatpush.msra.mxu0 %v644
    %741 = vmatmul.f32.gmra.mxu0 %v651
    %v742 = vpop.f32.mrf.mxu0
    %v743 = vadd.f32 0.0, %v742
    %744 = vmatmul.f32.gmra.mxu0 %v654
    %v745 = vpop.f32.mrf.mxu0
    %v746 = vadd.f32 0.0, %v745
    %747 = vdwg.mxu0
    %v749 = vsel %vm649, %v645, 0
    %v752 = vsel %vm649, %v646, 0
    %754 = vmatpush.msra.mxu0 0.0
    %755 = vmatpush.msra.mxu0 0.0
    %756 = vmatpush.msra.mxu0 0.0
    %757 = vmatpush.msra.mxu0 0.0
    %758 = vmatpush.msra.mxu0 0.0
    %759 = vmatpush.msra.mxu0 0.0
    %760 = vmatpush.msra.mxu0 0.0
    %761 = vmatpush.msra.mxu0 0.0
    %762 = vmatpush.msra.mxu0 0.0
    %763 = vmatpush.msra.mxu0 0.0
    %764 = vmatpush.msra.mxu0 0.0
    %765 = vmatpush.msra.mxu0 0.0
    %766 = vmatpush.msra.mxu0 0.0
    %767 = vmatpush.msra.mxu0 0.0
    %768 = vmatpush.msra.mxu0 0.0
    %769 = vmatpush.msra.mxu0 %v637
    %770 = vmatmul.f32.gmra.mxu0 %v749
    %v771 = vpop.f32.mrf.mxu0
    %v772 = vadd.f32 %v674, %v771
    %773 = vmatmul.f32.gmra.mxu0 %v752
    %v774 = vpop.f32.mrf.mxu0
    %v775 = vadd.f32 %v677, %v774
    %776 = vdwg.mxu0
    %777 = vmatpush.msra.mxu0 0.0
    %778 = vmatpush.msra.mxu0 0.0
    %779 = vmatpush.msra.mxu0 0.0
    %780 = vmatpush.msra.mxu0 0.0
    %781 = vmatpush.msra.mxu0 0.0
    %782 = vmatpush.msra.mxu0 0.0
    %783 = vmatpush.msra.mxu0 0.0
    %784 = vmatpush.msra.mxu0 0.0
    %785 = vmatpush.msra.mxu0 0.0
    %786 = vmatpush.msra.mxu0 0.0
    %787 = vmatpush.msra.mxu0 0.0
    %788 = vmatpush.msra.mxu0 0.0
    %789 = vmatpush.msra.mxu0 0.0
    %790 = vmatpush.msra.mxu0 0.0
    %791 = vmatpush.msra.mxu0 0.0
    %792 = vmatpush.msra.mxu0 %v638
    %793 = vmatmul.f32.gmra.mxu0 %v749
    %v794 = vpop.f32.mrf.mxu0
    %v795 = vadd.f32 %v697, %v794
    %796 = vmatmul.f32.gmra.mxu0 %v752
    %v797 = vpop.f32.mrf.mxu0
    %v798 = vadd.f32 %v700, %v797
    %799 = vdwg.mxu0
    %800 = vmatpush.msra.mxu0 0.0
    %801 = vmatpush.msra.mxu0 0.0
    %802 = vmatpush.msra.mxu0 0.0
    %803 = vmatpush.msra.mxu0 0.0
    %804 = vmatpush.msra.mxu0 0.0
    %805 = vmatpush.msra.mxu0 0.0
    %806 = vmatpush.msra.mxu0 0.0
    %807 = vmatpush.msra.mxu0 0.0
    %808 = vmatpush.msra.mxu0 0.0
    %809 = vmatpush.msra.mxu0 0.0
    %810 = vmatpush.msra.mxu0 0.0
    %811 = vmatpush.msra.mxu0 0.0
    %812 = vmatpush.msra.mxu0 0.0
    %813 = vmatpush.msra.mxu0 0.0
    %814 = vmatpush.msra.mxu0 0.0
    %815 = vmatpush.msra.mxu0 %v639
    %816 = vmatmul.f32.gmra.mxu0 %v749
    %v817 = vpop.f32.mrf.mxu0
    %v818 = vadd.f32 %v720, %v817
    %819 = vmatmul.f32.gmra.mxu0 %v752
    %v820 = vpop.f32.mrf.mxu0
    %v821 = vadd.f32 %v723, %v820
    %822 = vdwg.mxu0
    %823 = vmatpush.msra.mxu0 0.0
    %824 = vmatpush.msra.mxu0 0.0
    %825 = vmatpush.msra.mxu0 0.0
    %826 = vmatpush.msra.mxu0 0.0
    %827 = vmatpush.msra.mxu0 0.0
    %828 = vmatpush.msra.mxu0 0.0
    %829 = vmatpush.msra.mxu0 0.0
    %830 = vmatpush.msra.mxu0 0.0
    %831 = vmatpush.msra.mxu0 0.0
    %832 = vmatpush.msra.mxu0 0.0
    %833 = vmatpush.msra.mxu0 0.0
    %834 = vmatpush.msra.mxu0 0.0
    %835 = vmatpush.msra.mxu0 0.0
    %836 = vmatpush.msra.mxu0 0.0
    %837 = vmatpush.msra.mxu0 0.0
    %838 = vmatpush.msra.mxu0 %v640
    %839 = vmatmul.f32.gmra.mxu0 %v749
    %v840 = vpop.f32.mrf.mxu0
    %v841 = vadd.f32 %v743, %v840
    %842 = vmatmul.f32.gmra.mxu0 %v752
    %v843 = vpop.f32.mrf.mxu0
    %v844 = vadd.f32 %v746, %v843
    %845 = vdwg.mxu0
    %v846 = vld [vmem:[#allocation7] sm:$0xf]
    %v848 = vsel %vm649, %v846, 0
    %850 = vmatpush.msra.mxu0 0.0
    %851 = vmatpush.msra.mxu0 0.0
    %852 = vmatpush.msra.mxu0 0.0
    %853 = vmatpush.msra.mxu0 0.0
    %854 = vmatpush.msra.mxu0 0.0
    %855 = vmatpush.msra.mxu0 0.0
    %856 = vmatpush.msra.mxu0 0.0
    %857 = vmatpush.msra.mxu0 0.0
    %858 = vmatpush.msra.mxu0 0.0
    %859 = vmatpush.msra.mxu0 0.0
    %860 = vmatpush.msra.mxu0 0.0
    %861 = vmatpush.msra.mxu0 0.0
    %862 = vmatpush.msra.mxu0 0.0
    %863 = vmatpush.msra.mxu0 0.0
    %864 = vmatpush.msra.mxu0 0.0
    %865 = vmatpush.msra.mxu0 %v641
    %866 = vmatmul.f32.gmra.mxu0 %v848
    %v867 = vpop.f32.mrf.mxu0
    %v868 = vadd.f32 0.0, %v867
    %869 = vdwg.mxu0
    %870 = vmatpush.msra.mxu0 0.0
    %871 = vmatpush.msra.mxu0 0.0
    %872 = vmatpush.msra.mxu0 0.0
    %873 = vmatpush.msra.mxu0 0.0
    %874 = vmatpush.msra.mxu0 0.0
    %875 = vmatpush.msra.mxu0 0.0
    %876 = vmatpush.msra.mxu0 0.0
    %877 = vmatpush.msra.mxu0 0.0
    %878 = vmatpush.msra.mxu0 0.0
    %879 = vmatpush.msra.mxu0 0.0
    %880 = vmatpush.msra.mxu0 0.0
    %881 = vmatpush.msra.mxu0 0.0
    %882 = vmatpush.msra.mxu0 0.0
    %883 = vmatpush.msra.mxu0 0.0
    %884 = vmatpush.msra.mxu0 0.0
    %885 = vmatpush.msra.mxu0 %v642
    %886 = vmatmul.f32.gmra.mxu0 %v848
    %v887 = vpop.f32.mrf.mxu0
    %v888 = vadd.f32 0.0, %v887
    %889 = vdwg.mxu0
    %890 = vmatpush.msra.mxu0 0.0
    %891 = vmatpush.msra.mxu0 0.0
    %892 = vmatpush.msra.mxu0 0.0
    %893 = vmatpush.msra.mxu0 0.0
    %894 = vmatpush.msra.mxu0 0.0
    %895 = vmatpush.msra.mxu0 0.0
    %896 = vmatpush.msra.mxu0 0.0
    %897 = vmatpush.msra.mxu0 0.0
    %898 = vmatpush.msra.mxu0 0.0
    %899 = vmatpush.msra.mxu0 0.0
    %900 = vmatpush.msra.mxu0 0.0
    %901 = vmatpush.msra.mxu0 0.0
    %902 = vmatpush.msra.mxu0 0.0
    %903 = vmatpush.msra.mxu0 0.0
    %904 = vmatpush.msra.mxu0 0.0
    %905 = vmatpush.msra.mxu0 %v643
    %906 = vmatmul.f32.gmra.mxu0 %v848
    %v907 = vpop.f32.mrf.mxu0
    %v908 = vadd.f32 0.0, %v907
    %909 = vdwg.mxu0
    %910 = vmatpush.msra.mxu0 0.0
    %911 = vmatpush.msra.mxu0 0.0
    %912 = vmatpush.msra.mxu0 0.0
    %913 = vmatpush.msra.mxu0 0.0
    %914 = vmatpush.msra.mxu0 0.0
    %915 = vmatpush.msra.mxu0 0.0
    %916 = vmatpush.msra.mxu0 0.0
    %917 = vmatpush.msra.mxu0 0.0
    %918 = vmatpush.msra.mxu0 0.0
    %919 = vmatpush.msra.mxu0 0.0
    %920 = vmatpush.msra.mxu0 0.0
    %921 = vmatpush.msra.mxu0 0.0
    %922 = vmatpush.msra.mxu0 0.0
    %923 = vmatpush.msra.mxu0 0.0
    %924 = vmatpush.msra.mxu0 0.0
    %925 = vmatpush.msra.mxu0 %v644
    %926 = vmatmul.f32.gmra.mxu0 %v848
    %v927 = vpop.f32.mrf.mxu0
    %v928 = vadd.f32 0.0, %v927
    %929 = vdwg.mxu0
    %v930 = vmul.f32 %v868, %v868
    %v931 = vmul.f32 %v888, %v888
    %v932 = vmul.f32 %v908, %v908
    %v933 = vmul.f32 %v928, %v928
    %v938 = vrot.slane %v930, 4
    %v939 = vrot.slane %v931, 4
    %v940 = vrot.slane %v932, 4
    %v941 = vrot.slane %v933, 4
    %vm946 = vcmask 1043456
    %v947 = vsel %vm946, %v868, %v938
    %v948 = vsel %vm946, %v888, %v939
    %v949 = vsel %vm946, %v908, %v940
    %v950 = vsel %vm946, %v928, %v941
    %v951 = vadd.f32 %v947, %v948
    %v952 = vadd.f32 %v951, %v949
    %v953 = vadd.f32 %v952, %v950
    %954 = vadd.xlane.f32.xlu0 %v953
    %v955 = vpop.xlane.xlu0 %954
    %v956 = vmul.f32 %v955, 0.001953125
    %v957 = vmul.f32 %v956, %v956
    %v959 = vrot.slane %v957, 4
    %v961 = vsub.f32 %v956, %v959
    %v962 = vsub.f32 %v868, %v956
    %v963 = vsub.f32 %v888, %v956
    %v964 = vsub.f32 %v908, %v956
    %v965 = vsub.f32 %v928, %v956
    %v966 = vadd.f32 %v961, 1e-05
    %v967 = vrsqrt.pop %v966
    %v968 = vmul.f32 %v967, %v966
    %v969 = vmul.f32 %v968, %v967
    %v970 = vmul.f32 0.5, %v969
    %v971 = vsub.f32 1.5, %v970
    %v972 = vmul.f32 %v967, %v971
    %vm973 = vweird.f32 %v966
    %vm974 = vweird.f32 %v967
    %vm975 = vmor %vm973, %vm974
    %v976 = vsel %vm975, %v967, %v972
    %978 = vset.pattern.permute.xlu0 0
    %979 = vperm.xlu0 %978, %v976
    %v980 = vpop.permute.xlu0 %979
    %v981 = vrot.slane %v980, 4
    %v983 = vmul.f32 %v962, %v981
    %v984 = vmul.f32 %v963, %v981
    %v985 = vmul.f32 %v964, %v981
    %v986 = vmul.f32 %v965, %v981
    %v987 = vmax.f32 %v983, 0.0
    %v988 = vmax.f32 %v984, 0.0
    %v989 = vmax.f32 %v985, 0.0
    %v990 = vmax.f32 %v986, 0.0
    %v991 = vld [vmem:[%s13] sm:$0xff]
    %v992 = vpack.c.bf16 %v987, %v987
    %v993 = vpack.c.bf16 %v988, %v988
    %v994 = vpack.c.bf16 %v989, %v989
    %v995 = vpack.c.bf16 %v990, %v990
    %v1188 = vunpack.c.l.b16 %v115
    %v1189 = vunpack.c.h.b16 %v115
    %v1190 = vunpack.c.l.b16 %v116
    %v1191 = vunpack.c.h.b16 %v116
    %v1192 = vunpack.c.l.b16 %v117
    %v1193 = vunpack.c.h.b16 %v117
    %v1194 = vunpack.c.l.b16 %v118
    %v1195 = vunpack.c.h.b16 %v118
    %v1196 = vunpack.c.l.b16 %v119
    %v1197 = vunpack.c.h.b16 %v119
    %v1198 = vunpack.c.l.b16 %v120
    %v1199 = vunpack.c.h.b16 %v120
    %v1200 = vunpack.c.l.b16 %v121
    %v1201 = vunpack.c.h.b16 %v121
    %v1202 = vunpack.c.l.b16 %v122
    %v1203 = vunpack.c.h.b16 %v122
    %v1204 = vunpack.c.l.b16 %v123
    %v1205 = vunpack.c.h.b16 %v123
    %v1206 = vunpack.c.l.b16 %v124
    %v1207 = vunpack.c.h.b16 %v124
    %v1208 = vunpack.c.l.b16 %v125
    %v1209 = vunpack.c.h.b16 %v125
    %v1210 = vunpack.c.l.b16 %v126
    %v1211 = vunpack.c.h.b16 %v126
    %v1212 = vunpack.c.l.b16 %v127
    %v1213 = vunpack.c.h.b16 %v127
    %v1214 = vunpack.c.l.b16 %v128
    %v1215 = vunpack.c.h.b16 %v128
    %v1216 = vunpack.c.l.b16 %v129
    %v1217 = vunpack.c.h.b16 %v129
    %v1218 = vunpack.c.l.b16 %v130
    %v1219 = vunpack.c.h.b16 %v130
    %v1220 = vunpack.c.l.b16 %v131
    %v1221 = vunpack.c.h.b16 %v131
    %v1222 = vunpack.c.l.b16 %v132
    %v1223 = vunpack.c.h.b16 %v132
    %v1224 = vunpack.c.l.b16 %v133
    %v1225 = vunpack.c.h.b16 %v133
    %v1226 = vunpack.c.l.b16 %v134
    %v1227 = vunpack.c.h.b16 %v134
    %v1228 = vunpack.c.l.b16 %v135
    %v1229 = vunpack.c.h.b16 %v135
    %v1230 = vunpack.c.l.b16 %v136
    %v1231 = vunpack.c.h.b16 %v136
    %v1232 = vunpack.c.l.b16 %v137
    %v1233 = vunpack.c.h.b16 %v137
    %v1234 = vunpack.c.l.b16 %v138
    %v1235 = vunpack.c.h.b16 %v138
    %v1236 = vunpack.c.l.b16 %v139
    %v1237 = vunpack.c.h.b16 %v139
    %v1238 = vunpack.c.l.b16 %v140
    %v1239 = vunpack.c.h.b16 %v140
    %v1240 = vunpack.c.l.b16 %v141
    %v1241 = vunpack.c.h.b16 %v141
    %v1242 = vunpack.c.l.b16 %v142
    %v1243 = vunpack.c.h.b16 %v142
    %v1244 = vunpack.c.l.b16 %v143
    %v1245 = vunpack.c.h.b16 %v143
    %v1246 = vunpack.c.l.b16 %v144
    %v1247 = vunpack.c.h.b16 %v144
    %v1248 = vunpack.c.l.b16 %v145
    %v1249 = vunpack.c.h.b16 %v145
    %v1250 = vunpack.c.l.b16 %v146
    %v1251 = vunpack.c.h.b16 %v146
    %v1252 = vunpack.c.l.b16 %v147
    %v1253 = vunpack.c.h.b16 %v147
    %v1254 = vunpack.c.l.b16 %v148
    %v1255 = vunpack.c.h.b16 %v148
    %v1256 = vunpack.c.l.b16 %v149
    %v1257 = vunpack.c.h.b16 %v149
    %v1258 = vunpack.c.l.b16 %v150
    %v1259 = vunpack.c.h.b16 %v150
    %v1260 = vunpack.c.l.b16 %v151
    %v1261 = vunpack.c.h.b16 %v151
    %v1262 = vunpack.c.l.b16 %v152
    %v1263 = vunpack.c.h.b16 %v152
    %v1264 = vunpack.c.l.b16 %v153
    %v1265 = vunpack.c.h.b16 %v153
    %v1266 = vunpack.c.l.b16 %v154
    %v1267 = vunpack.c.h.b16 %v154
    %v1268 = vunpack.c.l.b16 %v155
    %v1269 = vunpack.c.h.b16 %v155
    %v1270 = vunpack.c.l.b16 %v156
    %v1271 = vunpack.c.h.b16 %v156
    %v1272 = vunpack.c.l.b16 %v157
    %v1273 = vunpack.c.h.b16 %v157
    %v1274 = vunpack.c.l.b16 %v158
    %v1275 = vunpack.c.h.b16 %v158
    %v1276 = vunpack.c.l.b16 %v159
    %v1277 = vunpack.c.h.b16 %v159
    %v1278 = vunpack.c.l.b16 %v160
    %v1279 = vunpack.c.h.b16 %v160
    %v1280 = vunpack.c.l.b16 %v161
    %v1281 = vunpack.c.h.b16 %v161
    %v1282 = vunpack.c.l.b16 %v162
    %v1283 = vunpack.c.h.b16 %v162
    %v1284 = vunpack.c.l.b16 %v163
    %v1285 = vunpack.c.h.b16 %v163
    %v1286 = vunpack.c.l.b16 %v164
    %v1287 = vunpack.c.h.b16 %v164
    %v1288 = vunpack.c.l.b16 %v165
    %v1289 = vunpack.c.h.b16 %v165
    %v1290 = vunpack.c.l.b16 %v166
    %v1291 = vunpack.c.h.b16 %v166
    %v1292 = vunpack.c.l.b16 %v167
    %v1293 = vunpack.c.h.b16 %v167
    %v1294 = vunpack.c.l.b16 %v168
    %v1295 = vunpack.c.h.b16 %v168
    %v1296 = vunpack.c.l.b16 %v169
    %v1297 = vunpack.c.h.b16 %v169
    %v1298 = vunpack.c.l.b16 %v170
    %v1299 = vunpack.c.h.b16 %v170
    %v1300 = vunpack.c.l.b16 %v171
    %v1301 = vunpack.c.h.b16 %v171
    %v1302 = vunpack.c.l.b16 %v172
    %v1303 = vunpack.c.h.b16 %v172
    %v1304 = vunpack.c.l.b16 %v173
    %v1305 = vunpack.c.h.b16 %v173
    %v1306 = vunpack.c.l.b16 %v174
    %v1307 = vunpack.c.h.b16 %v174
    %v1308 = vunpack.c.l.b16 %v175
    %v1309 = vunpack.c.h.b16 %v175
    %v1310 = vunpack.c.l.b16 %v176
    %v1311 = vunpack.c.h.b16 %v176
    %v1312 = vunpack.c.l.b16 %v177
    %v1313 = vunpack.c.h.b16 %v177
    %v1314 = vunpack.c.l.b16 %v178
    %v1315 = vunpack.c.h.b16 %v178
    %v1316 = vunpack.c.l.b16 %v179
    %v1317 = vunpack.c.h.b16 %v179
    %v1318 = vunpack.c.l.b16 %v180
    %v1319 = vunpack.c.h.b16 %v180
    %v1320 = vunpack.c.l.b16 %v181
    %v1321 = vunpack.c.h.b16 %v181
    %v1322 = vunpack.c.l.b16 %v182
    %v1323 = vunpack.c.h.b16 %v182
    %v1324 = vunpack.c.l.b16 %v183
    %v1325 = vunpack.c.h.b16 %v183
    %v1326 = vunpack.c.l.b16 %v184
    %v1327 = vunpack.c.h.b16 %v184
    %v1328 = vunpack.c.l.b16 %v185
    %v1329 = vunpack.c.h.b16 %v185
    %v1330 = vunpack.c.l.b16 %v186
    %v1331 = vunpack.c.h.b16 %v186
    %v1332 = vunpack.c.l.b16 %v187
    %v1333 = vunpack.c.h.b16 %v187
    %v1334 = vunpack.c.l.b16 %v188
    %v1335 = vunpack.c.h.b16 %v188
    %v1336 = vunpack.c.l.b16 %v189
    %v1337 = vunpack.c.h.b16 %v189
    %v1338 = vunpack.c.l.b16 %v190
    %v1339 = vunpack.c.h.b16 %v190
    %v1340 = vunpack.c.l.b16 %v191
    %v1341 = vunpack.c.h.b16 %v191
    %v1342 = vunpack.c.l.b16 %v192
    %v1343 = vunpack.c.h.b16 %v192
    %v1344 = vunpack.c.l.b16 %v193
    %v1345 = vunpack.c.h.b16 %v193
    %v1346 = vunpack.c.l.b16 %v194
    %v1347 = vunpack.c.h.b16 %v194
    %v1348 = vunpack.c.l.b16 %v195
    %v1349 = vunpack.c.h.b16 %v195
    %v1350 = vunpack.c.l.b16 %v196
    %v1351 = vunpack.c.h.b16 %v196
    %v1352 = vunpack.c.l.b16 %v197
    %v1353 = vunpack.c.h.b16 %v197
    %v1354 = vunpack.c.l.b16 %v198
    %v1355 = vunpack.c.h.b16 %v198
    %v1356 = vunpack.c.l.b16 %v199
    %v1357 = vunpack.c.h.b16 %v199
    %v1358 = vunpack.c.l.b16 %v200
    %v1359 = vunpack.c.h.b16 %v200
    %v1360 = vunpack.c.l.b16 %v201
    %v1361 = vunpack.c.h.b16 %v201
    %v1362 = vunpack.c.l.b16 %v202
    %v1363 = vunpack.c.h.b16 %v202
    %v1364 = vunpack.c.l.b16 %v203
    %v1365 = vunpack.c.h.b16 %v203
    %v1366 = vunpack.c.l.b16 %v204
    %v1367 = vunpack.c.h.b16 %v204
    %v1368 = vunpack.c.l.b16 %v205
    %v1369 = vunpack.c.h.b16 %v205
    %v1370 = vunpack.c.l.b16 %v206
    %v1371 = vunpack.c.h.b16 %v206
    %v1372 = vunpack.c.l.b16 %v207
    %v1373 = vunpack.c.h.b16 %v207
    %v1374 = vunpack.c.l.b16 %v208
    %v1375 = vunpack.c.h.b16 %v208
    %v1376 = vunpack.c.l.b16 %v209
    %v1377 = vunpack.c.h.b16 %v209
    %v1378 = vunpack.c.l.b16 %v210
    %v1379 = vunpack.c.h.b16 %v210
    %v1380 = vunpack.c.l.b16 %v211
    %v1381 = vunpack.c.h.b16 %v211
    %v1382 = vunpack.c.l.b16 %v212
    %v1383 = vunpack.c.h.b16 %v212
    %v1384 = vunpack.c.l.b16 %v213
    %v1385 = vunpack.c.h.b16 %v213
    %v1386 = vunpack.c.l.b16 %v214
    %v1387 = vunpack.c.h.b16 %v214
    %v1388 = vunpack.c.l.b16 %v215
    %v1389 = vunpack.c.h.b16 %v215
    %v1390 = vunpack.c.l.b16 %v216
    %v1391 = vunpack.c.h.b16 %v216
    %v1392 = vunpack.c.l.b16 %v217
    %v1393 = vunpack.c.h.b16 %v217
    %v1394 = vunpack.c.l.b16 %v218
    %v1395 = vunpack.c.h.b16 %v218
    %v1396 = vunpack.c.l.b16 %v219
    %v1397 = vunpack.c.h.b16 %v219
    %v1398 = vunpack.c.l.b16 %v220
    %v1399 = vunpack.c.h.b16 %v220
    %v1400 = vunpack.c.l.b16 %v221
    %v1401 = vunpack.c.h.b16 %v221
    %v1402 = vunpack.c.l.b16 %v222
    %v1403 = vunpack.c.h.b16 %v222
    %v1404 = vunpack.c.l.b16 %v223
    %v1405 = vunpack.c.h.b16 %v223
    %v1406 = vunpack.c.l.b16 %v224
    %v1407 = vunpack.c.h.b16 %v224
    %v1408 = vunpack.c.l.b16 %v225
    %v1409 = vunpack.c.h.b16 %v225
    %v1410 = vunpack.c.l.b16 %v226
    %v1411 = vunpack.c.h.b16 %v226
    %v1412 = vunpack.c.l.b16 %v227
    %v1413 = vunpack.c.h.b16 %v227
    %v1414 = vunpack.c.l.b16 %v228
    %v1415 = vunpack.c.h.b16 %v228
    %v1416 = vunpack.c.l.b16 %v229
    %v1417 = vunpack.c.h.b16 %v229
    %v1418 = vunpack.c.l.b16 %v230
    %v1419 = vunpack.c.h.b16 %v230
    %v1420 = vunpack.c.l.b16 %v231
    %v1421 = vunpack.c.h.b16 %v231
    %v1422 = vunpack.c.l.b16 %v232
    %v1423 = vunpack.c.h.b16 %v232
    %v1424 = vunpack.c.l.b16 %v233
    %v1425 = vunpack.c.h.b16 %v233
    %v1426 = vunpack.c.l.b16 %v234
    %v1427 = vunpack.c.h.b16 %v234
    %v1428 = vunpack.c.l.b16 %v235
    %v1429 = vunpack.c.h.b16 %v235
    %v1430 = vunpack.c.l.b16 %v236
    %v1431 = vunpack.c.h.b16 %v236
    %v1432 = vunpack.c.l.b16 %v237
    %v1433 = vunpack.c.h.b16 %v237
    %v1434 = vunpack.c.l.b16 %v238
    %v1435 = vunpack.c.h.b16 %v238
    %v1436 = vunpack.c.l.b16 %v239
    %v1437 = vunpack.c.h.b16 %v239
    %v1438 = vunpack.c.l.b16 %v240
    %v1439 = vunpack.c.h.b16 %v240
    %v1440 = vunpack.c.l.b16 %v241
    %v1441 = vunpack.c.h.b16 %v241
    %v1442 = vunpack.c.l.b16 %v242
    %v1443 = vunpack.c.h.b16 %v242
    %v1444 = vunpack.c.l.b16 %v243
    %v1445 = vunpack.c.h.b16 %v243
    %v1446 = vunpack.c.l.b16 %v244
    %v1447 = vunpack.c.h.b16 %v244
    %v1448 = vunpack.c.l.b16 %v245
    %v1449 = vunpack.c.h.b16 %v245
    %v1450 = vunpack.c.l.b16 %v246
    %v1451 = vunpack.c.h.b16 %v246
    %v1452 = vunpack.c.l.b16 %v247
    %v1453 = vunpack.c.h.b16 %v247
    %v1454 = vunpack.c.l.b16 %v248
    %v1455 = vunpack.c.h.b16 %v248
    %v1456 = vunpack.c.l.b16 %v249
    %v1457 = vunpack.c.h.b16 %v249
    %v1458 = vunpack.c.l.b16 %v250
    %v1459 = vunpack.c.h.b16 %v250
    %v1460 = vunpack.c.l.b16 %v251
    %v1461 = vunpack.c.h.b16 %v251
    %v1462 = vunpack.c.l.b16 %v252
    %v1463 = vunpack.c.h.b16 %v252
    %v1464 = vunpack.c.l.b16 %v253
    %v1465 = vunpack.c.h.b16 %v253
    %v1466 = vunpack.c.l.b16 %v254
    %v1467 = vunpack.c.h.b16 %v254
    %v1468 = vunpack.c.l.b16 %v255
    %v1469 = vunpack.c.h.b16 %v255
    %v1470 = vunpack.c.l.b16 %v256
    %v1471 = vunpack.c.h.b16 %v256
    %v1472 = vunpack.c.l.b16 %v257
    %v1473 = vunpack.c.h.b16 %v257
    %v1474 = vunpack.c.l.b16 %v258
    %v1475 = vunpack.c.h.b16 %v258
    %v1476 = vunpack.c.l.b16 %v259
    %v1477 = vunpack.c.h.b16 %v259
    %v1478 = vunpack.c.l.b16 %v260
    %v1479 = vunpack.c.h.b16 %v260
    %v1480 = vunpack.c.l.b16 %v261
    %v1481 = vunpack.c.h.b16 %v261
    %v1482 = vunpack.c.l.b16 %v262
    %v1483 = vunpack.c.h.b16 %v262
    %v1484 = vunpack.c.l.b16 %v263
    %v1485 = vunpack.c.h.b16 %v263
    %v1486 = vunpack.c.l.b16 %v264
    %v1487 = vunpack.c.h.b16 %v264
    %v1488 = vunpack.c.l.b16 %v265
    %v1489 = vunpack.c.h.b16 %v265
    %v1490 = vunpack.c.l.b16 %v266
    %v1491 = vunpack.c.h.b16 %v266
    %v1492 = vunpack.c.l.b16 %v267
    %v1493 = vunpack.c.h.b16 %v267
    %v1494 = vunpack.c.l.b16 %v268
    %v1495 = vunpack.c.h.b16 %v268
    %v1496 = vunpack.c.l.b16 %v269
    %v1497 = vunpack.c.h.b16 %v269
    %v1498 = vunpack.c.l.b16 %v270
    %v1499 = vunpack.c.h.b16 %v270
    %v1500 = vunpack.c.l.b16 %v271
    %v1501 = vunpack.c.h.b16 %v271
    %v1502 = vunpack.c.l.b16 %v272
    %v1503 = vunpack.c.h.b16 %v272
    %v1504 = vunpack.c.l.b16 %v273
    %v1505 = vunpack.c.h.b16 %v273
    %v1506 = vunpack.c.l.b16 %v274
    %v1507 = vunpack.c.h.b16 %v274
    %v1508 = vunpack.c.l.b16 %v275
    %v1509 = vunpack.c.h.b16 %v275
    %v1510 = vunpack.c.l.b16 %v276
    %v1511 = vunpack.c.h.b16 %v276
    %v1512 = vunpack.c.l.b16 %v277
    %v1513 = vunpack.c.h.b16 %v277
    %v1514 = vunpack.c.l.b16 %v278
    %v1515 = vunpack.c.h.b16 %v278
    %v1516 = vunpack.c.l.b16 %v279
    %v1517 = vunpack.c.h.b16 %v279
    %v1518 = vunpack.c.l.b16 %v280
    %v1519 = vunpack.c.h.b16 %v280
    %v1520 = vunpack.c.l.b16 %v281
    %v1521 = vunpack.c.h.b16 %v281
    %v1522 = vunpack.c.l.b16 %v282
    %v1523 = vunpack.c.h.b16 %v282
    %v1524 = vunpack.c.l.b16 %v283
    %v1525 = vunpack.c.h.b16 %v283
    %v1526 = vunpack.c.l.b16 %v284
    %v1527 = vunpack.c.h.b16 %v284
    %v1528 = vunpack.c.l.b16 %v285
    %v1529 = vunpack.c.h.b16 %v285
    %v1530 = vunpack.c.l.b16 %v286
    %v1531 = vunpack.c.h.b16 %v286
    %v1532 = vunpack.c.l.b16 %v287
    %v1533 = vunpack.c.h.b16 %v287
    %v1534 = vunpack.c.l.b16 %v288
    %v1535 = vunpack.c.h.b16 %v288
    %v1536 = vunpack.c.l.b16 %v289
    %v1537 = vunpack.c.h.b16 %v289
    %v1538 = vunpack.c.l.b16 %v290
    %v1539 = vunpack.c.h.b16 %v290
    %v1540 = vunpack.c.l.b16 %v291
    %v1541 = vunpack.c.h.b16 %v291
    %v1542 = vunpack.c.l.b16 %v292
    %v1543 = vunpack.c.h.b16 %v292
    %v1544 = vunpack.c.l.b16 %v293
    %v1545 = vunpack.c.h.b16 %v293
    %v1546 = vunpack.c.l.b16 %v294
    %v1547 = vunpack.c.h.b16 %v294
    %v1548 = vunpack.c.l.b16 %v295
    %v1549 = vunpack.c.h.b16 %v295
    %v1550 = vunpack.c.l.b16 %v296
    %v1551 = vunpack.c.h.b16 %v296
    %v1552 = vunpack.c.l.b16 %v297
    %v1553 = vunpack.c.h.b16 %v297
    %v1554 = vunpack.c.l.b16 %v298
    %v1555 = vunpack.c.h.b16 %v298
    %v1556 = vunpack.c.l.b16 %v299
    %v1557 = vunpack.c.h.b16 %v299
    %v1558 = vunpack.c.l.b16 %v300
    %v1559 = vunpack.c.h.b16 %v300
    %v1560 = vunpack.c.l.b16 %v301
    %v1561 = vunpack.c.h.b16 %v301
    %v1562 = vunpack.c.l.b16 %v302
    %v1563 = vunpack.c.h.b16 %v302
    %v1564 = vunpack.c.l.b16 %v303
    %v1565 = vunpack.c.h.b16 %v303
    %v1566 = vunpack.c.l.b16 %v304
    %v1567 = vunpack.c.h.b16 %v304
    %v1568 = vunpack.c.l.b16 %v305
    %v1569 = vunpack.c.h.b16 %v305
    %v1570 = vunpack.c.l.b16 %v306
    %v1571 = vunpack.c.h.b16 %v306
    %v1572 = vpack.c.b16 %v1194, %v1188
    %v1573 = vpack.c.b16 %v1195, %v1189
    %v1574 = vpack.c.b16 %v1196, %v1190
    %v1575 = vpack.c.b16 %v1197, %v1191
    %v1576 = vpack.c.b16 %v1198, %v1192
    %v1577 = vpack.c.b16 %v1199, %v1193
    %v1578 = vpack.c.b16 %v1206, %v1200
    %v1579 = vpack.c.b16 %v1207, %v1201
    %v1580 = vpack.c.b16 %v1208, %v1202
    %v1581 = vpack.c.b16 %v1209, %v1203
    %v1582 = vpack.c.b16 %v1210, %v1204
    %v1583 = vpack.c.b16 %v1211, %v1205
    %v1584 = vpack.c.b16 %v1218, %v1212
    %v1585 = vpack.c.b16 %v1219, %v1213
    %v1586 = vpack.c.b16 %v1220, %v1214
    %v1587 = vpack.c.b16 %v1221, %v1215
    %v1588 = vpack.c.b16 %v1222, %v1216
    %v1589 = vpack.c.b16 %v1223, %v1217
    %v1590 = vpack.c.b16 %v1230, %v1224
    %v1591 = vpack.c.b16 %v1231, %v1225
    %v1592 = vpack.c.b16 %v1232, %v1226
    %v1593 = vpack.c.b16 %v1233, %v1227
    %v1594 = vpack.c.b16 %v1234, %v1228
    %v1595 = vpack.c.b16 %v1235, %v1229
    %v1596 = vpack.c.b16 %v1242, %v1236
    %v1597 = vpack.c.b16 %v1243, %v1237
    %v1598 = vpack.c.b16 %v1244, %v1238
    %v1599 = vpack.c.b16 %v1245, %v1239
    %v1600 = vpack.c.b16 %v1246, %v1240
    %v1601 = vpack.c.b16 %v1247, %v1241
    %v1602 = vpack.c.b16 %v1254, %v1248
    %v1603 = vpack.c.b16 %v1255, %v1249
    %v1604 = vpack.c.b16 %v1256, %v1250
    %v1605 = vpack.c.b16 %v1257, %v1251
    %v1606 = vpack.c.b16 %v1258, %v1252
    %v1607 = vpack.c.b16 %v1259, %v1253
    %v1608 = vpack.c.b16 %v1266, %v1260
    %v1609 = vpack.c.b16 %v1267, %v1261
    %v1610 = vpack.c.b16 %v1268, %v1262
    %v1611 = vpack.c.b16 %v1269, %v1263
    %v1612 = vpack.c.b16 %v1270, %v1264
    %v1613 = vpack.c.b16 %v1271, %v1265
    %v1614 = vpack.c.b16 %v1278, %v1272
    %v1615 = vpack.c.b16 %v1279, %v1273
    %v1616 = vpack.c.b16 %v1280, %v1274
    %v1617 = vpack.c.b16 %v1281, %v1275
    %v1618 = vpack.c.b16 %v1282, %v1276
    %v1619 = vpack.c.b16 %v1283, %v1277
    %v1620 = vpack.c.b16 %v1290, %v1284
    %v1621 = vpack.c.b16 %v1291, %v1285
    %v1622 = vpack.c.b16 %v1292, %v1286
    %v1623 = vpack.c.b16 %v1293, %v1287
    %v1624 = vpack.c.b16 %v1294, %v1288
    %v1625 = vpack.c.b16 %v1295, %v1289
    %v1626 = vpack.c.b16 %v1302, %v1296
    %v1627 = vpack.c.b16 %v1303, %v1297
    %v1628 = vpack.c.b16 %v1304, %v1298
    %v1629 = vpack.c.b16 %v1305, %v1299
    %v1630 = vpack.c.b16 %v1306, %v1300
    %v1631 = vpack.c.b16 %v1307, %v1301
    %v1632 = vpack.c.b16 %v1314, %v1308
    %v1633 = vpack.c.b16 %v1315, %v1309
    %v1634 = vpack.c.b16 %v1316, %v1310
    %v1635 = vpack.c.b16 %v1317, %v1311
    %v1636 = vpack.c.b16 %v1318, %v1312
    %v1637 = vpack.c.b16 %v1319, %v1313
    %v1638 = vpack.c.b16 %v1326, %v1320
    %v1639 = vpack.c.b16 %v1327, %v1321
    %v1640 = vpack.c.b16 %v1328, %v1322
    %v1641 = vpack.c.b16 %v1329, %v1323
    %v1642 = vpack.c.b16 %v1330, %v1324
    %v1643 = vpack.c.b16 %v1331, %v1325
    %v1644 = vpack.c.b16 %v1338, %v1332
    %v1645 = vpack.c.b16 %v1339, %v1333
    %v1646 = vpack.c.b16 %v1340, %v1334
    %v1647 = vpack.c.b16 %v1341, %v1335
    %v1648 = vpack.c.b16 %v1342, %v1336
    %v1649 = vpack.c.b16 %v1343, %v1337
    %v1650 = vpack.c.b16 %v1350, %v1344
    %v1651 = vpack.c.b16 %v1351, %v1345
    %v1652 = vpack.c.b16 %v1352, %v1346
    %v1653 = vpack.c.b16 %v1353, %v1347
    %v1654 = vpack.c.b16 %v1354, %v1348
    %v1655 = vpack.c.b16 %v1355, %v1349
    %v1656 = vpack.c.b16 %v1362, %v1356
    %v1657 = vpack.c.b16 %v1363, %v1357
    %v1658 = vpack.c.b16 %v1364, %v1358
    %v1659 = vpack.c.b16 %v1365, %v1359
    %v1660 = vpack.c.b16 %v1366, %v1360
    %v1661 = vpack.c.b16 %v1367, %v1361
    %v1662 = vpack.c.b16 %v1374, %v1368
    %v1663 = vpack.c.b16 %v1375, %v1369
    %v1664 = vpack.c.b16 %v1376, %v1370
    %v1665 = vpack.c.b16 %v1377, %v1371
    %v1666 = vpack.c.b16 %v1378, %v1372
    %v1667 = vpack.c.b16 %v1379, %v1373
    %v1668 = vpack.c.b16 %v1386, %v1380
    %v1669 = vpack.c.b16 %v1387, %v1381
    %v1670 = vpack.c.b16 %v1388, %v1382
    %v1671 = vpack.c.b16 %v1389, %v1383
    %v1672 = vpack.c.b16 %v1390, %v1384
    %v1673 = vpack.c.b16 %v1391, %v1385
    %v1674 = vpack.c.b16 %v1398, %v1392
    %v1675 = vpack.c.b16 %v1399, %v1393
    %v1676 = vpack.c.b16 %v1400, %v1394
    %v1677 = vpack.c.b16 %v1401, %v1395
    %v1678 = vpack.c.b16 %v1402, %v1396
    %v1679 = vpack.c.b16 %v1403, %v1397
    %v1680 = vpack.c.b16 %v1410, %v1404
    %v1681 = vpack.c.b16 %v1411, %v1405
    %v1682 = vpack.c.b16 %v1412, %v1406
    %v1683 = vpack.c.b16 %v1413, %v1407
    %v1684 = vpack.c.b16 %v1414, %v1408
    %v1685 = vpack.c.b16 %v1415, %v1409
    %v1686 = vpack.c.b16 %v1422, %v1416
    %v1687 = vpack.c.b16 %v1423, %v1417
    %v1688 = vpack.c.b16 %v1424, %v1418
    %v1689 = vpack.c.b16 %v1425, %v1419
    %v1690 = vpack.c.b16 %v1426, %v1420
    %v1691 = vpack.c.b16 %v1427, %v1421
    %v1692 = vpack.c.b16 %v1434, %v1428
    %v1693 = vpack.c.b16 %v1435, %v1429
    %v1694 = vpack.c.b16 %v1436, %v1430
    %v1695 = vpack.c.b16 %v1437, %v1431
    %v1696 = vpack.c.b16 %v1438, %v1432
    %v1697 = vpack.c.b16 %v1439, %v1433
    %v1698 = vpack.c.b16 %v1446, %v1440
    %v1699 = vpack.c.b16 %v1447, %v1441
    %v1700 = vpack.c.b16 %v1448, %v1442
    %v1701 = vpack.c.b16 %v1449, %v1443
    %v1702 = vpack.c.b16 %v1450, %v1444
    %v1703 = vpack.c.b16 %v1451, %v1445
    %v1704 = vpack.c.b16 %v1458, %v1452
    %v1705 = vpack.c.b16 %v1459, %v1453
    %v1706 = vpack.c.b16 %v1460, %v1454
    %v1707 = vpack.c.b16 %v1461, %v1455
    %v1708 = vpack.c.b16 %v1462, %v1456
    %v1709 = vpack.c.b16 %v1463, %v1457
    %v1710 = vpack.c.b16 %v1470, %v1464
    %v1711 = vpack.c.b16 %v1471, %v1465
    %v1712 = vpack.c.b16 %v1472, %v1466
    %v1713 = vpack.c.b16 %v1473, %v1467
    %v1714 = vpack.c.b16 %v1474, %v1468
    %v1715 = vpack.c.b16 %v1475, %v1469
    %v1716 = vpack.c.b16 %v1482, %v1476
    %v1717 = vpack.c.b16 %v1483, %v1477
    %v1718 = vpack.c.b16 %v1484, %v1478
    %v1719 = vpack.c.b16 %v1485, %v1479
    %v1720 = vpack.c.b16 %v1486, %v1480
    %v1721 = vpack.c.b16 %v1487, %v1481
    %v1722 = vpack.c.b16 %v1494, %v1488
    %v1723 = vpack.c.b16 %v1495, %v1489
    %v1724 = vpack.c.b16 %v1496, %v1490
    %v1725 = vpack.c.b16 %v1497, %v1491
    %v1726 = vpack.c.b16 %v1498, %v1492
    %v1727 = vpack.c.b16 %v1499, %v1493
    %v1728 = vpack.c.b16 %v1506, %v1500
    %v1729 = vpack.c.b16 %v1507, %v1501
    %v1730 = vpack.c.b16 %v1508, %v1502
    %v1731 = vpack.c.b16 %v1509, %v1503
    %v1732 = vpack.c.b16 %v1510, %v1504
    %v1733 = vpack.c.b16 %v1511, %v1505
    %v1734 = vpack.c.b16 %v1518, %v1512
    %v1735 = vpack.c.b16 %v1519, %v1513
    %v1736 = vpack.c.b16 %v1520, %v1514
    %v1737 = vpack.c.b16 %v1521, %v1515
    %v1738 = vpack.c.b16 %v1522, %v1516
    %v1739 = vpack.c.b16 %v1523, %v1517
    %v1740 = vpack.c.b16 %v1530, %v1524
    %v1741 = vpack.c.b16 %v1531, %v1525
    %v1742 = vpack.c.b16 %v1532, %v1526
    %v1743 = vpack.c.b16 %v1533, %v1527
    %v1744 = vpack.c.b16 %v1534, %v1528
    %v1745 = vpack.c.b16 %v1535, %v1529
    %v1746 = vpack.c.b16 %v1542, %v1536
    %v1747 = vpack.c.b16 %v1543, %v1537
    %v1748 = vpack.c.b16 %v1544, %v1538
    %v1749 = vpack.c.b16 %v1545, %v1539
    %v1750 = vpack.c.b16 %v1546, %v1540
    %v1751 = vpack.c.b16 %v1547, %v1541
    %v1752 = vpack.c.b16 %v1554, %v1548
    %v1753 = vpack.c.b16 %v1555, %v1549
    %v1754 = vpack.c.b16 %v1556, %v1550
    %v1755 = vpack.c.b16 %v1557, %v1551
    %v1756 = vpack.c.b16 %v1558, %v1552
    %v1757 = vpack.c.b16 %v1559, %v1553
    %v1758 = vpack.c.b16 %v1566, %v1560
    %v1759 = vpack.c.b16 %v1567, %v1561
    %v1760 = vpack.c.b16 %v1568, %v1562
    %v1761 = vpack.c.b16 %v1569, %v1563
    %v1762 = vpack.c.b16 %v1570, %v1564
    %v1763 = vpack.c.b16 %v1571, %v1565
    %1956 = vmatpush.bf16.msra.mxu0 %v1614
    %1957 = vmatpush.bf16.msra.mxu0 %v1608
    %1958 = vmatpush.bf16.msra.mxu0 %v1602
    %1959 = vmatpush.bf16.msra.mxu0 %v1596
    %1960 = vmatpush.bf16.msra.mxu0 %v1590
    %1961 = vmatpush.bf16.msra.mxu0 %v1584
    %1962 = vmatpush.bf16.msra.mxu0 %v1578
    %1963 = vmatpush.bf16.msra.mxu0 %v1572
    %1964 = vmatmul.bf16.gmra.mxu0 %v992
    %v1965 = vpop.f32.mrf.mxu0
    %v1966 = vadd.f32 0.0, %v1965
    %v1967 = vpop.f32.mrf.mxu0
    %1968 = vdwg.mxu0
    %1969 = vmatpush.bf16.msra.mxu0 %v1662
    %1970 = vmatpush.bf16.msra.mxu0 %v1656
    %1971 = vmatpush.bf16.msra.mxu0 %v1650
    %1972 = vmatpush.bf16.msra.mxu0 %v1644
    %1973 = vmatpush.bf16.msra.mxu0 %v1638
    %1974 = vmatpush.bf16.msra.mxu0 %v1632
    %1975 = vmatpush.bf16.msra.mxu0 %v1626
    %1976 = vmatpush.bf16.msra.mxu0 %v1620
    %1977 = vmatmul.bf16.gmra.mxu0 %v993
    %v1978 = vpop.f32.mrf.mxu0
    %v1979 = vadd.f32 %v1966, %v1978
    %v1980 = vpop.f32.mrf.mxu0
    %1981 = vdwg.mxu0
    %1982 = vmatpush.bf16.msra.mxu0 %v1710
    %1983 = vmatpush.bf16.msra.mxu0 %v1704
    %1984 = vmatpush.bf16.msra.mxu0 %v1698
    %1985 = vmatpush.bf16.msra.mxu0 %v1692
    %1986 = vmatpush.bf16.msra.mxu0 %v1686
    %1987 = vmatpush.bf16.msra.mxu0 %v1680
    %1988 = vmatpush.bf16.msra.mxu0 %v1674
    %1989 = vmatpush.bf16.msra.mxu0 %v1668
    %1990 = vmatmul.bf16.gmra.mxu0 %v994
    %v1991 = vpop.f32.mrf.mxu0
    %v1992 = vadd.f32 %v1979, %v1991
    %v1993 = vpop.f32.mrf.mxu0
    %1994 = vdwg.mxu0
    %1995 = vmatpush.bf16.msra.mxu0 %v1758
    %1996 = vmatpush.bf16.msra.mxu0 %v1752
    %1997 = vmatpush.bf16.msra.mxu0 %v1746
    %1998 = vmatpush.bf16.msra.mxu0 %v1740
    %1999 = vmatpush.bf16.msra.mxu0 %v1734
    %2000 = vmatpush.bf16.msra.mxu0 %v1728
    %2001 = vmatpush.bf16.msra.mxu0 %v1722
    %2002 = vmatpush.bf16.msra.mxu0 %v1716
    %2003 = vmatmul.bf16.gmra.mxu0 %v995
    %v2004 = vpop.f32.mrf.mxu0
    %v2005 = vadd.f32 %v1992, %v2004
    %v2006 = vpop.f32.mrf.mxu0
    %2007 = vdwg.mxu0
    %2008 = vmatpush.bf16.msra.mxu0 %v1615
    %2009 = vmatpush.bf16.msra.mxu0 %v1609
    %2010 = vmatpush.bf16.msra.mxu0 %v1603
    %2011 = vmatpush.bf16.msra.mxu0 %v1597
    %2012 = vmatpush.bf16.msra.mxu0 %v1591
    %2013 = vmatpush.bf16.msra.mxu0 %v1585
    %2014 = vmatpush.bf16.msra.mxu0 %v1579
    %2015 = vmatpush.bf16.msra.mxu0 %v1573
    %2016 = vmatmul.bf16.gmra.mxu0 %v992
    %v2017 = vpop.f32.mrf.mxu0
    %v2018 = vadd.f32 0.0, %v2017
    %v2019 = vpop.f32.mrf.mxu0
    %2020 = vdwg.mxu0
    %2021 = vmatpush.bf16.msra.mxu0 %v1663
    %2022 = vmatpush.bf16.msra.mxu0 %v1657
    %2023 = vmatpush.bf16.msra.mxu0 %v1651
    %2024 = vmatpush.bf16.msra.mxu0 %v1645
    %2025 = vmatpush.bf16.msra.mxu0 %v1639
    %2026 = vmatpush.bf16.msra.mxu0 %v1633
    %2027 = vmatpush.bf16.msra.mxu0 %v1627
    %2028 = vmatpush.bf16.msra.mxu0 %v1621
    %2029 = vmatmul.bf16.gmra.mxu0 %v993
    %v2030 = vpop.f32.mrf.mxu0
    %v2031 = vadd.f32 %v2018, %v2030
    %v2032 = vpop.f32.mrf.mxu0
    %2033 = vdwg.mxu0
    %2034 = vmatpush.bf16.msra.mxu0 %v1711
    %2035 = vmatpush.bf16.msra.mxu0 %v1705
    %2036 = vmatpush.bf16.msra.mxu0 %v1699
    %2037 = vmatpush.bf16.msra.mxu0 %v1693
    %2038 = vmatpush.bf16.msra.mxu0 %v1687
    %2039 = vmatpush.bf16.msra.mxu0 %v1681
    %2040 = vmatpush.bf16.msra.mxu0 %v1675
    %2041 = vmatpush.bf16.msra.mxu0 %v1669
    %2042 = vmatmul.bf16.gmra.mxu0 %v994
    %v2043 = vpop.f32.mrf.mxu0
    %v2044 = vadd.f32 %v2031, %v2043
    %v2045 = vpop.f32.mrf.mxu0
    %2046 = vdwg.mxu0
    %2047 = vmatpush.bf16.msra.mxu0 %v1759
    %2048 = vmatpush.bf16.msra.mxu0 %v1753
    %2049 = vmatpush.bf16.msra.mxu0 %v1747
    %2050 = vmatpush.bf16.msra.mxu0 %v1741
    %2051 = vmatpush.bf16.msra.mxu0 %v1735
    %2052 = vmatpush.bf16.msra.mxu0 %v1729
    %2053 = vmatpush.bf16.msra.mxu0 %v1723
    %2054 = vmatpush.bf16.msra.mxu0 %v1717
    %2055 = vmatmul.bf16.gmra.mxu0 %v995
    %v2056 = vpop.f32.mrf.mxu0
    %v2057 = vadd.f32 %v2044, %v2056
    %v2058 = vpop.f32.mrf.mxu0
    %2059 = vdwg.mxu0
    %2060 = vmatpush.bf16.msra.mxu0 %v1616
    %2061 = vmatpush.bf16.msra.mxu0 %v1610
    %2062 = vmatpush.bf16.msra.mxu0 %v1604
    %2063 = vmatpush.bf16.msra.mxu0 %v1598
    %2064 = vmatpush.bf16.msra.mxu0 %v1592
    %2065 = vmatpush.bf16.msra.mxu0 %v1586
    %2066 = vmatpush.bf16.msra.mxu0 %v1580
    %2067 = vmatpush.bf16.msra.mxu0 %v1574
    %2068 = vmatmul.bf16.gmra.mxu0 %v992
    %v2069 = vpop.f32.mrf.mxu0
    %v2070 = vadd.f32 0.0, %v2069
    %v2071 = vpop.f32.mrf.mxu0
    %2072 = vdwg.mxu0
    %2073 = vmatpush.bf16.msra.mxu0 %v1664
    %2074 = vmatpush.bf16.msra.mxu0 %v1658
    %2075 = vmatpush.bf16.msra.mxu0 %v1652
    %2076 = vmatpush.bf16.msra.mxu0 %v1646
    %2077 = vmatpush.bf16.msra.mxu0 %v1640
    %2078 = vmatpush.bf16.msra.mxu0 %v1634
    %2079 = vmatpush.bf16.msra.mxu0 %v1628
    %2080 = vmatpush.bf16.msra.mxu0 %v1622
    %2081 = vmatmul.bf16.gmra.mxu0 %v993
    %v2082 = vpop.f32.mrf.mxu0
    %v2083 = vadd.f32 %v2070, %v2082
    %v2084 = vpop.f32.mrf.mxu0
    %2085 = vdwg.mxu0
    %2086 = vmatpush.bf16.msra.mxu0 %v1712
    %2087 = vmatpush.bf16.msra.mxu0 %v1706
    %2088 = vmatpush.bf16.msra.mxu0 %v1700
    %2089 = vmatpush.bf16.msra.mxu0 %v1694
    %2090 = vmatpush.bf16.msra.mxu0 %v1688
    %2091 = vmatpush.bf16.msra.mxu0 %v1682
    %2092 = vmatpush.bf16.msra.mxu0 %v1676
    %2093 = vmatpush.bf16.msra.mxu0 %v1670
    %2094 = vmatmul.bf16.gmra.mxu0 %v994
    %v2095 = vpop.f32.mrf.mxu0
    %v2096 = vadd.f32 %v2083, %v2095
    %v2097 = vpop.f32.mrf.mxu0
    %2098 = vdwg.mxu0
    %2099 = vmatpush.bf16.msra.mxu0 %v1760
    %2100 = vmatpush.bf16.msra.mxu0 %v1754
    %2101 = vmatpush.bf16.msra.mxu0 %v1748
    %2102 = vmatpush.bf16.msra.mxu0 %v1742
    %2103 = vmatpush.bf16.msra.mxu0 %v1736
    %2104 = vmatpush.bf16.msra.mxu0 %v1730
    %2105 = vmatpush.bf16.msra.mxu0 %v1724
    %2106 = vmatpush.bf16.msra.mxu0 %v1718
    %2107 = vmatmul.bf16.gmra.mxu0 %v995
    %v2108 = vpop.f32.mrf.mxu0
    %v2109 = vadd.f32 %v2096, %v2108
    %v2110 = vpop.f32.mrf.mxu0
    %2111 = vdwg.mxu0
    %2112 = vmatpush.bf16.msra.mxu0 %v1617
    %2113 = vmatpush.bf16.msra.mxu0 %v1611
    %2114 = vmatpush.bf16.msra.mxu0 %v1605
    %2115 = vmatpush.bf16.msra.mxu0 %v1599
    %2116 = vmatpush.bf16.msra.mxu0 %v1593
    %2117 = vmatpush.bf16.msra.mxu0 %v1587
    %2118 = vmatpush.bf16.msra.mxu0 %v1581
    %2119 = vmatpush.bf16.msra.mxu0 %v1575
    %2120 = vmatmul.bf16.gmra.mxu0 %v992
    %v2121 = vpop.f32.mrf.mxu0
    %v2122 = vadd.f32 0.0, %v2121
    %v2123 = vpop.f32.mrf.mxu0
    %2124 = vdwg.mxu0
    %2125 = vmatpush.bf16.msra.mxu0 %v1665
    %2126 = vmatpush.bf16.msra.mxu0 %v1659
    %2127 = vmatpush.bf16.msra.mxu0 %v1653
    %2128 = vmatpush.bf16.msra.mxu0 %v1647
    %2129 = vmatpush.bf16.msra.mxu0 %v1641
    %2130 = vmatpush.bf16.msra.mxu0 %v1635
    %2131 = vmatpush.bf16.msra.mxu0 %v1629
    %2132 = vmatpush.bf16.msra.mxu0 %v1623
    %2133 = vmatmul.bf16.gmra.mxu0 %v993
    %v2134 = vpop.f32.mrf.mxu0
    %v2135 = vadd.f32 %v2122, %v2134
    %v2136 = vpop.f32.mrf.mxu0
    %2137 = vdwg.mxu0
    %2138 = vmatpush.bf16.msra.mxu0 %v1713
    %2139 = vmatpush.bf16.msra.mxu0 %v1707
    %2140 = vmatpush.bf16.msra.mxu0 %v1701
    %2141 = vmatpush.bf16.msra.mxu0 %v1695
    %2142 = vmatpush.bf16.msra.mxu0 %v1689
    %2143 = vmatpush.bf16.msra.mxu0 %v1683
    %2144 = vmatpush.bf16.msra.mxu0 %v1677
    %2145 = vmatpush.bf16.msra.mxu0 %v1671
    %2146 = vmatmul.bf16.gmra.mxu0 %v994
    %v2147 = vpop.f32.mrf.mxu0
    %v2148 = vadd.f32 %v2135, %v2147
    %v2149 = vpop.f32.mrf.mxu0
    %2150 = vdwg.mxu0
    %2151 = vmatpush.bf16.msra.mxu0 %v1761
    %2152 = vmatpush.bf16.msra.mxu0 %v1755
    %2153 = vmatpush.bf16.msra.mxu0 %v1749
    %2154 = vmatpush.bf16.msra.mxu0 %v1743
    %2155 = vmatpush.bf16.msra.mxu0 %v1737
    %2156 = vmatpush.bf16.msra.mxu0 %v1731
    %2157 = vmatpush.bf16.msra.mxu0 %v1725
    %2158 = vmatpush.bf16.msra.mxu0 %v1719
    %2159 = vmatmul.bf16.gmra.mxu0 %v995
    %v2160 = vpop.f32.mrf.mxu0
    %v2161 = vadd.f32 %v2148, %v2160
    %v2162 = vpop.f32.mrf.mxu0
    %2163 = vdwg.mxu0
    %2164 = vmatpush.bf16.msra.mxu0 %v1618
    %2165 = vmatpush.bf16.msra.mxu0 %v1612
    %2166 = vmatpush.bf16.msra.mxu0 %v1606
    %2167 = vmatpush.bf16.msra.mxu0 %v1600
    %2168 = vmatpush.bf16.msra.mxu0 %v1594
    %2169 = vmatpush.bf16.msra.mxu0 %v1588
    %2170 = vmatpush.bf16.msra.mxu0 %v1582
    %2171 = vmatpush.bf16.msra.mxu0 %v1576
    %2172 = vmatmul.bf16.gmra.mxu0 %v992
    %v2173 = vpop.f32.mrf.mxu0
    %v2174 = vadd.f32 0.0, %v2173
    %v2175 = vpop.f32.mrf.mxu0
    %2176 = vdwg.mxu0
    %2177 = vmatpush.bf16.msra.mxu0 %v1666
    %2178 = vmatpush.bf16.msra.mxu0 %v1660
    %2179 = vmatpush.bf16.msra.mxu0 %v1654
    %2180 = vmatpush.bf16.msra.mxu0 %v1648
    %2181 = vmatpush.bf16.msra.mxu0 %v1642
    %2182 = vmatpush.bf16.msra.mxu0 %v1636
    %2183 = vmatpush.bf16.msra.mxu0 %v1630
    %2184 = vmatpush.bf16.msra.mxu0 %v1624
    %2185 = vmatmul.bf16.gmra.mxu0 %v993
    %v2186 = vpop.f32.mrf.mxu0
    %v2187 = vadd.f32 %v2174, %v2186
    %v2188 = vpop.f32.mrf.mxu0
    %2189 = vdwg.mxu0
    %2190 = vmatpush.bf16.msra.mxu0 %v1714
    %2191 = vmatpush.bf16.msra.mxu0 %v1708
    %2192 = vmatpush.bf16.msra.mxu0 %v1702
    %2193 = vmatpush.bf16.msra.mxu0 %v1696
    %2194 = vmatpush.bf16.msra.mxu0 %v1690
    %2195 = vmatpush.bf16.msra.mxu0 %v1684
    %2196 = vmatpush.bf16.msra.mxu0 %v1678
    %2197 = vmatpush.bf16.msra.mxu0 %v1672
    %2198 = vmatmul.bf16.gmra.mxu0 %v994
    %v2199 = vpop.f32.mrf.mxu0
    %v2200 = vadd.f32 %v2187, %v2199
    %v2201 = vpop.f32.mrf.mxu0
    %2202 = vdwg.mxu0
    %2203 = vmatpush.bf16.msra.mxu0 %v1762
    %2204 = vmatpush.bf16.msra.mxu0 %v1756
    %2205 = vmatpush.bf16.msra.mxu0 %v1750
    %2206 = vmatpush.bf16.msra.mxu0 %v1744
    %2207 = vmatpush.bf16.msra.mxu0 %v1738
    %2208 = vmatpush.bf16.msra.mxu0 %v1732
    %2209 = vmatpush.bf16.msra.mxu0 %v1726
    %2210 = vmatpush.bf16.msra.mxu0 %v1720
    %2211 = vmatmul.bf16.gmra.mxu0 %v995
    %v2212 = vpop.f32.mrf.mxu0
    %v2213 = vadd.f32 %v2200, %v2212
    %v2214 = vpop.f32.mrf.mxu0
    %2215 = vdwg.mxu0
    %2216 = vmatpush.bf16.msra.mxu0 %v1619
    %2217 = vmatpush.bf16.msra.mxu0 %v1613
    %2218 = vmatpush.bf16.msra.mxu0 %v1607
    %2219 = vmatpush.bf16.msra.mxu0 %v1601
    %2220 = vmatpush.bf16.msra.mxu0 %v1595
    %2221 = vmatpush.bf16.msra.mxu0 %v1589
    %2222 = vmatpush.bf16.msra.mxu0 %v1583
    %2223 = vmatpush.bf16.msra.mxu0 %v1577
    %2224 = vmatmul.bf16.gmra.mxu0 %v992
    %v2225 = vpop.f32.mrf.mxu0
    %v2226 = vadd.f32 0.0, %v2225
    %v2227 = vpop.f32.mrf.mxu0
    %2228 = vdwg.mxu0
    %2229 = vmatpush.bf16.msra.mxu0 %v1667
    %2230 = vmatpush.bf16.msra.mxu0 %v1661
    %2231 = vmatpush.bf16.msra.mxu0 %v1655
    %2232 = vmatpush.bf16.msra.mxu0 %v1649
    %2233 = vmatpush.bf16.msra.mxu0 %v1643
    %2234 = vmatpush.bf16.msra.mxu0 %v1637
    %2235 = vmatpush.bf16.msra.mxu0 %v1631
    %2236 = vmatpush.bf16.msra.mxu0 %v1625
    %2237 = vmatmul.bf16.gmra.mxu0 %v993
    %v2238 = vpop.f32.mrf.mxu0
    %v2239 = vadd.f32 %v2226, %v2238
    %v2240 = vpop.f32.mrf.mxu0
    %2241 = vdwg.mxu0
    %2242 = vmatpush.bf16.msra.mxu0 %v1715
    %2243 = vmatpush.bf16.msra.mxu0 %v1709
    %2244 = vmatpush.bf16.msra.mxu0 %v1703
    %2245 = vmatpush.bf16.msra.mxu0 %v1697
    %2246 = vmatpush.bf16.msra.mxu0 %v1691
    %2247 = vmatpush.bf16.msra.mxu0 %v1685
    %2248 = vmatpush.bf16.msra.mxu0 %v1679
    %2249 = vmatpush.bf16.msra.mxu0 %v1673
    %2250 = vmatmul.bf16.gmra.mxu0 %v994
    %v2251 = vpop.f32.mrf.mxu0
    %v2252 = vadd.f32 %v2239, %v2251
    %v2253 = vpop.f32.mrf.mxu0
    %2254 = vdwg.mxu0
    %2255 = vmatpush.bf16.msra.mxu0 %v1763
    %2256 = vmatpush.bf16.msra.mxu0 %v1757
    %2257 = vmatpush.bf16.msra.mxu0 %v1751
    %2258 = vmatpush.bf16.msra.mxu0 %v1745
    %2259 = vmatpush.bf16.msra.mxu0 %v1739
    %2260 = vmatpush.bf16.msra.mxu0 %v1733
    %2261 = vmatpush.bf16.msra.mxu0 %v1727
    %2262 = vmatpush.bf16.msra.mxu0 %v1721
    %2263 = vmatmul.bf16.gmra.mxu0 %v995
    %v2264 = vpop.f32.mrf.mxu0
    %v2265 = vadd.f32 %v2252, %v2264
    %v2266 = vpop.f32.mrf.mxu0
    %2267 = vdwg.mxu0
    %v2271 = vrot.slane %v2161, 4
    %v2272 = vrot.slane %v2213, 4
    %v2273 = vrot.slane %v2265, 4
    %v2277 = vsel %vm946, %v2005, %v2271
    %v2278 = vsel %vm946, %v2057, %v2272
    %v2279 = vsel %vm946, %v2109, %v2273
    %v2281 = vsel %vm649, %v991, 0
    %2283 = vmatpush.msra.mxu0 0.0
    %2284 = vmatpush.msra.mxu0 0.0
    %2285 = vmatpush.msra.mxu0 0.0
    %2286 = vmatpush.msra.mxu0 0.0
    %2287 = vmatpush.msra.mxu0 0.0
    %2288 = vmatpush.msra.mxu0 0.0
    %2289 = vmatpush.msra.mxu0 0.0
    %2290 = vmatpush.msra.mxu0 0.0
    %2291 = vmatpush.msra.mxu0 0.0
    %2292 = vmatpush.msra.mxu0 0.0
    %2293 = vmatpush.msra.mxu0 0.0
    %2294 = vmatpush.msra.mxu0 0.0
    %2295 = vmatpush.msra.mxu0 0.0
    %2296 = vmatpush.msra.mxu0 0.0
    %2297 = vmatpush.msra.mxu0 0.0
    %2298 = vmatpush.msra.mxu0 %v2277
    %2299 = vmatmul.f32.gmra.mxu0 %v2281
    %v2300 = vpop.f32.mrf.mxu0
    %v2301 = vadd.f32 0.0, %v2300
    %2302 = vdwg.mxu0
    %2303 = vmatpush.msra.mxu0 0.0
    %2304 = vmatpush.msra.mxu0 0.0
    %2305 = vmatpush.msra.mxu0 0.0
    %2306 = vmatpush.msra.mxu0 0.0
    %2307 = vmatpush.msra.mxu0 0.0
    %2308 = vmatpush.msra.mxu0 0.0
    %2309 = vmatpush.msra.mxu0 0.0
    %2310 = vmatpush.msra.mxu0 0.0
    %2311 = vmatpush.msra.mxu0 0.0
    %2312 = vmatpush.msra.mxu0 0.0
    %2313 = vmatpush.msra.mxu0 0.0
    %2314 = vmatpush.msra.mxu0 0.0
    %2315 = vmatpush.msra.mxu0 0.0
    %2316 = vmatpush.msra.mxu0 0.0
    %2317 = vmatpush.msra.mxu0 0.0
    %2318 = vmatpush.msra.mxu0 %v2278
    %2319 = vmatmul.f32.gmra.mxu0 %v2281
    %v2320 = vpop.f32.mrf.mxu0
    %v2321 = vadd.f32 0.0, %v2320
    %2322 = vdwg.mxu0
    %2323 = vmatpush.msra.mxu0 0.0
    %2324 = vmatpush.msra.mxu0 0.0
    %2325 = vmatpush.msra.mxu0 0.0
    %2326 = vmatpush.msra.mxu0 0.0
    %2327 = vmatpush.msra.mxu0 0.0
    %2328 = vmatpush.msra.mxu0 0.0
    %2329 = vmatpush.msra.mxu0 0.0
    %2330 = vmatpush.msra.mxu0 0.0
    %2331 = vmatpush.msra.mxu0 0.0
    %2332 = vmatpush.msra.mxu0 0.0
    %2333 = vmatpush.msra.mxu0 0.0
    %2334 = vmatpush.msra.mxu0 0.0
    %2335 = vmatpush.msra.mxu0 0.0
    %2336 = vmatpush.msra.mxu0 0.0
    %2337 = vmatpush.msra.mxu0 0.0
    %2338 = vmatpush.msra.mxu0 %v2279
    %2339 = vmatmul.f32.gmra.mxu0 %v2281
    %v2340 = vpop.f32.mrf.mxu0
    %v2341 = vadd.f32 0.0, %v2340
    %2342 = vdwg.mxu0
    %v2343 = vmul.f32 %v2301, %v2301
    %v2344 = vmul.f32 %v2321, %v2321
    %v2345 = vmul.f32 %v2341, %v2341
    %v2346 = vadd.f32 %v2301, %v2321
    %v2347 = vadd.f32 %v2346, %v2341
    %2348 = vadd.xlane.f32.xlu0 %v2347
    %v2349 = vpop.xlane.xlu0 %2348
    %v2350 = vadd.f32 %v2343, %v2344
    %v2351 = vadd.f32 %v2350, %v2345
    %2352 = vadd.xlane.f32.xlu0 %v2351
    %v2353 = vpop.xlane.xlu0 %2352
    %v2354 = vmul.f32 %v2349, 0.0034722222
    %v2355 = vmul.f32 %v2353, 0.0034722222
    %v2356 = vmul.f32 %v2354, %v2354
    %v2357 = vsub.f32 %v2355, %v2356
    %v2358 = vsub.f32 %v2301, %v2354
    %v2359 = vsub.f32 %v2321, %v2354
    %v2360 = vsub.f32 %v2341, %v2354
    %v2361 = vadd.f32 %v2357, 1e-05
    %v2362 = vrsqrt.pop %v2361
    %v2363 = vmul.f32 %v2362, %v2361
    %v2364 = vmul.f32 %v2363, %v2362
    %v2365 = vmul.f32 0.5, %v2364
    %v2366 = vsub.f32 1.5, %v2365
    %v2367 = vmul.f32 %v2362, %v2366
    %vm2368 = vweird.f32 %v2361
    %vm2369 = vweird.f32 %v2362
    %vm2370 = vmor %vm2368, %vm2369
    %v2371 = vsel %vm2370, %v2362, %v2367
    %v2372 = vmul.f32 %v2358, %v2371
    %v2373 = vmul.f32 %v2359, %v2371
    %v2374 = vmul.f32 %v2360, %v2371
    %v2375 = vmax.f32 %v2372, 0.0
    %v2376 = vmax.f32 %v2373, 0.0
    %v2377 = vmax.f32 %v2374, 0.0
    %v2381 = vrot.slane %v2375, 4
    %v2382 = vrot.slane %v2376, 4
    %v2383 = vrot.slane %v2377, 4
    %v2387 = vpack.c.bf16 %v2375, %v2375
    %v2388 = vpack.c.bf16 %v2376, %v2376
    %v2389 = vpack.c.bf16 %v2377, %v2377
    %v2390 = vpack.c.bf16 %v2381, %v2381
    %v2391 = vpack.c.bf16 %v2382, %v2382
    %v2392 = vpack.c.bf16 %v2383, %v2383
    %v2585 = vunpack.c.l.b16 %v307
    %v2586 = vunpack.c.h.b16 %v307
    %v2587 = vunpack.c.l.b16 %v308
    %v2588 = vunpack.c.h.b16 %v308
    %v2589 = vunpack.c.l.b16 %v309
    %v2590 = vunpack.c.h.b16 %v309
    %v2591 = vunpack.c.l.b16 %v310
    %v2592 = vunpack.c.h.b16 %v310
    %v2593 = vunpack.c.l.b16 %v311
    %v2594 = vunpack.c.h.b16 %v311
    %v2595 = vunpack.c.l.b16 %v312
    %v2596 = vunpack.c.h.b16 %v312
    %v2597 = vunpack.c.l.b16 %v313
    %v2598 = vunpack.c.h.b16 %v313
    %v2599 = vunpack.c.l.b16 %v314
    %v2600 = vunpack.c.h.b16 %v314
    %v2601 = vunpack.c.l.b16 %v315
    %v2602 = vunpack.c.h.b16 %v315
    %v2603 = vunpack.c.l.b16 %v316
    %v2604 = vunpack.c.h.b16 %v316
    %v2605 = vunpack.c.l.b16 %v317
    %v2606 = vunpack.c.h.b16 %v317
    %v2607 = vunpack.c.l.b16 %v318
    %v2608 = vunpack.c.h.b16 %v318
    %v2609 = vunpack.c.l.b16 %v319
    %v2610 = vunpack.c.h.b16 %v319
    %v2611 = vunpack.c.l.b16 %v320
    %v2612 = vunpack.c.h.b16 %v320
    %v2613 = vunpack.c.l.b16 %v321
    %v2614 = vunpack.c.h.b16 %v321
    %v2615 = vunpack.c.l.b16 %v322
    %v2616 = vunpack.c.h.b16 %v322
    %v2617 = vunpack.c.l.b16 %v323
    %v2618 = vunpack.c.h.b16 %v323
    %v2619 = vunpack.c.l.b16 %v324
    %v2620 = vunpack.c.h.b16 %v324
    %v2621 = vunpack.c.l.b16 %v325
    %v2622 = vunpack.c.h.b16 %v325
    %v2623 = vunpack.c.l.b16 %v326
    %v2624 = vunpack.c.h.b16 %v326
    %v2625 = vunpack.c.l.b16 %v327
    %v2626 = vunpack.c.h.b16 %v327
    %v2627 = vunpack.c.l.b16 %v328
    %v2628 = vunpack.c.h.b16 %v328
    %v2629 = vunpack.c.l.b16 %v329
    %v2630 = vunpack.c.h.b16 %v329
    %v2631 = vunpack.c.l.b16 %v330
    %v2632 = vunpack.c.h.b16 %v330
    %v2633 = vunpack.c.l.b16 %v331
    %v2634 = vunpack.c.h.b16 %v331
    %v2635 = vunpack.c.l.b16 %v332
    %v2636 = vunpack.c.h.b16 %v332
    %v2637 = vunpack.c.l.b16 %v333
    %v2638 = vunpack.c.h.b16 %v333
    %v2639 = vunpack.c.l.b16 %v334
    %v2640 = vunpack.c.h.b16 %v334
    %v2641 = vunpack.c.l.b16 %v335
    %v2642 = vunpack.c.h.b16 %v335
    %v2643 = vunpack.c.l.b16 %v336
    %v2644 = vunpack.c.h.b16 %v336
    %v2645 = vunpack.c.l.b16 %v337
    %v2646 = vunpack.c.h.b16 %v337
    %v2647 = vunpack.c.l.b16 %v338
    %v2648 = vunpack.c.h.b16 %v338
    %v2649 = vunpack.c.l.b16 %v339
    %v2650 = vunpack.c.h.b16 %v339
    %v2651 = vunpack.c.l.b16 %v340
    %v2652 = vunpack.c.h.b16 %v340
    %v2653 = vunpack.c.l.b16 %v341
    %v2654 = vunpack.c.h.b16 %v341
    %v2655 = vunpack.c.l.b16 %v342
    %v2656 = vunpack.c.h.b16 %v342
    %v2657 = vunpack.c.l.b16 %v343
    %v2658 = vunpack.c.h.b16 %v343
    %v2659 = vunpack.c.l.b16 %v344
    %v2660 = vunpack.c.h.b16 %v344
    %v2661 = vunpack.c.l.b16 %v345
    %v2662 = vunpack.c.h.b16 %v345
    %v2663 = vunpack.c.l.b16 %v346
    %v2664 = vunpack.c.h.b16 %v346
    %v2665 = vunpack.c.l.b16 %v347
    %v2666 = vunpack.c.h.b16 %v347
    %v2667 = vunpack.c.l.b16 %v348
    %v2668 = vunpack.c.h.b16 %v348
    %v2669 = vunpack.c.l.b16 %v349
    %v2670 = vunpack.c.h.b16 %v349
    %v2671 = vunpack.c.l.b16 %v350
    %v2672 = vunpack.c.h.b16 %v350
    %v2673 = vunpack.c.l.b16 %v351
    %v2674 = vunpack.c.h.b16 %v351
    %v2675 = vunpack.c.l.b16 %v352
    %v2676 = vunpack.c.h.b16 %v352
    %v2677 = vunpack.c.l.b16 %v353
    %v2678 = vunpack.c.h.b16 %v353
    %v2679 = vunpack.c.l.b16 %v354
    %v2680 = vunpack.c.h.b16 %v354
    %v2681 = vunpack.c.l.b16 %v355
    %v2682 = vunpack.c.h.b16 %v355
    %v2683 = vunpack.c.l.b16 %v356
    %v2684 = vunpack.c.h.b16 %v356
    %v2685 = vunpack.c.l.b16 %v357
    %v2686 = vunpack.c.h.b16 %v357
    %v2687 = vunpack.c.l.b16 %v358
    %v2688 = vunpack.c.h.b16 %v358
    %v2689 = vunpack.c.l.b16 %v359
    %v2690 = vunpack.c.h.b16 %v359
    %v2691 = vunpack.c.l.b16 %v360
    %v2692 = vunpack.c.h.b16 %v360
    %v2693 = vunpack.c.l.b16 %v361
    %v2694 = vunpack.c.h.b16 %v361
    %v2695 = vunpack.c.l.b16 %v362
    %v2696 = vunpack.c.h.b16 %v362
    %v2697 = vunpack.c.l.b16 %v363
    %v2698 = vunpack.c.h.b16 %v363
    %v2699 = vunpack.c.l.b16 %v364
    %v2700 = vunpack.c.h.b16 %v364
    %v2701 = vunpack.c.l.b16 %v365
    %v2702 = vunpack.c.h.b16 %v365
    %v2703 = vunpack.c.l.b16 %v366
    %v2704 = vunpack.c.h.b16 %v366
    %v2705 = vunpack.c.l.b16 %v367
    %v2706 = vunpack.c.h.b16 %v367
    %v2707 = vunpack.c.l.b16 %v368
    %v2708 = vunpack.c.h.b16 %v368
    %v2709 = vunpack.c.l.b16 %v369
    %v2710 = vunpack.c.h.b16 %v369
    %v2711 = vunpack.c.l.b16 %v370
    %v2712 = vunpack.c.h.b16 %v370
    %v2713 = vunpack.c.l.b16 %v371
    %v2714 = vunpack.c.h.b16 %v371
    %v2715 = vunpack.c.l.b16 %v372
    %v2716 = vunpack.c.h.b16 %v372
    %v2717 = vunpack.c.l.b16 %v373
    %v2718 = vunpack.c.h.b16 %v373
    %v2719 = vunpack.c.l.b16 %v374
    %v2720 = vunpack.c.h.b16 %v374
    %v2721 = vunpack.c.l.b16 %v375
    %v2722 = vunpack.c.h.b16 %v375
    %v2723 = vunpack.c.l.b16 %v376
    %v2724 = vunpack.c.h.b16 %v376
    %v2725 = vunpack.c.l.b16 %v377
    %v2726 = vunpack.c.h.b16 %v377
    %v2727 = vunpack.c.l.b16 %v378
    %v2728 = vunpack.c.h.b16 %v378
    %v2729 = vunpack.c.l.b16 %v379
    %v2730 = vunpack.c.h.b16 %v379
    %v2731 = vunpack.c.l.b16 %v380
    %v2732 = vunpack.c.h.b16 %v380
    %v2733 = vunpack.c.l.b16 %v381
    %v2734 = vunpack.c.h.b16 %v381
    %v2735 = vunpack.c.l.b16 %v382
    %v2736 = vunpack.c.h.b16 %v382
    %v2737 = vunpack.c.l.b16 %v383
    %v2738 = vunpack.c.h.b16 %v383
    %v2739 = vunpack.c.l.b16 %v384
    %v2740 = vunpack.c.h.b16 %v384
    %v2741 = vunpack.c.l.b16 %v385
    %v2742 = vunpack.c.h.b16 %v385
    %v2743 = vunpack.c.l.b16 %v386
    %v2744 = vunpack.c.h.b16 %v386
    %v2745 = vunpack.c.l.b16 %v387
    %v2746 = vunpack.c.h.b16 %v387
    %v2747 = vunpack.c.l.b16 %v388
    %v2748 = vunpack.c.h.b16 %v388
    %v2749 = vunpack.c.l.b16 %v389
    %v2750 = vunpack.c.h.b16 %v389
    %v2751 = vunpack.c.l.b16 %v390
    %v2752 = vunpack.c.h.b16 %v390
    %v2753 = vunpack.c.l.b16 %v391
    %v2754 = vunpack.c.h.b16 %v391
    %v2755 = vunpack.c.l.b16 %v392
    %v2756 = vunpack.c.h.b16 %v392
    %v2757 = vunpack.c.l.b16 %v393
    %v2758 = vunpack.c.h.b16 %v393
    %v2759 = vunpack.c.l.b16 %v394
    %v2760 = vunpack.c.h.b16 %v394
    %v2761 = vunpack.c.l.b16 %v395
    %v2762 = vunpack.c.h.b16 %v395
    %v2763 = vunpack.c.l.b16 %v396
    %v2764 = vunpack.c.h.b16 %v396
    %v2765 = vunpack.c.l.b16 %v397
    %v2766 = vunpack.c.h.b16 %v397
    %v2767 = vunpack.c.l.b16 %v398
    %v2768 = vunpack.c.h.b16 %v398
    %v2769 = vunpack.c.l.b16 %v399
    %v2770 = vunpack.c.h.b16 %v399
    %v2771 = vunpack.c.l.b16 %v400
    %v2772 = vunpack.c.h.b16 %v400
    %v2773 = vunpack.c.l.b16 %v401
    %v2774 = vunpack.c.h.b16 %v401
    %v2775 = vunpack.c.l.b16 %v402
    %v2776 = vunpack.c.h.b16 %v402
    %v2777 = vunpack.c.l.b16 %v403
    %v2778 = vunpack.c.h.b16 %v403
    %v2779 = vunpack.c.l.b16 %v404
    %v2780 = vunpack.c.h.b16 %v404
    %v2781 = vunpack.c.l.b16 %v405
    %v2782 = vunpack.c.h.b16 %v405
    %v2783 = vunpack.c.l.b16 %v406
    %v2784 = vunpack.c.h.b16 %v406
    %v2785 = vunpack.c.l.b16 %v407
    %v2786 = vunpack.c.h.b16 %v407
    %v2787 = vunpack.c.l.b16 %v408
    %v2788 = vunpack.c.h.b16 %v408
    %v2789 = vunpack.c.l.b16 %v409
    %v2790 = vunpack.c.h.b16 %v409
    %v2791 = vunpack.c.l.b16 %v410
    %v2792 = vunpack.c.h.b16 %v410
    %v2793 = vunpack.c.l.b16 %v411
    %v2794 = vunpack.c.h.b16 %v411
    %v2795 = vunpack.c.l.b16 %v412
    %v2796 = vunpack.c.h.b16 %v412
    %v2797 = vunpack.c.l.b16 %v413
    %v2798 = vunpack.c.h.b16 %v413
    %v2799 = vunpack.c.l.b16 %v414
    %v2800 = vunpack.c.h.b16 %v414
    %v2801 = vunpack.c.l.b16 %v415
    %v2802 = vunpack.c.h.b16 %v415
    %v2803 = vunpack.c.l.b16 %v416
    %v2804 = vunpack.c.h.b16 %v416
    %v2805 = vunpack.c.l.b16 %v417
    %v2806 = vunpack.c.h.b16 %v417
    %v2807 = vunpack.c.l.b16 %v418
    %v2808 = vunpack.c.h.b16 %v418
    %v2809 = vunpack.c.l.b16 %v419
    %v2810 = vunpack.c.h.b16 %v419
    %v2811 = vunpack.c.l.b16 %v420
    %v2812 = vunpack.c.h.b16 %v420
    %v2813 = vunpack.c.l.b16 %v421
    %v2814 = vunpack.c.h.b16 %v421
    %v2815 = vunpack.c.l.b16 %v422
    %v2816 = vunpack.c.h.b16 %v422
    %v2817 = vunpack.c.l.b16 %v423
    %v2818 = vunpack.c.h.b16 %v423
    %v2819 = vunpack.c.l.b16 %v424
    %v2820 = vunpack.c.h.b16 %v424
    %v2821 = vunpack.c.l.b16 %v425
    %v2822 = vunpack.c.h.b16 %v425
    %v2823 = vunpack.c.l.b16 %v426
    %v2824 = vunpack.c.h.b16 %v426
    %v2825 = vunpack.c.l.b16 %v427
    %v2826 = vunpack.c.h.b16 %v427
    %v2827 = vunpack.c.l.b16 %v428
    %v2828 = vunpack.c.h.b16 %v428
    %v2829 = vunpack.c.l.b16 %v429
    %v2830 = vunpack.c.h.b16 %v429
    %v2831 = vunpack.c.l.b16 %v430
    %v2832 = vunpack.c.h.b16 %v430
    %v2833 = vunpack.c.l.b16 %v431
    %v2834 = vunpack.c.h.b16 %v431
    %v2835 = vunpack.c.l.b16 %v432
    %v2836 = vunpack.c.h.b16 %v432
    %v2837 = vunpack.c.l.b16 %v433
    %v2838 = vunpack.c.h.b16 %v433
    %v2839 = vunpack.c.l.b16 %v434
    %v2840 = vunpack.c.h.b16 %v434
    %v2841 = vunpack.c.l.b16 %v435
    %v2842 = vunpack.c.h.b16 %v435
    %v2843 = vunpack.c.l.b16 %v436
    %v2844 = vunpack.c.h.b16 %v436
    %v2845 = vunpack.c.l.b16 %v437
    %v2846 = vunpack.c.h.b16 %v437
    %v2847 = vunpack.c.l.b16 %v438
    %v2848 = vunpack.c.h.b16 %v438
    %v2849 = vunpack.c.l.b16 %v439
    %v2850 = vunpack.c.h.b16 %v439
    %v2851 = vunpack.c.l.b16 %v440
    %v2852 = vunpack.c.h.b16 %v440
    %v2853 = vunpack.c.l.b16 %v441
    %v2854 = vunpack.c.h.b16 %v441
    %v2855 = vunpack.c.l.b16 %v442
    %v2856 = vunpack.c.h.b16 %v442
    %v2857 = vunpack.c.l.b16 %v443
    %v2858 = vunpack.c.h.b16 %v443
    %v2859 = vunpack.c.l.b16 %v444
    %v2860 = vunpack.c.h.b16 %v444
    %v2861 = vunpack.c.l.b16 %v445
    %v2862 = vunpack.c.h.b16 %v445
    %v2863 = vunpack.c.l.b16 %v446
    %v2864 = vunpack.c.h.b16 %v446
    %v2865 = vunpack.c.l.b16 %v447
    %v2866 = vunpack.c.h.b16 %v447
    %v2867 = vunpack.c.l.b16 %v448
    %v2868 = vunpack.c.h.b16 %v448
    %v2869 = vunpack.c.l.b16 %v449
    %v2870 = vunpack.c.h.b16 %v449
    %v2871 = vunpack.c.l.b16 %v450
    %v2872 = vunpack.c.h.b16 %v450
    %v2873 = vunpack.c.l.b16 %v451
    %v2874 = vunpack.c.h.b16 %v451
    %v2875 = vunpack.c.l.b16 %v452
    %v2876 = vunpack.c.h.b16 %v452
    %v2877 = vunpack.c.l.b16 %v453
    %v2878 = vunpack.c.h.b16 %v453
    %v2879 = vunpack.c.l.b16 %v454
    %v2880 = vunpack.c.h.b16 %v454
    %v2881 = vunpack.c.l.b16 %v455
    %v2882 = vunpack.c.h.b16 %v455
    %v2883 = vunpack.c.l.b16 %v456
    %v2884 = vunpack.c.h.b16 %v456
    %v2885 = vunpack.c.l.b16 %v457
    %v2886 = vunpack.c.h.b16 %v457
    %v2887 = vunpack.c.l.b16 %v458
    %v2888 = vunpack.c.h.b16 %v458
    %v2889 = vunpack.c.l.b16 %v459
    %v2890 = vunpack.c.h.b16 %v459
    %v2891 = vunpack.c.l.b16 %v460
    %v2892 = vunpack.c.h.b16 %v460
    %v2893 = vunpack.c.l.b16 %v461
    %v2894 = vunpack.c.h.b16 %v461
    %v2895 = vunpack.c.l.b16 %v462
    %v2896 = vunpack.c.h.b16 %v462
    %v2897 = vunpack.c.l.b16 %v463
    %v2898 = vunpack.c.h.b16 %v463
    %v2899 = vunpack.c.l.b16 %v464
    %v2900 = vunpack.c.h.b16 %v464
    %v2901 = vunpack.c.l.b16 %v465
    %v2902 = vunpack.c.h.b16 %v465
    %v2903 = vunpack.c.l.b16 %v466
    %v2904 = vunpack.c.h.b16 %v466
    %v2905 = vunpack.c.l.b16 %v467
    %v2906 = vunpack.c.h.b16 %v467
    %v2907 = vunpack.c.l.b16 %v468
    %v2908 = vunpack.c.h.b16 %v468
    %v2909 = vunpack.c.l.b16 %v469
    %v2910 = vunpack.c.h.b16 %v469
    %v2911 = vunpack.c.l.b16 %v470
    %v2912 = vunpack.c.h.b16 %v470
    %v2913 = vunpack.c.l.b16 %v471
    %v2914 = vunpack.c.h.b16 %v471
    %v2915 = vunpack.c.l.b16 %v472
    %v2916 = vunpack.c.h.b16 %v472
    %v2917 = vunpack.c.l.b16 %v473
    %v2918 = vunpack.c.h.b16 %v473
    %v2919 = vunpack.c.l.b16 %v474
    %v2920 = vunpack.c.h.b16 %v474
    %v2921 = vunpack.c.l.b16 %v475
    %v2922 = vunpack.c.h.b16 %v475
    %v2923 = vunpack.c.l.b16 %v476
    %v2924 = vunpack.c.h.b16 %v476
    %v2925 = vunpack.c.l.b16 %v477
    %v2926 = vunpack.c.h.b16 %v477
    %v2927 = vunpack.c.l.b16 %v478
    %v2928 = vunpack.c.h.b16 %v478
    %v2929 = vunpack.c.l.b16 %v479
    %v2930 = vunpack.c.h.b16 %v479
    %v2931 = vunpack.c.l.b16 %v480
    %v2932 = vunpack.c.h.b16 %v480
    %v2933 = vunpack.c.l.b16 %v481
    %v2934 = vunpack.c.h.b16 %v481
    %v2935 = vunpack.c.l.b16 %v482
    %v2936 = vunpack.c.h.b16 %v482
    %v2937 = vunpack.c.l.b16 %v483
    %v2938 = vunpack.c.h.b16 %v483
    %v2939 = vunpack.c.l.b16 %v484
    %v2940 = vunpack.c.h.b16 %v484
    %v2941 = vunpack.c.l.b16 %v485
    %v2942 = vunpack.c.h.b16 %v485
    %v2943 = vunpack.c.l.b16 %v486
    %v2944 = vunpack.c.h.b16 %v486
    %v2945 = vunpack.c.l.b16 %v487
    %v2946 = vunpack.c.h.b16 %v487
    %v2947 = vunpack.c.l.b16 %v488
    %v2948 = vunpack.c.h.b16 %v488
    %v2949 = vunpack.c.l.b16 %v489
    %v2950 = vunpack.c.h.b16 %v489
    %v2951 = vunpack.c.l.b16 %v490
    %v2952 = vunpack.c.h.b16 %v490
    %v2953 = vunpack.c.l.b16 %v491
    %v2954 = vunpack.c.h.b16 %v491
    %v2955 = vunpack.c.l.b16 %v492
    %v2956 = vunpack.c.h.b16 %v492
    %v2957 = vunpack.c.l.b16 %v493
    %v2958 = vunpack.c.h.b16 %v493
    %v2959 = vunpack.c.l.b16 %v494
    %v2960 = vunpack.c.h.b16 %v494
    %v2961 = vunpack.c.l.b16 %v495
    %v2962 = vunpack.c.h.b16 %v495
    %v2963 = vunpack.c.l.b16 %v496
    %v2964 = vunpack.c.h.b16 %v496
    %v2965 = vunpack.c.l.b16 %v497
    %v2966 = vunpack.c.h.b16 %v497
    %v2967 = vunpack.c.l.b16 %v498
    %v2968 = vunpack.c.h.b16 %v498
    %v2969 = vpack.c.b16 %v2589, %v2585
    %v2970 = vpack.c.b16 %v2590, %v2586
    %v2971 = vpack.c.b16 %v2591, %v2587
    %v2972 = vpack.c.b16 %v2592, %v2588
    %v2973 = vpack.c.b16 %v2597, %v2593
    %v2974 = vpack.c.b16 %v2598, %v2594
    %v2975 = vpack.c.b16 %v2599, %v2595
    %v2976 = vpack.c.b16 %v2600, %v2596
    %v2977 = vpack.c.b16 %v2605, %v2601
    %v2978 = vpack.c.b16 %v2606, %v2602
    %v2979 = vpack.c.b16 %v2607, %v2603
    %v2980 = vpack.c.b16 %v2608, %v2604
    %v2981 = vpack.c.b16 %v2613, %v2609
    %v2982 = vpack.c.b16 %v2614, %v2610
    %v2983 = vpack.c.b16 %v2615, %v2611
    %v2984 = vpack.c.b16 %v2616, %v2612
    %v2985 = vpack.c.b16 %v2621, %v2617
    %v2986 = vpack.c.b16 %v2622, %v2618
    %v2987 = vpack.c.b16 %v2623, %v2619
    %v2988 = vpack.c.b16 %v2624, %v2620
    %v2989 = vpack.c.b16 %v2629, %v2625
    %v2990 = vpack.c.b16 %v2630, %v2626
    %v2991 = vpack.c.b16 %v2631, %v2627
    %v2992 = vpack.c.b16 %v2632, %v2628
    %v2993 = vpack.c.b16 %v2637, %v2633
    %v2994 = vpack.c.b16 %v2638, %v2634
    %v2995 = vpack.c.b16 %v2639, %v2635
    %v2996 = vpack.c.b16 %v2640, %v2636
    %v2997 = vpack.c.b16 %v2645, %v2641
    %v2998 = vpack.c.b16 %v2646, %v2642
    %v2999 = vpack.c.b16 %v2647, %v2643
    %v3000 = vpack.c.b16 %v2648, %v2644
    %v3001 = vpack.c.b16 %v2653, %v2649
    %v3002 = vpack.c.b16 %v2654, %v2650
    %v3003 = vpack.c.b16 %v2655, %v2651
    %v3004 = vpack.c.b16 %v2656, %v2652
    %v3005 = vpack.c.b16 %v2661, %v2657
    %v3006 = vpack.c.b16 %v2662, %v2658
    %v3007 = vpack.c.b16 %v2663, %v2659
    %v3008 = vpack.c.b16 %v2664, %v2660
    %v3009 = vpack.c.b16 %v2669, %v2665
    %v3010 = vpack.c.b16 %v2670, %v2666
    %v3011 = vpack.c.b16 %v2671, %v2667
    %v3012 = vpack.c.b16 %v2672, %v2668
    %v3013 = vpack.c.b16 %v2677, %v2673
    %v3014 = vpack.c.b16 %v2678, %v2674
    %v3015 = vpack.c.b16 %v2679, %v2675
    %v3016 = vpack.c.b16 %v2680, %v2676
    %v3017 = vpack.c.b16 %v2685, %v2681
    %v3018 = vpack.c.b16 %v2686, %v2682
    %v3019 = vpack.c.b16 %v2687, %v2683
    %v3020 = vpack.c.b16 %v2688, %v2684
    %v3021 = vpack.c.b16 %v2693, %v2689
    %v3022 = vpack.c.b16 %v2694, %v2690
    %v3023 = vpack.c.b16 %v2695, %v2691
    %v3024 = vpack.c.b16 %v2696, %v2692
    %v3025 = vpack.c.b16 %v2701, %v2697
    %v3026 = vpack.c.b16 %v2702, %v2698
    %v3027 = vpack.c.b16 %v2703, %v2699
    %v3028 = vpack.c.b16 %v2704, %v2700
    %v3029 = vpack.c.b16 %v2709, %v2705
    %v3030 = vpack.c.b16 %v2710, %v2706
    %v3031 = vpack.c.b16 %v2711, %v2707
    %v3032 = vpack.c.b16 %v2712, %v2708
    %v3033 = vpack.c.b16 %v2717, %v2713
    %v3034 = vpack.c.b16 %v2718, %v2714
    %v3035 = vpack.c.b16 %v2719, %v2715
    %v3036 = vpack.c.b16 %v2720, %v2716
    %v3037 = vpack.c.b16 %v2725, %v2721
    %v3038 = vpack.c.b16 %v2726, %v2722
    %v3039 = vpack.c.b16 %v2727, %v2723
    %v3040 = vpack.c.b16 %v2728, %v2724
    %v3041 = vpack.c.b16 %v2733, %v2729
    %v3042 = vpack.c.b16 %v2734, %v2730
    %v3043 = vpack.c.b16 %v2735, %v2731
    %v3044 = vpack.c.b16 %v2736, %v2732
    %v3045 = vpack.c.b16 %v2741, %v2737
    %v3046 = vpack.c.b16 %v2742, %v2738
    %v3047 = vpack.c.b16 %v2743, %v2739
    %v3048 = vpack.c.b16 %v2744, %v2740
    %v3049 = vpack.c.b16 %v2749, %v2745
    %v3050 = vpack.c.b16 %v2750, %v2746
    %v3051 = vpack.c.b16 %v2751, %v2747
    %v3052 = vpack.c.b16 %v2752, %v2748
    %v3053 = vpack.c.b16 %v2757, %v2753
    %v3054 = vpack.c.b16 %v2758, %v2754
    %v3055 = vpack.c.b16 %v2759, %v2755
    %v3056 = vpack.c.b16 %v2760, %v2756
    %v3057 = vpack.c.b16 %v2765, %v2761
    %v3058 = vpack.c.b16 %v2766, %v2762
    %v3059 = vpack.c.b16 %v2767, %v2763
    %v3060 = vpack.c.b16 %v2768, %v2764
    %v3061 = vpack.c.b16 %v2773, %v2769
    %v3062 = vpack.c.b16 %v2774, %v2770
    %v3063 = vpack.c.b16 %v2775, %v2771
    %v3064 = vpack.c.b16 %v2776, %v2772
    %v3065 = vpack.c.b16 %v2781, %v2777
    %v3066 = vpack.c.b16 %v2782, %v2778
    %v3067 = vpack.c.b16 %v2783, %v2779
    %v3068 = vpack.c.b16 %v2784, %v2780
    %v3069 = vpack.c.b16 %v2789, %v2785
    %v3070 = vpack.c.b16 %v2790, %v2786
    %v3071 = vpack.c.b16 %v2791, %v2787
    %v3072 = vpack.c.b16 %v2792, %v2788
    %v3073 = vpack.c.b16 %v2797, %v2793
    %v3074 = vpack.c.b16 %v2798, %v2794
    %v3075 = vpack.c.b16 %v2799, %v2795
    %v3076 = vpack.c.b16 %v2800, %v2796
    %v3077 = vpack.c.b16 %v2805, %v2801
    %v3078 = vpack.c.b16 %v2806, %v2802
    %v3079 = vpack.c.b16 %v2807, %v2803
    %v3080 = vpack.c.b16 %v2808, %v2804
    %v3081 = vpack.c.b16 %v2813, %v2809
    %v3082 = vpack.c.b16 %v2814, %v2810
    %v3083 = vpack.c.b16 %v2815, %v2811
    %v3084 = vpack.c.b16 %v2816, %v2812
    %v3085 = vpack.c.b16 %v2821, %v2817
    %v3086 = vpack.c.b16 %v2822, %v2818
    %v3087 = vpack.c.b16 %v2823, %v2819
    %v3088 = vpack.c.b16 %v2824, %v2820
    %v3089 = vpack.c.b16 %v2829, %v2825
    %v3090 = vpack.c.b16 %v2830, %v2826
    %v3091 = vpack.c.b16 %v2831, %v2827
    %v3092 = vpack.c.b16 %v2832, %v2828
    %v3093 = vpack.c.b16 %v2837, %v2833
    %v3094 = vpack.c.b16 %v2838, %v2834
    %v3095 = vpack.c.b16 %v2839, %v2835
    %v3096 = vpack.c.b16 %v2840, %v2836
    %v3097 = vpack.c.b16 %v2845, %v2841
    %v3098 = vpack.c.b16 %v2846, %v2842
    %v3099 = vpack.c.b16 %v2847, %v2843
    %v3100 = vpack.c.b16 %v2848, %v2844
    %v3101 = vpack.c.b16 %v2853, %v2849
    %v3102 = vpack.c.b16 %v2854, %v2850
    %v3103 = vpack.c.b16 %v2855, %v2851
    %v3104 = vpack.c.b16 %v2856, %v2852
    %v3105 = vpack.c.b16 %v2861, %v2857
    %v3106 = vpack.c.b16 %v2862, %v2858
    %v3107 = vpack.c.b16 %v2863, %v2859
    %v3108 = vpack.c.b16 %v2864, %v2860
    %v3109 = vpack.c.b16 %v2869, %v2865
    %v3110 = vpack.c.b16 %v2870, %v2866
    %v3111 = vpack.c.b16 %v2871, %v2867
    %v3112 = vpack.c.b16 %v2872, %v2868
    %v3113 = vpack.c.b16 %v2877, %v2873
    %v3114 = vpack.c.b16 %v2878, %v2874
    %v3115 = vpack.c.b16 %v2879, %v2875
    %v3116 = vpack.c.b16 %v2880, %v2876
    %v3117 = vpack.c.b16 %v2885, %v2881
    %v3118 = vpack.c.b16 %v2886, %v2882
    %v3119 = vpack.c.b16 %v2887, %v2883
    %v3120 = vpack.c.b16 %v2888, %v2884
    %v3121 = vpack.c.b16 %v2893, %v2889
    %v3122 = vpack.c.b16 %v2894, %v2890
    %v3123 = vpack.c.b16 %v2895, %v2891
    %v3124 = vpack.c.b16 %v2896, %v2892
    %v3125 = vpack.c.b16 %v2901, %v2897
    %v3126 = vpack.c.b16 %v2902, %v2898
    %v3127 = vpack.c.b16 %v2903, %v2899
    %v3128 = vpack.c.b16 %v2904, %v2900
    %v3129 = vpack.c.b16 %v2909, %v2905
    %v3130 = vpack.c.b16 %v2910, %v2906
    %v3131 = vpack.c.b16 %v2911, %v2907
    %v3132 = vpack.c.b16 %v2912, %v2908
    %v3133 = vpack.c.b16 %v2917, %v2913
    %v3134 = vpack.c.b16 %v2918, %v2914
    %v3135 = vpack.c.b16 %v2919, %v2915
    %v3136 = vpack.c.b16 %v2920, %v2916
    %v3137 = vpack.c.b16 %v2925, %v2921
    %v3138 = vpack.c.b16 %v2926, %v2922
    %v3139 = vpack.c.b16 %v2927, %v2923
    %v3140 = vpack.c.b16 %v2928, %v2924
    %v3141 = vpack.c.b16 %v2933, %v2929
    %v3142 = vpack.c.b16 %v2934, %v2930
    %v3143 = vpack.c.b16 %v2935, %v2931
    %v3144 = vpack.c.b16 %v2936, %v2932
    %v3145 = vpack.c.b16 %v2941, %v2937
    %v3146 = vpack.c.b16 %v2942, %v2938
    %v3147 = vpack.c.b16 %v2943, %v2939
    %v3148 = vpack.c.b16 %v2944, %v2940
    %v3149 = vpack.c.b16 %v2949, %v2945
    %v3150 = vpack.c.b16 %v2950, %v2946
    %v3151 = vpack.c.b16 %v2951, %v2947
    %v3152 = vpack.c.b16 %v2952, %v2948
    %v3153 = vpack.c.b16 %v2957, %v2953
    %v3154 = vpack.c.b16 %v2958, %v2954
    %v3155 = vpack.c.b16 %v2959, %v2955
    %v3156 = vpack.c.b16 %v2960, %v2956
    %v3157 = vpack.c.b16 %v2965, %v2961
    %v3158 = vpack.c.b16 %v2966, %v2962
    %v3159 = vpack.c.b16 %v2967, %v2963
    %v3160 = vpack.c.b16 %v2968, %v2964
    %3353 = vmatpush.bf16.msra.mxu0 %v2997
    %3354 = vmatpush.bf16.msra.mxu0 %v2993
    %3355 = vmatpush.bf16.msra.mxu0 %v2989
    %3356 = vmatpush.bf16.msra.mxu0 %v2985
    %3357 = vmatpush.bf16.msra.mxu0 %v2981
    %3358 = vmatpush.bf16.msra.mxu0 %v2977
    %3359 = vmatpush.bf16.msra.mxu0 %v2973
    %3360 = vmatpush.bf16.msra.mxu0 %v2969
    %3361 = vmatmul.bf16.gmra.mxu0 %v2387
    %v3362 = vpop.f32.mrf.mxu0
    %v3363 = vadd.f32 0.0, %v3362
    %v3364 = vpop.f32.mrf.mxu0
    %3365 = vdwg.mxu0
    %3366 = vmatpush.bf16.msra.mxu0 %v3029
    %3367 = vmatpush.bf16.msra.mxu0 %v3025
    %3368 = vmatpush.bf16.msra.mxu0 %v3021
    %3369 = vmatpush.bf16.msra.mxu0 %v3017
    %3370 = vmatpush.bf16.msra.mxu0 %v3013
    %3371 = vmatpush.bf16.msra.mxu0 %v3009
    %3372 = vmatpush.bf16.msra.mxu0 %v3005
    %3373 = vmatpush.bf16.msra.mxu0 %v3001
    %3374 = vmatmul.bf16.gmra.mxu0 %v2388
    %v3375 = vpop.f32.mrf.mxu0
    %v3376 = vadd.f32 %v3363, %v3375
    %v3377 = vpop.f32.mrf.mxu0
    %3378 = vdwg.mxu0
    %3379 = vmatpush.bf16.msra.mxu0 %v3061
    %3380 = vmatpush.bf16.msra.mxu0 %v3057
    %3381 = vmatpush.bf16.msra.mxu0 %v3053
    %3382 = vmatpush.bf16.msra.mxu0 %v3049
    %3383 = vmatpush.bf16.msra.mxu0 %v3045
    %3384 = vmatpush.bf16.msra.mxu0 %v3041
    %3385 = vmatpush.bf16.msra.mxu0 %v3037
    %3386 = vmatpush.bf16.msra.mxu0 %v3033
    %3387 = vmatmul.bf16.gmra.mxu0 %v2389
    %v3388 = vpop.f32.mrf.mxu0
    %v3389 = vadd.f32 %v3376, %v3388
    %v3390 = vpop.f32.mrf.mxu0
    %3391 = vdwg.mxu0
    %3392 = vmatpush.bf16.msra.mxu0 %v3093
    %3393 = vmatpush.bf16.msra.mxu0 %v3089
    %3394 = vmatpush.bf16.msra.mxu0 %v3085
    %3395 = vmatpush.bf16.msra.mxu0 %v3081
    %3396 = vmatpush.bf16.msra.mxu0 %v3077
    %3397 = vmatpush.bf16.msra.mxu0 %v3073
    %3398 = vmatpush.bf16.msra.mxu0 %v3069
    %3399 = vmatpush.bf16.msra.mxu0 %v3065
    %3400 = vmatmul.bf16.gmra.mxu0 %v2390
    %v3401 = vpop.f32.mrf.mxu0
    %v3402 = vadd.f32 %v3389, %v3401
    %v3403 = vpop.f32.mrf.mxu0
    %3404 = vdwg.mxu0
    %3405 = vmatpush.bf16.msra.mxu0 %v3125
    %3406 = vmatpush.bf16.msra.mxu0 %v3121
    %3407 = vmatpush.bf16.msra.mxu0 %v3117
    %3408 = vmatpush.bf16.msra.mxu0 %v3113
    %3409 = vmatpush.bf16.msra.mxu0 %v3109
    %3410 = vmatpush.bf16.msra.mxu0 %v3105
    %3411 = vmatpush.bf16.msra.mxu0 %v3101
    %3412 = vmatpush.bf16.msra.mxu0 %v3097
    %3413 = vmatmul.bf16.gmra.mxu0 %v2391
    %v3414 = vpop.f32.mrf.mxu0
    %v3415 = vadd.f32 %v3402, %v3414
    %v3416 = vpop.f32.mrf.mxu0
    %3417 = vdwg.mxu0
    %3418 = vmatpush.bf16.msra.mxu0 %v3157
    %3419 = vmatpush.bf16.msra.mxu0 %v3153
    %3420 = vmatpush.bf16.msra.mxu0 %v3149
    %3421 = vmatpush.bf16.msra.mxu0 %v3145
    %3422 = vmatpush.bf16.msra.mxu0 %v3141
    %3423 = vmatpush.bf16.msra.mxu0 %v3137
    %3424 = vmatpush.bf16.msra.mxu0 %v3133
    %3425 = vmatpush.bf16.msra.mxu0 %v3129
    %3426 = vmatmul.bf16.gmra.mxu0 %v2392
    %v3427 = vpop.f32.mrf.mxu0
    %v3428 = vadd.f32 %v3415, %v3427
    %v3429 = vpop.f32.mrf.mxu0
    %3430 = vdwg.mxu0
    %3431 = vmatpush.bf16.msra.mxu0 %v2998
    %3432 = vmatpush.bf16.msra.mxu0 %v2994
    %3433 = vmatpush.bf16.msra.mxu0 %v2990
    %3434 = vmatpush.bf16.msra.mxu0 %v2986
    %3435 = vmatpush.bf16.msra.mxu0 %v2982
    %3436 = vmatpush.bf16.msra.mxu0 %v2978
    %3437 = vmatpush.bf16.msra.mxu0 %v2974
    %3438 = vmatpush.bf16.msra.mxu0 %v2970
    %3439 = vmatmul.bf16.gmra.mxu0 %v2387
    %v3440 = vpop.f32.mrf.mxu0
    %v3441 = vadd.f32 0.0, %v3440
    %v3442 = vpop.f32.mrf.mxu0
    %3443 = vdwg.mxu0
    %3444 = vmatpush.bf16.msra.mxu0 %v3030
    %3445 = vmatpush.bf16.msra.mxu0 %v3026
    %3446 = vmatpush.bf16.msra.mxu0 %v3022
    %3447 = vmatpush.bf16.msra.mxu0 %v3018
    %3448 = vmatpush.bf16.msra.mxu0 %v3014
    %3449 = vmatpush.bf16.msra.mxu0 %v3010
    %3450 = vmatpush.bf16.msra.mxu0 %v3006
    %3451 = vmatpush.bf16.msra.mxu0 %v3002
    %3452 = vmatmul.bf16.gmra.mxu0 %v2388
    %v3453 = vpop.f32.mrf.mxu0
    %v3454 = vadd.f32 %v3441, %v3453
    %v3455 = vpop.f32.mrf.mxu0
    %3456 = vdwg.mxu0
    %3457 = vmatpush.bf16.msra.mxu0 %v3062
    %3458 = vmatpush.bf16.msra.mxu0 %v3058
    %3459 = vmatpush.bf16.msra.mxu0 %v3054
    %3460 = vmatpush.bf16.msra.mxu0 %v3050
    %3461 = vmatpush.bf16.msra.mxu0 %v3046
    %3462 = vmatpush.bf16.msra.mxu0 %v3042
    %3463 = vmatpush.bf16.msra.mxu0 %v3038
    %3464 = vmatpush.bf16.msra.mxu0 %v3034
    %3465 = vmatmul.bf16.gmra.mxu0 %v2389
    %v3466 = vpop.f32.mrf.mxu0
    %v3467 = vadd.f32 %v3454, %v3466
    %v3468 = vpop.f32.mrf.mxu0
    %3469 = vdwg.mxu0
    %3470 = vmatpush.bf16.msra.mxu0 %v3094
    %3471 = vmatpush.bf16.msra.mxu0 %v3090
    %3472 = vmatpush.bf16.msra.mxu0 %v3086
    %3473 = vmatpush.bf16.msra.mxu0 %v3082
    %3474 = vmatpush.bf16.msra.mxu0 %v3078
    %3475 = vmatpush.bf16.msra.mxu0 %v3074
    %3476 = vmatpush.bf16.msra.mxu0 %v3070
    %3477 = vmatpush.bf16.msra.mxu0 %v3066
    %3478 = vmatmul.bf16.gmra.mxu0 %v2390
    %v3479 = vpop.f32.mrf.mxu0
    %v3480 = vadd.f32 %v3467, %v3479
    %v3481 = vpop.f32.mrf.mxu0
    %3482 = vdwg.mxu0
    %3483 = vmatpush.bf16.msra.mxu0 %v3126
    %3484 = vmatpush.bf16.msra.mxu0 %v3122
    %3485 = vmatpush.bf16.msra.mxu0 %v3118
    %3486 = vmatpush.bf16.msra.mxu0 %v3114
    %3487 = vmatpush.bf16.msra.mxu0 %v3110
    %3488 = vmatpush.bf16.msra.mxu0 %v3106
    %3489 = vmatpush.bf16.msra.mxu0 %v3102
    %3490 = vmatpush.bf16.msra.mxu0 %v3098
    %3491 = vmatmul.bf16.gmra.mxu0 %v2391
    %v3492 = vpop.f32.mrf.mxu0
    %v3493 = vadd.f32 %v3480, %v3492
    %v3494 = vpop.f32.mrf.mxu0
    %3495 = vdwg.mxu0
    %3496 = vmatpush.bf16.msra.mxu0 %v3158
    %3497 = vmatpush.bf16.msra.mxu0 %v3154
    %3498 = vmatpush.bf16.msra.mxu0 %v3150
    %3499 = vmatpush.bf16.msra.mxu0 %v3146
    %3500 = vmatpush.bf16.msra.mxu0 %v3142
    %3501 = vmatpush.bf16.msra.mxu0 %v3138
    %3502 = vmatpush.bf16.msra.mxu0 %v3134
    %3503 = vmatpush.bf16.msra.mxu0 %v3130
    %3504 = vmatmul.bf16.gmra.mxu0 %v2392
    %v3505 = vpop.f32.mrf.mxu0
    %v3506 = vadd.f32 %v3493, %v3505
    %v3507 = vpop.f32.mrf.mxu0
    %3508 = vdwg.mxu0
    %3509 = vmatpush.bf16.msra.mxu0 %v2999
    %3510 = vmatpush.bf16.msra.mxu0 %v2995
    %3511 = vmatpush.bf16.msra.mxu0 %v2991
    %3512 = vmatpush.bf16.msra.mxu0 %v2987
    %3513 = vmatpush.bf16.msra.mxu0 %v2983
    %3514 = vmatpush.bf16.msra.mxu0 %v2979
    %3515 = vmatpush.bf16.msra.mxu0 %v2975
    %3516 = vmatpush.bf16.msra.mxu0 %v2971
    %3517 = vmatmul.bf16.gmra.mxu0 %v2387
    %v3518 = vpop.f32.mrf.mxu0
    %v3519 = vadd.f32 0.0, %v3518
    %v3520 = vpop.f32.mrf.mxu0
    %3521 = vdwg.mxu0
    %3522 = vmatpush.bf16.msra.mxu0 %v3031
    %3523 = vmatpush.bf16.msra.mxu0 %v3027
    %3524 = vmatpush.bf16.msra.mxu0 %v3023
    %3525 = vmatpush.bf16.msra.mxu0 %v3019
    %3526 = vmatpush.bf16.msra.mxu0 %v3015
    %3527 = vmatpush.bf16.msra.mxu0 %v3011
    %3528 = vmatpush.bf16.msra.mxu0 %v3007
    %3529 = vmatpush.bf16.msra.mxu0 %v3003
    %3530 = vmatmul.bf16.gmra.mxu0 %v2388
    %v3531 = vpop.f32.mrf.mxu0
    %v3532 = vadd.f32 %v3519, %v3531
    %v3533 = vpop.f32.mrf.mxu0
    %3534 = vdwg.mxu0
    %3535 = vmatpush.bf16.msra.mxu0 %v3063
    %3536 = vmatpush.bf16.msra.mxu0 %v3059
    %3537 = vmatpush.bf16.msra.mxu0 %v3055
    %3538 = vmatpush.bf16.msra.mxu0 %v3051
    %3539 = vmatpush.bf16.msra.mxu0 %v3047
    %3540 = vmatpush.bf16.msra.mxu0 %v3043
    %3541 = vmatpush.bf16.msra.mxu0 %v3039
    %3542 = vmatpush.bf16.msra.mxu0 %v3035
    %3543 = vmatmul.bf16.gmra.mxu0 %v2389
    %v3544 = vpop.f32.mrf.mxu0
    %v3545 = vadd.f32 %v3532, %v3544
    %v3546 = vpop.f32.mrf.mxu0
    %3547 = vdwg.mxu0
    %3548 = vmatpush.bf16.msra.mxu0 %v3095
    %3549 = vmatpush.bf16.msra.mxu0 %v3091
    %3550 = vmatpush.bf16.msra.mxu0 %v3087
    %3551 = vmatpush.bf16.msra.mxu0 %v3083
    %3552 = vmatpush.bf16.msra.mxu0 %v3079
    %3553 = vmatpush.bf16.msra.mxu0 %v3075
    %3554 = vmatpush.bf16.msra.mxu0 %v3071
    %3555 = vmatpush.bf16.msra.mxu0 %v3067
    %3556 = vmatmul.bf16.gmra.mxu0 %v2390
    %v3557 = vpop.f32.mrf.mxu0
    %v3558 = vadd.f32 %v3545, %v3557
    %v3559 = vpop.f32.mrf.mxu0
    %3560 = vdwg.mxu0
    %3561 = vmatpush.bf16.msra.mxu0 %v3127
    %3562 = vmatpush.bf16.msra.mxu0 %v3123
    %3563 = vmatpush.bf16.msra.mxu0 %v3119
    %3564 = vmatpush.bf16.msra.mxu0 %v3115
    %3565 = vmatpush.bf16.msra.mxu0 %v3111
    %3566 = vmatpush.bf16.msra.mxu0 %v3107
    %3567 = vmatpush.bf16.msra.mxu0 %v3103
    %3568 = vmatpush.bf16.msra.mxu0 %v3099
    %3569 = vmatmul.bf16.gmra.mxu0 %v2391
    %v3570 = vpop.f32.mrf.mxu0
    %v3571 = vadd.f32 %v3558, %v3570
    %v3572 = vpop.f32.mrf.mxu0
    %3573 = vdwg.mxu0
    %3574 = vmatpush.bf16.msra.mxu0 %v3159
    %3575 = vmatpush.bf16.msra.mxu0 %v3155
    %3576 = vmatpush.bf16.msra.mxu0 %v3151
    %3577 = vmatpush.bf16.msra.mxu0 %v3147
    %3578 = vmatpush.bf16.msra.mxu0 %v3143
    %3579 = vmatpush.bf16.msra.mxu0 %v3139
    %3580 = vmatpush.bf16.msra.mxu0 %v3135
    %3581 = vmatpush.bf16.msra.mxu0 %v3131
    %3582 = vmatmul.bf16.gmra.mxu0 %v2392
    %v3583 = vpop.f32.mrf.mxu0
    %v3584 = vadd.f32 %v3571, %v3583
    %v3585 = vpop.f32.mrf.mxu0
    %3586 = vdwg.mxu0
    %3587 = vmatpush.bf16.msra.mxu0 %v3000
    %3588 = vmatpush.bf16.msra.mxu0 %v2996
    %3589 = vmatpush.bf16.msra.mxu0 %v2992
    %3590 = vmatpush.bf16.msra.mxu0 %v2988
    %3591 = vmatpush.bf16.msra.mxu0 %v2984
    %3592 = vmatpush.bf16.msra.mxu0 %v2980
    %3593 = vmatpush.bf16.msra.mxu0 %v2976
    %3594 = vmatpush.bf16.msra.mxu0 %v2972
    %3595 = vmatmul.bf16.gmra.mxu0 %v2387
    %v3596 = vpop.f32.mrf.mxu0
    %v3597 = vadd.f32 0.0, %v3596
    %v3598 = vpop.f32.mrf.mxu0
    %3599 = vdwg.mxu0
    %3600 = vmatpush.bf16.msra.mxu0 %v3032
    %3601 = vmatpush.bf16.msra.mxu0 %v3028
    %3602 = vmatpush.bf16.msra.mxu0 %v3024
    %3603 = vmatpush.bf16.msra.mxu0 %v3020
    %3604 = vmatpush.bf16.msra.mxu0 %v3016
    %3605 = vmatpush.bf16.msra.mxu0 %v3012
    %3606 = vmatpush.bf16.msra.mxu0 %v3008
    %3607 = vmatpush.bf16.msra.mxu0 %v3004
    %3608 = vmatmul.bf16.gmra.mxu0 %v2388
    %v3609 = vpop.f32.mrf.mxu0
    %v3610 = vadd.f32 %v3597, %v3609
    %v3611 = vpop.f32.mrf.mxu0
    %3612 = vdwg.mxu0
    %3613 = vmatpush.bf16.msra.mxu0 %v3064
    %3614 = vmatpush.bf16.msra.mxu0 %v3060
    %3615 = vmatpush.bf16.msra.mxu0 %v3056
    %3616 = vmatpush.bf16.msra.mxu0 %v3052
    %3617 = vmatpush.bf16.msra.mxu0 %v3048
    %3618 = vmatpush.bf16.msra.mxu0 %v3044
    %3619 = vmatpush.bf16.msra.mxu0 %v3040
    %3620 = vmatpush.bf16.msra.mxu0 %v3036
    %3621 = vmatmul.bf16.gmra.mxu0 %v2389
    %v3622 = vpop.f32.mrf.mxu0
    %v3623 = vadd.f32 %v3610, %v3622
    %v3624 = vpop.f32.mrf.mxu0
    %3625 = vdwg.mxu0
    %3626 = vmatpush.bf16.msra.mxu0 %v3096
    %3627 = vmatpush.bf16.msra.mxu0 %v3092
    %3628 = vmatpush.bf16.msra.mxu0 %v3088
    %3629 = vmatpush.bf16.msra.mxu0 %v3084
    %3630 = vmatpush.bf16.msra.mxu0 %v3080
    %3631 = vmatpush.bf16.msra.mxu0 %v3076
    %3632 = vmatpush.bf16.msra.mxu0 %v3072
    %3633 = vmatpush.bf16.msra.mxu0 %v3068
    %3634 = vmatmul.bf16.gmra.mxu0 %v2390
    %v3635 = vpop.f32.mrf.mxu0
    %v3636 = vadd.f32 %v3623, %v3635
    %v3637 = vpop.f32.mrf.mxu0
    %3638 = vdwg.mxu0
    %3639 = vmatpush.bf16.msra.mxu0 %v3128
    %3640 = vmatpush.bf16.msra.mxu0 %v3124
    %3641 = vmatpush.bf16.msra.mxu0 %v3120
    %3642 = vmatpush.bf16.msra.mxu0 %v3116
    %3643 = vmatpush.bf16.msra.mxu0 %v3112
    %3644 = vmatpush.bf16.msra.mxu0 %v3108
    %3645 = vmatpush.bf16.msra.mxu0 %v3104
    %3646 = vmatpush.bf16.msra.mxu0 %v3100
    %3647 = vmatmul.bf16.gmra.mxu0 %v2391
    %v3648 = vpop.f32.mrf.mxu0
    %v3649 = vadd.f32 %v3636, %v3648
    %v3650 = vpop.f32.mrf.mxu0
    %3651 = vdwg.mxu0
    %3652 = vmatpush.bf16.msra.mxu0 %v3160
    %3653 = vmatpush.bf16.msra.mxu0 %v3156
    %3654 = vmatpush.bf16.msra.mxu0 %v3152
    %3655 = vmatpush.bf16.msra.mxu0 %v3148
    %3656 = vmatpush.bf16.msra.mxu0 %v3144
    %3657 = vmatpush.bf16.msra.mxu0 %v3140
    %3658 = vmatpush.bf16.msra.mxu0 %v3136
    %3659 = vmatpush.bf16.msra.mxu0 %v3132
    %3660 = vmatmul.bf16.gmra.mxu0 %v2392
    %v3661 = vpop.f32.mrf.mxu0
    %v3662 = vadd.f32 %v3649, %v3661
    %v3663 = vpop.f32.mrf.mxu0
    %3664 = vdwg.mxu0
    %v3665 = vperm.slane %v987, 0
    %v3666 = vperm.slane %v988, 0
    %v3667 = vperm.slane %v989, 0
    %v3668 = vperm.slane %v990, 0
    %v3673 = vrot.slane %v3666, 4
    %v3674 = vrot.slane %v3668, 4
    %v3675 = vsel %vm946, %v3665, %v3673
    %v3676 = vsel %vm946, %v3667, %v3674
    %v3679 = vmul.f32 %v627, %v3675
    %v3680 = vmul.f32 %v628, %v3676
    %v3681 = vld [vmem:[%s14] sm:$0xff]
    %3684 = vst [vmem:[#allocation1] ss:$2 sm:$0xff] %v3679
    %s3685 = scalar_lea.vmem [#allocation1], 16
    %3686 = vst [vmem:[%s3685] ss:$2 sm:$0xff] %v3680
    %v3687 = vld.sshfl [vmem:[#allocation1] sm:$0xff pattern:$0x75316420]
    %v3688 = vld.sshfl [vmem:[#allocation1 + $0x8] sm:$0xff pattern:$0x75316420]
    %v3689 = vld.sshfl [vmem:[#allocation1 + $0x10] sm:$0xff pattern:$0x75316420]
    %v3690 = vld.sshfl [vmem:[#allocation1 + $0x18] sm:$0xff pattern:$0x75316420]
    %v3695 = vpack.c.bf16 %v3687, %v3687
    %v3696 = vpack.c.bf16 %v3688, %v3688
    %v3697 = vpack.c.bf16 %v3689, %v3689
    %v3698 = vpack.c.bf16 %v3690, %v3690
    %v3763 = vunpack.c.l.b16 %v499
    %v3764 = vunpack.c.h.b16 %v499
    %v3765 = vunpack.c.l.b16 %v500
    %v3766 = vunpack.c.h.b16 %v500
    %v3767 = vunpack.c.l.b16 %v501
    %v3768 = vunpack.c.h.b16 %v501
    %v3769 = vunpack.c.l.b16 %v502
    %v3770 = vunpack.c.h.b16 %v502
    %v3771 = vunpack.c.l.b16 %v503
    %v3772 = vunpack.c.h.b16 %v503
    %v3773 = vunpack.c.l.b16 %v504
    %v3774 = vunpack.c.h.b16 %v504
    %v3775 = vunpack.c.l.b16 %v505
    %v3776 = vunpack.c.h.b16 %v505
    %v3777 = vunpack.c.l.b16 %v506
    %v3778 = vunpack.c.h.b16 %v506
    %v3779 = vunpack.c.l.b16 %v507
    %v3780 = vunpack.c.h.b16 %v507
    %v3781 = vunpack.c.l.b16 %v508
    %v3782 = vunpack.c.h.b16 %v508
    %v3783 = vunpack.c.l.b16 %v509
    %v3784 = vunpack.c.h.b16 %v509
    %v3785 = vunpack.c.l.b16 %v510
    %v3786 = vunpack.c.h.b16 %v510
    %v3787 = vunpack.c.l.b16 %v511
    %v3788 = vunpack.c.h.b16 %v511
    %v3789 = vunpack.c.l.b16 %v512
    %v3790 = vunpack.c.h.b16 %v512
    %v3791 = vunpack.c.l.b16 %v513
    %v3792 = vunpack.c.h.b16 %v513
    %v3793 = vunpack.c.l.b16 %v514
    %v3794 = vunpack.c.h.b16 %v514
    %v3795 = vunpack.c.l.b16 %v515
    %v3796 = vunpack.c.h.b16 %v515
    %v3797 = vunpack.c.l.b16 %v516
    %v3798 = vunpack.c.h.b16 %v516
    %v3799 = vunpack.c.l.b16 %v517
    %v3800 = vunpack.c.h.b16 %v517
    %v3801 = vunpack.c.l.b16 %v518
    %v3802 = vunpack.c.h.b16 %v518
    %v3803 = vunpack.c.l.b16 %v519
    %v3804 = vunpack.c.h.b16 %v519
    %v3805 = vunpack.c.l.b16 %v520
    %v3806 = vunpack.c.h.b16 %v520
    %v3807 = vunpack.c.l.b16 %v521
    %v3808 = vunpack.c.h.b16 %v521
    %v3809 = vunpack.c.l.b16 %v522
    %v3810 = vunpack.c.h.b16 %v522
    %v3811 = vunpack.c.l.b16 %v523
    %v3812 = vunpack.c.h.b16 %v523
    %v3813 = vunpack.c.l.b16 %v524
    %v3814 = vunpack.c.h.b16 %v524
    %v3815 = vunpack.c.l.b16 %v525
    %v3816 = vunpack.c.h.b16 %v525
    %v3817 = vunpack.c.l.b16 %v526
    %v3818 = vunpack.c.h.b16 %v526
    %v3819 = vunpack.c.l.b16 %v527
    %v3820 = vunpack.c.h.b16 %v527
    %v3821 = vunpack.c.l.b16 %v528
    %v3822 = vunpack.c.h.b16 %v528
    %v3823 = vunpack.c.l.b16 %v529
    %v3824 = vunpack.c.h.b16 %v529
    %v3825 = vunpack.c.l.b16 %v530
    %v3826 = vunpack.c.h.b16 %v530
    %v3827 = vunpack.c.l.b16 %v531
    %v3828 = vunpack.c.h.b16 %v531
    %v3829 = vunpack.c.l.b16 %v532
    %v3830 = vunpack.c.h.b16 %v532
    %v3831 = vunpack.c.l.b16 %v533
    %v3832 = vunpack.c.h.b16 %v533
    %v3833 = vunpack.c.l.b16 %v534
    %v3834 = vunpack.c.h.b16 %v534
    %v3835 = vunpack.c.l.b16 %v535
    %v3836 = vunpack.c.h.b16 %v535
    %v3837 = vunpack.c.l.b16 %v536
    %v3838 = vunpack.c.h.b16 %v536
    %v3839 = vunpack.c.l.b16 %v537
    %v3840 = vunpack.c.h.b16 %v537
    %v3841 = vunpack.c.l.b16 %v538
    %v3842 = vunpack.c.h.b16 %v538
    %v3843 = vunpack.c.l.b16 %v539
    %v3844 = vunpack.c.h.b16 %v539
    %v3845 = vunpack.c.l.b16 %v540
    %v3846 = vunpack.c.h.b16 %v540
    %v3847 = vunpack.c.l.b16 %v541
    %v3848 = vunpack.c.h.b16 %v541
    %v3849 = vunpack.c.l.b16 %v542
    %v3850 = vunpack.c.h.b16 %v542
    %v3851 = vunpack.c.l.b16 %v543
    %v3852 = vunpack.c.h.b16 %v543
    %v3853 = vunpack.c.l.b16 %v544
    %v3854 = vunpack.c.h.b16 %v544
    %v3855 = vunpack.c.l.b16 %v545
    %v3856 = vunpack.c.h.b16 %v545
    %v3857 = vunpack.c.l.b16 %v546
    %v3858 = vunpack.c.h.b16 %v546
    %v3859 = vunpack.c.l.b16 %v547
    %v3860 = vunpack.c.h.b16 %v547
    %v3861 = vunpack.c.l.b16 %v548
    %v3862 = vunpack.c.h.b16 %v548
    %v3863 = vunpack.c.l.b16 %v549
    %v3864 = vunpack.c.h.b16 %v549
    %v3865 = vunpack.c.l.b16 %v550
    %v3866 = vunpack.c.h.b16 %v550
    %v3867 = vunpack.c.l.b16 %v551
    %v3868 = vunpack.c.h.b16 %v551
    %v3869 = vunpack.c.l.b16 %v552
    %v3870 = vunpack.c.h.b16 %v552
    %v3871 = vunpack.c.l.b16 %v553
    %v3872 = vunpack.c.h.b16 %v553
    %v3873 = vunpack.c.l.b16 %v554
    %v3874 = vunpack.c.h.b16 %v554
    %v3875 = vunpack.c.l.b16 %v555
    %v3876 = vunpack.c.h.b16 %v555
    %v3877 = vunpack.c.l.b16 %v556
    %v3878 = vunpack.c.h.b16 %v556
    %v3879 = vunpack.c.l.b16 %v557
    %v3880 = vunpack.c.h.b16 %v557
    %v3881 = vunpack.c.l.b16 %v558
    %v3882 = vunpack.c.h.b16 %v558
    %v3883 = vunpack.c.l.b16 %v559
    %v3884 = vunpack.c.h.b16 %v559
    %v3885 = vunpack.c.l.b16 %v560
    %v3886 = vunpack.c.h.b16 %v560
    %v3887 = vunpack.c.l.b16 %v561
    %v3888 = vunpack.c.h.b16 %v561
    %v3889 = vunpack.c.l.b16 %v562
    %v3890 = vunpack.c.h.b16 %v562
    %v3891 = vpack.c.b16 %v3765, %v3763
    %v3892 = vpack.c.b16 %v3766, %v3764
    %v3893 = vpack.c.b16 %v3769, %v3767
    %v3894 = vpack.c.b16 %v3770, %v3768
    %v3895 = vpack.c.b16 %v3773, %v3771
    %v3896 = vpack.c.b16 %v3774, %v3772
    %v3897 = vpack.c.b16 %v3777, %v3775
    %v3898 = vpack.c.b16 %v3778, %v3776
    %v3899 = vpack.c.b16 %v3781, %v3779
    %v3900 = vpack.c.b16 %v3782, %v3780
    %v3901 = vpack.c.b16 %v3785, %v3783
    %v3902 = vpack.c.b16 %v3786, %v3784
    %v3903 = vpack.c.b16 %v3789, %v3787
    %v3904 = vpack.c.b16 %v3790, %v3788
    %v3905 = vpack.c.b16 %v3793, %v3791
    %v3906 = vpack.c.b16 %v3794, %v3792
    %v3907 = vpack.c.b16 %v3797, %v3795
    %v3908 = vpack.c.b16 %v3798, %v3796
    %v3909 = vpack.c.b16 %v3801, %v3799
    %v3910 = vpack.c.b16 %v3802, %v3800
    %v3911 = vpack.c.b16 %v3805, %v3803
    %v3912 = vpack.c.b16 %v3806, %v3804
    %v3913 = vpack.c.b16 %v3809, %v3807
    %v3914 = vpack.c.b16 %v3810, %v3808
    %v3915 = vpack.c.b16 %v3813, %v3811
    %v3916 = vpack.c.b16 %v3814, %v3812
    %v3917 = vpack.c.b16 %v3817, %v3815
    %v3918 = vpack.c.b16 %v3818, %v3816
    %v3919 = vpack.c.b16 %v3821, %v3819
    %v3920 = vpack.c.b16 %v3822, %v3820
    %v3921 = vpack.c.b16 %v3825, %v3823
    %v3922 = vpack.c.b16 %v3826, %v3824
    %v3923 = vpack.c.b16 %v3829, %v3827
    %v3924 = vpack.c.b16 %v3830, %v3828
    %v3925 = vpack.c.b16 %v3833, %v3831
    %v3926 = vpack.c.b16 %v3834, %v3832
    %v3927 = vpack.c.b16 %v3837, %v3835
    %v3928 = vpack.c.b16 %v3838, %v3836
    %v3929 = vpack.c.b16 %v3841, %v3839
    %v3930 = vpack.c.b16 %v3842, %v3840
    %v3931 = vpack.c.b16 %v3845, %v3843
    %v3932 = vpack.c.b16 %v3846, %v3844
    %v3933 = vpack.c.b16 %v3849, %v3847
    %v3934 = vpack.c.b16 %v3850, %v3848
    %v3935 = vpack.c.b16 %v3853, %v3851
    %v3936 = vpack.c.b16 %v3854, %v3852
    %v3937 = vpack.c.b16 %v3857, %v3855
    %v3938 = vpack.c.b16 %v3858, %v3856
    %v3939 = vpack.c.b16 %v3861, %v3859
    %v3940 = vpack.c.b16 %v3862, %v3860
    %v3941 = vpack.c.b16 %v3865, %v3863
    %v3942 = vpack.c.b16 %v3866, %v3864
    %v3943 = vpack.c.b16 %v3869, %v3867
    %v3944 = vpack.c.b16 %v3870, %v3868
    %v3945 = vpack.c.b16 %v3873, %v3871
    %v3946 = vpack.c.b16 %v3874, %v3872
    %v3947 = vpack.c.b16 %v3877, %v3875
    %v3948 = vpack.c.b16 %v3878, %v3876
    %v3949 = vpack.c.b16 %v3881, %v3879
    %v3950 = vpack.c.b16 %v3882, %v3880
    %v3951 = vpack.c.b16 %v3885, %v3883
    %v3952 = vpack.c.b16 %v3886, %v3884
    %v3953 = vpack.c.b16 %v3889, %v3887
    %v3954 = vpack.c.b16 %v3890, %v3888
    %4019 = vmatpush.bf16.msra.mxu0 %v3905
    %4020 = vmatpush.bf16.msra.mxu0 %v3903
    %4021 = vmatpush.bf16.msra.mxu0 %v3901
    %4022 = vmatpush.bf16.msra.mxu0 %v3899
    %4023 = vmatpush.bf16.msra.mxu0 %v3897
    %4024 = vmatpush.bf16.msra.mxu0 %v3895
    %4025 = vmatpush.bf16.msra.mxu0 %v3893
    %4026 = vmatpush.bf16.msra.mxu0 %v3891
    %4027 = vmatmul.bf16.gmra.mxu0 %v3695
    %v4028 = vpop.f32.mrf.mxu0
    %v4029 = vadd.f32 0.0, %v4028
    %v4030 = vpop.f32.mrf.mxu0
    %4031 = vdwg.mxu0
    %4032 = vmatpush.bf16.msra.mxu0 %v3921
    %4033 = vmatpush.bf16.msra.mxu0 %v3919
    %4034 = vmatpush.bf16.msra.mxu0 %v3917
    %4035 = vmatpush.bf16.msra.mxu0 %v3915
    %4036 = vmatpush.bf16.msra.mxu0 %v3913
    %4037 = vmatpush.bf16.msra.mxu0 %v3911
    %4038 = vmatpush.bf16.msra.mxu0 %v3909
    %4039 = vmatpush.bf16.msra.mxu0 %v3907
    %4040 = vmatmul.bf16.gmra.mxu0 %v3696
    %v4041 = vpop.f32.mrf.mxu0
    %v4042 = vadd.f32 %v4029, %v4041
    %v4043 = vpop.f32.mrf.mxu0
    %4044 = vdwg.mxu0
    %4045 = vmatpush.bf16.msra.mxu0 %v3937
    %4046 = vmatpush.bf16.msra.mxu0 %v3935
    %4047 = vmatpush.bf16.msra.mxu0 %v3933
    %4048 = vmatpush.bf16.msra.mxu0 %v3931
    %4049 = vmatpush.bf16.msra.mxu0 %v3929
    %4050 = vmatpush.bf16.msra.mxu0 %v3927
    %4051 = vmatpush.bf16.msra.mxu0 %v3925
    %4052 = vmatpush.bf16.msra.mxu0 %v3923
    %4053 = vmatmul.bf16.gmra.mxu0 %v3697
    %v4054 = vpop.f32.mrf.mxu0
    %v4055 = vadd.f32 %v4042, %v4054
    %v4056 = vpop.f32.mrf.mxu0
    %4057 = vdwg.mxu0
    %4058 = vmatpush.bf16.msra.mxu0 %v3953
    %4059 = vmatpush.bf16.msra.mxu0 %v3951
    %4060 = vmatpush.bf16.msra.mxu0 %v3949
    %4061 = vmatpush.bf16.msra.mxu0 %v3947
    %4062 = vmatpush.bf16.msra.mxu0 %v3945
    %4063 = vmatpush.bf16.msra.mxu0 %v3943
    %4064 = vmatpush.bf16.msra.mxu0 %v3941
    %4065 = vmatpush.bf16.msra.mxu0 %v3939
    %4066 = vmatmul.bf16.gmra.mxu0 %v3698
    %v4067 = vpop.f32.mrf.mxu0
    %v4068 = vadd.f32 %v4055, %v4067
    %v4069 = vpop.f32.mrf.mxu0
    %4070 = vdwg.mxu0
    %4071 = vmatpush.bf16.msra.mxu0 %v3906
    %4072 = vmatpush.bf16.msra.mxu0 %v3904
    %4073 = vmatpush.bf16.msra.mxu0 %v3902
    %4074 = vmatpush.bf16.msra.mxu0 %v3900
    %4075 = vmatpush.bf16.msra.mxu0 %v3898
    %4076 = vmatpush.bf16.msra.mxu0 %v3896
    %4077 = vmatpush.bf16.msra.mxu0 %v3894
    %4078 = vmatpush.bf16.msra.mxu0 %v3892
    %4079 = vmatmul.bf16.gmra.mxu0 %v3695
    %v4080 = vpop.f32.mrf.mxu0
    %v4081 = vadd.f32 0.0, %v4080
    %v4082 = vpop.f32.mrf.mxu0
    %4083 = vdwg.mxu0
    %4084 = vmatpush.bf16.msra.mxu0 %v3922
    %4085 = vmatpush.bf16.msra.mxu0 %v3920
    %4086 = vmatpush.bf16.msra.mxu0 %v3918
    %4087 = vmatpush.bf16.msra.mxu0 %v3916
    %4088 = vmatpush.bf16.msra.mxu0 %v3914
    %4089 = vmatpush.bf16.msra.mxu0 %v3912
    %4090 = vmatpush.bf16.msra.mxu0 %v3910
    %4091 = vmatpush.bf16.msra.mxu0 %v3908
    %4092 = vmatmul.bf16.gmra.mxu0 %v3696
    %v4093 = vpop.f32.mrf.mxu0
    %v4094 = vadd.f32 %v4081, %v4093
    %v4095 = vpop.f32.mrf.mxu0
    %4096 = vdwg.mxu0
    %4097 = vmatpush.bf16.msra.mxu0 %v3938
    %4098 = vmatpush.bf16.msra.mxu0 %v3936
    %4099 = vmatpush.bf16.msra.mxu0 %v3934
    %4100 = vmatpush.bf16.msra.mxu0 %v3932
    %4101 = vmatpush.bf16.msra.mxu0 %v3930
    %4102 = vmatpush.bf16.msra.mxu0 %v3928
    %4103 = vmatpush.bf16.msra.mxu0 %v3926
    %4104 = vmatpush.bf16.msra.mxu0 %v3924
    %4105 = vmatmul.bf16.gmra.mxu0 %v3697
    %v4106 = vpop.f32.mrf.mxu0
    %v4107 = vadd.f32 %v4094, %v4106
    %v4108 = vpop.f32.mrf.mxu0
    %4109 = vdwg.mxu0
    %4110 = vmatpush.bf16.msra.mxu0 %v3954
    %4111 = vmatpush.bf16.msra.mxu0 %v3952
    %4112 = vmatpush.bf16.msra.mxu0 %v3950
    %4113 = vmatpush.bf16.msra.mxu0 %v3948
    %4114 = vmatpush.bf16.msra.mxu0 %v3946
    %4115 = vmatpush.bf16.msra.mxu0 %v3944
    %4116 = vmatpush.bf16.msra.mxu0 %v3942
    %4117 = vmatpush.bf16.msra.mxu0 %v3940
    %4118 = vmatmul.bf16.gmra.mxu0 %v3698
    %v4119 = vpop.f32.mrf.mxu0
    %v4120 = vadd.f32 %v4107, %v4119
    %v4121 = vpop.f32.mrf.mxu0
    %4122 = vdwg.mxu0
    %v4124 = vrot.slane %v4120, 4
    %v4126 = vsel %vm946, %v4068, %v4124
    %v4128 = vsel %vm649, %v3681, 0
    %4130 = vmatpush.msra.mxu0 0.0
    %4131 = vmatpush.msra.mxu0 0.0
    %4132 = vmatpush.msra.mxu0 0.0
    %4133 = vmatpush.msra.mxu0 0.0
    %4134 = vmatpush.msra.mxu0 0.0
    %4135 = vmatpush.msra.mxu0 0.0
    %4136 = vmatpush.msra.mxu0 0.0
    %4137 = vmatpush.msra.mxu0 0.0
    %4138 = vmatpush.msra.mxu0 0.0
    %4139 = vmatpush.msra.mxu0 0.0
    %4140 = vmatpush.msra.mxu0 0.0
    %4141 = vmatpush.msra.mxu0 0.0
    %4142 = vmatpush.msra.mxu0 0.0
    %4143 = vmatpush.msra.mxu0 0.0
    %4144 = vmatpush.msra.mxu0 0.0
    %4145 = vmatpush.msra.mxu0 %v4126
    %4146 = vmatmul.f32.gmra.mxu0 %v4128
    %v4147 = vpop.f32.mrf.mxu0
    %v4148 = vadd.f32 0.0, %v4147
    %4149 = vdwg.mxu0
    %v4150 = vmul.f32 %v4148, %v4148
    %4151 = vadd.xlane.f32.xlu0 %v4148
    %v4152 = vpop.xlane.xlu0 %4151
    %4153 = vadd.xlane.f32.xlu0 %v4150
    %v4154 = vpop.xlane.xlu0 %4153
    %v4155 = vmul.f32 %v4152, 0.0125
    %v4156 = vmul.f32 %v4154, 0.0125
    %v4157 = vmul.f32 %v4155, %v4155
    %v4158 = vsub.f32 %v4156, %v4157
    %v4159 = vsub.f32 %v4148, %v4155
    %v4160 = vadd.f32 %v4158, 1e-05
    %v4161 = vrsqrt.pop %v4160
    %v4162 = vmul.f32 %v4161, %v4160
    %v4163 = vmul.f32 %v4162, %v4161
    %v4164 = vmul.f32 0.5, %v4163
    %v4165 = vsub.f32 1.5, %v4164
    %v4166 = vmul.f32 %v4161, %v4165
    %vm4167 = vweird.f32 %v4160
    %vm4168 = vweird.f32 %v4161
    %vm4169 = vmor %vm4167, %vm4168
    %v4170 = vsel %vm4169, %v4161, %v4166
    %v4171 = vmul.f32 %v4159, %v4170
    %v4172 = vmax.f32 %v4171, 0.0
    %v4174 = vrot.slane %v4172, 4
    %v4176 = vpack.c.bf16 %v4172, %v4172
    %v4177 = vpack.c.bf16 %v4174, %v4174
    %v4242 = vunpack.c.l.b16 %v563
    %v4243 = vunpack.c.h.b16 %v563
    %v4244 = vunpack.c.l.b16 %v564
    %v4245 = vunpack.c.h.b16 %v564
    %v4246 = vunpack.c.l.b16 %v565
    %v4247 = vunpack.c.h.b16 %v565
    %v4248 = vunpack.c.l.b16 %v566
    %v4249 = vunpack.c.h.b16 %v566
    %v4250 = vunpack.c.l.b16 %v567
    %v4251 = vunpack.c.h.b16 %v567
    %v4252 = vunpack.c.l.b16 %v568
    %v4253 = vunpack.c.h.b16 %v568
    %v4254 = vunpack.c.l.b16 %v569
    %v4255 = vunpack.c.h.b16 %v569
    %v4256 = vunpack.c.l.b16 %v570
    %v4257 = vunpack.c.h.b16 %v570
    %v4258 = vunpack.c.l.b16 %v571
    %v4259 = vunpack.c.h.b16 %v571
    %v4260 = vunpack.c.l.b16 %v572
    %v4261 = vunpack.c.h.b16 %v572
    %v4262 = vunpack.c.l.b16 %v573
    %v4263 = vunpack.c.h.b16 %v573
    %v4264 = vunpack.c.l.b16 %v574
    %v4265 = vunpack.c.h.b16 %v574
    %v4266 = vunpack.c.l.b16 %v575
    %v4267 = vunpack.c.h.b16 %v575
    %v4268 = vunpack.c.l.b16 %v576
    %v4269 = vunpack.c.h.b16 %v576
    %v4270 = vunpack.c.l.b16 %v577
    %v4271 = vunpack.c.h.b16 %v577
    %v4272 = vunpack.c.l.b16 %v578
    %v4273 = vunpack.c.h.b16 %v578
    %v4274 = vunpack.c.l.b16 %v579
    %v4275 = vunpack.c.h.b16 %v579
    %v4276 = vunpack.c.l.b16 %v580
    %v4277 = vunpack.c.h.b16 %v580
    %v4278 = vunpack.c.l.b16 %v581
    %v4279 = vunpack.c.h.b16 %v581
    %v4280 = vunpack.c.l.b16 %v582
    %v4281 = vunpack.c.h.b16 %v582
    %v4282 = vunpack.c.l.b16 %v583
    %v4283 = vunpack.c.h.b16 %v583
    %v4284 = vunpack.c.l.b16 %v584
    %v4285 = vunpack.c.h.b16 %v584
    %v4286 = vunpack.c.l.b16 %v585
    %v4287 = vunpack.c.h.b16 %v585
    %v4288 = vunpack.c.l.b16 %v586
    %v4289 = vunpack.c.h.b16 %v586
    %v4290 = vunpack.c.l.b16 %v587
    %v4291 = vunpack.c.h.b16 %v587
    %v4292 = vunpack.c.l.b16 %v588
    %v4293 = vunpack.c.h.b16 %v588
    %v4294 = vunpack.c.l.b16 %v589
    %v4295 = vunpack.c.h.b16 %v589
    %v4296 = vunpack.c.l.b16 %v590
    %v4297 = vunpack.c.h.b16 %v590
    %v4298 = vunpack.c.l.b16 %v591
    %v4299 = vunpack.c.h.b16 %v591
    %v4300 = vunpack.c.l.b16 %v592
    %v4301 = vunpack.c.h.b16 %v592
    %v4302 = vunpack.c.l.b16 %v593
    %v4303 = vunpack.c.h.b16 %v593
    %v4304 = vunpack.c.l.b16 %v594
    %v4305 = vunpack.c.h.b16 %v594
    %v4306 = vunpack.c.l.b16 %v595
    %v4307 = vunpack.c.h.b16 %v595
    %v4308 = vunpack.c.l.b16 %v596
    %v4309 = vunpack.c.h.b16 %v596
    %v4310 = vunpack.c.l.b16 %v597
    %v4311 = vunpack.c.h.b16 %v597
    %v4312 = vunpack.c.l.b16 %v598
    %v4313 = vunpack.c.h.b16 %v598
    %v4314 = vunpack.c.l.b16 %v599
    %v4315 = vunpack.c.h.b16 %v599
    %v4316 = vunpack.c.l.b16 %v600
    %v4317 = vunpack.c.h.b16 %v600
    %v4318 = vunpack.c.l.b16 %v601
    %v4319 = vunpack.c.h.b16 %v601
    %v4320 = vunpack.c.l.b16 %v602
    %v4321 = vunpack.c.h.b16 %v602
    %v4322 = vunpack.c.l.b16 %v603
    %v4323 = vunpack.c.h.b16 %v603
    %v4324 = vunpack.c.l.b16 %v604
    %v4325 = vunpack.c.h.b16 %v604
    %v4326 = vunpack.c.l.b16 %v605
    %v4327 = vunpack.c.h.b16 %v605
    %v4328 = vunpack.c.l.b16 %v606
    %v4329 = vunpack.c.h.b16 %v606
    %v4330 = vunpack.c.l.b16 %v607
    %v4331 = vunpack.c.h.b16 %v607
    %v4332 = vunpack.c.l.b16 %v608
    %v4333 = vunpack.c.h.b16 %v608
    %v4334 = vunpack.c.l.b16 %v609
    %v4335 = vunpack.c.h.b16 %v609
    %v4336 = vunpack.c.l.b16 %v610
    %v4337 = vunpack.c.h.b16 %v610
    %v4338 = vunpack.c.l.b16 %v611
    %v4339 = vunpack.c.h.b16 %v611
    %v4340 = vunpack.c.l.b16 %v612
    %v4341 = vunpack.c.h.b16 %v612
    %v4342 = vunpack.c.l.b16 %v613
    %v4343 = vunpack.c.h.b16 %v613
    %v4344 = vunpack.c.l.b16 %v614
    %v4345 = vunpack.c.h.b16 %v614
    %v4346 = vunpack.c.l.b16 %v615
    %v4347 = vunpack.c.h.b16 %v615
    %v4348 = vunpack.c.l.b16 %v616
    %v4349 = vunpack.c.h.b16 %v616
    %v4350 = vunpack.c.l.b16 %v617
    %v4351 = vunpack.c.h.b16 %v617
    %v4352 = vunpack.c.l.b16 %v618
    %v4353 = vunpack.c.h.b16 %v618
    %v4354 = vunpack.c.l.b16 %v619
    %v4355 = vunpack.c.h.b16 %v619
    %v4356 = vunpack.c.l.b16 %v620
    %v4357 = vunpack.c.h.b16 %v620
    %v4358 = vunpack.c.l.b16 %v621
    %v4359 = vunpack.c.h.b16 %v621
    %v4360 = vunpack.c.l.b16 %v622
    %v4361 = vunpack.c.h.b16 %v622
    %v4362 = vunpack.c.l.b16 %v623
    %v4363 = vunpack.c.h.b16 %v623
    %v4364 = vunpack.c.l.b16 %v624
    %v4365 = vunpack.c.h.b16 %v624
    %v4366 = vunpack.c.l.b16 %v625
    %v4367 = vunpack.c.h.b16 %v625
    %v4368 = vunpack.c.l.b16 %v626
    %v4369 = vunpack.c.h.b16 %v626
    %v4370 = vpack.c.b16 %v4246, %v4242
    %v4371 = vpack.c.b16 %v4247, %v4243
    %v4372 = vpack.c.b16 %v4248, %v4244
    %v4373 = vpack.c.b16 %v4249, %v4245
    %v4374 = vpack.c.b16 %v4254, %v4250
    %v4375 = vpack.c.b16 %v4255, %v4251
    %v4376 = vpack.c.b16 %v4256, %v4252
    %v4377 = vpack.c.b16 %v4257, %v4253
    %v4378 = vpack.c.b16 %v4262, %v4258
    %v4379 = vpack.c.b16 %v4263, %v4259
    %v4380 = vpack.c.b16 %v4264, %v4260
    %v4381 = vpack.c.b16 %v4265, %v4261
    %v4382 = vpack.c.b16 %v4270, %v4266
    %v4383 = vpack.c.b16 %v4271, %v4267
    %v4384 = vpack.c.b16 %v4272, %v4268
    %v4385 = vpack.c.b16 %v4273, %v4269
    %v4386 = vpack.c.b16 %v4278, %v4274
    %v4387 = vpack.c.b16 %v4279, %v4275
    %v4388 = vpack.c.b16 %v4280, %v4276
    %v4389 = vpack.c.b16 %v4281, %v4277
    %v4390 = vpack.c.b16 %v4286, %v4282
    %v4391 = vpack.c.b16 %v4287, %v4283
    %v4392 = vpack.c.b16 %v4288, %v4284
    %v4393 = vpack.c.b16 %v4289, %v4285
    %v4394 = vpack.c.b16 %v4294, %v4290
    %v4395 = vpack.c.b16 %v4295, %v4291
    %v4396 = vpack.c.b16 %v4296, %v4292
    %v4397 = vpack.c.b16 %v4297, %v4293
    %v4398 = vpack.c.b16 %v4302, %v4298
    %v4399 = vpack.c.b16 %v4303, %v4299
    %v4400 = vpack.c.b16 %v4304, %v4300
    %v4401 = vpack.c.b16 %v4305, %v4301
    %v4402 = vpack.c.b16 %v4310, %v4306
    %v4403 = vpack.c.b16 %v4311, %v4307
    %v4404 = vpack.c.b16 %v4312, %v4308
    %v4405 = vpack.c.b16 %v4313, %v4309
    %v4406 = vpack.c.b16 %v4318, %v4314
    %v4407 = vpack.c.b16 %v4319, %v4315
    %v4408 = vpack.c.b16 %v4320, %v4316
    %v4409 = vpack.c.b16 %v4321, %v4317
    %v4410 = vpack.c.b16 %v4326, %v4322
    %v4411 = vpack.c.b16 %v4327, %v4323
    %v4412 = vpack.c.b16 %v4328, %v4324
    %v4413 = vpack.c.b16 %v4329, %v4325
    %v4414 = vpack.c.b16 %v4334, %v4330
    %v4415 = vpack.c.b16 %v4335, %v4331
    %v4416 = vpack.c.b16 %v4336, %v4332
    %v4417 = vpack.c.b16 %v4337, %v4333
    %v4418 = vpack.c.b16 %v4342, %v4338
    %v4419 = vpack.c.b16 %v4343, %v4339
    %v4420 = vpack.c.b16 %v4344, %v4340
    %v4421 = vpack.c.b16 %v4345, %v4341
    %v4422 = vpack.c.b16 %v4350, %v4346
    %v4423 = vpack.c.b16 %v4351, %v4347
    %v4424 = vpack.c.b16 %v4352, %v4348
    %v4425 = vpack.c.b16 %v4353, %v4349
    %v4426 = vpack.c.b16 %v4358, %v4354
    %v4427 = vpack.c.b16 %v4359, %v4355
    %v4428 = vpack.c.b16 %v4360, %v4356
    %v4429 = vpack.c.b16 %v4361, %v4357
    %v4430 = vpack.c.b16 %v4366, %v4362
    %v4431 = vpack.c.b16 %v4367, %v4363
    %v4432 = vpack.c.b16 %v4368, %v4364
    %v4433 = vpack.c.b16 %v4369, %v4365
    %4498 = vmatpush.bf16.msra.mxu0 %v4398
    %4499 = vmatpush.bf16.msra.mxu0 %v4394
    %4500 = vmatpush.bf16.msra.mxu0 %v4390
    %4501 = vmatpush.bf16.msra.mxu0 %v4386
    %4502 = vmatpush.bf16.msra.mxu0 %v4382
    %4503 = vmatpush.bf16.msra.mxu0 %v4378
    %4504 = vmatpush.bf16.msra.mxu0 %v4374
    %4505 = vmatpush.bf16.msra.mxu0 %v4370
    %4506 = vmatmul.bf16.gmra.mxu0 %v4176
    %v4507 = vpop.f32.mrf.mxu0
    %v4508 = vadd.f32 0.0, %v4507
    %v4509 = vpop.f32.mrf.mxu0
    %4510 = vdwg.mxu0
    %4511 = vmatpush.bf16.msra.mxu0 %v4430
    %4512 = vmatpush.bf16.msra.mxu0 %v4426
    %4513 = vmatpush.bf16.msra.mxu0 %v4422
    %4514 = vmatpush.bf16.msra.mxu0 %v4418
    %4515 = vmatpush.bf16.msra.mxu0 %v4414
    %4516 = vmatpush.bf16.msra.mxu0 %v4410
    %4517 = vmatpush.bf16.msra.mxu0 %v4406
    %4518 = vmatpush.bf16.msra.mxu0 %v4402
    %4519 = vmatmul.bf16.gmra.mxu0 %v4177
    %v4520 = vpop.f32.mrf.mxu0
    %v4521 = vadd.f32 %v4508, %v4520
    %v4522 = vpop.f32.mrf.mxu0
    %4523 = vdwg.mxu0
    %4524 = vmatpush.bf16.msra.mxu0 %v4399
    %4525 = vmatpush.bf16.msra.mxu0 %v4395
    %4526 = vmatpush.bf16.msra.mxu0 %v4391
    %4527 = vmatpush.bf16.msra.mxu0 %v4387
    %4528 = vmatpush.bf16.msra.mxu0 %v4383
    %4529 = vmatpush.bf16.msra.mxu0 %v4379
    %4530 = vmatpush.bf16.msra.mxu0 %v4375
    %4531 = vmatpush.bf16.msra.mxu0 %v4371
    %4532 = vmatmul.bf16.gmra.mxu0 %v4176
    %v4533 = vpop.f32.mrf.mxu0
    %v4534 = vadd.f32 0.0, %v4533
    %v4535 = vpop.f32.mrf.mxu0
    %4536 = vdwg.mxu0
    %4537 = vmatpush.bf16.msra.mxu0 %v4431
    %4538 = vmatpush.bf16.msra.mxu0 %v4427
    %4539 = vmatpush.bf16.msra.mxu0 %v4423
    %4540 = vmatpush.bf16.msra.mxu0 %v4419
    %4541 = vmatpush.bf16.msra.mxu0 %v4415
    %4542 = vmatpush.bf16.msra.mxu0 %v4411
    %4543 = vmatpush.bf16.msra.mxu0 %v4407
    %4544 = vmatpush.bf16.msra.mxu0 %v4403
    %4545 = vmatmul.bf16.gmra.mxu0 %v4177
    %v4546 = vpop.f32.mrf.mxu0
    %v4547 = vadd.f32 %v4534, %v4546
    %v4548 = vpop.f32.mrf.mxu0
    %4549 = vdwg.mxu0
    %4550 = vmatpush.bf16.msra.mxu0 %v4400
    %4551 = vmatpush.bf16.msra.mxu0 %v4396
    %4552 = vmatpush.bf16.msra.mxu0 %v4392
    %4553 = vmatpush.bf16.msra.mxu0 %v4388
    %4554 = vmatpush.bf16.msra.mxu0 %v4384
    %4555 = vmatpush.bf16.msra.mxu0 %v4380
    %4556 = vmatpush.bf16.msra.mxu0 %v4376
    %4557 = vmatpush.bf16.msra.mxu0 %v4372
    %4558 = vmatmul.bf16.gmra.mxu0 %v4176
    %v4559 = vpop.f32.mrf.mxu0
    %v4560 = vadd.f32 0.0, %v4559
    %v4561 = vpop.f32.mrf.mxu0
    %4562 = vdwg.mxu0
    %4563 = vmatpush.bf16.msra.mxu0 %v4432
    %4564 = vmatpush.bf16.msra.mxu0 %v4428
    %4565 = vmatpush.bf16.msra.mxu0 %v4424
    %4566 = vmatpush.bf16.msra.mxu0 %v4420
    %4567 = vmatpush.bf16.msra.mxu0 %v4416
    %4568 = vmatpush.bf16.msra.mxu0 %v4412
    %4569 = vmatpush.bf16.msra.mxu0 %v4408
    %4570 = vmatpush.bf16.msra.mxu0 %v4404
    %4571 = vmatmul.bf16.gmra.mxu0 %v4177
    %v4572 = vpop.f32.mrf.mxu0
    %v4573 = vadd.f32 %v4560, %v4572
    %v4574 = vpop.f32.mrf.mxu0
    %4575 = vdwg.mxu0
    %4576 = vmatpush.bf16.msra.mxu0 %v4401
    %4577 = vmatpush.bf16.msra.mxu0 %v4397
    %4578 = vmatpush.bf16.msra.mxu0 %v4393
    %4579 = vmatpush.bf16.msra.mxu0 %v4389
    %4580 = vmatpush.bf16.msra.mxu0 %v4385
    %4581 = vmatpush.bf16.msra.mxu0 %v4381
    %4582 = vmatpush.bf16.msra.mxu0 %v4377
    %4583 = vmatpush.bf16.msra.mxu0 %v4373
    %4584 = vmatmul.bf16.gmra.mxu0 %v4176
    %v4585 = vpop.f32.mrf.mxu0
    %v4586 = vadd.f32 0.0, %v4585
    %v4587 = vpop.f32.mrf.mxu0
    %4588 = vdwg.mxu0
    %4589 = vmatpush.bf16.msra.mxu0 %v4433
    %4590 = vmatpush.bf16.msra.mxu0 %v4429
    %4591 = vmatpush.bf16.msra.mxu0 %v4425
    %4592 = vmatpush.bf16.msra.mxu0 %v4421
    %4593 = vmatpush.bf16.msra.mxu0 %v4417
    %4594 = vmatpush.bf16.msra.mxu0 %v4413
    %4595 = vmatpush.bf16.msra.mxu0 %v4409
    %4596 = vmatpush.bf16.msra.mxu0 %v4405
    %4597 = vmatmul.bf16.gmra.mxu0 %v4177
    %v4598 = vpop.f32.mrf.mxu0
    %v4599 = vadd.f32 %v4586, %v4598
    %v4600 = vpop.f32.mrf.mxu0
    %4601 = vdwg.mxu0
    %v4602 = vld [vmem:[%s12] sm:$0xff]
    %v4603 = vadd.f32 %v987, %v3428
    %v4604 = vadd.f32 %v988, %v3506
    %v4605 = vadd.f32 %v989, %v3584
    %v4606 = vadd.f32 %v990, %v3662
    %v4607 = vadd.f32 %v4603, %v4521
    %v4608 = vadd.f32 %v4604, %v4547
    %v4609 = vadd.f32 %v4605, %v4573
    %v4610 = vadd.f32 %v4606, %v4599
    %vm4611 = vcmask 31744
    %v4613 = vsel %vm4611, %v4602, 0
    %v4616 = vsel %vm946, %v4607, 0
    %v4619 = vsel %vm946, %v4608, 0
    %v4622 = vsel %vm946, %v4609, 0
    %v4625 = vsel %vm946, %v4610, 0
    %4627 = vmatpush.msra.mxu0 0.0
    %4628 = vmatpush.msra.mxu0 0.0
    %4629 = vmatpush.msra.mxu0 0.0
    %4630 = vmatpush.msra.mxu0 0.0
    %4631 = vmatpush.msra.mxu0 0.0
    %4632 = vmatpush.msra.mxu0 0.0
    %4633 = vmatpush.msra.mxu0 0.0
    %4634 = vmatpush.msra.mxu0 0.0
    %4635 = vmatpush.msra.mxu0 0.0
    %4636 = vmatpush.msra.mxu0 0.0
    %4637 = vmatpush.msra.mxu0 0.0
    %4638 = vmatpush.msra.mxu0 0.0
    %4639 = vmatpush.msra.mxu0 0.0
    %4640 = vmatpush.msra.mxu0 0.0
    %4641 = vmatpush.msra.mxu0 0.0
    %4642 = vmatpush.msra.mxu0 %v4616
    %4643 = vmatmul.f32.gmra.mxu0 %v4613
    %v4644 = vpop.f32.mrf.mxu0
    %v4645 = vadd.f32 0.0, %v4644
    %4646 = vdwg.mxu0
    %4647 = vmatpush.msra.mxu0 0.0
    %4648 = vmatpush.msra.mxu0 0.0
    %4649 = vmatpush.msra.mxu0 0.0
    %4650 = vmatpush.msra.mxu0 0.0
    %4651 = vmatpush.msra.mxu0 0.0
    %4652 = vmatpush.msra.mxu0 0.0
    %4653 = vmatpush.msra.mxu0 0.0
    %4654 = vmatpush.msra.mxu0 0.0
    %4655 = vmatpush.msra.mxu0 0.0
    %4656 = vmatpush.msra.mxu0 0.0
    %4657 = vmatpush.msra.mxu0 0.0
    %4658 = vmatpush.msra.mxu0 0.0
    %4659 = vmatpush.msra.mxu0 0.0
    %4660 = vmatpush.msra.mxu0 0.0
    %4661 = vmatpush.msra.mxu0 0.0
    %4662 = vmatpush.msra.mxu0 %v4619
    %4663 = vmatmul.f32.gmra.mxu0 %v4613
    %v4664 = vpop.f32.mrf.mxu0
    %v4665 = vadd.f32 0.0, %v4664
    %4666 = vdwg.mxu0
    %4667 = vmatpush.msra.mxu0 0.0
    %4668 = vmatpush.msra.mxu0 0.0
    %4669 = vmatpush.msra.mxu0 0.0
    %4670 = vmatpush.msra.mxu0 0.0
    %4671 = vmatpush.msra.mxu0 0.0
    %4672 = vmatpush.msra.mxu0 0.0
    %4673 = vmatpush.msra.mxu0 0.0
    %4674 = vmatpush.msra.mxu0 0.0
    %4675 = vmatpush.msra.mxu0 0.0
    %4676 = vmatpush.msra.mxu0 0.0
    %4677 = vmatpush.msra.mxu0 0.0
    %4678 = vmatpush.msra.mxu0 0.0
    %4679 = vmatpush.msra.mxu0 0.0
    %4680 = vmatpush.msra.mxu0 0.0
    %4681 = vmatpush.msra.mxu0 0.0
    %4682 = vmatpush.msra.mxu0 %v4622
    %4683 = vmatmul.f32.gmra.mxu0 %v4613
    %v4684 = vpop.f32.mrf.mxu0
    %v4685 = vadd.f32 0.0, %v4684
    %4686 = vdwg.mxu0
    %4687 = vmatpush.msra.mxu0 0.0
    %4688 = vmatpush.msra.mxu0 0.0
    %4689 = vmatpush.msra.mxu0 0.0
    %4690 = vmatpush.msra.mxu0 0.0
    %4691 = vmatpush.msra.mxu0 0.0
    %4692 = vmatpush.msra.mxu0 0.0
    %4693 = vmatpush.msra.mxu0 0.0
    %4694 = vmatpush.msra.mxu0 0.0
    %4695 = vmatpush.msra.mxu0 0.0
    %4696 = vmatpush.msra.mxu0 0.0
    %4697 = vmatpush.msra.mxu0 0.0
    %4698 = vmatpush.msra.mxu0 0.0
    %4699 = vmatpush.msra.mxu0 0.0
    %4700 = vmatpush.msra.mxu0 0.0
    %4701 = vmatpush.msra.mxu0 0.0
    %4702 = vmatpush.msra.mxu0 %v4625
    %4703 = vmatmul.f32.gmra.mxu0 %v4613
    %v4704 = vpop.f32.mrf.mxu0
    %v4705 = vadd.f32 0.0, %v4704
    %4706 = vdwg.mxu0
    %v4707 = vadd.f32 %v775, %v4645
    %v4708 = vadd.f32 %v798, %v4665
    %v4709 = vadd.f32 %v821, %v4685
    %v4710 = vadd.f32 %v844, %v4705
    %v4711 = vmul.f32 %v772, %v772
    %v4712 = vmul.f32 %v795, %v795
    %v4713 = vmul.f32 %v818, %v818
    %v4714 = vmul.f32 %v841, %v841
    %v4715 = vmul.f32 %v4707, %v4707
    %v4716 = vmul.f32 %v4708, %v4708
    %v4717 = vmul.f32 %v4709, %v4709
    %v4718 = vmul.f32 %v4710, %v4710
    %v4719 = vadd.f32 %v772, %v795
    %v4720 = vadd.f32 %v4719, %v818
    %v4721 = vadd.f32 %v4720, %v841
    %4722 = vadd.xlane.f32.xlu0 %v4721
    %v4723 = vpop.xlane.xlu0 %4722
    %v4724 = vadd.f32 %v4707, %v4708
    %v4725 = vadd.f32 %v4724, %v4709
    %v4726 = vadd.f32 %v4725, %v4710
    %4727 = vadd.xlane.f32.xlu0 %v4726
    %v4728 = vpop.xlane.xlu0 %4727
    %v4729 = vadd.f32 %v4711, %v4712
    %v4730 = vadd.f32 %v4729, %v4713
    %v4731 = vadd.f32 %v4730, %v4714
    %4732 = vadd.xlane.f32.xlu0 %v4731
    %v4733 = vpop.xlane.xlu0 %4732
    %v4734 = vadd.f32 %v4715, %v4716
    %v4735 = vadd.f32 %v4734, %v4717
    %v4736 = vadd.f32 %v4735, %v4718
    %4737 = vadd.xlane.f32.xlu0 %v4736
    %v4738 = vpop.xlane.xlu0 %4737
    %v4739 = vmul.f32 %v4723, 0.001953125
    %v4740 = vmul.f32 %v4728, 0.001953125
    %v4741 = vmul.f32 %v4733, 0.001953125
    %v4742 = vmul.f32 %v4738, 0.001953125
    %v4743 = vmul.f32 %v4739, %v4739
    %v4744 = vmul.f32 %v4740, %v4740
    %v4745 = vsub.f32 %v4741, %v4743
    %v4746 = vsub.f32 %v4742, %v4744
    %v4747 = vsub.f32 %v772, %v4739
    %v4748 = vsub.f32 %v795, %v4739
    %v4749 = vsub.f32 %v818, %v4739
    %v4750 = vsub.f32 %v841, %v4739
    %v4751 = vsub.f32 %v4707, %v4740
    %v4752 = vsub.f32 %v4708, %v4740
    %v4753 = vsub.f32 %v4709, %v4740
    %v4754 = vsub.f32 %v4710, %v4740
    %v4755 = vadd.f32 %v4745, 1e-05
    %v4756 = vadd.f32 %v4746, 1e-05
    %v4757 = vrsqrt.pop %v4755
    %v4758 = vmul.f32 %v4757, %v4755
    %v4759 = vmul.f32 %v4758, %v4757
    %v4760 = vmul.f32 0.5, %v4759
    %v4761 = vsub.f32 1.5, %v4760
    %v4762 = vmul.f32 %v4757, %v4761
    %vm4763 = vweird.f32 %v4755
    %vm4764 = vweird.f32 %v4757
    %vm4765 = vmor %vm4763, %vm4764
    %v4766 = vsel %vm4765, %v4757, %v4762
    %v4767 = vrsqrt.pop %v4756
    %v4768 = vmul.f32 %v4767, %v4756
    %v4769 = vmul.f32 %v4768, %v4767
    %v4770 = vmul.f32 0.5, %v4769
    %v4771 = vsub.f32 1.5, %v4770
    %v4772 = vmul.f32 %v4767, %v4771
    %vm4773 = vweird.f32 %v4756
    %vm4774 = vweird.f32 %v4767
    %vm4775 = vmor %vm4773, %vm4774
    %v4776 = vsel %vm4775, %v4767, %v4772
    %v4777 = vmul.f32 %v4747, %v4766
    %v4778 = vmul.f32 %v4748, %v4766
    %v4779 = vmul.f32 %v4749, %v4766
    %v4780 = vmul.f32 %v4750, %v4766
    %v4781 = vmul.f32 %v4751, %v4776
    %v4782 = vmul.f32 %v4752, %v4776
    %v4783 = vmul.f32 %v4753, %v4776
    %v4784 = vmul.f32 %v4754, %v4776
    %v4785 = vmax.f32 %v4777, 0.0
    %v4786 = vmax.f32 %v4778, 0.0
    %v4787 = vmax.f32 %v4779, 0.0
    %v4788 = vmax.f32 %v4780, 0.0
    %v4789 = vmax.f32 %v4781, 0.0
    %v4790 = vmax.f32 %v4782, 0.0
    %v4791 = vmax.f32 %v4783, 0.0
    %v4792 = vmax.f32 %v4784, 0.0
    %4793 = vrot.lane.b32.xlu0 %v4785, 17
    %v4794 = vpop.permute.xlu0 %4793
    %4795 = vrot.lane.b32.xlu0 %v4789, 17
    %v4796 = vpop.permute.xlu0 %4795
    %4797 = vrot.lane.b32.xlu0 %v4786, 17
    %v4798 = vpop.permute.xlu0 %4797
    %4799 = vrot.lane.b32.xlu0 %v4790, 17
    %v4800 = vpop.permute.xlu0 %4799
    %4801 = vrot.lane.b32.xlu0 %v4787, 17
    %v4802 = vpop.permute.xlu0 %4801
    %4803 = vrot.lane.b32.xlu0 %v4791, 17
    %v4804 = vpop.permute.xlu0 %4803
    %4805 = vrot.lane.b32.xlu0 %v4788, 17
    %v4806 = vpop.permute.xlu0 %4805
    %4807 = vrot.lane.b32.xlu0 %v4792, 17
    %v4808 = vpop.permute.xlu0 %4807
    %v4809 = vlaneseq
    %v4810 = vand.u32 %v4809, 127
    %vm4811 = vcmp.lt.s32.totalorder %v4810, 17
    %v4812 = vsel %vm4811, %v4802, %v4806
    %v4813 = vsel %vm4811, %v4804, %v4808
    %v4814 = vsel %vm4811, %v4798, %v4802
    %v4815 = vsel %vm4811, %v4800, %v4804
    %v4816 = vsel %vm4811, %v4794, %v4798
    %v4817 = vsel %vm4811, %v4796, %v4800
    %v4818 = vsel %vm4811, %v4806, %v4794
    %v4819 = vsel %vm4811, %v4808, %v4796
    %v4820 = vperm.slane %v629, 0
    %v4821 = vperm.slane %v630, 0
    %v4822 = vperm.slane %v631, 0
    %v4823 = vperm.slane %v632, 0
    %v4824 = vmul.f32 %v4818, %v4820
    %v4825 = vmul.f32 %v4816, %v4821
    %v4826 = vmul.f32 %v4814, %v4822
    %v4827 = vmul.f32 %v4812, %v4823
    %v4828 = vmul.f32 %v4819, %v4820
    %v4829 = vmul.f32 %v4817, %v4821
    %v4830 = vmul.f32 %v4815, %v4822
    %v4831 = vmul.f32 %v4813, %v4823
    %4832 = vrot.lane.b32.xlu0 %v4785, 16
    %v4833 = vpop.permute.xlu0 %4832
    %4834 = vrot.lane.b32.xlu0 %v4789, 16
    %v4835 = vpop.permute.xlu0 %4834
    %4836 = vrot.lane.b32.xlu0 %v4786, 16
    %v4837 = vpop.permute.xlu0 %4836
    %4838 = vrot.lane.b32.xlu0 %v4790, 16
    %v4839 = vpop.permute.xlu0 %4838
    %4840 = vrot.lane.b32.xlu0 %v4787, 16
    %v4841 = vpop.permute.xlu0 %4840
    %4842 = vrot.lane.b32.xlu0 %v4791, 16
    %v4843 = vpop.permute.xlu0 %4842
    %4844 = vrot.lane.b32.xlu0 %v4788, 16
    %v4845 = vpop.permute.xlu0 %4844
    %4846 = vrot.lane.b32.xlu0 %v4792, 16
    %v4847 = vpop.permute.xlu0 %4846
    %vm4848 = vcmp.lt.s32.totalorder %v4810, 16
    %v4849 = vsel %vm4848, %v4841, %v4845
    %v4850 = vsel %vm4848, %v4843, %v4847
    %v4851 = vsel %vm4848, %v4837, %v4841
    %v4852 = vsel %vm4848, %v4839, %v4843
    %v4853 = vsel %vm4848, %v4833, %v4837
    %v4854 = vsel %vm4848, %v4835, %v4839
    %v4855 = vsel %vm4848, %v4845, %v4833
    %v4856 = vsel %vm4848, %v4847, %v4835
    %v4857 = vperm.slane %v629, 1
    %v4858 = vperm.slane %v630, 1
    %v4859 = vperm.slane %v631, 1
    %v4860 = vperm.slane %v632, 1
    %v4861 = vmul.f32 %v4855, %v4857
    %v4862 = vmul.f32 %v4853, %v4858
    %v4863 = vmul.f32 %v4851, %v4859
    %v4864 = vmul.f32 %v4849, %v4860
    %v4865 = vmul.f32 %v4856, %v4857
    %v4866 = vmul.f32 %v4854, %v4858
    %v4867 = vmul.f32 %v4852, %v4859
    %v4868 = vmul.f32 %v4850, %v4860
    %4869 = vrot.lane.b32.xlu0 %v4785, 15
    %v4870 = vpop.permute.xlu0 %4869
    %4871 = vrot.lane.b32.xlu0 %v4789, 15
    %v4872 = vpop.permute.xlu0 %4871
    %4873 = vrot.lane.b32.xlu0 %v4786, 15
    %v4874 = vpop.permute.xlu0 %4873
    %4875 = vrot.lane.b32.xlu0 %v4790, 15
    %v4876 = vpop.permute.xlu0 %4875
    %4877 = vrot.lane.b32.xlu0 %v4787, 15
    %v4878 = vpop.permute.xlu0 %4877
    %4879 = vrot.lane.b32.xlu0 %v4791, 15
    %v4880 = vpop.permute.xlu0 %4879
    %4881 = vrot.lane.b32.xlu0 %v4788, 15
    %v4882 = vpop.permute.xlu0 %4881
    %4883 = vrot.lane.b32.xlu0 %v4792, 15
    %v4884 = vpop.permute.xlu0 %4883
    %vm4885 = vcmp.lt.s32.totalorder %v4810, 15
    %v4886 = vsel %vm4885, %v4878, %v4882
    %v4887 = vsel %vm4885, %v4880, %v4884
    %v4888 = vsel %vm4885, %v4874, %v4878
    %v4889 = vsel %vm4885, %v4876, %v4880
    %v4890 = vsel %vm4885, %v4870, %v4874
    %v4891 = vsel %vm4885, %v4872, %v4876
    %v4892 = vsel %vm4885, %v4882, %v4870
    %v4893 = vsel %vm4885, %v4884, %v4872
    %v4894 = vperm.slane %v629, 2
    %v4895 = vperm.slane %v630, 2
    %v4896 = vperm.slane %v631, 2
    %v4897 = vperm.slane %v632, 2
    %v4898 = vmul.f32 %v4892, %v4894
    %v4899 = vmul.f32 %v4890, %v4895
    %v4900 = vmul.f32 %v4888, %v4896
    %v4901 = vmul.f32 %v4886, %v4897
    %v4902 = vmul.f32 %v4893, %v4894
    %v4903 = vmul.f32 %v4891, %v4895
    %v4904 = vmul.f32 %v4889, %v4896
    %v4905 = vmul.f32 %v4887, %v4897
    %4906 = vrot.lane.b32.xlu0 %v4785, 1
    %v4907 = vpop.permute.xlu0 %4906
    %4908 = vrot.lane.b32.xlu0 %v4789, 1
    %v4909 = vpop.permute.xlu0 %4908
    %4910 = vrot.lane.b32.xlu0 %v4786, 1
    %v4911 = vpop.permute.xlu0 %4910
    %4912 = vrot.lane.b32.xlu0 %v4790, 1
    %v4913 = vpop.permute.xlu0 %4912
    %4914 = vrot.lane.b32.xlu0 %v4787, 1
    %v4915 = vpop.permute.xlu0 %4914
    %4916 = vrot.lane.b32.xlu0 %v4791, 1
    %v4917 = vpop.permute.xlu0 %4916
    %4918 = vrot.lane.b32.xlu0 %v4788, 1
    %v4919 = vpop.permute.xlu0 %4918
    %4920 = vrot.lane.b32.xlu0 %v4792, 1
    %v4921 = vpop.permute.xlu0 %4920
    %vm4922 = vcmp.lt.s32.totalorder %v4810, 1
    %v4923 = vsel %vm4922, %v4915, %v4919
    %v4924 = vsel %vm4922, %v4917, %v4921
    %v4925 = vsel %vm4922, %v4911, %v4915
    %v4926 = vsel %vm4922, %v4913, %v4917
    %v4927 = vsel %vm4922, %v4907, %v4911
    %v4928 = vsel %vm4922, %v4909, %v4913
    %v4929 = vsel %vm4922, %v4919, %v4907
    %v4930 = vsel %vm4922, %v4921, %v4909
    %v4931 = vperm.slane %v629, 3
    %v4932 = vperm.slane %v630, 3
    %v4933 = vperm.slane %v631, 3
    %v4934 = vperm.slane %v632, 3
    %v4935 = vmul.f32 %v4929, %v4931
    %v4936 = vmul.f32 %v4927, %v4932
    %v4937 = vmul.f32 %v4925, %v4933
    %v4938 = vmul.f32 %v4923, %v4934
    %v4939 = vmul.f32 %v4930, %v4931
    %v4940 = vmul.f32 %v4928, %v4932
    %v4941 = vmul.f32 %v4926, %v4933
    %v4942 = vmul.f32 %v4924, %v4934
    %4943 = vrot.lane.b32.xlu0 %v4785, 127
    %v4944 = vpop.permute.xlu0 %4943
    %4945 = vrot.lane.b32.xlu0 %v4789, 127
    %v4946 = vpop.permute.xlu0 %4945
    %4947 = vrot.lane.b32.xlu0 %v4786, 127
    %v4948 = vpop.permute.xlu0 %4947
    %4949 = vrot.lane.b32.xlu0 %v4790, 127
    %v4950 = vpop.permute.xlu0 %4949
    %4951 = vrot.lane.b32.xlu0 %v4787, 127
    %v4952 = vpop.permute.xlu0 %4951
    %4953 = vrot.lane.b32.xlu0 %v4791, 127
    %v4954 = vpop.permute.xlu0 %4953
    %4955 = vrot.lane.b32.xlu0 %v4788, 127
    %v4956 = vpop.permute.xlu0 %4955
    %4957 = vrot.lane.b32.xlu0 %v4792, 127
    %v4958 = vpop.permute.xlu0 %4957
    %vm4959 = vcmp.lt.s32.totalorder %v4810, 127
    %v4960 = vsel %vm4959, %v4952, %v4956
    %v4961 = vsel %vm4959, %v4954, %v4958
    %v4962 = vsel %vm4959, %v4948, %v4952
    %v4963 = vsel %vm4959, %v4950, %v4954
    %v4964 = vsel %vm4959, %v4944, %v4948
    %v4965 = vsel %vm4959, %v4946, %v4950
    %v4966 = vsel %vm4959, %v4956, %v4944
    %v4967 = vsel %vm4959, %v4958, %v4946
    %v4968 = vperm.slane %v629, 5
    %v4969 = vperm.slane %v630, 5
    %v4970 = vperm.slane %v631, 5
    %v4971 = vperm.slane %v632, 5
    %v4972 = vmul.f32 %v4964, %v4968
    %v4973 = vmul.f32 %v4962, %v4969
    %v4974 = vmul.f32 %v4960, %v4970
    %v4975 = vmul.f32 %v4966, %v4971
    %v4976 = vmul.f32 %v4965, %v4968
    %v4977 = vmul.f32 %v4963, %v4969
    %v4978 = vmul.f32 %v4961, %v4970
    %v4979 = vmul.f32 %v4967, %v4971
    %4980 = vrot.lane.b32.xlu0 %v4785, 113
    %v4981 = vpop.permute.xlu0 %4980
    %4982 = vrot.lane.b32.xlu0 %v4789, 113
    %v4983 = vpop.permute.xlu0 %4982
    %4984 = vrot.lane.b32.xlu0 %v4786, 113
    %v4985 = vpop.permute.xlu0 %4984
    %4986 = vrot.lane.b32.xlu0 %v4790, 113
    %v4987 = vpop.permute.xlu0 %4986
    %4988 = vrot.lane.b32.xlu0 %v4787, 113
    %v4989 = vpop.permute.xlu0 %4988
    %4990 = vrot.lane.b32.xlu0 %v4791, 113
    %v4991 = vpop.permute.xlu0 %4990
    %4992 = vrot.lane.b32.xlu0 %v4788, 113
    %v4993 = vpop.permute.xlu0 %4992
    %4994 = vrot.lane.b32.xlu0 %v4792, 113
    %v4995 = vpop.permute.xlu0 %4994
    %vm4996 = vcmp.lt.s32.totalorder %v4810, 113
    %v4997 = vsel %vm4996, %v4989, %v4993
    %v4998 = vsel %vm4996, %v4991, %v4995
    %v4999 = vsel %vm4996, %v4985, %v4989
    %v5000 = vsel %vm4996, %v4987, %v4991
    %v5001 = vsel %vm4996, %v4981, %v4985
    %v5002 = vsel %vm4996, %v4983, %v4987
    %v5003 = vsel %vm4996, %v4993, %v4981
    %v5004 = vsel %vm4996, %v4995, %v4983
    %v5005 = vperm.slane %v629, 6
    %v5006 = vperm.slane %v630, 6
    %v5007 = vperm.slane %v631, 6
    %v5008 = vperm.slane %v632, 6
    %v5009 = vmul.f32 %v5001, %v5005
    %v5010 = vmul.f32 %v4999, %v5006
    %v5011 = vmul.f32 %v4997, %v5007
    %v5012 = vmul.f32 %v5003, %v5008
    %v5013 = vmul.f32 %v5002, %v5005
    %v5014 = vmul.f32 %v5000, %v5006
    %v5015 = vmul.f32 %v4998, %v5007
    %v5016 = vmul.f32 %v5004, %v5008
    %5017 = vrot.lane.b32.xlu0 %v4785, 112
    %v5018 = vpop.permute.xlu0 %5017
    %5019 = vrot.lane.b32.xlu0 %v4789, 112
    %v5020 = vpop.permute.xlu0 %5019
    %5021 = vrot.lane.b32.xlu0 %v4786, 112
    %v5022 = vpop.permute.xlu0 %5021
    %5023 = vrot.lane.b32.xlu0 %v4790, 112
    %v5024 = vpop.permute.xlu0 %5023
    %5025 = vrot.lane.b32.xlu0 %v4787, 112
    %v5026 = vpop.permute.xlu0 %5025
    %5027 = vrot.lane.b32.xlu0 %v4791, 112
    %v5028 = vpop.permute.xlu0 %5027
    %5029 = vrot.lane.b32.xlu0 %v4788, 112
    %v5030 = vpop.permute.xlu0 %5029
    %5031 = vrot.lane.b32.xlu0 %v4792, 112
    %v5032 = vpop.permute.xlu0 %5031
    %vm5033 = vcmp.lt.s32.totalorder %v4810, 112
    %v5034 = vsel %vm5033, %v5026, %v5030
    %v5035 = vsel %vm5033, %v5028, %v5032
    %v5036 = vsel %vm5033, %v5022, %v5026
    %v5037 = vsel %vm5033, %v5024, %v5028
    %v5038 = vsel %vm5033, %v5018, %v5022
    %v5039 = vsel %vm5033, %v5020, %v5024
    %v5040 = vsel %vm5033, %v5030, %v5018
    %v5041 = vsel %vm5033, %v5032, %v5020
    %v5042 = vperm.slane %v629, 7
    %v5043 = vperm.slane %v630, 7
    %v5044 = vperm.slane %v631, 7
    %v5045 = vperm.slane %v632, 7
    %v5046 = vmul.f32 %v5038, %v5042
    %v5047 = vmul.f32 %v5036, %v5043
    %v5048 = vmul.f32 %v5034, %v5044
    %v5049 = vmul.f32 %v5040, %v5045
    %v5050 = vmul.f32 %v5039, %v5042
    %v5051 = vmul.f32 %v5037, %v5043
    %v5052 = vmul.f32 %v5035, %v5044
    %v5053 = vmul.f32 %v5041, %v5045
    %5054 = vrot.lane.b32.xlu0 %v4785, 111
    %v5055 = vpop.permute.xlu0 %5054
    %5056 = vrot.lane.b32.xlu0 %v4789, 111
    %v5057 = vpop.permute.xlu0 %5056
    %5058 = vrot.lane.b32.xlu0 %v4786, 111
    %v5059 = vpop.permute.xlu0 %5058
    %5060 = vrot.lane.b32.xlu0 %v4790, 111
    %v5061 = vpop.permute.xlu0 %5060
    %5062 = vrot.lane.b32.xlu0 %v4787, 111
    %v5063 = vpop.permute.xlu0 %5062
    %5064 = vrot.lane.b32.xlu0 %v4791, 111
    %v5065 = vpop.permute.xlu0 %5064
    %5066 = vrot.lane.b32.xlu0 %v4788, 111
    %v5067 = vpop.permute.xlu0 %5066
    %5068 = vrot.lane.b32.xlu0 %v4792, 111
    %v5069 = vpop.permute.xlu0 %5068
    %vm5070 = vcmp.lt.s32.totalorder %v4810, 111
    %v5071 = vsel %vm5070, %v5063, %v5067
    %v5072 = vsel %vm5070, %v5065, %v5069
    %v5073 = vsel %vm5070, %v5059, %v5063
    %v5074 = vsel %vm5070, %v5061, %v5065
    %v5075 = vsel %vm5070, %v5055, %v5059
    %v5076 = vsel %vm5070, %v5057, %v5061
    %v5077 = vsel %vm5070, %v5067, %v5055
    %v5078 = vsel %vm5070, %v5069, %v5057
    %v5079 = vperm.slane %v633, 0
    %v5080 = vperm.slane %v634, 0
    %v5081 = vperm.slane %v635, 0
    %v5082 = vperm.slane %v636, 0
    %v5083 = vmul.f32 %v5075, %v5079
    %v5084 = vmul.f32 %v5073, %v5080
    %v5085 = vmul.f32 %v5071, %v5081
    %v5086 = vmul.f32 %v5077, %v5082
    %v5087 = vmul.f32 %v5076, %v5079
    %v5088 = vmul.f32 %v5074, %v5080
    %v5089 = vmul.f32 %v5072, %v5081
    %v5090 = vmul.f32 %v5078, %v5082
    %v5091 = vld [vmem:[%s10] sm:$0xff]
    %v5092 = vld [vmem:[%s10 + $0x8] sm:$0xff]
    %v5093 = vld [vmem:[%s10 + $0x10] sm:$0xff]
    %v5094 = vld [vmem:[%s10 + $0x18] sm:$0xff]
    %vm5095 = vcmask 130048
    %v5097 = vsel %vm5095, %v5092, 0
    %v5100 = vsel %vm5095, %v5094, 0
    %5102 = vmatpush.msra.mxu0 %v5050
    %5103 = vmatpush.msra.mxu0 %v5046
    %5104 = vmatpush.msra.mxu0 %v5013
    %5105 = vmatpush.msra.mxu0 %v5009
    %5106 = vmatpush.msra.mxu0 %v4976
    %5107 = vmatpush.msra.mxu0 %v4972
    %5108 = vmatpush.msra.mxu0 %v4789
    %5109 = vmatpush.msra.mxu0 %v4785
    %5110 = vmatpush.msra.mxu0 %v4939
    %5111 = vmatpush.msra.mxu0 %v4935
    %5112 = vmatpush.msra.mxu0 %v4902
    %5113 = vmatpush.msra.mxu0 %v4898
    %5114 = vmatpush.msra.mxu0 %v4865
    %5115 = vmatpush.msra.mxu0 %v4861
    %5116 = vmatpush.msra.mxu0 %v4828
    %5117 = vmatpush.msra.mxu0 %v4824
    %5118 = vmatmul.f32.gmra.mxu0 %v5091
    %v5119 = vpop.f32.mrf.mxu0
    %v5120 = vadd.f32 0.0, %v5119
    %5121 = vmatmul.f32.gmra.mxu0 %v5093
    %v5122 = vpop.f32.mrf.mxu0
    %v5123 = vadd.f32 0.0, %v5122
    %5124 = vdwg.mxu0
    %5125 = vmatpush.msra.mxu0 0.0
    %5126 = vmatpush.msra.mxu0 0.0
    %5127 = vmatpush.msra.mxu0 0.0
    %5128 = vmatpush.msra.mxu0 0.0
    %5129 = vmatpush.msra.mxu0 0.0
    %5130 = vmatpush.msra.mxu0 0.0
    %5131 = vmatpush.msra.mxu0 0.0
    %5132 = vmatpush.msra.mxu0 0.0
    %5133 = vmatpush.msra.mxu0 0.0
    %5134 = vmatpush.msra.mxu0 0.0
    %5135 = vmatpush.msra.mxu0 0.0
    %5136 = vmatpush.msra.mxu0 0.0
    %5137 = vmatpush.msra.mxu0 0.0
    %5138 = vmatpush.msra.mxu0 0.0
    %5139 = vmatpush.msra.mxu0 %v5087
    %5140 = vmatpush.msra.mxu0 %v5083
    %5141 = vmatmul.f32.gmra.mxu0 %v5097
    %v5142 = vpop.f32.mrf.mxu0
    %v5143 = vadd.f32 %v5120, %v5142
    %5144 = vmatmul.f32.gmra.mxu0 %v5100
    %v5145 = vpop.f32.mrf.mxu0
    %v5146 = vadd.f32 %v5123, %v5145
    %5147 = vdwg.mxu0
    %5148 = vmatpush.msra.mxu0 %v5051
    %5149 = vmatpush.msra.mxu0 %v5047
    %5150 = vmatpush.msra.mxu0 %v5014
    %5151 = vmatpush.msra.mxu0 %v5010
    %5152 = vmatpush.msra.mxu0 %v4977
    %5153 = vmatpush.msra.mxu0 %v4973
    %5154 = vmatpush.msra.mxu0 %v4790
    %5155 = vmatpush.msra.mxu0 %v4786
    %5156 = vmatpush.msra.mxu0 %v4940
    %5157 = vmatpush.msra.mxu0 %v4936
    %5158 = vmatpush.msra.mxu0 %v4903
    %5159 = vmatpush.msra.mxu0 %v4899
    %5160 = vmatpush.msra.mxu0 %v4866
    %5161 = vmatpush.msra.mxu0 %v4862
    %5162 = vmatpush.msra.mxu0 %v4829
    %5163 = vmatpush.msra.mxu0 %v4825
    %5164 = vmatmul.f32.gmra.mxu0 %v5091
    %v5165 = vpop.f32.mrf.mxu0
    %v5166 = vadd.f32 0.0, %v5165
    %5167 = vmatmul.f32.gmra.mxu0 %v5093
    %v5168 = vpop.f32.mrf.mxu0
    %v5169 = vadd.f32 0.0, %v5168
    %5170 = vdwg.mxu0
    %5171 = vmatpush.msra.mxu0 0.0
    %5172 = vmatpush.msra.mxu0 0.0
    %5173 = vmatpush.msra.mxu0 0.0
    %5174 = vmatpush.msra.mxu0 0.0
    %5175 = vmatpush.msra.mxu0 0.0
    %5176 = vmatpush.msra.mxu0 0.0
    %5177 = vmatpush.msra.mxu0 0.0
    %5178 = vmatpush.msra.mxu0 0.0
    %5179 = vmatpush.msra.mxu0 0.0
    %5180 = vmatpush.msra.mxu0 0.0
    %5181 = vmatpush.msra.mxu0 0.0
    %5182 = vmatpush.msra.mxu0 0.0
    %5183 = vmatpush.msra.mxu0 0.0
    %5184 = vmatpush.msra.mxu0 0.0
    %5185 = vmatpush.msra.mxu0 %v5088
    %5186 = vmatpush.msra.mxu0 %v5084
    %5187 = vmatmul.f32.gmra.mxu0 %v5097
    %v5188 = vpop.f32.mrf.mxu0
    %v5189 = vadd.f32 %v5166, %v5188
    %5190 = vmatmul.f32.gmra.mxu0 %v5100
    %v5191 = vpop.f32.mrf.mxu0
    %v5192 = vadd.f32 %v5169, %v5191
    %5193 = vdwg.mxu0
    %5194 = vmatpush.msra.mxu0 %v5052
    %5195 = vmatpush.msra.mxu0 %v5048
    %5196 = vmatpush.msra.mxu0 %v5015
    %5197 = vmatpush.msra.mxu0 %v5011
    %5198 = vmatpush.msra.mxu0 %v4978
    %5199 = vmatpush.msra.mxu0 %v4974
    %5200 = vmatpush.msra.mxu0 %v4791
    %5201 = vmatpush.msra.mxu0 %v4787
    %5202 = vmatpush.msra.mxu0 %v4941
    %5203 = vmatpush.msra.mxu0 %v4937
    %5204 = vmatpush.msra.mxu0 %v4904
    %5205 = vmatpush.msra.mxu0 %v4900
    %5206 = vmatpush.msra.mxu0 %v4867
    %5207 = vmatpush.msra.mxu0 %v4863
    %5208 = vmatpush.msra.mxu0 %v4830
    %5209 = vmatpush.msra.mxu0 %v4826
    %5210 = vmatmul.f32.gmra.mxu0 %v5091
    %v5211 = vpop.f32.mrf.mxu0
    %v5212 = vadd.f32 0.0, %v5211
    %5213 = vmatmul.f32.gmra.mxu0 %v5093
    %v5214 = vpop.f32.mrf.mxu0
    %v5215 = vadd.f32 0.0, %v5214
    %5216 = vdwg.mxu0
    %5217 = vmatpush.msra.mxu0 0.0
    %5218 = vmatpush.msra.mxu0 0.0
    %5219 = vmatpush.msra.mxu0 0.0
    %5220 = vmatpush.msra.mxu0 0.0
    %5221 = vmatpush.msra.mxu0 0.0
    %5222 = vmatpush.msra.mxu0 0.0
    %5223 = vmatpush.msra.mxu0 0.0
    %5224 = vmatpush.msra.mxu0 0.0
    %5225 = vmatpush.msra.mxu0 0.0
    %5226 = vmatpush.msra.mxu0 0.0
    %5227 = vmatpush.msra.mxu0 0.0
    %5228 = vmatpush.msra.mxu0 0.0
    %5229 = vmatpush.msra.mxu0 0.0
    %5230 = vmatpush.msra.mxu0 0.0
    %5231 = vmatpush.msra.mxu0 %v5089
    %5232 = vmatpush.msra.mxu0 %v5085
    %5233 = vmatmul.f32.gmra.mxu0 %v5097
    %v5234 = vpop.f32.mrf.mxu0
    %v5235 = vadd.f32 %v5212, %v5234
    %5236 = vmatmul.f32.gmra.mxu0 %v5100
    %v5237 = vpop.f32.mrf.mxu0
    %v5238 = vadd.f32 %v5215, %v5237
    %5239 = vdwg.mxu0
    %5240 = vmatpush.msra.mxu0 %v5053
    %5241 = vmatpush.msra.mxu0 %v5049
    %5242 = vmatpush.msra.mxu0 %v5016
    %5243 = vmatpush.msra.mxu0 %v5012
    %5244 = vmatpush.msra.mxu0 %v4979
    %5245 = vmatpush.msra.mxu0 %v4975
    %5246 = vmatpush.msra.mxu0 %v4792
    %5247 = vmatpush.msra.mxu0 %v4788
    %5248 = vmatpush.msra.mxu0 %v4942
    %5249 = vmatpush.msra.mxu0 %v4938
    %5250 = vmatpush.msra.mxu0 %v4905
    %5251 = vmatpush.msra.mxu0 %v4901
    %5252 = vmatpush.msra.mxu0 %v4868
    %5253 = vmatpush.msra.mxu0 %v4864
    %5254 = vmatpush.msra.mxu0 %v4831
    %5255 = vmatpush.msra.mxu0 %v4827
    %5256 = vmatmul.f32.gmra.mxu0 %v5091
    %v5257 = vpop.f32.mrf.mxu0
    %v5258 = vadd.f32 0.0, %v5257
    %5259 = vmatmul.f32.gmra.mxu0 %v5093
    %v5260 = vpop.f32.mrf.mxu0
    %v5261 = vadd.f32 0.0, %v5260
    %5262 = vdwg.mxu0
    %5263 = vmatpush.msra.mxu0 0.0
    %5264 = vmatpush.msra.mxu0 0.0
    %5265 = vmatpush.msra.mxu0 0.0
    %5266 = vmatpush.msra.mxu0 0.0
    %5267 = vmatpush.msra.mxu0 0.0
    %5268 = vmatpush.msra.mxu0 0.0
    %5269 = vmatpush.msra.mxu0 0.0
    %5270 = vmatpush.msra.mxu0 0.0
    %5271 = vmatpush.msra.mxu0 0.0
    %5272 = vmatpush.msra.mxu0 0.0
    %5273 = vmatpush.msra.mxu0 0.0
    %5274 = vmatpush.msra.mxu0 0.0
    %5275 = vmatpush.msra.mxu0 0.0
    %5276 = vmatpush.msra.mxu0 0.0
    %5277 = vmatpush.msra.mxu0 %v5090
    %5278 = vmatpush.msra.mxu0 %v5086
    %5279 = vmatmul.f32.gmra.mxu0 %v5097
    %v5280 = vpop.f32.mrf.mxu0
    %v5281 = vadd.f32 %v5258, %v5280
    %5282 = vmatmul.f32.gmra.mxu0 %v5100
    %v5283 = vpop.f32.mrf.mxu0
    %v5284 = vadd.f32 %v5261, %v5283
    %5285 = vdwg.mxu0
    %s5286 = scalar_lea.vmem [#allocation7], 4
    %v5287 = vld [vmem:[%s5286] sm:$0xf]
    %v5289 = vsel %vm649, %v5287, 0
    %5291 = vmatpush.msra.mxu0 0.0
    %5292 = vmatpush.msra.mxu0 0.0
    %5293 = vmatpush.msra.mxu0 0.0
    %5294 = vmatpush.msra.mxu0 0.0
    %5295 = vmatpush.msra.mxu0 0.0
    %5296 = vmatpush.msra.mxu0 0.0
    %5297 = vmatpush.msra.mxu0 0.0
    %5298 = vmatpush.msra.mxu0 0.0
    %5299 = vmatpush.msra.mxu0 0.0
    %5300 = vmatpush.msra.mxu0 0.0
    %5301 = vmatpush.msra.mxu0 0.0
    %5302 = vmatpush.msra.mxu0 0.0
    %5303 = vmatpush.msra.mxu0 0.0
    %5304 = vmatpush.msra.mxu0 0.0
    %5305 = vmatpush.msra.mxu0 0.0
    %5306 = vmatpush.msra.mxu0 %v4789
    %5307 = vmatmul.f32.gmra.mxu0 %v5289
    %v5308 = vpop.f32.mrf.mxu0
    %v5309 = vadd.f32 0.0, %v5308
    %5310 = vdwg.mxu0
    %5311 = vmatpush.msra.mxu0 0.0
    %5312 = vmatpush.msra.mxu0 0.0
    %5313 = vmatpush.msra.mxu0 0.0
    %5314 = vmatpush.msra.mxu0 0.0
    %5315 = vmatpush.msra.mxu0 0.0
    %5316 = vmatpush.msra.mxu0 0.0
    %5317 = vmatpush.msra.mxu0 0.0
    %5318 = vmatpush.msra.mxu0 0.0
    %5319 = vmatpush.msra.mxu0 0.0
    %5320 = vmatpush.msra.mxu0 0.0
    %5321 = vmatpush.msra.mxu0 0.0
    %5322 = vmatpush.msra.mxu0 0.0
    %5323 = vmatpush.msra.mxu0 0.0
    %5324 = vmatpush.msra.mxu0 0.0
    %5325 = vmatpush.msra.mxu0 0.0
    %5326 = vmatpush.msra.mxu0 %v4790
    %5327 = vmatmul.f32.gmra.mxu0 %v5289
    %v5328 = vpop.f32.mrf.mxu0
    %v5329 = vadd.f32 0.0, %v5328
    %5330 = vdwg.mxu0
    %5331 = vmatpush.msra.mxu0 0.0
    %5332 = vmatpush.msra.mxu0 0.0
    %5333 = vmatpush.msra.mxu0 0.0
    %5334 = vmatpush.msra.mxu0 0.0
    %5335 = vmatpush.msra.mxu0 0.0
    %5336 = vmatpush.msra.mxu0 0.0
    %5337 = vmatpush.msra.mxu0 0.0
    %5338 = vmatpush.msra.mxu0 0.0
    %5339 = vmatpush.msra.mxu0 0.0
    %5340 = vmatpush.msra.mxu0 0.0
    %5341 = vmatpush.msra.mxu0 0.0
    %5342 = vmatpush.msra.mxu0 0.0
    %5343 = vmatpush.msra.mxu0 0.0
    %5344 = vmatpush.msra.mxu0 0.0
    %5345 = vmatpush.msra.mxu0 0.0
    %5346 = vmatpush.msra.mxu0 %v4791
    %5347 = vmatmul.f32.gmra.mxu0 %v5289
    %v5348 = vpop.f32.mrf.mxu0
    %v5349 = vadd.f32 0.0, %v5348
    %5350 = vdwg.mxu0
    %5351 = vmatpush.msra.mxu0 0.0
    %5352 = vmatpush.msra.mxu0 0.0
    %5353 = vmatpush.msra.mxu0 0.0
    %5354 = vmatpush.msra.mxu0 0.0
    %5355 = vmatpush.msra.mxu0 0.0
    %5356 = vmatpush.msra.mxu0 0.0
    %5357 = vmatpush.msra.mxu0 0.0
    %5358 = vmatpush.msra.mxu0 0.0
    %5359 = vmatpush.msra.mxu0 0.0
    %5360 = vmatpush.msra.mxu0 0.0
    %5361 = vmatpush.msra.mxu0 0.0
    %5362 = vmatpush.msra.mxu0 0.0
    %5363 = vmatpush.msra.mxu0 0.0
    %5364 = vmatpush.msra.mxu0 0.0
    %5365 = vmatpush.msra.mxu0 0.0
    %5366 = vmatpush.msra.mxu0 %v4792
    %5367 = vmatmul.f32.gmra.mxu0 %v5289
    %v5368 = vpop.f32.mrf.mxu0
    %v5369 = vadd.f32 0.0, %v5368
    %5370 = vdwg.mxu0
    %v5371 = vmul.f32 %v5309, %v5309
    %v5372 = vmul.f32 %v5329, %v5329
    %v5373 = vmul.f32 %v5349, %v5349
    %v5374 = vmul.f32 %v5369, %v5369
    %v5379 = vrot.slane %v5371, 4
    %v5380 = vrot.slane %v5372, 4
    %v5381 = vrot.slane %v5373, 4
    %v5382 = vrot.slane %v5374, 4
    %v5387 = vsel %vm946, %v5309, %v5379
    %v5388 = vsel %vm946, %v5329, %v5380
    %v5389 = vsel %vm946, %v5349, %v5381
    %v5390 = vsel %vm946, %v5369, %v5382
    %v5391 = vadd.f32 %v5387, %v5388
    %v5392 = vadd.f32 %v5391, %v5389
    %v5393 = vadd.f32 %v5392, %v5390
    %5394 = vadd.xlane.f32.xlu0 %v5393
    %v5395 = vpop.xlane.xlu0 %5394
    %v5396 = vmul.f32 %v5395, 0.001953125
    %v5397 = vmul.f32 %v5396, %v5396
    %v5399 = vrot.slane %v5397, 4
    %v5401 = vsub.f32 %v5396, %v5399
    %v5402 = vsub.f32 %v5309, %v5396
    %v5403 = vsub.f32 %v5329, %v5396
    %v5404 = vsub.f32 %v5349, %v5396
    %v5405 = vsub.f32 %v5369, %v5396
    %v5406 = vadd.f32 %v5401, 1e-05
    %v5407 = vrsqrt.pop %v5406
    %v5408 = vmul.f32 %v5407, %v5406
    %v5409 = vmul.f32 %v5408, %v5407
    %v5410 = vmul.f32 0.5, %v5409
    %v5411 = vsub.f32 1.5, %v5410
    %v5412 = vmul.f32 %v5407, %v5411
    %vm5413 = vweird.f32 %v5406
    %vm5414 = vweird.f32 %v5407
    %vm5415 = vmor %vm5413, %vm5414
    %v5416 = vsel %vm5415, %v5407, %v5412
    %5418 = vset.pattern.permute.xlu0 0
    %5419 = vperm.xlu0 %5418, %v5416
    %v5420 = vpop.permute.xlu0 %5419
    %v5421 = vrot.slane %v5420, 4
    %v5423 = vmul.f32 %v5402, %v5421
    %v5424 = vmul.f32 %v5403, %v5421
    %v5425 = vmul.f32 %v5404, %v5421
    %v5426 = vmul.f32 %v5405, %v5421
    %v5427 = vmax.f32 %v5423, 0.0
    %v5428 = vmax.f32 %v5424, 0.0
    %v5429 = vmax.f32 %v5425, 0.0
    %v5430 = vmax.f32 %v5426, 0.0
    %s5431 = scalar_lea.vmem %s13, 8
    %v5432 = vld [vmem:[%s5431] sm:$0xff]
    %v5433 = vpack.c.bf16 %v5427, %v5427
    %v5434 = vpack.c.bf16 %v5428, %v5428
    %v5435 = vpack.c.bf16 %v5429, %v5429
    %v5436 = vpack.c.bf16 %v5430, %v5430
    %5437 = vmatpush.bf16.msra.mxu0 %v1614
    %5438 = vmatpush.bf16.msra.mxu0 %v1608
    %5439 = vmatpush.bf16.msra.mxu0 %v1602
    %5440 = vmatpush.bf16.msra.mxu0 %v1596
    %5441 = vmatpush.bf16.msra.mxu0 %v1590
    %5442 = vmatpush.bf16.msra.mxu0 %v1584
    %5443 = vmatpush.bf16.msra.mxu0 %v1578
    %5444 = vmatpush.bf16.msra.mxu0 %v1572
    %5445 = vmatmul.bf16.gmra.mxu0 %v5433
    %v5446 = vpop.f32.mrf.mxu0
    %v5447 = vadd.f32 0.0, %v5446
    %v5448 = vpop.f32.mrf.mxu0
    %5449 = vdwg.mxu0
    %5450 = vmatpush.bf16.msra.mxu0 %v1662
    %5451 = vmatpush.bf16.msra.mxu0 %v1656
    %5452 = vmatpush.bf16.msra.mxu0 %v1650
    %5453 = vmatpush.bf16.msra.mxu0 %v1644
    %5454 = vmatpush.bf16.msra.mxu0 %v1638
    %5455 = vmatpush.bf16.msra.mxu0 %v1632
    %5456 = vmatpush.bf16.msra.mxu0 %v1626
    %5457 = vmatpush.bf16.msra.mxu0 %v1620
    %5458 = vmatmul.bf16.gmra.mxu0 %v5434
    %v5459 = vpop.f32.mrf.mxu0
    %v5460 = vadd.f32 %v5447, %v5459
    %v5461 = vpop.f32.mrf.mxu0
    %5462 = vdwg.mxu0
    %5463 = vmatpush.bf16.msra.mxu0 %v1710
    %5464 = vmatpush.bf16.msra.mxu0 %v1704
    %5465 = vmatpush.bf16.msra.mxu0 %v1698
    %5466 = vmatpush.bf16.msra.mxu0 %v1692
    %5467 = vmatpush.bf16.msra.mxu0 %v1686
    %5468 = vmatpush.bf16.msra.mxu0 %v1680
    %5469 = vmatpush.bf16.msra.mxu0 %v1674
    %5470 = vmatpush.bf16.msra.mxu0 %v1668
    %5471 = vmatmul.bf16.gmra.mxu0 %v5435
    %v5472 = vpop.f32.mrf.mxu0
    %v5473 = vadd.f32 %v5460, %v5472
    %v5474 = vpop.f32.mrf.mxu0
    %5475 = vdwg.mxu0
    %5476 = vmatpush.bf16.msra.mxu0 %v1758
    %5477 = vmatpush.bf16.msra.mxu0 %v1752
    %5478 = vmatpush.bf16.msra.mxu0 %v1746
    %5479 = vmatpush.bf16.msra.mxu0 %v1740
    %5480 = vmatpush.bf16.msra.mxu0 %v1734
    %5481 = vmatpush.bf16.msra.mxu0 %v1728
    %5482 = vmatpush.bf16.msra.mxu0 %v1722
    %5483 = vmatpush.bf16.msra.mxu0 %v1716
    %5484 = vmatmul.bf16.gmra.mxu0 %v5436
    %v5485 = vpop.f32.mrf.mxu0
    %v5486 = vadd.f32 %v5473, %v5485
    %v5487 = vpop.f32.mrf.mxu0
    %5488 = vdwg.mxu0
    %5489 = vmatpush.bf16.msra.mxu0 %v1615
    %5490 = vmatpush.bf16.msra.mxu0 %v1609
    %5491 = vmatpush.bf16.msra.mxu0 %v1603
    %5492 = vmatpush.bf16.msra.mxu0 %v1597
    %5493 = vmatpush.bf16.msra.mxu0 %v1591
    %5494 = vmatpush.bf16.msra.mxu0 %v1585
    %5495 = vmatpush.bf16.msra.mxu0 %v1579
    %5496 = vmatpush.bf16.msra.mxu0 %v1573
    %5497 = vmatmul.bf16.gmra.mxu0 %v5433
    %v5498 = vpop.f32.mrf.mxu0
    %v5499 = vadd.f32 0.0, %v5498
    %v5500 = vpop.f32.mrf.mxu0
    %5501 = vdwg.mxu0
    %5502 = vmatpush.bf16.msra.mxu0 %v1663
    %5503 = vmatpush.bf16.msra.mxu0 %v1657
    %5504 = vmatpush.bf16.msra.mxu0 %v1651
    %5505 = vmatpush.bf16.msra.mxu0 %v1645
    %5506 = vmatpush.bf16.msra.mxu0 %v1639
    %5507 = vmatpush.bf16.msra.mxu0 %v1633
    %5508 = vmatpush.bf16.msra.mxu0 %v1627
    %5509 = vmatpush.bf16.msra.mxu0 %v1621
    %5510 = vmatmul.bf16.gmra.mxu0 %v5434
    %v5511 = vpop.f32.mrf.mxu0
    %v5512 = vadd.f32 %v5499, %v5511
    %v5513 = vpop.f32.mrf.mxu0
    %5514 = vdwg.mxu0
    %5515 = vmatpush.bf16.msra.mxu0 %v1711
    %5516 = vmatpush.bf16.msra.mxu0 %v1705
    %5517 = vmatpush.bf16.msra.mxu0 %v1699
    %5518 = vmatpush.bf16.msra.mxu0 %v1693
    %5519 = vmatpush.bf16.msra.mxu0 %v1687
    %5520 = vmatpush.bf16.msra.mxu0 %v1681
    %5521 = vmatpush.bf16.msra.mxu0 %v1675
    %5522 = vmatpush.bf16.msra.mxu0 %v1669
    %5523 = vmatmul.bf16.gmra.mxu0 %v5435
    %v5524 = vpop.f32.mrf.mxu0
    %v5525 = vadd.f32 %v5512, %v5524
    %v5526 = vpop.f32.mrf.mxu0
    %5527 = vdwg.mxu0
    %5528 = vmatpush.bf16.msra.mxu0 %v1759
    %5529 = vmatpush.bf16.msra.mxu0 %v1753
    %5530 = vmatpush.bf16.msra.mxu0 %v1747
    %5531 = vmatpush.bf16.msra.mxu0 %v1741
    %5532 = vmatpush.bf16.msra.mxu0 %v1735
    %5533 = vmatpush.bf16.msra.mxu0 %v1729
    %5534 = vmatpush.bf16.msra.mxu0 %v1723
    %5535 = vmatpush.bf16.msra.mxu0 %v1717
    %5536 = vmatmul.bf16.gmra.mxu0 %v5436
    %v5537 = vpop.f32.mrf.mxu0
    %v5538 = vadd.f32 %v5525, %v5537
    %v5539 = vpop.f32.mrf.mxu0
    %5540 = vdwg.mxu0
    %5541 = vmatpush.bf16.msra.mxu0 %v1616
    %5542 = vmatpush.bf16.msra.mxu0 %v1610
    %5543 = vmatpush.bf16.msra.mxu0 %v1604
    %5544 = vmatpush.bf16.msra.mxu0 %v1598
    %5545 = vmatpush.bf16.msra.mxu0 %v1592
    %5546 = vmatpush.bf16.msra.mxu0 %v1586
    %5547 = vmatpush.bf16.msra.mxu0 %v1580
    %5548 = vmatpush.bf16.msra.mxu0 %v1574
    %5549 = vmatmul.bf16.gmra.mxu0 %v5433
    %v5550 = vpop.f32.mrf.mxu0
    %v5551 = vadd.f32 0.0, %v5550
    %v5552 = vpop.f32.mrf.mxu0
    %5553 = vdwg.mxu0
    %5554 = vmatpush.bf16.msra.mxu0 %v1664
    %5555 = vmatpush.bf16.msra.mxu0 %v1658
    %5556 = vmatpush.bf16.msra.mxu0 %v1652
    %5557 = vmatpush.bf16.msra.mxu0 %v1646
    %5558 = vmatpush.bf16.msra.mxu0 %v1640
    %5559 = vmatpush.bf16.msra.mxu0 %v1634
    %5560 = vmatpush.bf16.msra.mxu0 %v1628
    %5561 = vmatpush.bf16.msra.mxu0 %v1622
    %5562 = vmatmul.bf16.gmra.mxu0 %v5434
    %v5563 = vpop.f32.mrf.mxu0
    %v5564 = vadd.f32 %v5551, %v5563
    %v5565 = vpop.f32.mrf.mxu0
    %5566 = vdwg.mxu0
    %5567 = vmatpush.bf16.msra.mxu0 %v1712
    %5568 = vmatpush.bf16.msra.mxu0 %v1706
    %5569 = vmatpush.bf16.msra.mxu0 %v1700
    %5570 = vmatpush.bf16.msra.mxu0 %v1694
    %5571 = vmatpush.bf16.msra.mxu0 %v1688
    %5572 = vmatpush.bf16.msra.mxu0 %v1682
    %5573 = vmatpush.bf16.msra.mxu0 %v1676
    %5574 = vmatpush.bf16.msra.mxu0 %v1670
    %5575 = vmatmul.bf16.gmra.mxu0 %v5435
    %v5576 = vpop.f32.mrf.mxu0
    %v5577 = vadd.f32 %v5564, %v5576
    %v5578 = vpop.f32.mrf.mxu0
    %5579 = vdwg.mxu0
    %5580 = vmatpush.bf16.msra.mxu0 %v1760
    %5581 = vmatpush.bf16.msra.mxu0 %v1754
    %5582 = vmatpush.bf16.msra.mxu0 %v1748
    %5583 = vmatpush.bf16.msra.mxu0 %v1742
    %5584 = vmatpush.bf16.msra.mxu0 %v1736
    %5585 = vmatpush.bf16.msra.mxu0 %v1730
    %5586 = vmatpush.bf16.msra.mxu0 %v1724
    %5587 = vmatpush.bf16.msra.mxu0 %v1718
    %5588 = vmatmul.bf16.gmra.mxu0 %v5436
    %v5589 = vpop.f32.mrf.mxu0
    %v5590 = vadd.f32 %v5577, %v5589
    %v5591 = vpop.f32.mrf.mxu0
    %5592 = vdwg.mxu0
    %5593 = vmatpush.bf16.msra.mxu0 %v1617
    %5594 = vmatpush.bf16.msra.mxu0 %v1611
    %5595 = vmatpush.bf16.msra.mxu0 %v1605
    %5596 = vmatpush.bf16.msra.mxu0 %v1599
    %5597 = vmatpush.bf16.msra.mxu0 %v1593
    %5598 = vmatpush.bf16.msra.mxu0 %v1587
    %5599 = vmatpush.bf16.msra.mxu0 %v1581
    %5600 = vmatpush.bf16.msra.mxu0 %v1575
    %5601 = vmatmul.bf16.gmra.mxu0 %v5433
    %v5602 = vpop.f32.mrf.mxu0
    %v5603 = vadd.f32 0.0, %v5602
    %v5604 = vpop.f32.mrf.mxu0
    %5605 = vdwg.mxu0
    %5606 = vmatpush.bf16.msra.mxu0 %v1665
    %5607 = vmatpush.bf16.msra.mxu0 %v1659
    %5608 = vmatpush.bf16.msra.mxu0 %v1653
    %5609 = vmatpush.bf16.msra.mxu0 %v1647
    %5610 = vmatpush.bf16.msra.mxu0 %v1641
    %5611 = vmatpush.bf16.msra.mxu0 %v1635
    %5612 = vmatpush.bf16.msra.mxu0 %v1629
    %5613 = vmatpush.bf16.msra.mxu0 %v1623
    %5614 = vmatmul.bf16.gmra.mxu0 %v5434
    %v5615 = vpop.f32.mrf.mxu0
    %v5616 = vadd.f32 %v5603, %v5615
    %v5617 = vpop.f32.mrf.mxu0
    %5618 = vdwg.mxu0
    %5619 = vmatpush.bf16.msra.mxu0 %v1713
    %5620 = vmatpush.bf16.msra.mxu0 %v1707
    %5621 = vmatpush.bf16.msra.mxu0 %v1701
    %5622 = vmatpush.bf16.msra.mxu0 %v1695
    %5623 = vmatpush.bf16.msra.mxu0 %v1689
    %5624 = vmatpush.bf16.msra.mxu0 %v1683
    %5625 = vmatpush.bf16.msra.mxu0 %v1677
    %5626 = vmatpush.bf16.msra.mxu0 %v1671
    %5627 = vmatmul.bf16.gmra.mxu0 %v5435
    %v5628 = vpop.f32.mrf.mxu0
    %v5629 = vadd.f32 %v5616, %v5628
    %v5630 = vpop.f32.mrf.mxu0
    %5631 = vdwg.mxu0
    %5632 = vmatpush.bf16.msra.mxu0 %v1761
    %5633 = vmatpush.bf16.msra.mxu0 %v1755
    %5634 = vmatpush.bf16.msra.mxu0 %v1749
    %5635 = vmatpush.bf16.msra.mxu0 %v1743
    %5636 = vmatpush.bf16.msra.mxu0 %v1737
    %5637 = vmatpush.bf16.msra.mxu0 %v1731
    %5638 = vmatpush.bf16.msra.mxu0 %v1725
    %5639 = vmatpush.bf16.msra.mxu0 %v1719
    %5640 = vmatmul.bf16.gmra.mxu0 %v5436
    %v5641 = vpop.f32.mrf.mxu0
    %v5642 = vadd.f32 %v5629, %v5641
    %v5643 = vpop.f32.mrf.mxu0
    %5644 = vdwg.mxu0
    %5645 = vmatpush.bf16.msra.mxu0 %v1618
    %5646 = vmatpush.bf16.msra.mxu0 %v1612
    %5647 = vmatpush.bf16.msra.mxu0 %v1606
    %5648 = vmatpush.bf16.msra.mxu0 %v1600
    %5649 = vmatpush.bf16.msra.mxu0 %v1594
    %5650 = vmatpush.bf16.msra.mxu0 %v1588
    %5651 = vmatpush.bf16.msra.mxu0 %v1582
    %5652 = vmatpush.bf16.msra.mxu0 %v1576
    %5653 = vmatmul.bf16.gmra.mxu0 %v5433
    %v5654 = vpop.f32.mrf.mxu0
    %v5655 = vadd.f32 0.0, %v5654
    %v5656 = vpop.f32.mrf.mxu0
    %5657 = vdwg.mxu0
    %5658 = vmatpush.bf16.msra.mxu0 %v1666
    %5659 = vmatpush.bf16.msra.mxu0 %v1660
    %5660 = vmatpush.bf16.msra.mxu0 %v1654
    %5661 = vmatpush.bf16.msra.mxu0 %v1648
    %5662 = vmatpush.bf16.msra.mxu0 %v1642
    %5663 = vmatpush.bf16.msra.mxu0 %v1636
    %5664 = vmatpush.bf16.msra.mxu0 %v1630
    %5665 = vmatpush.bf16.msra.mxu0 %v1624
    %5666 = vmatmul.bf16.gmra.mxu0 %v5434
    %v5667 = vpop.f32.mrf.mxu0
    %v5668 = vadd.f32 %v5655, %v5667
    %v5669 = vpop.f32.mrf.mxu0
    %5670 = vdwg.mxu0
    %5671 = vmatpush.bf16.msra.mxu0 %v1714
    %5672 = vmatpush.bf16.msra.mxu0 %v1708
    %5673 = vmatpush.bf16.msra.mxu0 %v1702
    %5674 = vmatpush.bf16.msra.mxu0 %v1696
    %5675 = vmatpush.bf16.msra.mxu0 %v1690
    %5676 = vmatpush.bf16.msra.mxu0 %v1684
    %5677 = vmatpush.bf16.msra.mxu0 %v1678
    %5678 = vmatpush.bf16.msra.mxu0 %v1672
    %5679 = vmatmul.bf16.gmra.mxu0 %v5435
    %v5680 = vpop.f32.mrf.mxu0
    %v5681 = vadd.f32 %v5668, %v5680
    %v5682 = vpop.f32.mrf.mxu0
    %5683 = vdwg.mxu0
    %5684 = vmatpush.bf16.msra.mxu0 %v1762
    %5685 = vmatpush.bf16.msra.mxu0 %v1756
    %5686 = vmatpush.bf16.msra.mxu0 %v1750
    %5687 = vmatpush.bf16.msra.mxu0 %v1744
    %5688 = vmatpush.bf16.msra.mxu0 %v1738
    %5689 = vmatpush.bf16.msra.mxu0 %v1732
    %5690 = vmatpush.bf16.msra.mxu0 %v1726
    %5691 = vmatpush.bf16.msra.mxu0 %v1720
    %5692 = vmatmul.bf16.gmra.mxu0 %v5436
    %v5693 = vpop.f32.mrf.mxu0
    %v5694 = vadd.f32 %v5681, %v5693
    %v5695 = vpop.f32.mrf.mxu0
    %5696 = vdwg.mxu0
    %5697 = vmatpush.bf16.msra.mxu0 %v1619
    %5698 = vmatpush.bf16.msra.mxu0 %v1613
    %5699 = vmatpush.bf16.msra.mxu0 %v1607
    %5700 = vmatpush.bf16.msra.mxu0 %v1601
    %5701 = vmatpush.bf16.msra.mxu0 %v1595
    %5702 = vmatpush.bf16.msra.mxu0 %v1589
    %5703 = vmatpush.bf16.msra.mxu0 %v1583
    %5704 = vmatpush.bf16.msra.mxu0 %v1577
    %5705 = vmatmul.bf16.gmra.mxu0 %v5433
    %v5706 = vpop.f32.mrf.mxu0
    %v5707 = vadd.f32 0.0, %v5706
    %v5708 = vpop.f32.mrf.mxu0
    %5709 = vdwg.mxu0
    %5710 = vmatpush.bf16.msra.mxu0 %v1667
    %5711 = vmatpush.bf16.msra.mxu0 %v1661
    %5712 = vmatpush.bf16.msra.mxu0 %v1655
    %5713 = vmatpush.bf16.msra.mxu0 %v1649
    %5714 = vmatpush.bf16.msra.mxu0 %v1643
    %5715 = vmatpush.bf16.msra.mxu0 %v1637
    %5716 = vmatpush.bf16.msra.mxu0 %v1631
    %5717 = vmatpush.bf16.msra.mxu0 %v1625
    %5718 = vmatmul.bf16.gmra.mxu0 %v5434
    %v5719 = vpop.f32.mrf.mxu0
    %v5720 = vadd.f32 %v5707, %v5719
    %v5721 = vpop.f32.mrf.mxu0
    %5722 = vdwg.mxu0
    %5723 = vmatpush.bf16.msra.mxu0 %v1715
    %5724 = vmatpush.bf16.msra.mxu0 %v1709
    %5725 = vmatpush.bf16.msra.mxu0 %v1703
    %5726 = vmatpush.bf16.msra.mxu0 %v1697
    %5727 = vmatpush.bf16.msra.mxu0 %v1691
    %5728 = vmatpush.bf16.msra.mxu0 %v1685
    %5729 = vmatpush.bf16.msra.mxu0 %v1679
    %5730 = vmatpush.bf16.msra.mxu0 %v1673
    %5731 = vmatmul.bf16.gmra.mxu0 %v5435
    %v5732 = vpop.f32.mrf.mxu0
    %v5733 = vadd.f32 %v5720, %v5732
    %v5734 = vpop.f32.mrf.mxu0
    %5735 = vdwg.mxu0
    %5736 = vmatpush.bf16.msra.mxu0 %v1763
    %5737 = vmatpush.bf16.msra.mxu0 %v1757
    %5738 = vmatpush.bf16.msra.mxu0 %v1751
    %5739 = vmatpush.bf16.msra.mxu0 %v1745
    %5740 = vmatpush.bf16.msra.mxu0 %v1739
    %5741 = vmatpush.bf16.msra.mxu0 %v1733
    %5742 = vmatpush.bf16.msra.mxu0 %v1727
    %5743 = vmatpush.bf16.msra.mxu0 %v1721
    %5744 = vmatmul.bf16.gmra.mxu0 %v5436
    %v5745 = vpop.f32.mrf.mxu0
    %v5746 = vadd.f32 %v5733, %v5745
    %v5747 = vpop.f32.mrf.mxu0
    %5748 = vdwg.mxu0
    %v5752 = vrot.slane %v5642, 4
    %v5753 = vrot.slane %v5694, 4
    %v5754 = vrot.slane %v5746, 4
    %v5758 = vsel %vm946, %v5486, %v5752
    %v5759 = vsel %vm946, %v5538, %v5753
    %v5760 = vsel %vm946, %v5590, %v5754
    %v5762 = vsel %vm649, %v5432, 0
    %5764 = vmatpush.msra.mxu0 0.0
    %5765 = vmatpush.msra.mxu0 0.0
    %5766 = vmatpush.msra.mxu0 0.0
    %5767 = vmatpush.msra.mxu0 0.0
    %5768 = vmatpush.msra.mxu0 0.0
    %5769 = vmatpush.msra.mxu0 0.0
    %5770 = vmatpush.msra.mxu0 0.0
    %5771 = vmatpush.msra.mxu0 0.0
    %5772 = vmatpush.msra.mxu0 0.0
    %5773 = vmatpush.msra.mxu0 0.0
    %5774 = vmatpush.msra.mxu0 0.0
    %5775 = vmatpush.msra.mxu0 0.0
    %5776 = vmatpush.msra.mxu0 0.0
    %5777 = vmatpush.msra.mxu0 0.0
    %5778 = vmatpush.msra.mxu0 0.0
    %5779 = vmatpush.msra.mxu0 %v5758
    %5780 = vmatmul.f32.gmra.mxu0 %v5762
    %v5781 = vpop.f32.mrf.mxu0
    %v5782 = vadd.f32 0.0, %v5781
    %5783 = vdwg.mxu0
    %5784 = vmatpush.msra.mxu0 0.0
    %5785 = vmatpush.msra.mxu0 0.0
    %5786 = vmatpush.msra.mxu0 0.0
    %5787 = vmatpush.msra.mxu0 0.0
    %5788 = vmatpush.msra.mxu0 0.0
    %5789 = vmatpush.msra.mxu0 0.0
    %5790 = vmatpush.msra.mxu0 0.0
    %5791 = vmatpush.msra.mxu0 0.0
    %5792 = vmatpush.msra.mxu0 0.0
    %5793 = vmatpush.msra.mxu0 0.0
    %5794 = vmatpush.msra.mxu0 0.0
    %5795 = vmatpush.msra.mxu0 0.0
    %5796 = vmatpush.msra.mxu0 0.0
    %5797 = vmatpush.msra.mxu0 0.0
    %5798 = vmatpush.msra.mxu0 0.0
    %5799 = vmatpush.msra.mxu0 %v5759
    %5800 = vmatmul.f32.gmra.mxu0 %v5762
    %v5801 = vpop.f32.mrf.mxu0
    %v5802 = vadd.f32 0.0, %v5801
    %5803 = vdwg.mxu0
    %5804 = vmatpush.msra.mxu0 0.0
    %5805 = vmatpush.msra.mxu0 0.0
    %5806 = vmatpush.msra.mxu0 0.0
    %5807 = vmatpush.msra.mxu0 0.0
    %5808 = vmatpush.msra.mxu0 0.0
    %5809 = vmatpush.msra.mxu0 0.0
    %5810 = vmatpush.msra.mxu0 0.0
    %5811 = vmatpush.msra.mxu0 0.0
    %5812 = vmatpush.msra.mxu0 0.0
    %5813 = vmatpush.msra.mxu0 0.0
    %5814 = vmatpush.msra.mxu0 0.0
    %5815 = vmatpush.msra.mxu0 0.0
    %5816 = vmatpush.msra.mxu0 0.0
    %5817 = vmatpush.msra.mxu0 0.0
    %5818 = vmatpush.msra.mxu0 0.0
    %5819 = vmatpush.msra.mxu0 %v5760
    %5820 = vmatmul.f32.gmra.mxu0 %v5762
    %v5821 = vpop.f32.mrf.mxu0
    %v5822 = vadd.f32 0.0, %v5821
    %5823 = vdwg.mxu0
    %v5824 = vmul.f32 %v5782, %v5782
    %v5825 = vmul.f32 %v5802, %v5802
    %v5826 = vmul.f32 %v5822, %v5822
    %v5827 = vadd.f32 %v5782, %v5802
    %v5828 = vadd.f32 %v5827, %v5822
    %5829 = vadd.xlane.f32.xlu0 %v5828
    %v5830 = vpop.xlane.xlu0 %5829
    %v5831 = vadd.f32 %v5824, %v5825
    %v5832 = vadd.f32 %v5831, %v5826
    %5833 = vadd.xlane.f32.xlu0 %v5832
    %v5834 = vpop.xlane.xlu0 %5833
    %v5835 = vmul.f32 %v5830, 0.0034722222
    %v5836 = vmul.f32 %v5834, 0.0034722222
    %v5837 = vmul.f32 %v5835, %v5835
    %v5838 = vsub.f32 %v5836, %v5837
    %v5839 = vsub.f32 %v5782, %v5835
    %v5840 = vsub.f32 %v5802, %v5835
    %v5841 = vsub.f32 %v5822, %v5835
    %v5842 = vadd.f32 %v5838, 1e-05
    %v5843 = vrsqrt.pop %v5842
    %v5844 = vmul.f32 %v5843, %v5842
    %v5845 = vmul.f32 %v5844, %v5843
    %v5846 = vmul.f32 0.5, %v5845
    %v5847 = vsub.f32 1.5, %v5846
    %v5848 = vmul.f32 %v5843, %v5847
    %vm5849 = vweird.f32 %v5842
    %vm5850 = vweird.f32 %v5843
    %vm5851 = vmor %vm5849, %vm5850
    %v5852 = vsel %vm5851, %v5843, %v5848
    %v5853 = vmul.f32 %v5839, %v5852
    %v5854 = vmul.f32 %v5840, %v5852
    %v5855 = vmul.f32 %v5841, %v5852
    %v5856 = vmax.f32 %v5853, 0.0
    %v5857 = vmax.f32 %v5854, 0.0
    %v5858 = vmax.f32 %v5855, 0.0
    %v5862 = vrot.slane %v5856, 4
    %v5863 = vrot.slane %v5857, 4
    %v5864 = vrot.slane %v5858, 4
    %v5868 = vpack.c.bf16 %v5856, %v5856
    %v5869 = vpack.c.bf16 %v5857, %v5857
    %v5870 = vpack.c.bf16 %v5858, %v5858
    %v5871 = vpack.c.bf16 %v5862, %v5862
    %v5872 = vpack.c.bf16 %v5863, %v5863
    %v5873 = vpack.c.bf16 %v5864, %v5864
    %5874 = vmatpush.bf16.msra.mxu0 %v2997
    %5875 = vmatpush.bf16.msra.mxu0 %v2993
    %5876 = vmatpush.bf16.msra.mxu0 %v2989
    %5877 = vmatpush.bf16.msra.mxu0 %v2985
    %5878 = vmatpush.bf16.msra.mxu0 %v2981
    %5879 = vmatpush.bf16.msra.mxu0 %v2977
    %5880 = vmatpush.bf16.msra.mxu0 %v2973
    %5881 = vmatpush.bf16.msra.mxu0 %v2969
    %5882 = vmatmul.bf16.gmra.mxu0 %v5868
    %v5883 = vpop.f32.mrf.mxu0
    %v5884 = vadd.f32 0.0, %v5883
    %v5885 = vpop.f32.mrf.mxu0
    %5886 = vdwg.mxu0
    %5887 = vmatpush.bf16.msra.mxu0 %v3029
    %5888 = vmatpush.bf16.msra.mxu0 %v3025
    %5889 = vmatpush.bf16.msra.mxu0 %v3021
    %5890 = vmatpush.bf16.msra.mxu0 %v3017
    %5891 = vmatpush.bf16.msra.mxu0 %v3013
    %5892 = vmatpush.bf16.msra.mxu0 %v3009
    %5893 = vmatpush.bf16.msra.mxu0 %v3005
    %5894 = vmatpush.bf16.msra.mxu0 %v3001
    %5895 = vmatmul.bf16.gmra.mxu0 %v5869
    %v5896 = vpop.f32.mrf.mxu0
    %v5897 = vadd.f32 %v5884, %v5896
    %v5898 = vpop.f32.mrf.mxu0
    %5899 = vdwg.mxu0
    %5900 = vmatpush.bf16.msra.mxu0 %v3061
    %5901 = vmatpush.bf16.msra.mxu0 %v3057
    %5902 = vmatpush.bf16.msra.mxu0 %v3053
    %5903 = vmatpush.bf16.msra.mxu0 %v3049
    %5904 = vmatpush.bf16.msra.mxu0 %v3045
    %5905 = vmatpush.bf16.msra.mxu0 %v3041
    %5906 = vmatpush.bf16.msra.mxu0 %v3037
    %5907 = vmatpush.bf16.msra.mxu0 %v3033
    %5908 = vmatmul.bf16.gmra.mxu0 %v5870
    %v5909 = vpop.f32.mrf.mxu0
    %v5910 = vadd.f32 %v5897, %v5909
    %v5911 = vpop.f32.mrf.mxu0
    %5912 = vdwg.mxu0
    %5913 = vmatpush.bf16.msra.mxu0 %v3093
    %5914 = vmatpush.bf16.msra.mxu0 %v3089
    %5915 = vmatpush.bf16.msra.mxu0 %v3085
    %5916 = vmatpush.bf16.msra.mxu0 %v3081
    %5917 = vmatpush.bf16.msra.mxu0 %v3077
    %5918 = vmatpush.bf16.msra.mxu0 %v3073
    %5919 = vmatpush.bf16.msra.mxu0 %v3069
    %5920 = vmatpush.bf16.msra.mxu0 %v3065
    %5921 = vmatmul.bf16.gmra.mxu0 %v5871
    %v5922 = vpop.f32.mrf.mxu0
    %v5923 = vadd.f32 %v5910, %v5922
    %v5924 = vpop.f32.mrf.mxu0
    %5925 = vdwg.mxu0
    %5926 = vmatpush.bf16.msra.mxu0 %v3125
    %5927 = vmatpush.bf16.msra.mxu0 %v3121
    %5928 = vmatpush.bf16.msra.mxu0 %v3117
    %5929 = vmatpush.bf16.msra.mxu0 %v3113
    %5930 = vmatpush.bf16.msra.mxu0 %v3109
    %5931 = vmatpush.bf16.msra.mxu0 %v3105
    %5932 = vmatpush.bf16.msra.mxu0 %v3101
    %5933 = vmatpush.bf16.msra.mxu0 %v3097
    %5934 = vmatmul.bf16.gmra.mxu0 %v5872
    %v5935 = vpop.f32.mrf.mxu0
    %v5936 = vadd.f32 %v5923, %v5935
    %v5937 = vpop.f32.mrf.mxu0
    %5938 = vdwg.mxu0
    %5939 = vmatpush.bf16.msra.mxu0 %v3157
    %5940 = vmatpush.bf16.msra.mxu0 %v3153
    %5941 = vmatpush.bf16.msra.mxu0 %v3149
    %5942 = vmatpush.bf16.msra.mxu0 %v3145
    %5943 = vmatpush.bf16.msra.mxu0 %v3141
    %5944 = vmatpush.bf16.msra.mxu0 %v3137
    %5945 = vmatpush.bf16.msra.mxu0 %v3133
    %5946 = vmatpush.bf16.msra.mxu0 %v3129
    %5947 = vmatmul.bf16.gmra.mxu0 %v5873
    %v5948 = vpop.f32.mrf.mxu0
    %v5949 = vadd.f32 %v5936, %v5948
    %v5950 = vpop.f32.mrf.mxu0
    %5951 = vdwg.mxu0
    %5952 = vmatpush.bf16.msra.mxu0 %v2998
    %5953 = vmatpush.bf16.msra.mxu0 %v2994
    %5954 = vmatpush.bf16.msra.mxu0 %v2990
    %5955 = vmatpush.bf16.msra.mxu0 %v2986
    %5956 = vmatpush.bf16.msra.mxu0 %v2982
    %5957 = vmatpush.bf16.msra.mxu0 %v2978
    %5958 = vmatpush.bf16.msra.mxu0 %v2974
    %5959 = vmatpush.bf16.msra.mxu0 %v2970
    %5960 = vmatmul.bf16.gmra.mxu0 %v5868
    %v5961 = vpop.f32.mrf.mxu0
    %v5962 = vadd.f32 0.0, %v5961
    %v5963 = vpop.f32.mrf.mxu0
    %5964 = vdwg.mxu0
    %5965 = vmatpush.bf16.msra.mxu0 %v3030
    %5966 = vmatpush.bf16.msra.mxu0 %v3026
    %5967 = vmatpush.bf16.msra.mxu0 %v3022
    %5968 = vmatpush.bf16.msra.mxu0 %v3018
    %5969 = vmatpush.bf16.msra.mxu0 %v3014
    %5970 = vmatpush.bf16.msra.mxu0 %v3010
    %5971 = vmatpush.bf16.msra.mxu0 %v3006
    %5972 = vmatpush.bf16.msra.mxu0 %v3002
    %5973 = vmatmul.bf16.gmra.mxu0 %v5869
    %v5974 = vpop.f32.mrf.mxu0
    %v5975 = vadd.f32 %v5962, %v5974
    %v5976 = vpop.f32.mrf.mxu0
    %5977 = vdwg.mxu0
    %5978 = vmatpush.bf16.msra.mxu0 %v3062
    %5979 = vmatpush.bf16.msra.mxu0 %v3058
    %5980 = vmatpush.bf16.msra.mxu0 %v3054
    %5981 = vmatpush.bf16.msra.mxu0 %v3050
    %5982 = vmatpush.bf16.msra.mxu0 %v3046
    %5983 = vmatpush.bf16.msra.mxu0 %v3042
    %5984 = vmatpush.bf16.msra.mxu0 %v3038
    %5985 = vmatpush.bf16.msra.mxu0 %v3034
    %5986 = vmatmul.bf16.gmra.mxu0 %v5870
    %v5987 = vpop.f32.mrf.mxu0
    %v5988 = vadd.f32 %v5975, %v5987
    %v5989 = vpop.f32.mrf.mxu0
    %5990 = vdwg.mxu0
    %5991 = vmatpush.bf16.msra.mxu0 %v3094
    %5992 = vmatpush.bf16.msra.mxu0 %v3090
    %5993 = vmatpush.bf16.msra.mxu0 %v3086
    %5994 = vmatpush.bf16.msra.mxu0 %v3082
    %5995 = vmatpush.bf16.msra.mxu0 %v3078
    %5996 = vmatpush.bf16.msra.mxu0 %v3074
    %5997 = vmatpush.bf16.msra.mxu0 %v3070
    %5998 = vmatpush.bf16.msra.mxu0 %v3066
    %5999 = vmatmul.bf16.gmra.mxu0 %v5871
    %v6000 = vpop.f32.mrf.mxu0
    %v6001 = vadd.f32 %v5988, %v6000
    %v6002 = vpop.f32.mrf.mxu0
    %6003 = vdwg.mxu0
    %6004 = vmatpush.bf16.msra.mxu0 %v3126
    %6005 = vmatpush.bf16.msra.mxu0 %v3122
    %6006 = vmatpush.bf16.msra.mxu0 %v3118
    %6007 = vmatpush.bf16.msra.mxu0 %v3114
    %6008 = vmatpush.bf16.msra.mxu0 %v3110
    %6009 = vmatpush.bf16.msra.mxu0 %v3106
    %6010 = vmatpush.bf16.msra.mxu0 %v3102
    %6011 = vmatpush.bf16.msra.mxu0 %v3098
    %6012 = vmatmul.bf16.gmra.mxu0 %v5872
    %v6013 = vpop.f32.mrf.mxu0
    %v6014 = vadd.f32 %v6001, %v6013
    %v6015 = vpop.f32.mrf.mxu0
    %6016 = vdwg.mxu0
    %6017 = vmatpush.bf16.msra.mxu0 %v3158
    %6018 = vmatpush.bf16.msra.mxu0 %v3154
    %6019 = vmatpush.bf16.msra.mxu0 %v3150
    %6020 = vmatpush.bf16.msra.mxu0 %v3146
    %6021 = vmatpush.bf16.msra.mxu0 %v3142
    %6022 = vmatpush.bf16.msra.mxu0 %v3138
    %6023 = vmatpush.bf16.msra.mxu0 %v3134
    %6024 = vmatpush.bf16.msra.mxu0 %v3130
    %6025 = vmatmul.bf16.gmra.mxu0 %v5873
    %v6026 = vpop.f32.mrf.mxu0
    %v6027 = vadd.f32 %v6014, %v6026
    %v6028 = vpop.f32.mrf.mxu0
    %6029 = vdwg.mxu0
    %6030 = vmatpush.bf16.msra.mxu0 %v2999
    %6031 = vmatpush.bf16.msra.mxu0 %v2995
    %6032 = vmatpush.bf16.msra.mxu0 %v2991
    %6033 = vmatpush.bf16.msra.mxu0 %v2987
    %6034 = vmatpush.bf16.msra.mxu0 %v2983
    %6035 = vmatpush.bf16.msra.mxu0 %v2979
    %6036 = vmatpush.bf16.msra.mxu0 %v2975
    %6037 = vmatpush.bf16.msra.mxu0 %v2971
    %6038 = vmatmul.bf16.gmra.mxu0 %v5868
    %v6039 = vpop.f32.mrf.mxu0
    %v6040 = vadd.f32 0.0, %v6039
    %v6041 = vpop.f32.mrf.mxu0
    %6042 = vdwg.mxu0
    %6043 = vmatpush.bf16.msra.mxu0 %v3031
    %6044 = vmatpush.bf16.msra.mxu0 %v3027
    %6045 = vmatpush.bf16.msra.mxu0 %v3023
    %6046 = vmatpush.bf16.msra.mxu0 %v3019
    %6047 = vmatpush.bf16.msra.mxu0 %v3015
    %6048 = vmatpush.bf16.msra.mxu0 %v3011
    %6049 = vmatpush.bf16.msra.mxu0 %v3007
    %6050 = vmatpush.bf16.msra.mxu0 %v3003
    %6051 = vmatmul.bf16.gmra.mxu0 %v5869
    %v6052 = vpop.f32.mrf.mxu0
    %v6053 = vadd.f32 %v6040, %v6052
    %v6054 = vpop.f32.mrf.mxu0
    %6055 = vdwg.mxu0
    %6056 = vmatpush.bf16.msra.mxu0 %v3063
    %6057 = vmatpush.bf16.msra.mxu0 %v3059
    %6058 = vmatpush.bf16.msra.mxu0 %v3055
    %6059 = vmatpush.bf16.msra.mxu0 %v3051
    %6060 = vmatpush.bf16.msra.mxu0 %v3047
    %6061 = vmatpush.bf16.msra.mxu0 %v3043
    %6062 = vmatpush.bf16.msra.mxu0 %v3039
    %6063 = vmatpush.bf16.msra.mxu0 %v3035
    %6064 = vmatmul.bf16.gmra.mxu0 %v5870
    %v6065 = vpop.f32.mrf.mxu0
    %v6066 = vadd.f32 %v6053, %v6065
    %v6067 = vpop.f32.mrf.mxu0
    %6068 = vdwg.mxu0
    %6069 = vmatpush.bf16.msra.mxu0 %v3095
    %6070 = vmatpush.bf16.msra.mxu0 %v3091
    %6071 = vmatpush.bf16.msra.mxu0 %v3087
    %6072 = vmatpush.bf16.msra.mxu0 %v3083
    %6073 = vmatpush.bf16.msra.mxu0 %v3079
    %6074 = vmatpush.bf16.msra.mxu0 %v3075
    %6075 = vmatpush.bf16.msra.mxu0 %v3071
    %6076 = vmatpush.bf16.msra.mxu0 %v3067
    %6077 = vmatmul.bf16.gmra.mxu0 %v5871
    %v6078 = vpop.f32.mrf.mxu0
    %v6079 = vadd.f32 %v6066, %v6078
    %v6080 = vpop.f32.mrf.mxu0
    %6081 = vdwg.mxu0
    %6082 = vmatpush.bf16.msra.mxu0 %v3127
    %6083 = vmatpush.bf16.msra.mxu0 %v3123
    %6084 = vmatpush.bf16.msra.mxu0 %v3119
    %6085 = vmatpush.bf16.msra.mxu0 %v3115
    %6086 = vmatpush.bf16.msra.mxu0 %v3111
    %6087 = vmatpush.bf16.msra.mxu0 %v3107
    %6088 = vmatpush.bf16.msra.mxu0 %v3103
    %6089 = vmatpush.bf16.msra.mxu0 %v3099
    %6090 = vmatmul.bf16.gmra.mxu0 %v5872
    %v6091 = vpop.f32.mrf.mxu0
    %v6092 = vadd.f32 %v6079, %v6091
    %v6093 = vpop.f32.mrf.mxu0
    %6094 = vdwg.mxu0
    %6095 = vmatpush.bf16.msra.mxu0 %v3159
    %6096 = vmatpush.bf16.msra.mxu0 %v3155
    %6097 = vmatpush.bf16.msra.mxu0 %v3151
    %6098 = vmatpush.bf16.msra.mxu0 %v3147
    %6099 = vmatpush.bf16.msra.mxu0 %v3143
    %6100 = vmatpush.bf16.msra.mxu0 %v3139
    %6101 = vmatpush.bf16.msra.mxu0 %v3135
    %6102 = vmatpush.bf16.msra.mxu0 %v3131
    %6103 = vmatmul.bf16.gmra.mxu0 %v5873
    %v6104 = vpop.f32.mrf.mxu0
    %v6105 = vadd.f32 %v6092, %v6104
    %v6106 = vpop.f32.mrf.mxu0
    %6107 = vdwg.mxu0
    %6108 = vmatpush.bf16.msra.mxu0 %v3000
    %6109 = vmatpush.bf16.msra.mxu0 %v2996
    %6110 = vmatpush.bf16.msra.mxu0 %v2992
    %6111 = vmatpush.bf16.msra.mxu0 %v2988
    %6112 = vmatpush.bf16.msra.mxu0 %v2984
    %6113 = vmatpush.bf16.msra.mxu0 %v2980
    %6114 = vmatpush.bf16.msra.mxu0 %v2976
    %6115 = vmatpush.bf16.msra.mxu0 %v2972
    %6116 = vmatmul.bf16.gmra.mxu0 %v5868
    %v6117 = vpop.f32.mrf.mxu0
    %v6118 = vadd.f32 0.0, %v6117
    %v6119 = vpop.f32.mrf.mxu0
    %6120 = vdwg.mxu0
    %6121 = vmatpush.bf16.msra.mxu0 %v3032
    %6122 = vmatpush.bf16.msra.mxu0 %v3028
    %6123 = vmatpush.bf16.msra.mxu0 %v3024
    %6124 = vmatpush.bf16.msra.mxu0 %v3020
    %6125 = vmatpush.bf16.msra.mxu0 %v3016
    %6126 = vmatpush.bf16.msra.mxu0 %v3012
    %6127 = vmatpush.bf16.msra.mxu0 %v3008
    %6128 = vmatpush.bf16.msra.mxu0 %v3004
    %6129 = vmatmul.bf16.gmra.mxu0 %v5869
    %v6130 = vpop.f32.mrf.mxu0
    %v6131 = vadd.f32 %v6118, %v6130
    %v6132 = vpop.f32.mrf.mxu0
    %6133 = vdwg.mxu0
    %6134 = vmatpush.bf16.msra.mxu0 %v3064
    %6135 = vmatpush.bf16.msra.mxu0 %v3060
    %6136 = vmatpush.bf16.msra.mxu0 %v3056
    %6137 = vmatpush.bf16.msra.mxu0 %v3052
    %6138 = vmatpush.bf16.msra.mxu0 %v3048
    %6139 = vmatpush.bf16.msra.mxu0 %v3044
    %6140 = vmatpush.bf16.msra.mxu0 %v3040
    %6141 = vmatpush.bf16.msra.mxu0 %v3036
    %6142 = vmatmul.bf16.gmra.mxu0 %v5870
    %v6143 = vpop.f32.mrf.mxu0
    %v6144 = vadd.f32 %v6131, %v6143
    %v6145 = vpop.f32.mrf.mxu0
    %6146 = vdwg.mxu0
    %6147 = vmatpush.bf16.msra.mxu0 %v3096
    %6148 = vmatpush.bf16.msra.mxu0 %v3092
    %6149 = vmatpush.bf16.msra.mxu0 %v3088
    %6150 = vmatpush.bf16.msra.mxu0 %v3084
    %6151 = vmatpush.bf16.msra.mxu0 %v3080
    %6152 = vmatpush.bf16.msra.mxu0 %v3076
    %6153 = vmatpush.bf16.msra.mxu0 %v3072
    %6154 = vmatpush.bf16.msra.mxu0 %v3068
    %6155 = vmatmul.bf16.gmra.mxu0 %v5871
    %v6156 = vpop.f32.mrf.mxu0
    %v6157 = vadd.f32 %v6144, %v6156
    %v6158 = vpop.f32.mrf.mxu0
    %6159 = vdwg.mxu0
    %6160 = vmatpush.bf16.msra.mxu0 %v3128
    %6161 = vmatpush.bf16.msra.mxu0 %v3124
    %6162 = vmatpush.bf16.msra.mxu0 %v3120
    %6163 = vmatpush.bf16.msra.mxu0 %v3116
    %6164 = vmatpush.bf16.msra.mxu0 %v3112
    %6165 = vmatpush.bf16.msra.mxu0 %v3108
    %6166 = vmatpush.bf16.msra.mxu0 %v3104
    %6167 = vmatpush.bf16.msra.mxu0 %v3100
    %6168 = vmatmul.bf16.gmra.mxu0 %v5872
    %v6169 = vpop.f32.mrf.mxu0
    %v6170 = vadd.f32 %v6157, %v6169
    %v6171 = vpop.f32.mrf.mxu0
    %6172 = vdwg.mxu0
    %6173 = vmatpush.bf16.msra.mxu0 %v3160
    %6174 = vmatpush.bf16.msra.mxu0 %v3156
    %6175 = vmatpush.bf16.msra.mxu0 %v3152
    %6176 = vmatpush.bf16.msra.mxu0 %v3148
    %6177 = vmatpush.bf16.msra.mxu0 %v3144
    %6178 = vmatpush.bf16.msra.mxu0 %v3140
    %6179 = vmatpush.bf16.msra.mxu0 %v3136
    %6180 = vmatpush.bf16.msra.mxu0 %v3132
    %6181 = vmatmul.bf16.gmra.mxu0 %v5873
    %v6182 = vpop.f32.mrf.mxu0
    %v6183 = vadd.f32 %v6170, %v6182
    %v6184 = vpop.f32.mrf.mxu0
    %6185 = vdwg.mxu0
    %v6186 = vperm.slane %v5427, 0
    %v6187 = vperm.slane %v5428, 0
    %v6188 = vperm.slane %v5429, 0
    %v6189 = vperm.slane %v5430, 0
    %v6194 = vrot.slane %v6187, 4
    %v6195 = vrot.slane %v6189, 4
    %v6196 = vsel %vm946, %v6186, %v6194
    %v6197 = vsel %vm946, %v6188, %v6195
    %v6200 = vmul.f32 %v627, %v6196
    %v6201 = vmul.f32 %v628, %v6197
    %s6202 = scalar_lea.vmem %s14, 8
    %v6203 = vld [vmem:[%s6202] sm:$0xff]
    %6206 = vst [vmem:[#allocation1] ss:$2 sm:$0xff] %v6200
    %s6207 = scalar_lea.vmem [#allocation1], 16
    %6208 = vst [vmem:[%s6207] ss:$2 sm:$0xff] %v6201
    %v6209 = vld.sshfl [vmem:[#allocation1] sm:$0xff pattern:$0x75316420]
    %v6210 = vld.sshfl [vmem:[#allocation1 + $0x8] sm:$0xff pattern:$0x75316420]
    %v6211 = vld.sshfl [vmem:[#allocation1 + $0x10] sm:$0xff pattern:$0x75316420]
    %v6212 = vld.sshfl [vmem:[#allocation1 + $0x18] sm:$0xff pattern:$0x75316420]
    %v6217 = vpack.c.bf16 %v6209, %v6209
    %v6218 = vpack.c.bf16 %v6210, %v6210
    %v6219 = vpack.c.bf16 %v6211, %v6211
    %v6220 = vpack.c.bf16 %v6212, %v6212
    %6221 = vmatpush.bf16.msra.mxu0 %v3905
    %6222 = vmatpush.bf16.msra.mxu0 %v3903
    %6223 = vmatpush.bf16.msra.mxu0 %v3901
    %6224 = vmatpush.bf16.msra.mxu0 %v3899
    %6225 = vmatpush.bf16.msra.mxu0 %v3897
    %6226 = vmatpush.bf16.msra.mxu0 %v3895
    %6227 = vmatpush.bf16.msra.mxu0 %v3893
    %6228 = vmatpush.bf16.msra.mxu0 %v3891
    %6229 = vmatmul.bf16.gmra.mxu0 %v6217
    %v6230 = vpop.f32.mrf.mxu0
    %v6231 = vadd.f32 0.0, %v6230
    %v6232 = vpop.f32.mrf.mxu0
    %6233 = vdwg.mxu0
    %6234 = vmatpush.bf16.msra.mxu0 %v3921
    %6235 = vmatpush.bf16.msra.mxu0 %v3919
    %6236 = vmatpush.bf16.msra.mxu0 %v3917
    %6237 = vmatpush.bf16.msra.mxu0 %v3915
    %6238 = vmatpush.bf16.msra.mxu0 %v3913
    %6239 = vmatpush.bf16.msra.mxu0 %v3911
    %6240 = vmatpush.bf16.msra.mxu0 %v3909
    %6241 = vmatpush.bf16.msra.mxu0 %v3907
    %6242 = vmatmul.bf16.gmra.mxu0 %v6218
    %v6243 = vpop.f32.mrf.mxu0
    %v6244 = vadd.f32 %v6231, %v6243
    %v6245 = vpop.f32.mrf.mxu0
    %6246 = vdwg.mxu0
    %6247 = vmatpush.bf16.msra.mxu0 %v3937
    %6248 = vmatpush.bf16.msra.mxu0 %v3935
    %6249 = vmatpush.bf16.msra.mxu0 %v3933
    %6250 = vmatpush.bf16.msra.mxu0 %v3931
    %6251 = vmatpush.bf16.msra.mxu0 %v3929
    %6252 = vmatpush.bf16.msra.mxu0 %v3927
    %6253 = vmatpush.bf16.msra.mxu0 %v3925
    %6254 = vmatpush.bf16.msra.mxu0 %v3923
    %6255 = vmatmul.bf16.gmra.mxu0 %v6219
    %v6256 = vpop.f32.mrf.mxu0
    %v6257 = vadd.f32 %v6244, %v6256
    %v6258 = vpop.f32.mrf.mxu0
    %6259 = vdwg.mxu0
    %6260 = vmatpush.bf16.msra.mxu0 %v3953
    %6261 = vmatpush.bf16.msra.mxu0 %v3951
    %6262 = vmatpush.bf16.msra.mxu0 %v3949
    %6263 = vmatpush.bf16.msra.mxu0 %v3947
    %6264 = vmatpush.bf16.msra.mxu0 %v3945
    %6265 = vmatpush.bf16.msra.mxu0 %v3943
    %6266 = vmatpush.bf16.msra.mxu0 %v3941
    %6267 = vmatpush.bf16.msra.mxu0 %v3939
    %6268 = vmatmul.bf16.gmra.mxu0 %v6220
    %v6269 = vpop.f32.mrf.mxu0
    %v6270 = vadd.f32 %v6257, %v6269
    %v6271 = vpop.f32.mrf.mxu0
    %6272 = vdwg.mxu0
    %6273 = vmatpush.bf16.msra.mxu0 %v3906
    %6274 = vmatpush.bf16.msra.mxu0 %v3904
    %6275 = vmatpush.bf16.msra.mxu0 %v3902
    %6276 = vmatpush.bf16.msra.mxu0 %v3900
    %6277 = vmatpush.bf16.msra.mxu0 %v3898
    %6278 = vmatpush.bf16.msra.mxu0 %v3896
    %6279 = vmatpush.bf16.msra.mxu0 %v3894
    %6280 = vmatpush.bf16.msra.mxu0 %v3892
    %6281 = vmatmul.bf16.gmra.mxu0 %v6217
    %v6282 = vpop.f32.mrf.mxu0
    %v6283 = vadd.f32 0.0, %v6282
    %v6284 = vpop.f32.mrf.mxu0
    %6285 = vdwg.mxu0
    %6286 = vmatpush.bf16.msra.mxu0 %v3922
    %6287 = vmatpush.bf16.msra.mxu0 %v3920
    %6288 = vmatpush.bf16.msra.mxu0 %v3918
    %6289 = vmatpush.bf16.msra.mxu0 %v3916
    %6290 = vmatpush.bf16.msra.mxu0 %v3914
    %6291 = vmatpush.bf16.msra.mxu0 %v3912
    %6292 = vmatpush.bf16.msra.mxu0 %v3910
    %6293 = vmatpush.bf16.msra.mxu0 %v3908
    %6294 = vmatmul.bf16.gmra.mxu0 %v6218
    %v6295 = vpop.f32.mrf.mxu0
    %v6296 = vadd.f32 %v6283, %v6295
    %v6297 = vpop.f32.mrf.mxu0
    %6298 = vdwg.mxu0
    %6299 = vmatpush.bf16.msra.mxu0 %v3938
    %6300 = vmatpush.bf16.msra.mxu0 %v3936
    %6301 = vmatpush.bf16.msra.mxu0 %v3934
    %6302 = vmatpush.bf16.msra.mxu0 %v3932
    %6303 = vmatpush.bf16.msra.mxu0 %v3930
    %6304 = vmatpush.bf16.msra.mxu0 %v3928
    %6305 = vmatpush.bf16.msra.mxu0 %v3926
    %6306 = vmatpush.bf16.msra.mxu0 %v3924
    %6307 = vmatmul.bf16.gmra.mxu0 %v6219
    %v6308 = vpop.f32.mrf.mxu0
    %v6309 = vadd.f32 %v6296, %v6308
    %v6310 = vpop.f32.mrf.mxu0
    %6311 = vdwg.mxu0
    %6312 = vmatpush.bf16.msra.mxu0 %v3954
    %6313 = vmatpush.bf16.msra.mxu0 %v3952
    %6314 = vmatpush.bf16.msra.mxu0 %v3950
    %6315 = vmatpush.bf16.msra.mxu0 %v3948
    %6316 = vmatpush.bf16.msra.mxu0 %v3946
    %6317 = vmatpush.bf16.msra.mxu0 %v3944
    %6318 = vmatpush.bf16.msra.mxu0 %v3942
    %6319 = vmatpush.bf16.msra.mxu0 %v3940
    %6320 = vmatmul.bf16.gmra.mxu0 %v6220
    %v6321 = vpop.f32.mrf.mxu0
    %v6322 = vadd.f32 %v6309, %v6321
    %v6323 = vpop.f32.mrf.mxu0
    %6324 = vdwg.mxu0
    %v6326 = vrot.slane %v6322, 4
    %v6328 = vsel %vm946, %v6270, %v6326
    %v6330 = vsel %vm649, %v6203, 0
    %6332 = vmatpush.msra.mxu0 0.0
    %6333 = vmatpush.msra.mxu0 0.0
    %6334 = vmatpush.msra.mxu0 0.0
    %6335 = vmatpush.msra.mxu0 0.0
    %6336 = vmatpush.msra.mxu0 0.0
    %6337 = vmatpush.msra.mxu0 0.0
    %6338 = vmatpush.msra.mxu0 0.0
    %6339 = vmatpush.msra.mxu0 0.0
    %6340 = vmatpush.msra.mxu0 0.0
    %6341 = vmatpush.msra.mxu0 0.0
    %6342 = vmatpush.msra.mxu0 0.0
    %6343 = vmatpush.msra.mxu0 0.0
    %6344 = vmatpush.msra.mxu0 0.0
    %6345 = vmatpush.msra.mxu0 0.0
    %6346 = vmatpush.msra.mxu0 0.0
    %6347 = vmatpush.msra.mxu0 %v6328
    %6348 = vmatmul.f32.gmra.mxu0 %v6330
    %v6349 = vpop.f32.mrf.mxu0
    %v6350 = vadd.f32 0.0, %v6349
    %6351 = vdwg.mxu0
    %v6352 = vmul.f32 %v6350, %v6350
    %6353 = vadd.xlane.f32.xlu0 %v6350
    %v6354 = vpop.xlane.xlu0 %6353
    %6355 = vadd.xlane.f32.xlu0 %v6352
    %v6356 = vpop.xlane.xlu0 %6355
    %v6357 = vmul.f32 %v6354, 0.0125
    %v6358 = vmul.f32 %v6356, 0.0125
    %v6359 = vmul.f32 %v6357, %v6357
    %v6360 = vsub.f32 %v6358, %v6359
    %v6361 = vsub.f32 %v6350, %v6357
    %v6362 = vadd.f32 %v6360, 1e-05
    %v6363 = vrsqrt.pop %v6362
    %v6364 = vmul.f32 %v6363, %v6362
    %v6365 = vmul.f32 %v6364, %v6363
    %v6366 = vmul.f32 0.5, %v6365
    %v6367 = vsub.f32 1.5, %v6366
    %v6368 = vmul.f32 %v6363, %v6367
    %vm6369 = vweird.f32 %v6362
    %vm6370 = vweird.f32 %v6363
    %vm6371 = vmor %vm6369, %vm6370
    %v6372 = vsel %vm6371, %v6363, %v6368
    %v6373 = vmul.f32 %v6361, %v6372
    %v6374 = vmax.f32 %v6373, 0.0
    %v6376 = vrot.slane %v6374, 4
    %v6378 = vpack.c.bf16 %v6374, %v6374
    %v6379 = vpack.c.bf16 %v6376, %v6376
    %6380 = vmatpush.bf16.msra.mxu0 %v4398
    %6381 = vmatpush.bf16.msra.mxu0 %v4394
    %6382 = vmatpush.bf16.msra.mxu0 %v4390
    %6383 = vmatpush.bf16.msra.mxu0 %v4386
    %6384 = vmatpush.bf16.msra.mxu0 %v4382
    %6385 = vmatpush.bf16.msra.mxu0 %v4378
    %6386 = vmatpush.bf16.msra.mxu0 %v4374
    %6387 = vmatpush.bf16.msra.mxu0 %v4370
    %6388 = vmatmul.bf16.gmra.mxu0 %v6378
    %v6389 = vpop.f32.mrf.mxu0
    %v6390 = vadd.f32 0.0, %v6389
    %v6391 = vpop.f32.mrf.mxu0
    %6392 = vdwg.mxu0
    %6393 = vmatpush.bf16.msra.mxu0 %v4430
    %6394 = vmatpush.bf16.msra.mxu0 %v4426
    %6395 = vmatpush.bf16.msra.mxu0 %v4422
    %6396 = vmatpush.bf16.msra.mxu0 %v4418
    %6397 = vmatpush.bf16.msra.mxu0 %v4414
    %6398 = vmatpush.bf16.msra.mxu0 %v4410
    %6399 = vmatpush.bf16.msra.mxu0 %v4406
    %6400 = vmatpush.bf16.msra.mxu0 %v4402
    %6401 = vmatmul.bf16.gmra.mxu0 %v6379
    %v6402 = vpop.f32.mrf.mxu0
    %v6403 = vadd.f32 %v6390, %v6402
    %v6404 = vpop.f32.mrf.mxu0
    %6405 = vdwg.mxu0
    %6406 = vmatpush.bf16.msra.mxu0 %v4399
    %6407 = vmatpush.bf16.msra.mxu0 %v4395
    %6408 = vmatpush.bf16.msra.mxu0 %v4391
    %6409 = vmatpush.bf16.msra.mxu0 %v4387
    %6410 = vmatpush.bf16.msra.mxu0 %v4383
    %6411 = vmatpush.bf16.msra.mxu0 %v4379
    %6412 = vmatpush.bf16.msra.mxu0 %v4375
    %6413 = vmatpush.bf16.msra.mxu0 %v4371
    %6414 = vmatmul.bf16.gmra.mxu0 %v6378
    %v6415 = vpop.f32.mrf.mxu0
    %v6416 = vadd.f32 0.0, %v6415
    %v6417 = vpop.f32.mrf.mxu0
    %6418 = vdwg.mxu0
    %6419 = vmatpush.bf16.msra.mxu0 %v4431
    %6420 = vmatpush.bf16.msra.mxu0 %v4427
    %6421 = vmatpush.bf16.msra.mxu0 %v4423
    %6422 = vmatpush.bf16.msra.mxu0 %v4419
    %6423 = vmatpush.bf16.msra.mxu0 %v4415
    %6424 = vmatpush.bf16.msra.mxu0 %v4411
    %6425 = vmatpush.bf16.msra.mxu0 %v4407
    %6426 = vmatpush.bf16.msra.mxu0 %v4403
    %6427 = vmatmul.bf16.gmra.mxu0 %v6379
    %v6428 = vpop.f32.mrf.mxu0
    %v6429 = vadd.f32 %v6416, %v6428
    %v6430 = vpop.f32.mrf.mxu0
    %6431 = vdwg.mxu0
    %6432 = vmatpush.bf16.msra.mxu0 %v4400
    %6433 = vmatpush.bf16.msra.mxu0 %v4396
    %6434 = vmatpush.bf16.msra.mxu0 %v4392
    %6435 = vmatpush.bf16.msra.mxu0 %v4388
    %6436 = vmatpush.bf16.msra.mxu0 %v4384
    %6437 = vmatpush.bf16.msra.mxu0 %v4380
    %6438 = vmatpush.bf16.msra.mxu0 %v4376
    %6439 = vmatpush.bf16.msra.mxu0 %v4372
    %6440 = vmatmul.bf16.gmra.mxu0 %v6378
    %v6441 = vpop.f32.mrf.mxu0
    %v6442 = vadd.f32 0.0, %v6441
    %v6443 = vpop.f32.mrf.mxu0
    %6444 = vdwg.mxu0
    %6445 = vmatpush.bf16.msra.mxu0 %v4432
    %6446 = vmatpush.bf16.msra.mxu0 %v4428
    %6447 = vmatpush.bf16.msra.mxu0 %v4424
    %6448 = vmatpush.bf16.msra.mxu0 %v4420
    %6449 = vmatpush.bf16.msra.mxu0 %v4416
    %6450 = vmatpush.bf16.msra.mxu0 %v4412
    %6451 = vmatpush.bf16.msra.mxu0 %v4408
    %6452 = vmatpush.bf16.msra.mxu0 %v4404
    %6453 = vmatmul.bf16.gmra.mxu0 %v6379
    %v6454 = vpop.f32.mrf.mxu0
    %v6455 = vadd.f32 %v6442, %v6454
    %v6456 = vpop.f32.mrf.mxu0
    %6457 = vdwg.mxu0
    %6458 = vmatpush.bf16.msra.mxu0 %v4401
    %6459 = vmatpush.bf16.msra.mxu0 %v4397
    %6460 = vmatpush.bf16.msra.mxu0 %v4393
    %6461 = vmatpush.bf16.msra.mxu0 %v4389
    %6462 = vmatpush.bf16.msra.mxu0 %v4385
    %6463 = vmatpush.bf16.msra.mxu0 %v4381
    %6464 = vmatpush.bf16.msra.mxu0 %v4377
    %6465 = vmatpush.bf16.msra.mxu0 %v4373
    %6466 = vmatmul.bf16.gmra.mxu0 %v6378
    %v6467 = vpop.f32.mrf.mxu0
    %v6468 = vadd.f32 0.0, %v6467
    %v6469 = vpop.f32.mrf.mxu0
    %6470 = vdwg.mxu0
    %6471 = vmatpush.bf16.msra.mxu0 %v4433
    %6472 = vmatpush.bf16.msra.mxu0 %v4429
    %6473 = vmatpush.bf16.msra.mxu0 %v4425
    %6474 = vmatpush.bf16.msra.mxu0 %v4421
    %6475 = vmatpush.bf16.msra.mxu0 %v4417
    %6476 = vmatpush.bf16.msra.mxu0 %v4413
    %6477 = vmatpush.bf16.msra.mxu0 %v4409
    %6478 = vmatpush.bf16.msra.mxu0 %v4405
    %6479 = vmatmul.bf16.gmra.mxu0 %v6379
    %v6480 = vpop.f32.mrf.mxu0
    %v6481 = vadd.f32 %v6468, %v6480
    %v6482 = vpop.f32.mrf.mxu0
    %6483 = vdwg.mxu0
    %s6484 = scalar_lea.vmem %s12, 8
    %v6485 = vld [vmem:[%s6484] sm:$0xff]
    %v6486 = vadd.f32 %v5427, %v5949
    %v6487 = vadd.f32 %v5428, %v6027
    %v6488 = vadd.f32 %v5429, %v6105
    %v6489 = vadd.f32 %v5430, %v6183
    %v6490 = vadd.f32 %v6486, %v6403
    %v6491 = vadd.f32 %v6487, %v6429
    %v6492 = vadd.f32 %v6488, %v6455
    %v6493 = vadd.f32 %v6489, %v6481
    %v6495 = vsel %vm4611, %v6485, 0
    %v6498 = vsel %vm946, %v6490, 0
    %v6501 = vsel %vm946, %v6491, 0
    %v6504 = vsel %vm946, %v6492, 0
    %v6507 = vsel %vm946, %v6493, 0
    %6509 = vmatpush.msra.mxu0 0.0
    %6510 = vmatpush.msra.mxu0 0.0
    %6511 = vmatpush.msra.mxu0 0.0
    %6512 = vmatpush.msra.mxu0 0.0
    %6513 = vmatpush.msra.mxu0 0.0
    %6514 = vmatpush.msra.mxu0 0.0
    %6515 = vmatpush.msra.mxu0 0.0
    %6516 = vmatpush.msra.mxu0 0.0
    %6517 = vmatpush.msra.mxu0 0.0
    %6518 = vmatpush.msra.mxu0 0.0
    %6519 = vmatpush.msra.mxu0 0.0
    %6520 = vmatpush.msra.mxu0 0.0
    %6521 = vmatpush.msra.mxu0 0.0
    %6522 = vmatpush.msra.mxu0 0.0
    %6523 = vmatpush.msra.mxu0 0.0
    %6524 = vmatpush.msra.mxu0 %v6498
    %6525 = vmatmul.f32.gmra.mxu0 %v6495
    %v6526 = vpop.f32.mrf.mxu0
    %v6527 = vadd.f32 0.0, %v6526
    %6528 = vdwg.mxu0
    %6529 = vmatpush.msra.mxu0 0.0
    %6530 = vmatpush.msra.mxu0 0.0
    %6531 = vmatpush.msra.mxu0 0.0
    %6532 = vmatpush.msra.mxu0 0.0
    %6533 = vmatpush.msra.mxu0 0.0
    %6534 = vmatpush.msra.mxu0 0.0
    %6535 = vmatpush.msra.mxu0 0.0
    %6536 = vmatpush.msra.mxu0 0.0
    %6537 = vmatpush.msra.mxu0 0.0
    %6538 = vmatpush.msra.mxu0 0.0
    %6539 = vmatpush.msra.mxu0 0.0
    %6540 = vmatpush.msra.mxu0 0.0
    %6541 = vmatpush.msra.mxu0 0.0
    %6542 = vmatpush.msra.mxu0 0.0
    %6543 = vmatpush.msra.mxu0 0.0
    %6544 = vmatpush.msra.mxu0 %v6501
    %6545 = vmatmul.f32.gmra.mxu0 %v6495
    %v6546 = vpop.f32.mrf.mxu0
    %v6547 = vadd.f32 0.0, %v6546
    %6548 = vdwg.mxu0
    %6549 = vmatpush.msra.mxu0 0.0
    %6550 = vmatpush.msra.mxu0 0.0
    %6551 = vmatpush.msra.mxu0 0.0
    %6552 = vmatpush.msra.mxu0 0.0
    %6553 = vmatpush.msra.mxu0 0.0
    %6554 = vmatpush.msra.mxu0 0.0
    %6555 = vmatpush.msra.mxu0 0.0
    %6556 = vmatpush.msra.mxu0 0.0
    %6557 = vmatpush.msra.mxu0 0.0
    %6558 = vmatpush.msra.mxu0 0.0
    %6559 = vmatpush.msra.mxu0 0.0
    %6560 = vmatpush.msra.mxu0 0.0
    %6561 = vmatpush.msra.mxu0 0.0
    %6562 = vmatpush.msra.mxu0 0.0
    %6563 = vmatpush.msra.mxu0 0.0
    %6564 = vmatpush.msra.mxu0 %v6504
    %6565 = vmatmul.f32.gmra.mxu0 %v6495
    %v6566 = vpop.f32.mrf.mxu0
    %v6567 = vadd.f32 0.0, %v6566
    %6568 = vdwg.mxu0
    %6569 = vmatpush.msra.mxu0 0.0
    %6570 = vmatpush.msra.mxu0 0.0
    %6571 = vmatpush.msra.mxu0 0.0
    %6572 = vmatpush.msra.mxu0 0.0
    %6573 = vmatpush.msra.mxu0 0.0
    %6574 = vmatpush.msra.mxu0 0.0
    %6575 = vmatpush.msra.mxu0 0.0
    %6576 = vmatpush.msra.mxu0 0.0
    %6577 = vmatpush.msra.mxu0 0.0
    %6578 = vmatpush.msra.mxu0 0.0
    %6579 = vmatpush.msra.mxu0 0.0
    %6580 = vmatpush.msra.mxu0 0.0
    %6581 = vmatpush.msra.mxu0 0.0
    %6582 = vmatpush.msra.mxu0 0.0
    %6583 = vmatpush.msra.mxu0 0.0
    %6584 = vmatpush.msra.mxu0 %v6507
    %6585 = vmatmul.f32.gmra.mxu0 %v6495
    %v6586 = vpop.f32.mrf.mxu0
    %v6587 = vadd.f32 0.0, %v6586
    %6588 = vdwg.mxu0
    %v6589 = vadd.f32 %v5146, %v6527
    %v6590 = vadd.f32 %v5192, %v6547
    %v6591 = vadd.f32 %v5238, %v6567
    %v6592 = vadd.f32 %v5284, %v6587
    %v6593 = vmul.f32 %v5143, %v5143
    %v6594 = vmul.f32 %v5189, %v5189
    %v6595 = vmul.f32 %v5235, %v5235
    %v6596 = vmul.f32 %v5281, %v5281
    %v6597 = vmul.f32 %v6589, %v6589
    %v6598 = vmul.f32 %v6590, %v6590
    %v6599 = vmul.f32 %v6591, %v6591
    %v6600 = vmul.f32 %v6592, %v6592
    %v6601 = vadd.f32 %v5143, %v5189
    %v6602 = vadd.f32 %v6601, %v5235
    %v6603 = vadd.f32 %v6602, %v5281
    %6604 = vadd.xlane.f32.xlu0 %v6603
    %v6605 = vpop.xlane.xlu0 %6604
    %v6606 = vadd.f32 %v6589, %v6590
    %v6607 = vadd.f32 %v6606, %v6591
    %v6608 = vadd.f32 %v6607, %v6592
    %6609 = vadd.xlane.f32.xlu0 %v6608
    %v6610 = vpop.xlane.xlu0 %6609
    %v6611 = vadd.f32 %v6593, %v6594
    %v6612 = vadd.f32 %v6611, %v6595
    %v6613 = vadd.f32 %v6612, %v6596
    %6614 = vadd.xlane.f32.xlu0 %v6613
    %v6615 = vpop.xlane.xlu0 %6614
    %v6616 = vadd.f32 %v6597, %v6598
    %v6617 = vadd.f32 %v6616, %v6599
    %v6618 = vadd.f32 %v6617, %v6600
    %6619 = vadd.xlane.f32.xlu0 %v6618
    %v6620 = vpop.xlane.xlu0 %6619
    %v6621 = vmul.f32 %v6605, 0.001953125
    %v6622 = vmul.f32 %v6610, 0.001953125
    %v6623 = vmul.f32 %v6615, 0.001953125
    %v6624 = vmul.f32 %v6620, 0.001953125
    %v6625 = vmul.f32 %v6621, %v6621
    %v6626 = vmul.f32 %v6622, %v6622
    %v6627 = vsub.f32 %v6623, %v6625
    %v6628 = vsub.f32 %v6624, %v6626
    %v6629 = vsub.f32 %v5143, %v6621
    %v6630 = vsub.f32 %v5189, %v6621
    %v6631 = vsub.f32 %v5235, %v6621
    %v6632 = vsub.f32 %v5281, %v6621
    %v6633 = vsub.f32 %v6589, %v6622
    %v6634 = vsub.f32 %v6590, %v6622
    %v6635 = vsub.f32 %v6591, %v6622
    %v6636 = vsub.f32 %v6592, %v6622
    %v6637 = vadd.f32 %v6627, 1e-05
    %v6638 = vadd.f32 %v6628, 1e-05
    %v6639 = vrsqrt.pop %v6637
    %v6640 = vmul.f32 %v6639, %v6637
    %v6641 = vmul.f32 %v6640, %v6639
    %v6642 = vmul.f32 0.5, %v6641
    %v6643 = vsub.f32 1.5, %v6642
    %v6644 = vmul.f32 %v6639, %v6643
    %vm6645 = vweird.f32 %v6637
    %vm6646 = vweird.f32 %v6639
    %vm6647 = vmor %vm6645, %vm6646
    %v6648 = vsel %vm6647, %v6639, %v6644
    %v6649 = vrsqrt.pop %v6638
    %v6650 = vmul.f32 %v6649, %v6638
    %v6651 = vmul.f32 %v6650, %v6649
    %v6652 = vmul.f32 0.5, %v6651
    %v6653 = vsub.f32 1.5, %v6652
    %v6654 = vmul.f32 %v6649, %v6653
    %vm6655 = vweird.f32 %v6638
    %vm6656 = vweird.f32 %v6649
    %vm6657 = vmor %vm6655, %vm6656
    %v6658 = vsel %vm6657, %v6649, %v6654
    %v6659 = vmul.f32 %v6629, %v6648
    %v6660 = vmul.f32 %v6630, %v6648
    %v6661 = vmul.f32 %v6631, %v6648
    %v6662 = vmul.f32 %v6632, %v6648
    %v6663 = vmul.f32 %v6633, %v6658
    %v6664 = vmul.f32 %v6634, %v6658
    %v6665 = vmul.f32 %v6635, %v6658
    %v6666 = vmul.f32 %v6636, %v6658
    %v6667 = vmax.f32 %v6659, 0.0
    %v6668 = vmax.f32 %v6660, 0.0
    %v6669 = vmax.f32 %v6661, 0.0
    %v6670 = vmax.f32 %v6662, 0.0
    %v6671 = vmax.f32 %v6663, 0.0
    %v6672 = vmax.f32 %v6664, 0.0
    %v6673 = vmax.f32 %v6665, 0.0
    %v6674 = vmax.f32 %v6666, 0.0
    %s6675 = scalar_lea.vmem %s8, 16
    %v6676 = vld [vmem:[%s6675] sm:$0xff]
    %v6677 = vld [vmem:[%s6675 + $0x8] sm:$0xff]
    %s6678 = scalar_lea.vmem %s9, 16
    %v6679 = vld [vmem:[%s6678] sm:$0xff]
    %v6680 = vld [vmem:[%s6678 + $0x8] sm:$0xff]
    %v6682 = vsel %vm649, %v6679, 0
    %v6685 = vsel %vm649, %v6680, 0
    %6687 = vmatpush.msra.mxu0 0.0
    %6688 = vmatpush.msra.mxu0 0.0
    %6689 = vmatpush.msra.mxu0 0.0
    %6690 = vmatpush.msra.mxu0 0.0
    %6691 = vmatpush.msra.mxu0 0.0
    %6692 = vmatpush.msra.mxu0 0.0
    %6693 = vmatpush.msra.mxu0 0.0
    %6694 = vmatpush.msra.mxu0 0.0
    %6695 = vmatpush.msra.mxu0 0.0
    %6696 = vmatpush.msra.mxu0 0.0
    %6697 = vmatpush.msra.mxu0 0.0
    %6698 = vmatpush.msra.mxu0 0.0
    %6699 = vmatpush.msra.mxu0 0.0
    %6700 = vmatpush.msra.mxu0 0.0
    %6701 = vmatpush.msra.mxu0 0.0
    %6702 = vmatpush.msra.mxu0 %v6671
    %6703 = vmatmul.f32.gmra.mxu0 %v6682
    %v6704 = vpop.f32.mrf.mxu0
    %v6705 = vadd.f32 0.0, %v6704
    %6706 = vmatmul.f32.gmra.mxu0 %v6685
    %v6707 = vpop.f32.mrf.mxu0
    %v6708 = vadd.f32 0.0, %v6707
    %6709 = vdwg.mxu0
    %6710 = vmatpush.msra.mxu0 0.0
    %6711 = vmatpush.msra.mxu0 0.0
    %6712 = vmatpush.msra.mxu0 0.0
    %6713 = vmatpush.msra.mxu0 0.0
    %6714 = vmatpush.msra.mxu0 0.0
    %6715 = vmatpush.msra.mxu0 0.0
    %6716 = vmatpush.msra.mxu0 0.0
    %6717 = vmatpush.msra.mxu0 0.0
    %6718 = vmatpush.msra.mxu0 0.0
    %6719 = vmatpush.msra.mxu0 0.0
    %6720 = vmatpush.msra.mxu0 0.0
    %6721 = vmatpush.msra.mxu0 0.0
    %6722 = vmatpush.msra.mxu0 0.0
    %6723 = vmatpush.msra.mxu0 0.0
    %6724 = vmatpush.msra.mxu0 0.0
    %6725 = vmatpush.msra.mxu0 %v6672
    %6726 = vmatmul.f32.gmra.mxu0 %v6682
    %v6727 = vpop.f32.mrf.mxu0
    %v6728 = vadd.f32 0.0, %v6727
    %6729 = vmatmul.f32.gmra.mxu0 %v6685
    %v6730 = vpop.f32.mrf.mxu0
    %v6731 = vadd.f32 0.0, %v6730
    %6732 = vdwg.mxu0
    %6733 = vmatpush.msra.mxu0 0.0
    %6734 = vmatpush.msra.mxu0 0.0
    %6735 = vmatpush.msra.mxu0 0.0
    %6736 = vmatpush.msra.mxu0 0.0
    %6737 = vmatpush.msra.mxu0 0.0
    %6738 = vmatpush.msra.mxu0 0.0
    %6739 = vmatpush.msra.mxu0 0.0
    %6740 = vmatpush.msra.mxu0 0.0
    %6741 = vmatpush.msra.mxu0 0.0
    %6742 = vmatpush.msra.mxu0 0.0
    %6743 = vmatpush.msra.mxu0 0.0
    %6744 = vmatpush.msra.mxu0 0.0
    %6745 = vmatpush.msra.mxu0 0.0
    %6746 = vmatpush.msra.mxu0 0.0
    %6747 = vmatpush.msra.mxu0 0.0
    %6748 = vmatpush.msra.mxu0 %v6673
    %6749 = vmatmul.f32.gmra.mxu0 %v6682
    %v6750 = vpop.f32.mrf.mxu0
    %v6751 = vadd.f32 0.0, %v6750
    %6752 = vmatmul.f32.gmra.mxu0 %v6685
    %v6753 = vpop.f32.mrf.mxu0
    %v6754 = vadd.f32 0.0, %v6753
    %6755 = vdwg.mxu0
    %6756 = vmatpush.msra.mxu0 0.0
    %6757 = vmatpush.msra.mxu0 0.0
    %6758 = vmatpush.msra.mxu0 0.0
    %6759 = vmatpush.msra.mxu0 0.0
    %6760 = vmatpush.msra.mxu0 0.0
    %6761 = vmatpush.msra.mxu0 0.0
    %6762 = vmatpush.msra.mxu0 0.0
    %6763 = vmatpush.msra.mxu0 0.0
    %6764 = vmatpush.msra.mxu0 0.0
    %6765 = vmatpush.msra.mxu0 0.0
    %6766 = vmatpush.msra.mxu0 0.0
    %6767 = vmatpush.msra.mxu0 0.0
    %6768 = vmatpush.msra.mxu0 0.0
    %6769 = vmatpush.msra.mxu0 0.0
    %6770 = vmatpush.msra.mxu0 0.0
    %6771 = vmatpush.msra.mxu0 %v6674
    %6772 = vmatmul.f32.gmra.mxu0 %v6682
    %v6773 = vpop.f32.mrf.mxu0
    %v6774 = vadd.f32 0.0, %v6773
    %6775 = vmatmul.f32.gmra.mxu0 %v6685
    %v6776 = vpop.f32.mrf.mxu0
    %v6777 = vadd.f32 0.0, %v6776
    %6778 = vdwg.mxu0
    %v6780 = vsel %vm649, %v6676, 0
    %v6783 = vsel %vm649, %v6677, 0
    %6785 = vmatpush.msra.mxu0 0.0
    %6786 = vmatpush.msra.mxu0 0.0
    %6787 = vmatpush.msra.mxu0 0.0
    %6788 = vmatpush.msra.mxu0 0.0
    %6789 = vmatpush.msra.mxu0 0.0
    %6790 = vmatpush.msra.mxu0 0.0
    %6791 = vmatpush.msra.mxu0 0.0
    %6792 = vmatpush.msra.mxu0 0.0
    %6793 = vmatpush.msra.mxu0 0.0
    %6794 = vmatpush.msra.mxu0 0.0
    %6795 = vmatpush.msra.mxu0 0.0
    %6796 = vmatpush.msra.mxu0 0.0
    %6797 = vmatpush.msra.mxu0 0.0
    %6798 = vmatpush.msra.mxu0 0.0
    %6799 = vmatpush.msra.mxu0 0.0
    %6800 = vmatpush.msra.mxu0 %v6667
    %6801 = vmatmul.f32.gmra.mxu0 %v6780
    %v6802 = vpop.f32.mrf.mxu0
    %v6803 = vadd.f32 %v6705, %v6802
    %6804 = vmatmul.f32.gmra.mxu0 %v6783
    %v6805 = vpop.f32.mrf.mxu0
    %v6806 = vadd.f32 %v6708, %v6805
    %6807 = vdwg.mxu0
    %6808 = vmatpush.msra.mxu0 0.0
    %6809 = vmatpush.msra.mxu0 0.0
    %6810 = vmatpush.msra.mxu0 0.0
    %6811 = vmatpush.msra.mxu0 0.0
    %6812 = vmatpush.msra.mxu0 0.0
    %6813 = vmatpush.msra.mxu0 0.0
    %6814 = vmatpush.msra.mxu0 0.0
    %6815 = vmatpush.msra.mxu0 0.0
    %6816 = vmatpush.msra.mxu0 0.0
    %6817 = vmatpush.msra.mxu0 0.0
    %6818 = vmatpush.msra.mxu0 0.0
    %6819 = vmatpush.msra.mxu0 0.0
    %6820 = vmatpush.msra.mxu0 0.0
    %6821 = vmatpush.msra.mxu0 0.0
    %6822 = vmatpush.msra.mxu0 0.0
    %6823 = vmatpush.msra.mxu0 %v6668
    %6824 = vmatmul.f32.gmra.mxu0 %v6780
    %v6825 = vpop.f32.mrf.mxu0
    %v6826 = vadd.f32 %v6728, %v6825
    %6827 = vmatmul.f32.gmra.mxu0 %v6783
    %v6828 = vpop.f32.mrf.mxu0
    %v6829 = vadd.f32 %v6731, %v6828
    %6830 = vdwg.mxu0
    %6831 = vmatpush.msra.mxu0 0.0
    %6832 = vmatpush.msra.mxu0 0.0
    %6833 = vmatpush.msra.mxu0 0.0
    %6834 = vmatpush.msra.mxu0 0.0
    %6835 = vmatpush.msra.mxu0 0.0
    %6836 = vmatpush.msra.mxu0 0.0
    %6837 = vmatpush.msra.mxu0 0.0
    %6838 = vmatpush.msra.mxu0 0.0
    %6839 = vmatpush.msra.mxu0 0.0
    %6840 = vmatpush.msra.mxu0 0.0
    %6841 = vmatpush.msra.mxu0 0.0
    %6842 = vmatpush.msra.mxu0 0.0
    %6843 = vmatpush.msra.mxu0 0.0
    %6844 = vmatpush.msra.mxu0 0.0
    %6845 = vmatpush.msra.mxu0 0.0
    %6846 = vmatpush.msra.mxu0 %v6669
    %6847 = vmatmul.f32.gmra.mxu0 %v6780
    %v6848 = vpop.f32.mrf.mxu0
    %v6849 = vadd.f32 %v6751, %v6848
    %6850 = vmatmul.f32.gmra.mxu0 %v6783
    %v6851 = vpop.f32.mrf.mxu0
    %v6852 = vadd.f32 %v6754, %v6851
    %6853 = vdwg.mxu0
    %6854 = vmatpush.msra.mxu0 0.0
    %6855 = vmatpush.msra.mxu0 0.0
    %6856 = vmatpush.msra.mxu0 0.0
    %6857 = vmatpush.msra.mxu0 0.0
    %6858 = vmatpush.msra.mxu0 0.0
    %6859 = vmatpush.msra.mxu0 0.0
    %6860 = vmatpush.msra.mxu0 0.0
    %6861 = vmatpush.msra.mxu0 0.0
    %6862 = vmatpush.msra.mxu0 0.0
    %6863 = vmatpush.msra.mxu0 0.0
    %6864 = vmatpush.msra.mxu0 0.0
    %6865 = vmatpush.msra.mxu0 0.0
    %6866 = vmatpush.msra.mxu0 0.0
    %6867 = vmatpush.msra.mxu0 0.0
    %6868 = vmatpush.msra.mxu0 0.0
    %6869 = vmatpush.msra.mxu0 %v6670
    %6870 = vmatmul.f32.gmra.mxu0 %v6780
    %v6871 = vpop.f32.mrf.mxu0
    %v6872 = vadd.f32 %v6774, %v6871
    %6873 = vmatmul.f32.gmra.mxu0 %v6783
    %v6874 = vpop.f32.mrf.mxu0
    %v6875 = vadd.f32 %v6777, %v6874
    %6876 = vdwg.mxu0
    %s6877 = scalar_lea.vmem [#allocation7], 8
    %v6878 = vld [vmem:[%s6877] sm:$0xf]
    %v6880 = vsel %vm649, %v6878, 0
    %6882 = vmatpush.msra.mxu0 0.0
    %6883 = vmatpush.msra.mxu0 0.0
    %6884 = vmatpush.msra.mxu0 0.0
    %6885 = vmatpush.msra.mxu0 0.0
    %6886 = vmatpush.msra.mxu0 0.0
    %6887 = vmatpush.msra.mxu0 0.0
    %6888 = vmatpush.msra.mxu0 0.0
    %6889 = vmatpush.msra.mxu0 0.0
    %6890 = vmatpush.msra.mxu0 0.0
    %6891 = vmatpush.msra.mxu0 0.0
    %6892 = vmatpush.msra.mxu0 0.0
    %6893 = vmatpush.msra.mxu0 0.0
    %6894 = vmatpush.msra.mxu0 0.0
    %6895 = vmatpush.msra.mxu0 0.0
    %6896 = vmatpush.msra.mxu0 0.0
    %6897 = vmatpush.msra.mxu0 %v6671
    %6898 = vmatmul.f32.gmra.mxu0 %v6880
    %v6899 = vpop.f32.mrf.mxu0
    %v6900 = vadd.f32 0.0, %v6899
    %6901 = vdwg.mxu0
    %6902 = vmatpush.msra.mxu0 0.0
    %6903 = vmatpush.msra.mxu0 0.0
    %6904 = vmatpush.msra.mxu0 0.0
    %6905 = vmatpush.msra.mxu0 0.0
    %6906 = vmatpush.msra.mxu0 0.0
    %6907 = vmatpush.msra.mxu0 0.0
    %6908 = vmatpush.msra.mxu0 0.0
    %6909 = vmatpush.msra.mxu0 0.0
    %6910 = vmatpush.msra.mxu0 0.0
    %6911 = vmatpush.msra.mxu0 0.0
    %6912 = vmatpush.msra.mxu0 0.0
    %6913 = vmatpush.msra.mxu0 0.0
    %6914 = vmatpush.msra.mxu0 0.0
    %6915 = vmatpush.msra.mxu0 0.0
    %6916 = vmatpush.msra.mxu0 0.0
    %6917 = vmatpush.msra.mxu0 %v6672
    %6918 = vmatmul.f32.gmra.mxu0 %v6880
    %v6919 = vpop.f32.mrf.mxu0
    %v6920 = vadd.f32 0.0, %v6919
    %6921 = vdwg.mxu0
    %6922 = vmatpush.msra.mxu0 0.0
    %6923 = vmatpush.msra.mxu0 0.0
    %6924 = vmatpush.msra.mxu0 0.0
    %6925 = vmatpush.msra.mxu0 0.0
    %6926 = vmatpush.msra.mxu0 0.0
    %6927 = vmatpush.msra.mxu0 0.0
    %6928 = vmatpush.msra.mxu0 0.0
    %6929 = vmatpush.msra.mxu0 0.0
    %6930 = vmatpush.msra.mxu0 0.0
    %6931 = vmatpush.msra.mxu0 0.0
    %6932 = vmatpush.msra.mxu0 0.0
    %6933 = vmatpush.msra.mxu0 0.0
    %6934 = vmatpush.msra.mxu0 0.0
    %6935 = vmatpush.msra.mxu0 0.0
    %6936 = vmatpush.msra.mxu0 0.0
    %6937 = vmatpush.msra.mxu0 %v6673
    %6938 = vmatmul.f32.gmra.mxu0 %v6880
    %v6939 = vpop.f32.mrf.mxu0
    %v6940 = vadd.f32 0.0, %v6939
    %6941 = vdwg.mxu0
    %6942 = vmatpush.msra.mxu0 0.0
    %6943 = vmatpush.msra.mxu0 0.0
    %6944 = vmatpush.msra.mxu0 0.0
    %6945 = vmatpush.msra.mxu0 0.0
    %6946 = vmatpush.msra.mxu0 0.0
    %6947 = vmatpush.msra.mxu0 0.0
    %6948 = vmatpush.msra.mxu0 0.0
    %6949 = vmatpush.msra.mxu0 0.0
    %6950 = vmatpush.msra.mxu0 0.0
    %6951 = vmatpush.msra.mxu0 0.0
    %6952 = vmatpush.msra.mxu0 0.0
    %6953 = vmatpush.msra.mxu0 0.0
    %6954 = vmatpush.msra.mxu0 0.0
    %6955 = vmatpush.msra.mxu0 0.0
    %6956 = vmatpush.msra.mxu0 0.0
    %6957 = vmatpush.msra.mxu0 %v6674
    %6958 = vmatmul.f32.gmra.mxu0 %v6880
    %v6959 = vpop.f32.mrf.mxu0
    %v6960 = vadd.f32 0.0, %v6959
    %6961 = vdwg.mxu0
    %v6962 = vmul.f32 %v6900, %v6900
    %v6963 = vmul.f32 %v6920, %v6920
    %v6964 = vmul.f32 %v6940, %v6940
    %v6965 = vmul.f32 %v6960, %v6960
    %v6970 = vrot.slane %v6962, 4
    %v6971 = vrot.slane %v6963, 4
    %v6972 = vrot.slane %v6964, 4
    %v6973 = vrot.slane %v6965, 4
    %v6978 = vsel %vm946, %v6900, %v6970
    %v6979 = vsel %vm946, %v6920, %v6971
    %v6980 = vsel %vm946, %v6940, %v6972
    %v6981 = vsel %vm946, %v6960, %v6973
    %v6982 = vadd.f32 %v6978, %v6979
    %v6983 = vadd.f32 %v6982, %v6980
    %v6984 = vadd.f32 %v6983, %v6981
    %6985 = vadd.xlane.f32.xlu0 %v6984
    %v6986 = vpop.xlane.xlu0 %6985
    %v6987 = vmul.f32 %v6986, 0.001953125
    %v6988 = vmul.f32 %v6987, %v6987
    %v6990 = vrot.slane %v6988, 4
    %v6992 = vsub.f32 %v6987, %v6990
    %v6993 = vsub.f32 %v6900, %v6987
    %v6994 = vsub.f32 %v6920, %v6987
    %v6995 = vsub.f32 %v6940, %v6987
    %v6996 = vsub.f32 %v6960, %v6987
    %v6997 = vadd.f32 %v6992, 1e-05
    %v6998 = vrsqrt.pop %v6997
    %v6999 = vmul.f32 %v6998, %v6997
    %v7000 = vmul.f32 %v6999, %v6998
    %v7001 = vmul.f32 0.5, %v7000
    %v7002 = vsub.f32 1.5, %v7001
    %v7003 = vmul.f32 %v6998, %v7002
    %vm7004 = vweird.f32 %v6997
    %vm7005 = vweird.f32 %v6998
    %vm7006 = vmor %vm7004, %vm7005
    %v7007 = vsel %vm7006, %v6998, %v7003
    %7009 = vset.pattern.permute.xlu0 0
    %7010 = vperm.xlu0 %7009, %v7007
    %v7011 = vpop.permute.xlu0 %7010
    %v7012 = vrot.slane %v7011, 4
    %v7014 = vmul.f32 %v6993, %v7012
    %v7015 = vmul.f32 %v6994, %v7012
    %v7016 = vmul.f32 %v6995, %v7012
    %v7017 = vmul.f32 %v6996, %v7012
    %v7018 = vmax.f32 %v7014, 0.0
    %v7019 = vmax.f32 %v7015, 0.0
    %v7020 = vmax.f32 %v7016, 0.0
    %v7021 = vmax.f32 %v7017, 0.0
    %s7022 = scalar_lea.vmem %s13, 16
    %v7023 = vld [vmem:[%s7022] sm:$0xff]
    %v7024 = vpack.c.bf16 %v7018, %v7018
    %v7025 = vpack.c.bf16 %v7019, %v7019
    %v7026 = vpack.c.bf16 %v7020, %v7020
    %v7027 = vpack.c.bf16 %v7021, %v7021
    %7028 = vmatpush.bf16.msra.mxu0 %v1614
    %7029 = vmatpush.bf16.msra.mxu0 %v1608
    %7030 = vmatpush.bf16.msra.mxu0 %v1602
    %7031 = vmatpush.bf16.msra.mxu0 %v1596
    %7032 = vmatpush.bf16.msra.mxu0 %v1590
    %7033 = vmatpush.bf16.msra.mxu0 %v1584
    %7034 = vmatpush.bf16.msra.mxu0 %v1578
    %7035 = vmatpush.bf16.msra.mxu0 %v1572
    %7036 = vmatmul.bf16.gmra.mxu0 %v7024
    %v7037 = vpop.f32.mrf.mxu0
    %v7038 = vadd.f32 0.0, %v7037
    %v7039 = vpop.f32.mrf.mxu0
    %7040 = vdwg.mxu0
    %7041 = vmatpush.bf16.msra.mxu0 %v1662
    %7042 = vmatpush.bf16.msra.mxu0 %v1656
    %7043 = vmatpush.bf16.msra.mxu0 %v1650
    %7044 = vmatpush.bf16.msra.mxu0 %v1644
    %7045 = vmatpush.bf16.msra.mxu0 %v1638
    %7046 = vmatpush.bf16.msra.mxu0 %v1632
    %7047 = vmatpush.bf16.msra.mxu0 %v1626
    %7048 = vmatpush.bf16.msra.mxu0 %v1620
    %7049 = vmatmul.bf16.gmra.mxu0 %v7025
    %v7050 = vpop.f32.mrf.mxu0
    %v7051 = vadd.f32 %v7038, %v7050
    %v7052 = vpop.f32.mrf.mxu0
    %7053 = vdwg.mxu0
    %7054 = vmatpush.bf16.msra.mxu0 %v1710
    %7055 = vmatpush.bf16.msra.mxu0 %v1704
    %7056 = vmatpush.bf16.msra.mxu0 %v1698
    %7057 = vmatpush.bf16.msra.mxu0 %v1692
    %7058 = vmatpush.bf16.msra.mxu0 %v1686
    %7059 = vmatpush.bf16.msra.mxu0 %v1680
    %7060 = vmatpush.bf16.msra.mxu0 %v1674
    %7061 = vmatpush.bf16.msra.mxu0 %v1668
    %7062 = vmatmul.bf16.gmra.mxu0 %v7026
    %v7063 = vpop.f32.mrf.mxu0
    %v7064 = vadd.f32 %v7051, %v7063
    %v7065 = vpop.f32.mrf.mxu0
    %7066 = vdwg.mxu0
    %7067 = vmatpush.bf16.msra.mxu0 %v1758
    %7068 = vmatpush.bf16.msra.mxu0 %v1752
    %7069 = vmatpush.bf16.msra.mxu0 %v1746
    %7070 = vmatpush.bf16.msra.mxu0 %v1740
    %7071 = vmatpush.bf16.msra.mxu0 %v1734
    %7072 = vmatpush.bf16.msra.mxu0 %v1728
    %7073 = vmatpush.bf16.msra.mxu0 %v1722
    %7074 = vmatpush.bf16.msra.mxu0 %v1716
    %7075 = vmatmul.bf16.gmra.mxu0 %v7027
    %v7076 = vpop.f32.mrf.mxu0
    %v7077 = vadd.f32 %v7064, %v7076
    %v7078 = vpop.f32.mrf.mxu0
    %7079 = vdwg.mxu0
    %7080 = vmatpush.bf16.msra.mxu0 %v1615
    %7081 = vmatpush.bf16.msra.mxu0 %v1609
    %7082 = vmatpush.bf16.msra.mxu0 %v1603
    %7083 = vmatpush.bf16.msra.mxu0 %v1597
    %7084 = vmatpush.bf16.msra.mxu0 %v1591
    %7085 = vmatpush.bf16.msra.mxu0 %v1585
    %7086 = vmatpush.bf16.msra.mxu0 %v1579
    %7087 = vmatpush.bf16.msra.mxu0 %v1573
    %7088 = vmatmul.bf16.gmra.mxu0 %v7024
    %v7089 = vpop.f32.mrf.mxu0
    %v7090 = vadd.f32 0.0, %v7089
    %v7091 = vpop.f32.mrf.mxu0
    %7092 = vdwg.mxu0
    %7093 = vmatpush.bf16.msra.mxu0 %v1663
    %7094 = vmatpush.bf16.msra.mxu0 %v1657
    %7095 = vmatpush.bf16.msra.mxu0 %v1651
    %7096 = vmatpush.bf16.msra.mxu0 %v1645
    %7097 = vmatpush.bf16.msra.mxu0 %v1639
    %7098 = vmatpush.bf16.msra.mxu0 %v1633
    %7099 = vmatpush.bf16.msra.mxu0 %v1627
    %7100 = vmatpush.bf16.msra.mxu0 %v1621
    %7101 = vmatmul.bf16.gmra.mxu0 %v7025
    %v7102 = vpop.f32.mrf.mxu0
    %v7103 = vadd.f32 %v7090, %v7102
    %v7104 = vpop.f32.mrf.mxu0
    %7105 = vdwg.mxu0
    %7106 = vmatpush.bf16.msra.mxu0 %v1711
    %7107 = vmatpush.bf16.msra.mxu0 %v1705
    %7108 = vmatpush.bf16.msra.mxu0 %v1699
    %7109 = vmatpush.bf16.msra.mxu0 %v1693
    %7110 = vmatpush.bf16.msra.mxu0 %v1687
    %7111 = vmatpush.bf16.msra.mxu0 %v1681
    %7112 = vmatpush.bf16.msra.mxu0 %v1675
    %7113 = vmatpush.bf16.msra.mxu0 %v1669
    %7114 = vmatmul.bf16.gmra.mxu0 %v7026
    %v7115 = vpop.f32.mrf.mxu0
    %v7116 = vadd.f32 %v7103, %v7115
    %v7117 = vpop.f32.mrf.mxu0
    %7118 = vdwg.mxu0
    %7119 = vmatpush.bf16.msra.mxu0 %v1759
    %7120 = vmatpush.bf16.msra.mxu0 %v1753
    %7121 = vmatpush.bf16.msra.mxu0 %v1747
    %7122 = vmatpush.bf16.msra.mxu0 %v1741
    %7123 = vmatpush.bf16.msra.mxu0 %v1735
    %7124 = vmatpush.bf16.msra.mxu0 %v1729
    %7125 = vmatpush.bf16.msra.mxu0 %v1723
    %7126 = vmatpush.bf16.msra.mxu0 %v1717
    %7127 = vmatmul.bf16.gmra.mxu0 %v7027
    %v7128 = vpop.f32.mrf.mxu0
    %v7129 = vadd.f32 %v7116, %v7128
    %v7130 = vpop.f32.mrf.mxu0
    %7131 = vdwg.mxu0
    %7132 = vmatpush.bf16.msra.mxu0 %v1616
    %7133 = vmatpush.bf16.msra.mxu0 %v1610
    %7134 = vmatpush.bf16.msra.mxu0 %v1604
    %7135 = vmatpush.bf16.msra.mxu0 %v1598
    %7136 = vmatpush.bf16.msra.mxu0 %v1592
    %7137 = vmatpush.bf16.msra.mxu0 %v1586
    %7138 = vmatpush.bf16.msra.mxu0 %v1580
    %7139 = vmatpush.bf16.msra.mxu0 %v1574
    %7140 = vmatmul.bf16.gmra.mxu0 %v7024
    %v7141 = vpop.f32.mrf.mxu0
    %v7142 = vadd.f32 0.0, %v7141
    %v7143 = vpop.f32.mrf.mxu0
    %7144 = vdwg.mxu0
    %7145 = vmatpush.bf16.msra.mxu0 %v1664
    %7146 = vmatpush.bf16.msra.mxu0 %v1658
    %7147 = vmatpush.bf16.msra.mxu0 %v1652
    %7148 = vmatpush.bf16.msra.mxu0 %v1646
    %7149 = vmatpush.bf16.msra.mxu0 %v1640
    %7150 = vmatpush.bf16.msra.mxu0 %v1634
    %7151 = vmatpush.bf16.msra.mxu0 %v1628
    %7152 = vmatpush.bf16.msra.mxu0 %v1622
    %7153 = vmatmul.bf16.gmra.mxu0 %v7025
    %v7154 = vpop.f32.mrf.mxu0
    %v7155 = vadd.f32 %v7142, %v7154
    %v7156 = vpop.f32.mrf.mxu0
    %7157 = vdwg.mxu0
    %7158 = vmatpush.bf16.msra.mxu0 %v1712
    %7159 = vmatpush.bf16.msra.mxu0 %v1706
    %7160 = vmatpush.bf16.msra.mxu0 %v1700
    %7161 = vmatpush.bf16.msra.mxu0 %v1694
    %7162 = vmatpush.bf16.msra.mxu0 %v1688
    %7163 = vmatpush.bf16.msra.mxu0 %v1682
    %7164 = vmatpush.bf16.msra.mxu0 %v1676
    %7165 = vmatpush.bf16.msra.mxu0 %v1670
    %7166 = vmatmul.bf16.gmra.mxu0 %v7026
    %v7167 = vpop.f32.mrf.mxu0
    %v7168 = vadd.f32 %v7155, %v7167
    %v7169 = vpop.f32.mrf.mxu0
    %7170 = vdwg.mxu0
    %7171 = vmatpush.bf16.msra.mxu0 %v1760
    %7172 = vmatpush.bf16.msra.mxu0 %v1754
    %7173 = vmatpush.bf16.msra.mxu0 %v1748
    %7174 = vmatpush.bf16.msra.mxu0 %v1742
    %7175 = vmatpush.bf16.msra.mxu0 %v1736
    %7176 = vmatpush.bf16.msra.mxu0 %v1730
    %7177 = vmatpush.bf16.msra.mxu0 %v1724
    %7178 = vmatpush.bf16.msra.mxu0 %v1718
    %7179 = vmatmul.bf16.gmra.mxu0 %v7027
    %v7180 = vpop.f32.mrf.mxu0
    %v7181 = vadd.f32 %v7168, %v7180
    %v7182 = vpop.f32.mrf.mxu0
    %7183 = vdwg.mxu0
    %7184 = vmatpush.bf16.msra.mxu0 %v1617
    %7185 = vmatpush.bf16.msra.mxu0 %v1611
    %7186 = vmatpush.bf16.msra.mxu0 %v1605
    %7187 = vmatpush.bf16.msra.mxu0 %v1599
    %7188 = vmatpush.bf16.msra.mxu0 %v1593
    %7189 = vmatpush.bf16.msra.mxu0 %v1587
    %7190 = vmatpush.bf16.msra.mxu0 %v1581
    %7191 = vmatpush.bf16.msra.mxu0 %v1575
    %7192 = vmatmul.bf16.gmra.mxu0 %v7024
    %v7193 = vpop.f32.mrf.mxu0
    %v7194 = vadd.f32 0.0, %v7193
    %v7195 = vpop.f32.mrf.mxu0
    %7196 = vdwg.mxu0
    %7197 = vmatpush.bf16.msra.mxu0 %v1665
    %7198 = vmatpush.bf16.msra.mxu0 %v1659
    %7199 = vmatpush.bf16.msra.mxu0 %v1653
    %7200 = vmatpush.bf16.msra.mxu0 %v1647
    %7201 = vmatpush.bf16.msra.mxu0 %v1641
    %7202 = vmatpush.bf16.msra.mxu0 %v1635
    %7203 = vmatpush.bf16.msra.mxu0 %v1629
    %7204 = vmatpush.bf16.msra.mxu0 %v1623
    %7205 = vmatmul.bf16.gmra.mxu0 %v7025
    %v7206 = vpop.f32.mrf.mxu0
    %v7207 = vadd.f32 %v7194, %v7206
    %v7208 = vpop.f32.mrf.mxu0
    %7209 = vdwg.mxu0
    %7210 = vmatpush.bf16.msra.mxu0 %v1713
    %7211 = vmatpush.bf16.msra.mxu0 %v1707
    %7212 = vmatpush.bf16.msra.mxu0 %v1701
    %7213 = vmatpush.bf16.msra.mxu0 %v1695
    %7214 = vmatpush.bf16.msra.mxu0 %v1689
    %7215 = vmatpush.bf16.msra.mxu0 %v1683
    %7216 = vmatpush.bf16.msra.mxu0 %v1677
    %7217 = vmatpush.bf16.msra.mxu0 %v1671
    %7218 = vmatmul.bf16.gmra.mxu0 %v7026
    %v7219 = vpop.f32.mrf.mxu0
    %v7220 = vadd.f32 %v7207, %v7219
    %v7221 = vpop.f32.mrf.mxu0
    %7222 = vdwg.mxu0
    %7223 = vmatpush.bf16.msra.mxu0 %v1761
    %7224 = vmatpush.bf16.msra.mxu0 %v1755
    %7225 = vmatpush.bf16.msra.mxu0 %v1749
    %7226 = vmatpush.bf16.msra.mxu0 %v1743
    %7227 = vmatpush.bf16.msra.mxu0 %v1737
    %7228 = vmatpush.bf16.msra.mxu0 %v1731
    %7229 = vmatpush.bf16.msra.mxu0 %v1725
    %7230 = vmatpush.bf16.msra.mxu0 %v1719
    %7231 = vmatmul.bf16.gmra.mxu0 %v7027
    %v7232 = vpop.f32.mrf.mxu0
    %v7233 = vadd.f32 %v7220, %v7232
    %v7234 = vpop.f32.mrf.mxu0
    %7235 = vdwg.mxu0
    %7236 = vmatpush.bf16.msra.mxu0 %v1618
    %7237 = vmatpush.bf16.msra.mxu0 %v1612
    %7238 = vmatpush.bf16.msra.mxu0 %v1606
    %7239 = vmatpush.bf16.msra.mxu0 %v1600
    %7240 = vmatpush.bf16.msra.mxu0 %v1594
    %7241 = vmatpush.bf16.msra.mxu0 %v1588
    %7242 = vmatpush.bf16.msra.mxu0 %v1582
    %7243 = vmatpush.bf16.msra.mxu0 %v1576
    %7244 = vmatmul.bf16.gmra.mxu0 %v7024
    %v7245 = vpop.f32.mrf.mxu0
    %v7246 = vadd.f32 0.0, %v7245
    %v7247 = vpop.f32.mrf.mxu0
    %7248 = vdwg.mxu0
    %7249 = vmatpush.bf16.msra.mxu0 %v1666
    %7250 = vmatpush.bf16.msra.mxu0 %v1660
    %7251 = vmatpush.bf16.msra.mxu0 %v1654
    %7252 = vmatpush.bf16.msra.mxu0 %v1648
    %7253 = vmatpush.bf16.msra.mxu0 %v1642
    %7254 = vmatpush.bf16.msra.mxu0 %v1636
    %7255 = vmatpush.bf16.msra.mxu0 %v1630
    %7256 = vmatpush.bf16.msra.mxu0 %v1624
    %7257 = vmatmul.bf16.gmra.mxu0 %v7025
    %v7258 = vpop.f32.mrf.mxu0
    %v7259 = vadd.f32 %v7246, %v7258
    %v7260 = vpop.f32.mrf.mxu0
    %7261 = vdwg.mxu0
    %7262 = vmatpush.bf16.msra.mxu0 %v1714
    %7263 = vmatpush.bf16.msra.mxu0 %v1708
    %7264 = vmatpush.bf16.msra.mxu0 %v1702
    %7265 = vmatpush.bf16.msra.mxu0 %v1696
    %7266 = vmatpush.bf16.msra.mxu0 %v1690
    %7267 = vmatpush.bf16.msra.mxu0 %v1684
    %7268 = vmatpush.bf16.msra.mxu0 %v1678
    %7269 = vmatpush.bf16.msra.mxu0 %v1672
    %7270 = vmatmul.bf16.gmra.mxu0 %v7026
    %v7271 = vpop.f32.mrf.mxu0
    %v7272 = vadd.f32 %v7259, %v7271
    %v7273 = vpop.f32.mrf.mxu0
    %7274 = vdwg.mxu0
    %7275 = vmatpush.bf16.msra.mxu0 %v1762
    %7276 = vmatpush.bf16.msra.mxu0 %v1756
    %7277 = vmatpush.bf16.msra.mxu0 %v1750
    %7278 = vmatpush.bf16.msra.mxu0 %v1744
    %7279 = vmatpush.bf16.msra.mxu0 %v1738
    %7280 = vmatpush.bf16.msra.mxu0 %v1732
    %7281 = vmatpush.bf16.msra.mxu0 %v1726
    %7282 = vmatpush.bf16.msra.mxu0 %v1720
    %7283 = vmatmul.bf16.gmra.mxu0 %v7027
    %v7284 = vpop.f32.mrf.mxu0
    %v7285 = vadd.f32 %v7272, %v7284
    %v7286 = vpop.f32.mrf.mxu0
    %7287 = vdwg.mxu0
    %7288 = vmatpush.bf16.msra.mxu0 %v1619
    %7289 = vmatpush.bf16.msra.mxu0 %v1613
    %7290 = vmatpush.bf16.msra.mxu0 %v1607
    %7291 = vmatpush.bf16.msra.mxu0 %v1601
    %7292 = vmatpush.bf16.msra.mxu0 %v1595
    %7293 = vmatpush.bf16.msra.mxu0 %v1589
    %7294 = vmatpush.bf16.msra.mxu0 %v1583
    %7295 = vmatpush.bf16.msra.mxu0 %v1577
    %7296 = vmatmul.bf16.gmra.mxu0 %v7024
    %v7297 = vpop.f32.mrf.mxu0
    %v7298 = vadd.f32 0.0, %v7297
    %v7299 = vpop.f32.mrf.mxu0
    %7300 = vdwg.mxu0
    %7301 = vmatpush.bf16.msra.mxu0 %v1667
    %7302 = vmatpush.bf16.msra.mxu0 %v1661
    %7303 = vmatpush.bf16.msra.mxu0 %v1655
    %7304 = vmatpush.bf16.msra.mxu0 %v1649
    %7305 = vmatpush.bf16.msra.mxu0 %v1643
    %7306 = vmatpush.bf16.msra.mxu0 %v1637
    %7307 = vmatpush.bf16.msra.mxu0 %v1631
    %7308 = vmatpush.bf16.msra.mxu0 %v1625
    %7309 = vmatmul.bf16.gmra.mxu0 %v7025
    %v7310 = vpop.f32.mrf.mxu0
    %v7311 = vadd.f32 %v7298, %v7310
    %v7312 = vpop.f32.mrf.mxu0
    %7313 = vdwg.mxu0
    %7314 = vmatpush.bf16.msra.mxu0 %v1715
    %7315 = vmatpush.bf16.msra.mxu0 %v1709
    %7316 = vmatpush.bf16.msra.mxu0 %v1703
    %7317 = vmatpush.bf16.msra.mxu0 %v1697
    %7318 = vmatpush.bf16.msra.mxu0 %v1691
    %7319 = vmatpush.bf16.msra.mxu0 %v1685
    %7320 = vmatpush.bf16.msra.mxu0 %v1679
    %7321 = vmatpush.bf16.msra.mxu0 %v1673
    %7322 = vmatmul.bf16.gmra.mxu0 %v7026
    %v7323 = vpop.f32.mrf.mxu0
    %v7324 = vadd.f32 %v7311, %v7323
    %v7325 = vpop.f32.mrf.mxu0
    %7326 = vdwg.mxu0
    %7327 = vmatpush.bf16.msra.mxu0 %v1763
    %7328 = vmatpush.bf16.msra.mxu0 %v1757
    %7329 = vmatpush.bf16.msra.mxu0 %v1751
    %7330 = vmatpush.bf16.msra.mxu0 %v1745
    %7331 = vmatpush.bf16.msra.mxu0 %v1739
    %7332 = vmatpush.bf16.msra.mxu0 %v1733
    %7333 = vmatpush.bf16.msra.mxu0 %v1727
    %7334 = vmatpush.bf16.msra.mxu0 %v1721
    %7335 = vmatmul.bf16.gmra.mxu0 %v7027
    %v7336 = vpop.f32.mrf.mxu0
    %v7337 = vadd.f32 %v7324, %v7336
    %v7338 = vpop.f32.mrf.mxu0
    %7339 = vdwg.mxu0
    %v7343 = vrot.slane %v7233, 4
    %v7344 = vrot.slane %v7285, 4
    %v7345 = vrot.slane %v7337, 4
    %v7349 = vsel %vm946, %v7077, %v7343
    %v7350 = vsel %vm946, %v7129, %v7344
    %v7351 = vsel %vm946, %v7181, %v7345
    %v7353 = vsel %vm649, %v7023, 0
    %7355 = vmatpush.msra.mxu0 0.0
    %7356 = vmatpush.msra.mxu0 0.0
    %7357 = vmatpush.msra.mxu0 0.0
    %7358 = vmatpush.msra.mxu0 0.0
    %7359 = vmatpush.msra.mxu0 0.0
    %7360 = vmatpush.msra.mxu0 0.0
    %7361 = vmatpush.msra.mxu0 0.0
    %7362 = vmatpush.msra.mxu0 0.0
    %7363 = vmatpush.msra.mxu0 0.0
    %7364 = vmatpush.msra.mxu0 0.0
    %7365 = vmatpush.msra.mxu0 0.0
    %7366 = vmatpush.msra.mxu0 0.0
    %7367 = vmatpush.msra.mxu0 0.0
    %7368 = vmatpush.msra.mxu0 0.0
    %7369 = vmatpush.msra.mxu0 0.0
    %7370 = vmatpush.msra.mxu0 %v7349
    %7371 = vmatmul.f32.gmra.mxu0 %v7353
    %v7372 = vpop.f32.mrf.mxu0
    %v7373 = vadd.f32 0.0, %v7372
    %7374 = vdwg.mxu0
    %7375 = vmatpush.msra.mxu0 0.0
    %7376 = vmatpush.msra.mxu0 0.0
    %7377 = vmatpush.msra.mxu0 0.0
    %7378 = vmatpush.msra.mxu0 0.0
    %7379 = vmatpush.msra.mxu0 0.0
    %7380 = vmatpush.msra.mxu0 0.0
    %7381 = vmatpush.msra.mxu0 0.0
    %7382 = vmatpush.msra.mxu0 0.0
    %7383 = vmatpush.msra.mxu0 0.0
    %7384 = vmatpush.msra.mxu0 0.0
    %7385 = vmatpush.msra.mxu0 0.0
    %7386 = vmatpush.msra.mxu0 0.0
    %7387 = vmatpush.msra.mxu0 0.0
    %7388 = vmatpush.msra.mxu0 0.0
    %7389 = vmatpush.msra.mxu0 0.0
    %7390 = vmatpush.msra.mxu0 %v7350
    %7391 = vmatmul.f32.gmra.mxu0 %v7353
    %v7392 = vpop.f32.mrf.mxu0
    %v7393 = vadd.f32 0.0, %v7392
    %7394 = vdwg.mxu0
    %7395 = vmatpush.msra.mxu0 0.0
    %7396 = vmatpush.msra.mxu0 0.0
    %7397 = vmatpush.msra.mxu0 0.0
    %7398 = vmatpush.msra.mxu0 0.0
    %7399 = vmatpush.msra.mxu0 0.0
    %7400 = vmatpush.msra.mxu0 0.0
    %7401 = vmatpush.msra.mxu0 0.0
    %7402 = vmatpush.msra.mxu0 0.0
    %7403 = vmatpush.msra.mxu0 0.0
    %7404 = vmatpush.msra.mxu0 0.0
    %7405 = vmatpush.msra.mxu0 0.0
    %7406 = vmatpush.msra.mxu0 0.0
    %7407 = vmatpush.msra.mxu0 0.0
    %7408 = vmatpush.msra.mxu0 0.0
    %7409 = vmatpush.msra.mxu0 0.0
    %7410 = vmatpush.msra.mxu0 %v7351
    %7411 = vmatmul.f32.gmra.mxu0 %v7353
    %v7412 = vpop.f32.mrf.mxu0
    %v7413 = vadd.f32 0.0, %v7412
    %7414 = vdwg.mxu0
    %v7415 = vmul.f32 %v7373, %v7373
    %v7416 = vmul.f32 %v7393, %v7393
    %v7417 = vmul.f32 %v7413, %v7413
    %v7418 = vadd.f32 %v7373, %v7393
    %v7419 = vadd.f32 %v7418, %v7413
    %7420 = vadd.xlane.f32.xlu0 %v7419
    %v7421 = vpop.xlane.xlu0 %7420
    %v7422 = vadd.f32 %v7415, %v7416
    %v7423 = vadd.f32 %v7422, %v7417
    %7424 = vadd.xlane.f32.xlu0 %v7423
    %v7425 = vpop.xlane.xlu0 %7424
    %v7426 = vmul.f32 %v7421, 0.0034722222
    %v7427 = vmul.f32 %v7425, 0.0034722222
    %v7428 = vmul.f32 %v7426, %v7426
    %v7429 = vsub.f32 %v7427, %v7428
    %v7430 = vsub.f32 %v7373, %v7426
    %v7431 = vsub.f32 %v7393, %v7426
    %v7432 = vsub.f32 %v7413, %v7426
    %v7433 = vadd.f32 %v7429, 1e-05
    %v7434 = vrsqrt.pop %v7433
    %v7435 = vmul.f32 %v7434, %v7433
    %v7436 = vmul.f32 %v7435, %v7434
    %v7437 = vmul.f32 0.5, %v7436
    %v7438 = vsub.f32 1.5, %v7437
    %v7439 = vmul.f32 %v7434, %v7438
    %vm7440 = vweird.f32 %v7433
    %vm7441 = vweird.f32 %v7434
    %vm7442 = vmor %vm7440, %vm7441
    %v7443 = vsel %vm7442, %v7434, %v7439
    %v7444 = vmul.f32 %v7430, %v7443
    %v7445 = vmul.f32 %v7431, %v7443
    %v7446 = vmul.f32 %v7432, %v7443
    %v7447 = vmax.f32 %v7444, 0.0
    %v7448 = vmax.f32 %v7445, 0.0
    %v7449 = vmax.f32 %v7446, 0.0
    %v7453 = vrot.slane %v7447, 4
    %v7454 = vrot.slane %v7448, 4
    %v7455 = vrot.slane %v7449, 4
    %v7459 = vpack.c.bf16 %v7447, %v7447
    %v7460 = vpack.c.bf16 %v7448, %v7448
    %v7461 = vpack.c.bf16 %v7449, %v7449
    %v7462 = vpack.c.bf16 %v7453, %v7453
    %v7463 = vpack.c.bf16 %v7454, %v7454
    %v7464 = vpack.c.bf16 %v7455, %v7455
    %7465 = vmatpush.bf16.msra.mxu0 %v2997
    %7466 = vmatpush.bf16.msra.mxu0 %v2993
    %7467 = vmatpush.bf16.msra.mxu0 %v2989
    %7468 = vmatpush.bf16.msra.mxu0 %v2985
    %7469 = vmatpush.bf16.msra.mxu0 %v2981
    %7470 = vmatpush.bf16.msra.mxu0 %v2977
    %7471 = vmatpush.bf16.msra.mxu0 %v2973
    %7472 = vmatpush.bf16.msra.mxu0 %v2969
    %7473 = vmatmul.bf16.gmra.mxu0 %v7459
    %v7474 = vpop.f32.mrf.mxu0
    %v7475 = vadd.f32 0.0, %v7474
    %v7476 = vpop.f32.mrf.mxu0
    %7477 = vdwg.mxu0
    %7478 = vmatpush.bf16.msra.mxu0 %v3029
    %7479 = vmatpush.bf16.msra.mxu0 %v3025
    %7480 = vmatpush.bf16.msra.mxu0 %v3021
    %7481 = vmatpush.bf16.msra.mxu0 %v3017
    %7482 = vmatpush.bf16.msra.mxu0 %v3013
    %7483 = vmatpush.bf16.msra.mxu0 %v3009
    %7484 = vmatpush.bf16.msra.mxu0 %v3005
    %7485 = vmatpush.bf16.msra.mxu0 %v3001
    %7486 = vmatmul.bf16.gmra.mxu0 %v7460
    %v7487 = vpop.f32.mrf.mxu0
    %v7488 = vadd.f32 %v7475, %v7487
    %v7489 = vpop.f32.mrf.mxu0
    %7490 = vdwg.mxu0
    %7491 = vmatpush.bf16.msra.mxu0 %v3061
    %7492 = vmatpush.bf16.msra.mxu0 %v3057
    %7493 = vmatpush.bf16.msra.mxu0 %v3053
    %7494 = vmatpush.bf16.msra.mxu0 %v3049
    %7495 = vmatpush.bf16.msra.mxu0 %v3045
    %7496 = vmatpush.bf16.msra.mxu0 %v3041
    %7497 = vmatpush.bf16.msra.mxu0 %v3037
    %7498 = vmatpush.bf16.msra.mxu0 %v3033
    %7499 = vmatmul.bf16.gmra.mxu0 %v7461
    %v7500 = vpop.f32.mrf.mxu0
    %v7501 = vadd.f32 %v7488, %v7500
    %v7502 = vpop.f32.mrf.mxu0
    %7503 = vdwg.mxu0
    %7504 = vmatpush.bf16.msra.mxu0 %v3093
    %7505 = vmatpush.bf16.msra.mxu0 %v3089
    %7506 = vmatpush.bf16.msra.mxu0 %v3085
    %7507 = vmatpush.bf16.msra.mxu0 %v3081
    %7508 = vmatpush.bf16.msra.mxu0 %v3077
    %7509 = vmatpush.bf16.msra.mxu0 %v3073
    %7510 = vmatpush.bf16.msra.mxu0 %v3069
    %7511 = vmatpush.bf16.msra.mxu0 %v3065
    %7512 = vmatmul.bf16.gmra.mxu0 %v7462
    %v7513 = vpop.f32.mrf.mxu0
    %v7514 = vadd.f32 %v7501, %v7513
    %v7515 = vpop.f32.mrf.mxu0
    %7516 = vdwg.mxu0
    %7517 = vmatpush.bf16.msra.mxu0 %v3125
    %7518 = vmatpush.bf16.msra.mxu0 %v3121
    %7519 = vmatpush.bf16.msra.mxu0 %v3117
    %7520 = vmatpush.bf16.msra.mxu0 %v3113
    %7521 = vmatpush.bf16.msra.mxu0 %v3109
    %7522 = vmatpush.bf16.msra.mxu0 %v3105
    %7523 = vmatpush.bf16.msra.mxu0 %v3101
    %7524 = vmatpush.bf16.msra.mxu0 %v3097
    %7525 = vmatmul.bf16.gmra.mxu0 %v7463
    %v7526 = vpop.f32.mrf.mxu0
    %v7527 = vadd.f32 %v7514, %v7526
    %v7528 = vpop.f32.mrf.mxu0
    %7529 = vdwg.mxu0
    %7530 = vmatpush.bf16.msra.mxu0 %v3157
    %7531 = vmatpush.bf16.msra.mxu0 %v3153
    %7532 = vmatpush.bf16.msra.mxu0 %v3149
    %7533 = vmatpush.bf16.msra.mxu0 %v3145
    %7534 = vmatpush.bf16.msra.mxu0 %v3141
    %7535 = vmatpush.bf16.msra.mxu0 %v3137
    %7536 = vmatpush.bf16.msra.mxu0 %v3133
    %7537 = vmatpush.bf16.msra.mxu0 %v3129
    %7538 = vmatmul.bf16.gmra.mxu0 %v7464
    %v7539 = vpop.f32.mrf.mxu0
    %v7540 = vadd.f32 %v7527, %v7539
    %v7541 = vpop.f32.mrf.mxu0
    %7542 = vdwg.mxu0
    %7543 = vmatpush.bf16.msra.mxu0 %v2998
    %7544 = vmatpush.bf16.msra.mxu0 %v2994
    %7545 = vmatpush.bf16.msra.mxu0 %v2990
    %7546 = vmatpush.bf16.msra.mxu0 %v2986
    %7547 = vmatpush.bf16.msra.mxu0 %v2982
    %7548 = vmatpush.bf16.msra.mxu0 %v2978
    %7549 = vmatpush.bf16.msra.mxu0 %v2974
    %7550 = vmatpush.bf16.msra.mxu0 %v2970
    %7551 = vmatmul.bf16.gmra.mxu0 %v7459
    %v7552 = vpop.f32.mrf.mxu0
    %v7553 = vadd.f32 0.0, %v7552
    %v7554 = vpop.f32.mrf.mxu0
    %7555 = vdwg.mxu0
    %7556 = vmatpush.bf16.msra.mxu0 %v3030
    %7557 = vmatpush.bf16.msra.mxu0 %v3026
    %7558 = vmatpush.bf16.msra.mxu0 %v3022
    %7559 = vmatpush.bf16.msra.mxu0 %v3018
    %7560 = vmatpush.bf16.msra.mxu0 %v3014
    %7561 = vmatpush.bf16.msra.mxu0 %v3010
    %7562 = vmatpush.bf16.msra.mxu0 %v3006
    %7563 = vmatpush.bf16.msra.mxu0 %v3002
    %7564 = vmatmul.bf16.gmra.mxu0 %v7460
    %v7565 = vpop.f32.mrf.mxu0
    %v7566 = vadd.f32 %v7553, %v7565
    %v7567 = vpop.f32.mrf.mxu0
    %7568 = vdwg.mxu0
    %7569 = vmatpush.bf16.msra.mxu0 %v3062
    %7570 = vmatpush.bf16.msra.mxu0 %v3058
    %7571 = vmatpush.bf16.msra.mxu0 %v3054
    %7572 = vmatpush.bf16.msra.mxu0 %v3050
    %7573 = vmatpush.bf16.msra.mxu0 %v3046
    %7574 = vmatpush.bf16.msra.mxu0 %v3042
    %7575 = vmatpush.bf16.msra.mxu0 %v3038
    %7576 = vmatpush.bf16.msra.mxu0 %v3034
    %7577 = vmatmul.bf16.gmra.mxu0 %v7461
    %v7578 = vpop.f32.mrf.mxu0
    %v7579 = vadd.f32 %v7566, %v7578
    %v7580 = vpop.f32.mrf.mxu0
    %7581 = vdwg.mxu0
    %7582 = vmatpush.bf16.msra.mxu0 %v3094
    %7583 = vmatpush.bf16.msra.mxu0 %v3090
    %7584 = vmatpush.bf16.msra.mxu0 %v3086
    %7585 = vmatpush.bf16.msra.mxu0 %v3082
    %7586 = vmatpush.bf16.msra.mxu0 %v3078
    %7587 = vmatpush.bf16.msra.mxu0 %v3074
    %7588 = vmatpush.bf16.msra.mxu0 %v3070
    %7589 = vmatpush.bf16.msra.mxu0 %v3066
    %7590 = vmatmul.bf16.gmra.mxu0 %v7462
    %v7591 = vpop.f32.mrf.mxu0
    %v7592 = vadd.f32 %v7579, %v7591
    %v7593 = vpop.f32.mrf.mxu0
    %7594 = vdwg.mxu0
    %7595 = vmatpush.bf16.msra.mxu0 %v3126
    %7596 = vmatpush.bf16.msra.mxu0 %v3122
    %7597 = vmatpush.bf16.msra.mxu0 %v3118
    %7598 = vmatpush.bf16.msra.mxu0 %v3114
    %7599 = vmatpush.bf16.msra.mxu0 %v3110
    %7600 = vmatpush.bf16.msra.mxu0 %v3106
    %7601 = vmatpush.bf16.msra.mxu0 %v3102
    %7602 = vmatpush.bf16.msra.mxu0 %v3098
    %7603 = vmatmul.bf16.gmra.mxu0 %v7463
    %v7604 = vpop.f32.mrf.mxu0
    %v7605 = vadd.f32 %v7592, %v7604
    %v7606 = vpop.f32.mrf.mxu0
    %7607 = vdwg.mxu0
    %7608 = vmatpush.bf16.msra.mxu0 %v3158
    %7609 = vmatpush.bf16.msra.mxu0 %v3154
    %7610 = vmatpush.bf16.msra.mxu0 %v3150
    %7611 = vmatpush.bf16.msra.mxu0 %v3146
    %7612 = vmatpush.bf16.msra.mxu0 %v3142
    %7613 = vmatpush.bf16.msra.mxu0 %v3138
    %7614 = vmatpush.bf16.msra.mxu0 %v3134
    %7615 = vmatpush.bf16.msra.mxu0 %v3130
    %7616 = vmatmul.bf16.gmra.mxu0 %v7464
    %v7617 = vpop.f32.mrf.mxu0
    %v7618 = vadd.f32 %v7605, %v7617
    %v7619 = vpop.f32.mrf.mxu0
    %7620 = vdwg.mxu0
    %7621 = vmatpush.bf16.msra.mxu0 %v2999
    %7622 = vmatpush.bf16.msra.mxu0 %v2995
    %7623 = vmatpush.bf16.msra.mxu0 %v2991
    %7624 = vmatpush.bf16.msra.mxu0 %v2987
    %7625 = vmatpush.bf16.msra.mxu0 %v2983
    %7626 = vmatpush.bf16.msra.mxu0 %v2979
    %7627 = vmatpush.bf16.msra.mxu0 %v2975
    %7628 = vmatpush.bf16.msra.mxu0 %v2971
    %7629 = vmatmul.bf16.gmra.mxu0 %v7459
    %v7630 = vpop.f32.mrf.mxu0
    %v7631 = vadd.f32 0.0, %v7630
    %v7632 = vpop.f32.mrf.mxu0
    %7633 = vdwg.mxu0
    %7634 = vmatpush.bf16.msra.mxu0 %v3031
    %7635 = vmatpush.bf16.msra.mxu0 %v3027
    %7636 = vmatpush.bf16.msra.mxu0 %v3023
    %7637 = vmatpush.bf16.msra.mxu0 %v3019
    %7638 = vmatpush.bf16.msra.mxu0 %v3015
    %7639 = vmatpush.bf16.msra.mxu0 %v3011
    %7640 = vmatpush.bf16.msra.mxu0 %v3007
    %7641 = vmatpush.bf16.msra.mxu0 %v3003
    %7642 = vmatmul.bf16.gmra.mxu0 %v7460
    %v7643 = vpop.f32.mrf.mxu0
    %v7644 = vadd.f32 %v7631, %v7643
    %v7645 = vpop.f32.mrf.mxu0
    %7646 = vdwg.mxu0
    %7647 = vmatpush.bf16.msra.mxu0 %v3063
    %7648 = vmatpush.bf16.msra.mxu0 %v3059
    %7649 = vmatpush.bf16.msra.mxu0 %v3055
    %7650 = vmatpush.bf16.msra.mxu0 %v3051
    %7651 = vmatpush.bf16.msra.mxu0 %v3047
    %7652 = vmatpush.bf16.msra.mxu0 %v3043
    %7653 = vmatpush.bf16.msra.mxu0 %v3039
    %7654 = vmatpush.bf16.msra.mxu0 %v3035
    %7655 = vmatmul.bf16.gmra.mxu0 %v7461
    %v7656 = vpop.f32.mrf.mxu0
    %v7657 = vadd.f32 %v7644, %v7656
    %v7658 = vpop.f32.mrf.mxu0
    %7659 = vdwg.mxu0
    %7660 = vmatpush.bf16.msra.mxu0 %v3095
    %7661 = vmatpush.bf16.msra.mxu0 %v3091
    %7662 = vmatpush.bf16.msra.mxu0 %v3087
    %7663 = vmatpush.bf16.msra.mxu0 %v3083
    %7664 = vmatpush.bf16.msra.mxu0 %v3079
    %7665 = vmatpush.bf16.msra.mxu0 %v3075
    %7666 = vmatpush.bf16.msra.mxu0 %v3071
    %7667 = vmatpush.bf16.msra.mxu0 %v3067
    %7668 = vmatmul.bf16.gmra.mxu0 %v7462
    %v7669 = vpop.f32.mrf.mxu0
    %v7670 = vadd.f32 %v7657, %v7669
    %v7671 = vpop.f32.mrf.mxu0
    %7672 = vdwg.mxu0
    %7673 = vmatpush.bf16.msra.mxu0 %v3127
    %7674 = vmatpush.bf16.msra.mxu0 %v3123
    %7675 = vmatpush.bf16.msra.mxu0 %v3119
    %7676 = vmatpush.bf16.msra.mxu0 %v3115
    %7677 = vmatpush.bf16.msra.mxu0 %v3111
    %7678 = vmatpush.bf16.msra.mxu0 %v3107
    %7679 = vmatpush.bf16.msra.mxu0 %v3103
    %7680 = vmatpush.bf16.msra.mxu0 %v3099
    %7681 = vmatmul.bf16.gmra.mxu0 %v7463
    %v7682 = vpop.f32.mrf.mxu0
    %v7683 = vadd.f32 %v7670, %v7682
    %v7684 = vpop.f32.mrf.mxu0
    %7685 = vdwg.mxu0
    %7686 = vmatpush.bf16.msra.mxu0 %v3159
    %7687 = vmatpush.bf16.msra.mxu0 %v3155
    %7688 = vmatpush.bf16.msra.mxu0 %v3151
    %7689 = vmatpush.bf16.msra.mxu0 %v3147
    %7690 = vmatpush.bf16.msra.mxu0 %v3143
    %7691 = vmatpush.bf16.msra.mxu0 %v3139
    %7692 = vmatpush.bf16.msra.mxu0 %v3135
    %7693 = vmatpush.bf16.msra.mxu0 %v3131
    %7694 = vmatmul.bf16.gmra.mxu0 %v7464
    %v7695 = vpop.f32.mrf.mxu0
    %v7696 = vadd.f32 %v7683, %v7695
    %v7697 = vpop.f32.mrf.mxu0
    %7698 = vdwg.mxu0
    %7699 = vmatpush.bf16.msra.mxu0 %v3000
    %7700 = vmatpush.bf16.msra.mxu0 %v2996
    %7701 = vmatpush.bf16.msra.mxu0 %v2992
    %7702 = vmatpush.bf16.msra.mxu0 %v2988
    %7703 = vmatpush.bf16.msra.mxu0 %v2984
    %7704 = vmatpush.bf16.msra.mxu0 %v2980
    %7705 = vmatpush.bf16.msra.mxu0 %v2976
    %7706 = vmatpush.bf16.msra.mxu0 %v2972
    %7707 = vmatmul.bf16.gmra.mxu0 %v7459
    %v7708 = vpop.f32.mrf.mxu0
    %v7709 = vadd.f32 0.0, %v7708
    %v7710 = vpop.f32.mrf.mxu0
    %7711 = vdwg.mxu0
    %7712 = vmatpush.bf16.msra.mxu0 %v3032
    %7713 = vmatpush.bf16.msra.mxu0 %v3028
    %7714 = vmatpush.bf16.msra.mxu0 %v3024
    %7715 = vmatpush.bf16.msra.mxu0 %v3020
    %7716 = vmatpush.bf16.msra.mxu0 %v3016
    %7717 = vmatpush.bf16.msra.mxu0 %v3012
    %7718 = vmatpush.bf16.msra.mxu0 %v3008
    %7719 = vmatpush.bf16.msra.mxu0 %v3004
    %7720 = vmatmul.bf16.gmra.mxu0 %v7460
    %v7721 = vpop.f32.mrf.mxu0
    %v7722 = vadd.f32 %v7709, %v7721
    %v7723 = vpop.f32.mrf.mxu0
    %7724 = vdwg.mxu0
    %7725 = vmatpush.bf16.msra.mxu0 %v3064
    %7726 = vmatpush.bf16.msra.mxu0 %v3060
    %7727 = vmatpush.bf16.msra.mxu0 %v3056
    %7728 = vmatpush.bf16.msra.mxu0 %v3052
    %7729 = vmatpush.bf16.msra.mxu0 %v3048
    %7730 = vmatpush.bf16.msra.mxu0 %v3044
    %7731 = vmatpush.bf16.msra.mxu0 %v3040
    %7732 = vmatpush.bf16.msra.mxu0 %v3036
    %7733 = vmatmul.bf16.gmra.mxu0 %v7461
    %v7734 = vpop.f32.mrf.mxu0
    %v7735 = vadd.f32 %v7722, %v7734
    %v7736 = vpop.f32.mrf.mxu0
    %7737 = vdwg.mxu0
    %7738 = vmatpush.bf16.msra.mxu0 %v3096
    %7739 = vmatpush.bf16.msra.mxu0 %v3092
    %7740 = vmatpush.bf16.msra.mxu0 %v3088
    %7741 = vmatpush.bf16.msra.mxu0 %v3084
    %7742 = vmatpush.bf16.msra.mxu0 %v3080
    %7743 = vmatpush.bf16.msra.mxu0 %v3076
    %7744 = vmatpush.bf16.msra.mxu0 %v3072
    %7745 = vmatpush.bf16.msra.mxu0 %v3068
    %7746 = vmatmul.bf16.gmra.mxu0 %v7462
    %v7747 = vpop.f32.mrf.mxu0
    %v7748 = vadd.f32 %v7735, %v7747
    %v7749 = vpop.f32.mrf.mxu0
    %7750 = vdwg.mxu0
    %7751 = vmatpush.bf16.msra.mxu0 %v3128
    %7752 = vmatpush.bf16.msra.mxu0 %v3124
    %7753 = vmatpush.bf16.msra.mxu0 %v3120
    %7754 = vmatpush.bf16.msra.mxu0 %v3116
    %7755 = vmatpush.bf16.msra.mxu0 %v3112
    %7756 = vmatpush.bf16.msra.mxu0 %v3108
    %7757 = vmatpush.bf16.msra.mxu0 %v3104
    %7758 = vmatpush.bf16.msra.mxu0 %v3100
    %7759 = vmatmul.bf16.gmra.mxu0 %v7463
    %v7760 = vpop.f32.mrf.mxu0
    %v7761 = vadd.f32 %v7748, %v7760
    %v7762 = vpop.f32.mrf.mxu0
    %7763 = vdwg.mxu0
    %7764 = vmatpush.bf16.msra.mxu0 %v3160
    %7765 = vmatpush.bf16.msra.mxu0 %v3156
    %7766 = vmatpush.bf16.msra.mxu0 %v3152
    %7767 = vmatpush.bf16.msra.mxu0 %v3148
    %7768 = vmatpush.bf16.msra.mxu0 %v3144
    %7769 = vmatpush.bf16.msra.mxu0 %v3140
    %7770 = vmatpush.bf16.msra.mxu0 %v3136
    %7771 = vmatpush.bf16.msra.mxu0 %v3132
    %7772 = vmatmul.bf16.gmra.mxu0 %v7464
    %v7773 = vpop.f32.mrf.mxu0
    %v7774 = vadd.f32 %v7761, %v7773
    %v7775 = vpop.f32.mrf.mxu0
    %7776 = vdwg.mxu0
    %v7777 = vperm.slane %v7018, 0
    %v7778 = vperm.slane %v7019, 0
    %v7779 = vperm.slane %v7020, 0
    %v7780 = vperm.slane %v7021, 0
    %v7785 = vrot.slane %v7778, 4
    %v7786 = vrot.slane %v7780, 4
    %v7787 = vsel %vm946, %v7777, %v7785
    %v7788 = vsel %vm946, %v7779, %v7786
    %v7791 = vmul.f32 %v627, %v7787
    %v7792 = vmul.f32 %v628, %v7788
    %s7793 = scalar_lea.vmem %s14, 16
    %v7794 = vld [vmem:[%s7793] sm:$0xff]
    %7797 = vst [vmem:[#allocation1] ss:$2 sm:$0xff] %v7791
    %s7798 = scalar_lea.vmem [#allocation1], 16
    %7799 = vst [vmem:[%s7798] ss:$2 sm:$0xff] %v7792
    %v7800 = vld.sshfl [vmem:[#allocation1] sm:$0xff pattern:$0x75316420]
    %v7801 = vld.sshfl [vmem:[#allocation1 + $0x8] sm:$0xff pattern:$0x75316420]
    %v7802 = vld.sshfl [vmem:[#allocation1 + $0x10] sm:$0xff pattern:$0x75316420]
    %v7803 = vld.sshfl [vmem:[#allocation1 + $0x18] sm:$0xff pattern:$0x75316420]
    %v7808 = vpack.c.bf16 %v7800, %v7800
    %v7809 = vpack.c.bf16 %v7801, %v7801
    %v7810 = vpack.c.bf16 %v7802, %v7802
    %v7811 = vpack.c.bf16 %v7803, %v7803
    %7812 = vmatpush.bf16.msra.mxu0 %v3905
    %7813 = vmatpush.bf16.msra.mxu0 %v3903
    %7814 = vmatpush.bf16.msra.mxu0 %v3901
    %7815 = vmatpush.bf16.msra.mxu0 %v3899
    %7816 = vmatpush.bf16.msra.mxu0 %v3897
    %7817 = vmatpush.bf16.msra.mxu0 %v3895
    %7818 = vmatpush.bf16.msra.mxu0 %v3893
    %7819 = vmatpush.bf16.msra.mxu0 %v3891
    %7820 = vmatmul.bf16.gmra.mxu0 %v7808
    %v7821 = vpop.f32.mrf.mxu0
    %v7822 = vadd.f32 0.0, %v7821
    %v7823 = vpop.f32.mrf.mxu0
    %7824 = vdwg.mxu0
    %7825 = vmatpush.bf16.msra.mxu0 %v3921
    %7826 = vmatpush.bf16.msra.mxu0 %v3919
    %7827 = vmatpush.bf16.msra.mxu0 %v3917
    %7828 = vmatpush.bf16.msra.mxu0 %v3915
    %7829 = vmatpush.bf16.msra.mxu0 %v3913
    %7830 = vmatpush.bf16.msra.mxu0 %v3911
    %7831 = vmatpush.bf16.msra.mxu0 %v3909
    %7832 = vmatpush.bf16.msra.mxu0 %v3907
    %7833 = vmatmul.bf16.gmra.mxu0 %v7809
    %v7834 = vpop.f32.mrf.mxu0
    %v7835 = vadd.f32 %v7822, %v7834
    %v7836 = vpop.f32.mrf.mxu0
    %7837 = vdwg.mxu0
    %7838 = vmatpush.bf16.msra.mxu0 %v3937
    %7839 = vmatpush.bf16.msra.mxu0 %v3935
    %7840 = vmatpush.bf16.msra.mxu0 %v3933
    %7841 = vmatpush.bf16.msra.mxu0 %v3931
    %7842 = vmatpush.bf16.msra.mxu0 %v3929
    %7843 = vmatpush.bf16.msra.mxu0 %v3927
    %7844 = vmatpush.bf16.msra.mxu0 %v3925
    %7845 = vmatpush.bf16.msra.mxu0 %v3923
    %7846 = vmatmul.bf16.gmra.mxu0 %v7810
    %v7847 = vpop.f32.mrf.mxu0
    %v7848 = vadd.f32 %v7835, %v7847
    %v7849 = vpop.f32.mrf.mxu0
    %7850 = vdwg.mxu0
    %7851 = vmatpush.bf16.msra.mxu0 %v3953
    %7852 = vmatpush.bf16.msra.mxu0 %v3951
    %7853 = vmatpush.bf16.msra.mxu0 %v3949
    %7854 = vmatpush.bf16.msra.mxu0 %v3947
    %7855 = vmatpush.bf16.msra.mxu0 %v3945
    %7856 = vmatpush.bf16.msra.mxu0 %v3943
    %7857 = vmatpush.bf16.msra.mxu0 %v3941
    %7858 = vmatpush.bf16.msra.mxu0 %v3939
    %7859 = vmatmul.bf16.gmra.mxu0 %v7811
    %v7860 = vpop.f32.mrf.mxu0
    %v7861 = vadd.f32 %v7848, %v7860
    %v7862 = vpop.f32.mrf.mxu0
    %7863 = vdwg.mxu0
    %7864 = vmatpush.bf16.msra.mxu0 %v3906
    %7865 = vmatpush.bf16.msra.mxu0 %v3904
    %7866 = vmatpush.bf16.msra.mxu0 %v3902
    %7867 = vmatpush.bf16.msra.mxu0 %v3900
    %7868 = vmatpush.bf16.msra.mxu0 %v3898
    %7869 = vmatpush.bf16.msra.mxu0 %v3896
    %7870 = vmatpush.bf16.msra.mxu0 %v3894
    %7871 = vmatpush.bf16.msra.mxu0 %v3892
    %7872 = vmatmul.bf16.gmra.mxu0 %v7808
    %v7873 = vpop.f32.mrf.mxu0
    %v7874 = vadd.f32 0.0, %v7873
    %v7875 = vpop.f32.mrf.mxu0
    %7876 = vdwg.mxu0
    %7877 = vmatpush.bf16.msra.mxu0 %v3922
    %7878 = vmatpush.bf16.msra.mxu0 %v3920
    %7879 = vmatpush.bf16.msra.mxu0 %v3918
    %7880 = vmatpush.bf16.msra.mxu0 %v3916
    %7881 = vmatpush.bf16.msra.mxu0 %v3914
    %7882 = vmatpush.bf16.msra.mxu0 %v3912
    %7883 = vmatpush.bf16.msra.mxu0 %v3910
    %7884 = vmatpush.bf16.msra.mxu0 %v3908
    %7885 = vmatmul.bf16.gmra.mxu0 %v7809
    %v7886 = vpop.f32.mrf.mxu0
    %v7887 = vadd.f32 %v7874, %v7886
    %v7888 = vpop.f32.mrf.mxu0
    %7889 = vdwg.mxu0
    %7890 = vmatpush.bf16.msra.mxu0 %v3938
    %7891 = vmatpush.bf16.msra.mxu0 %v3936
    %7892 = vmatpush.bf16.msra.mxu0 %v3934
    %7893 = vmatpush.bf16.msra.mxu0 %v3932
    %7894 = vmatpush.bf16.msra.mxu0 %v3930
    %7895 = vmatpush.bf16.msra.mxu0 %v3928
    %7896 = vmatpush.bf16.msra.mxu0 %v3926
    %7897 = vmatpush.bf16.msra.mxu0 %v3924
    %7898 = vmatmul.bf16.gmra.mxu0 %v7810
    %v7899 = vpop.f32.mrf.mxu0
    %v7900 = vadd.f32 %v7887, %v7899
    %v7901 = vpop.f32.mrf.mxu0
    %7902 = vdwg.mxu0
    %7903 = vmatpush.bf16.msra.mxu0 %v3954
    %7904 = vmatpush.bf16.msra.mxu0 %v3952
    %7905 = vmatpush.bf16.msra.mxu0 %v3950
    %7906 = vmatpush.bf16.msra.mxu0 %v3948
    %7907 = vmatpush.bf16.msra.mxu0 %v3946
    %7908 = vmatpush.bf16.msra.mxu0 %v3944
    %7909 = vmatpush.bf16.msra.mxu0 %v3942
    %7910 = vmatpush.bf16.msra.mxu0 %v3940
    %7911 = vmatmul.bf16.gmra.mxu0 %v7811
    %v7912 = vpop.f32.mrf.mxu0
    %v7913 = vadd.f32 %v7900, %v7912
    %v7914 = vpop.f32.mrf.mxu0
    %7915 = vdwg.mxu0
    %v7917 = vrot.slane %v7913, 4
    %v7919 = vsel %vm946, %v7861, %v7917
    %v7921 = vsel %vm649, %v7794, 0
    %7923 = vmatpush.msra.mxu0 0.0
    %7924 = vmatpush.msra.mxu0 0.0
    %7925 = vmatpush.msra.mxu0 0.0
    %7926 = vmatpush.msra.mxu0 0.0
    %7927 = vmatpush.msra.mxu0 0.0
    %7928 = vmatpush.msra.mxu0 0.0
    %7929 = vmatpush.msra.mxu0 0.0
    %7930 = vmatpush.msra.mxu0 0.0
    %7931 = vmatpush.msra.mxu0 0.0
    %7932 = vmatpush.msra.mxu0 0.0
    %7933 = vmatpush.msra.mxu0 0.0
    %7934 = vmatpush.msra.mxu0 0.0
    %7935 = vmatpush.msra.mxu0 0.0
    %7936 = vmatpush.msra.mxu0 0.0
    %7937 = vmatpush.msra.mxu0 0.0
    %7938 = vmatpush.msra.mxu0 %v7919
    %7939 = vmatmul.f32.gmra.mxu0 %v7921
    %v7940 = vpop.f32.mrf.mxu0
    %v7941 = vadd.f32 0.0, %v7940
    %7942 = vdwg.mxu0
    %v7943 = vmul.f32 %v7941, %v7941
    %7944 = vadd.xlane.f32.xlu0 %v7941
    %v7945 = vpop.xlane.xlu0 %7944
    %7946 = vadd.xlane.f32.xlu0 %v7943
    %v7947 = vpop.xlane.xlu0 %7946
    %v7948 = vmul.f32 %v7945, 0.0125
    %v7949 = vmul.f32 %v7947, 0.0125
    %v7950 = vmul.f32 %v7948, %v7948
    %v7951 = vsub.f32 %v7949, %v7950
    %v7952 = vsub.f32 %v7941, %v7948
    %v7953 = vadd.f32 %v7951, 1e-05
    %v7954 = vrsqrt.pop %v7953
    %v7955 = vmul.f32 %v7954, %v7953
    %v7956 = vmul.f32 %v7955, %v7954
    %v7957 = vmul.f32 0.5, %v7956
    %v7958 = vsub.f32 1.5, %v7957
    %v7959 = vmul.f32 %v7954, %v7958
    %vm7960 = vweird.f32 %v7953
    %vm7961 = vweird.f32 %v7954
    %vm7962 = vmor %vm7960, %vm7961
    %v7963 = vsel %vm7962, %v7954, %v7959
    %v7964 = vmul.f32 %v7952, %v7963
    %v7965 = vmax.f32 %v7964, 0.0
    %v7967 = vrot.slane %v7965, 4
    %v7969 = vpack.c.bf16 %v7965, %v7965
    %v7970 = vpack.c.bf16 %v7967, %v7967
    %7971 = vmatpush.bf16.msra.mxu0 %v4398
    %7972 = vmatpush.bf16.msra.mxu0 %v4394
    %7973 = vmatpush.bf16.msra.mxu0 %v4390
    %7974 = vmatpush.bf16.msra.mxu0 %v4386
    %7975 = vmatpush.bf16.msra.mxu0 %v4382
    %7976 = vmatpush.bf16.msra.mxu0 %v4378
    %7977 = vmatpush.bf16.msra.mxu0 %v4374
    %7978 = vmatpush.bf16.msra.mxu0 %v4370
    %7979 = vmatmul.bf16.gmra.mxu0 %v7969
    %v7980 = vpop.f32.mrf.mxu0
    %v7981 = vadd.f32 0.0, %v7980
    %v7982 = vpop.f32.mrf.mxu0
    %7983 = vdwg.mxu0
    %7984 = vmatpush.bf16.msra.mxu0 %v4430
    %7985 = vmatpush.bf16.msra.mxu0 %v4426
    %7986 = vmatpush.bf16.msra.mxu0 %v4422
    %7987 = vmatpush.bf16.msra.mxu0 %v4418
    %7988 = vmatpush.bf16.msra.mxu0 %v4414
    %7989 = vmatpush.bf16.msra.mxu0 %v4410
    %7990 = vmatpush.bf16.msra.mxu0 %v4406
    %7991 = vmatpush.bf16.msra.mxu0 %v4402
    %7992 = vmatmul.bf16.gmra.mxu0 %v7970
    %v7993 = vpop.f32.mrf.mxu0
    %v7994 = vadd.f32 %v7981, %v7993
    %v7995 = vpop.f32.mrf.mxu0
    %7996 = vdwg.mxu0
    %7997 = vmatpush.bf16.msra.mxu0 %v4399
    %7998 = vmatpush.bf16.msra.mxu0 %v4395
    %7999 = vmatpush.bf16.msra.mxu0 %v4391
    %8000 = vmatpush.bf16.msra.mxu0 %v4387
    %8001 = vmatpush.bf16.msra.mxu0 %v4383
    %8002 = vmatpush.bf16.msra.mxu0 %v4379
    %8003 = vmatpush.bf16.msra.mxu0 %v4375
    %8004 = vmatpush.bf16.msra.mxu0 %v4371
    %8005 = vmatmul.bf16.gmra.mxu0 %v7969
    %v8006 = vpop.f32.mrf.mxu0
    %v8007 = vadd.f32 0.0, %v8006
    %v8008 = vpop.f32.mrf.mxu0
    %8009 = vdwg.mxu0
    %8010 = vmatpush.bf16.msra.mxu0 %v4431
    %8011 = vmatpush.bf16.msra.mxu0 %v4427
    %8012 = vmatpush.bf16.msra.mxu0 %v4423
    %8013 = vmatpush.bf16.msra.mxu0 %v4419
    %8014 = vmatpush.bf16.msra.mxu0 %v4415
    %8015 = vmatpush.bf16.msra.mxu0 %v4411
    %8016 = vmatpush.bf16.msra.mxu0 %v4407
    %8017 = vmatpush.bf16.msra.mxu0 %v4403
    %8018 = vmatmul.bf16.gmra.mxu0 %v7970
    %v8019 = vpop.f32.mrf.mxu0
    %v8020 = vadd.f32 %v8007, %v8019
    %v8021 = vpop.f32.mrf.mxu0
    %8022 = vdwg.mxu0
    %8023 = vmatpush.bf16.msra.mxu0 %v4400
    %8024 = vmatpush.bf16.msra.mxu0 %v4396
    %8025 = vmatpush.bf16.msra.mxu0 %v4392
    %8026 = vmatpush.bf16.msra.mxu0 %v4388
    %8027 = vmatpush.bf16.msra.mxu0 %v4384
    %8028 = vmatpush.bf16.msra.mxu0 %v4380
    %8029 = vmatpush.bf16.msra.mxu0 %v4376
    %8030 = vmatpush.bf16.msra.mxu0 %v4372
    %8031 = vmatmul.bf16.gmra.mxu0 %v7969
    %v8032 = vpop.f32.mrf.mxu0
    %v8033 = vadd.f32 0.0, %v8032
    %v8034 = vpop.f32.mrf.mxu0
    %8035 = vdwg.mxu0
    %8036 = vmatpush.bf16.msra.mxu0 %v4432
    %8037 = vmatpush.bf16.msra.mxu0 %v4428
    %8038 = vmatpush.bf16.msra.mxu0 %v4424
    %8039 = vmatpush.bf16.msra.mxu0 %v4420
    %8040 = vmatpush.bf16.msra.mxu0 %v4416
    %8041 = vmatpush.bf16.msra.mxu0 %v4412
    %8042 = vmatpush.bf16.msra.mxu0 %v4408
    %8043 = vmatpush.bf16.msra.mxu0 %v4404
    %8044 = vmatmul.bf16.gmra.mxu0 %v7970
    %v8045 = vpop.f32.mrf.mxu0
    %v8046 = vadd.f32 %v8033, %v8045
    %v8047 = vpop.f32.mrf.mxu0
    %8048 = vdwg.mxu0
    %8049 = vmatpush.bf16.msra.mxu0 %v4401
    %8050 = vmatpush.bf16.msra.mxu0 %v4397
    %8051 = vmatpush.bf16.msra.mxu0 %v4393
    %8052 = vmatpush.bf16.msra.mxu0 %v4389
    %8053 = vmatpush.bf16.msra.mxu0 %v4385
    %8054 = vmatpush.bf16.msra.mxu0 %v4381
    %8055 = vmatpush.bf16.msra.mxu0 %v4377
    %8056 = vmatpush.bf16.msra.mxu0 %v4373
    %8057 = vmatmul.bf16.gmra.mxu0 %v7969
    %v8058 = vpop.f32.mrf.mxu0
    %v8059 = vadd.f32 0.0, %v8058
    %v8060 = vpop.f32.mrf.mxu0
    %8061 = vdwg.mxu0
    %8062 = vmatpush.bf16.msra.mxu0 %v4433
    %8063 = vmatpush.bf16.msra.mxu0 %v4429
    %8064 = vmatpush.bf16.msra.mxu0 %v4425
    %8065 = vmatpush.bf16.msra.mxu0 %v4421
    %8066 = vmatpush.bf16.msra.mxu0 %v4417
    %8067 = vmatpush.bf16.msra.mxu0 %v4413
    %8068 = vmatpush.bf16.msra.mxu0 %v4409
    %8069 = vmatpush.bf16.msra.mxu0 %v4405
    %8070 = vmatmul.bf16.gmra.mxu0 %v7970
    %v8071 = vpop.f32.mrf.mxu0
    %v8072 = vadd.f32 %v8059, %v8071
    %v8073 = vpop.f32.mrf.mxu0
    %8074 = vdwg.mxu0
    %s8075 = scalar_lea.vmem %s12, 16
    %v8076 = vld [vmem:[%s8075] sm:$0xff]
    %v8077 = vadd.f32 %v7018, %v7540
    %v8078 = vadd.f32 %v7019, %v7618
    %v8079 = vadd.f32 %v7020, %v7696
    %v8080 = vadd.f32 %v7021, %v7774
    %v8081 = vadd.f32 %v8077, %v7994
    %v8082 = vadd.f32 %v8078, %v8020
    %v8083 = vadd.f32 %v8079, %v8046
    %v8084 = vadd.f32 %v8080, %v8072
    %v8086 = vsel %vm4611, %v8076, 0
    %v8089 = vsel %vm946, %v8081, 0
    %v8092 = vsel %vm946, %v8082, 0
    %v8095 = vsel %vm946, %v8083, 0
    %v8098 = vsel %vm946, %v8084, 0
    %8100 = vmatpush.msra.mxu0 0.0
    %8101 = vmatpush.msra.mxu0 0.0
    %8102 = vmatpush.msra.mxu0 0.0
    %8103 = vmatpush.msra.mxu0 0.0
    %8104 = vmatpush.msra.mxu0 0.0
    %8105 = vmatpush.msra.mxu0 0.0
    %8106 = vmatpush.msra.mxu0 0.0
    %8107 = vmatpush.msra.mxu0 0.0
    %8108 = vmatpush.msra.mxu0 0.0
    %8109 = vmatpush.msra.mxu0 0.0
    %8110 = vmatpush.msra.mxu0 0.0
    %8111 = vmatpush.msra.mxu0 0.0
    %8112 = vmatpush.msra.mxu0 0.0
    %8113 = vmatpush.msra.mxu0 0.0
    %8114 = vmatpush.msra.mxu0 0.0
    %8115 = vmatpush.msra.mxu0 %v8089
    %8116 = vmatmul.f32.gmra.mxu0 %v8086
    %v8117 = vpop.f32.mrf.mxu0
    %v8118 = vadd.f32 0.0, %v8117
    %8119 = vdwg.mxu0
    %8120 = vmatpush.msra.mxu0 0.0
    %8121 = vmatpush.msra.mxu0 0.0
    %8122 = vmatpush.msra.mxu0 0.0
    %8123 = vmatpush.msra.mxu0 0.0
    %8124 = vmatpush.msra.mxu0 0.0
    %8125 = vmatpush.msra.mxu0 0.0
    %8126 = vmatpush.msra.mxu0 0.0
    %8127 = vmatpush.msra.mxu0 0.0
    %8128 = vmatpush.msra.mxu0 0.0
    %8129 = vmatpush.msra.mxu0 0.0
    %8130 = vmatpush.msra.mxu0 0.0
    %8131 = vmatpush.msra.mxu0 0.0
    %8132 = vmatpush.msra.mxu0 0.0
    %8133 = vmatpush.msra.mxu0 0.0
    %8134 = vmatpush.msra.mxu0 0.0
    %8135 = vmatpush.msra.mxu0 %v8092
    %8136 = vmatmul.f32.gmra.mxu0 %v8086
    %v8137 = vpop.f32.mrf.mxu0
    %v8138 = vadd.f32 0.0, %v8137
    %8139 = vdwg.mxu0
    %8140 = vmatpush.msra.mxu0 0.0
    %8141 = vmatpush.msra.mxu0 0.0
    %8142 = vmatpush.msra.mxu0 0.0
    %8143 = vmatpush.msra.mxu0 0.0
    %8144 = vmatpush.msra.mxu0 0.0
    %8145 = vmatpush.msra.mxu0 0.0
    %8146 = vmatpush.msra.mxu0 0.0
    %8147 = vmatpush.msra.mxu0 0.0
    %8148 = vmatpush.msra.mxu0 0.0
    %8149 = vmatpush.msra.mxu0 0.0
    %8150 = vmatpush.msra.mxu0 0.0
    %8151 = vmatpush.msra.mxu0 0.0
    %8152 = vmatpush.msra.mxu0 0.0
    %8153 = vmatpush.msra.mxu0 0.0
    %8154 = vmatpush.msra.mxu0 0.0
    %8155 = vmatpush.msra.mxu0 %v8095
    %8156 = vmatmul.f32.gmra.mxu0 %v8086
    %v8157 = vpop.f32.mrf.mxu0
    %v8158 = vadd.f32 0.0, %v8157
    %8159 = vdwg.mxu0
    %8160 = vmatpush.msra.mxu0 0.0
    %8161 = vmatpush.msra.mxu0 0.0
    %8162 = vmatpush.msra.mxu0 0.0
    %8163 = vmatpush.msra.mxu0 0.0
    %8164 = vmatpush.msra.mxu0 0.0
    %8165 = vmatpush.msra.mxu0 0.0
    %8166 = vmatpush.msra.mxu0 0.0
    %8167 = vmatpush.msra.mxu0 0.0
    %8168 = vmatpush.msra.mxu0 0.0
    %8169 = vmatpush.msra.mxu0 0.0
    %8170 = vmatpush.msra.mxu0 0.0
    %8171 = vmatpush.msra.mxu0 0.0
    %8172 = vmatpush.msra.mxu0 0.0
    %8173 = vmatpush.msra.mxu0 0.0
    %8174 = vmatpush.msra.mxu0 0.0
    %8175 = vmatpush.msra.mxu0 %v8098
    %8176 = vmatmul.f32.gmra.mxu0 %v8086
    %v8177 = vpop.f32.mrf.mxu0
    %v8178 = vadd.f32 0.0, %v8177
    %8179 = vdwg.mxu0
    %v8180 = vadd.f32 %v6806, %v8118
    %v8181 = vadd.f32 %v6829, %v8138
    %v8182 = vadd.f32 %v6852, %v8158
    %v8183 = vadd.f32 %v6875, %v8178
    %v8184 = vmul.f32 %v6803, %v6803
    %v8185 = vmul.f32 %v6826, %v6826
    %v8186 = vmul.f32 %v6849, %v6849
    %v8187 = vmul.f32 %v6872, %v6872
    %v8188 = vmul.f32 %v8180, %v8180
    %v8189 = vmul.f32 %v8181, %v8181
    %v8190 = vmul.f32 %v8182, %v8182
    %v8191 = vmul.f32 %v8183, %v8183
    %v8192 = vadd.f32 %v6803, %v6826
    %v8193 = vadd.f32 %v8192, %v6849
    %v8194 = vadd.f32 %v8193, %v6872
    %8195 = vadd.xlane.f32.xlu0 %v8194
    %v8196 = vpop.xlane.xlu0 %8195
    %v8197 = vadd.f32 %v8180, %v8181
    %v8198 = vadd.f32 %v8197, %v8182
    %v8199 = vadd.f32 %v8198, %v8183
    %8200 = vadd.xlane.f32.xlu0 %v8199
    %v8201 = vpop.xlane.xlu0 %8200
    %v8202 = vadd.f32 %v8184, %v8185
    %v8203 = vadd.f32 %v8202, %v8186
    %v8204 = vadd.f32 %v8203, %v8187
    %8205 = vadd.xlane.f32.xlu0 %v8204
    %v8206 = vpop.xlane.xlu0 %8205
    %v8207 = vadd.f32 %v8188, %v8189
    %v8208 = vadd.f32 %v8207, %v8190
    %v8209 = vadd.f32 %v8208, %v8191
    %8210 = vadd.xlane.f32.xlu0 %v8209
    %v8211 = vpop.xlane.xlu0 %8210
    %v8212 = vmul.f32 %v8196, 0.001953125
    %v8213 = vmul.f32 %v8201, 0.001953125
    %v8214 = vmul.f32 %v8206, 0.001953125
    %v8215 = vmul.f32 %v8211, 0.001953125
    %v8216 = vmul.f32 %v8212, %v8212
    %v8217 = vmul.f32 %v8213, %v8213
    %v8218 = vsub.f32 %v8214, %v8216
    %v8219 = vsub.f32 %v8215, %v8217
    %v8220 = vsub.f32 %v6803, %v8212
    %v8221 = vsub.f32 %v6826, %v8212
    %v8222 = vsub.f32 %v6849, %v8212
    %v8223 = vsub.f32 %v6872, %v8212
    %v8224 = vsub.f32 %v8180, %v8213
    %v8225 = vsub.f32 %v8181, %v8213
    %v8226 = vsub.f32 %v8182, %v8213
    %v8227 = vsub.f32 %v8183, %v8213
    %v8228 = vadd.f32 %v8218, 1e-05
    %v8229 = vadd.f32 %v8219, 1e-05
    %v8230 = vrsqrt.pop %v8228
    %v8231 = vmul.f32 %v8230, %v8228
    %v8232 = vmul.f32 %v8231, %v8230
    %v8233 = vmul.f32 0.5, %v8232
    %v8234 = vsub.f32 1.5, %v8233
    %v8235 = vmul.f32 %v8230, %v8234
    %vm8236 = vweird.f32 %v8228
    %vm8237 = vweird.f32 %v8230
    %vm8238 = vmor %vm8236, %vm8237
    %v8239 = vsel %vm8238, %v8230, %v8235
    %v8240 = vrsqrt.pop %v8229
    %v8241 = vmul.f32 %v8240, %v8229
    %v8242 = vmul.f32 %v8241, %v8240
    %v8243 = vmul.f32 0.5, %v8242
    %v8244 = vsub.f32 1.5, %v8243
    %v8245 = vmul.f32 %v8240, %v8244
    %vm8246 = vweird.f32 %v8229
    %vm8247 = vweird.f32 %v8240
    %vm8248 = vmor %vm8246, %vm8247
    %v8249 = vsel %vm8248, %v8240, %v8245
    %v8250 = vmul.f32 %v8220, %v8239
    %v8251 = vmul.f32 %v8221, %v8239
    %v8252 = vmul.f32 %v8222, %v8239
    %v8253 = vmul.f32 %v8223, %v8239
    %v8254 = vmul.f32 %v8224, %v8249
    %v8255 = vmul.f32 %v8225, %v8249
    %v8256 = vmul.f32 %v8226, %v8249
    %v8257 = vmul.f32 %v8227, %v8249
    %v8258 = vmax.f32 %v8250, 0.0
    %v8259 = vmax.f32 %v8251, 0.0
    %v8260 = vmax.f32 %v8252, 0.0
    %v8261 = vmax.f32 %v8253, 0.0
    %v8262 = vmax.f32 %v8254, 0.0
    %v8263 = vmax.f32 %v8255, 0.0
    %v8264 = vmax.f32 %v8256, 0.0
    %v8265 = vmax.f32 %v8257, 0.0
    %v8266 = vadd.f32 %v8258, %v637
    %v8267 = vadd.f32 %v8259, %v638
    %v8268 = vadd.f32 %v8260, %v639
    %v8269 = vadd.f32 %v8261, %v640
    %v8270 = vmax.f32 %v8266, 0.0
    %v8271 = vmax.f32 %v8267, 0.0
    %v8272 = vmax.f32 %v8268, 0.0
    %v8273 = vmax.f32 %v8269, 0.0
    %8274 = vst [vmem:[%s15] sm:$0xff] %v8270
    %8275 = vst [vmem:[%s15 + $0x8] sm:$0xff] %v8271
    %8276 = vst [vmem:[%s15 + $0x10] sm:$0xff] %v8272
    %8277 = vst [vmem:[%s15 + $0x18] sm:$0xff] %v8273
    %v8278 = vadd.f32 %v8262, %v641
    %v8279 = vadd.f32 %v8263, %v642
    %v8280 = vadd.f32 %v8264, %v643
    %v8281 = vadd.f32 %v8265, %v644
    %v8282 = vmax.f32 %v8278, 0.0
    %v8283 = vmax.f32 %v8279, 0.0
    %v8284 = vmax.f32 %v8280, 0.0
    %v8285 = vmax.f32 %v8281, 0.0
    %8286 = vst [vmem:[%s16] sm:$0xff] %v8282
    %8287 = vst [vmem:[%s16 + $0x8] sm:$0xff] %v8283
    %8288 = vst [vmem:[%s16 + $0x10] sm:$0xff] %v8284
    %8289 = vst [vmem:[%s16 + $0x18] sm:$0xff] %v8285
    // Predicated region
    $region78: #{ffc_block.1} parent=1 // pred_check
      _
    $region79: #{ffc_block.1} parent=1 // pred_check_branch
      %8291 = sbr.rel (0) target = $region81
    $region80: #{ffc_block.1} parent=1 // pred_region
      _
    $region81: #{ffc_block.1} parent=1 // pred_fallthru
      _
    // Predicated region
    $region82: #{ffc_block.1} parent=1 // pred_check
      _
    $region83: #{ffc_block.1} parent=1 // pred_check_branch
      %8293 = sbr.rel (0) target = $region85
    $region84: #{ffc_block.1} parent=1 // pred_region
      _
    $region85: #{ffc_block.1} parent=1 // pred_fallthru
      _
    // Predicated region
    $region86: #{ffc_block.1} parent=1 // pred_check
      _
    $region87: #{ffc_block.1} parent=1 // pred_check_branch
      %8295 = sbr.rel (0) target = $region89
    $region88: #{ffc_block.1} parent=1 // pred_region
      _
    $region89: #{ffc_block.1} parent=1 // pred_fallthru
      _
    // Predicated region
    $region90: #{ffc_block.1} parent=1 // pred_check
      _
    $region91: #{ffc_block.1} parent=1 // pred_check_branch
      %8297 = sbr.rel (0) target = $region93
    $region92: #{ffc_block.1} parent=1 // pred_region
      _
    $region93: #{ffc_block.1} parent=1 // pred_fallthru
      _
    %8298 = vsyncpa [#allocation3], 1
    %8299 = vsyncpa [#allocation5], 1
    %8300 = vsyncpa [#allocation8], 1

</llo_original>
